<compile_context>
chip_gen: v7x
topology: tpu7x:2x2x1
jax: 0.10.0
libtpu: 0.0.40
codegen_flags: <defaults>
</compile_context>

<pallas_src>
import functools

import jax
import jax.numpy as jnp
from jax.experimental import pallas as pl
from jax.experimental.pallas import tpu as pltpu

BN_EPS = 1e-5
LEAKY_SLOPE = 0.2
NEG_BIG = -1e30          # mask value for already-selected knn entries (avoid -inf)


# ------------------------------ Pallas kernel ------------------------------- #
def gan_kernel(x_ref, vecs_ref, qkvb_ref, qkvw_ref, ww_ref, cw_ref, out_ref, *, k):
    """Full Graph_Attention_Network forward for `bt` batch elements, all in VMEM."""
    f32, bf16 = jnp.float32, jnp.bfloat16
    bt, n, c = x_ref.shape
    rows = bt * n
    inter = ww_ref.shape[0]

    vecs = vecs_ref[...]                              # (3 + L, C) packed per-channel vectors
    tfs, tft, w_b = vecs[0:1], vecs[1:2], vecs[2:3]

    # ---------------- Transformer: pointwise parts on all bt*N rows at once -------------
    xf = x_ref[...].reshape(rows, c)                                   # (rows, C) f32
    feat = jnp.maximum(xf * tfs + tft, 0.0)                            # folded BN1d + ReLU
    # fused theta/phi/g projection: one (rows, C) @ (C, 3*inter) bf16 MXU matmul, f32 accum
    qkv = jnp.dot(feat.astype(bf16), qkvw_ref[...],
                  preferred_element_type=f32) + qkvb_ref[...]
    theta = qkv[:, :inter].reshape(bt, n, inter).astype(bf16)
    phi = qkv[:, inter:2 * inter].reshape(bt, n, inter).astype(bf16)
    g_x = qkv[:, 2 * inter:].reshape(bt, n, inter).astype(bf16)
    attn = jnp.einsum('bni,bmi->bnm', theta, phi, preferred_element_type=f32)   # (bt, N, N)
    attn = attn - jnp.max(attn, axis=-1, keepdims=True)
    p = jnp.exp(attn)
    p = p * pl.reciprocal(jnp.sum(p, axis=-1, keepdims=True), approx=True)      # EUP divide
    y = jnp.einsum('bnm,bmi->bni', p.astype(bf16), g_x, preferred_element_type=f32)
    w_y = jnp.dot(y.reshape(rows, inter).astype(bf16), ww_ref[...],
                  preferred_element_type=f32) + w_b
    h = xf + w_y                                                       # residual, (rows, C) f32

    # ---------------- 3 x (knn + edge conv + max over k), fused ----------------
    col = jax.lax.broadcasted_iota(jnp.int32, (bt, n, n), 2)           # hoisted out of loops
    ones_h = jnp.ones((bt, n, c), f32)                                 # for the f32 norm matmul
    for l in range(cw_ref.shape[0]):
        # [h_j - h_i, h_i] @ [Wa; Wb] == h_j @ Wa + h_i @ (Wb - Wa); BN scale folded into the
        # (C, 2C) weight, BN shift added to the center term.  One wide matmul -> ps | qb.
        pq = jnp.dot(h.astype(bf16), cw_ref[l], preferred_element_type=f32)      # (rows, 2C)
        ps3 = pq[:, :c].reshape(bt, n, c).astype(bf16)   # neighbor term, cast to bf16 once
        qb = pq[:, c:] + vecs[3 + l:4 + l]               # center term + BN shift, (rows, C)
        h3 = h.reshape(bt, n, c)
        h3b = h3.astype(bf16)
        # knn score: -||h_i - h_j||^2 + const_i == 2 h_i.h_j - ||h_j||^2
        inner = jnp.einsum('bic,bjc->bij', h3b, h3b, preferred_element_type=f32)  # bf16 MXU
        # ||h_j||^2 in f32, computed directly from h (decoupled from the bf16 inner product);
        # the ones-contraction produces the broadcast (bt, N, N) in-place, no relayout needed.
        sq_j = jnp.einsum('bic,bjc->bij', ones_h, h3 * h3, preferred_element_type=f32)
        score = 2.0 * inner - sq_j

        def knn_body(_, carry, ps3=ps3):
            score, acc = carry
            mx = jnp.max(score, axis=-1, keepdims=True)
            best = jnp.min(jnp.where(score == mx, col, n), axis=-1, keepdims=True)
            sel = col == best                            # first-argmax one-hot, (bt, N, N)
            nb = jnp.einsum('bij,bjc->bic', sel.astype(bf16), ps3,
                            preferred_element_type=f32)  # gather ps[best] on the MXU (bf16)
            acc = jnp.maximum(acc, nb)
            score = jnp.where(sel, NEG_BIG, score)
            return score, acc

        _, acc = jax.lax.fori_loop(
            0, k, knn_body, (score, jnp.full((bt, n, c), NEG_BIG, f32)), unroll=True)
        # + qb and LeakyReLU hoisted out of the k loop (both monotone per channel).
        v = acc.reshape(rows, c) + qb
        h = jnp.where(v > 0.0, v, LEAKY_SLOPE * v)

    out_ref[...] = h.reshape(bt, n, c)


# -------------------------------- wrappers ----------------------------------- #
def _fold_bn(bn):
    s = bn['g'] * jax.lax.rsqrt(bn['v'] + BN_EPS)
    return s, bn['b'] - bn['m'] * s


def _pick_bt(b, n):
    # Fold batch into the MXU row dimension: largest divisor of B with bt*N <= 256 rows
    # (v6e/v7x MXU height).  This also bounds the (bt, N, N) attention / knn temporaries,
    # which must be re-budgeted against v7x's 64 MiB VMEM when scaling N.
    bt = 1
    for d in range(1, b + 1):
        if b % d == 0 and d * n <= 256:
            bt = d
    return bt


def graph_attention_network(prototype_block, params, k=10, bt=None):
    B, N, C = prototype_block.shape
    assert k <= N, "k must be <= number of points"
    if bt is None:
        bt = _pick_bt(B, N)
    assert B % bt == 0
    # NOTE(v7x): prefer B // bt to be a multiple of 2 when B allows so both TensorCores get
    # grid steps; pass bt explicitly to trade MXU row-occupancy vs. core balance.

    tf = params['tf']
    tfs, tft = _fold_bn(tf['bn'])
    # fuse the three projections into one (C, 3*inter) weight; matmul weights in bf16
    qkv_w = jnp.concatenate([tf['theta_w'], tf['phi_w'], tf['g_w']], axis=1).astype(jnp.bfloat16)
    qkv_b = jnp.concatenate([tf['theta_b'], tf['phi_b'], tf['g_b']], axis=1)
    w_w = tf['W_w'].astype(jnp.bfloat16)

    cw_list, ct_list = [], []
    for conv in params['convs']:
        w = conv['w']                  # (2C, C): rows [:C] act on (h_j - h_i), rows [C:] on h_i
        s, t = _fold_bn(conv['bn'])
        # fold BN scale into the weights and merge the two matmuls into one (C, 2C) weight
        cw_list.append(jnp.concatenate([w[:C] * s, (w[C:] - w[:C]) * s], axis=1))
        ct_list.append(t)
    cw = jnp.stack(cw_list).astype(jnp.bfloat16)                       # (L, C, 2C)
    # pack all tiny per-channel vectors into a single operand: [tfs, tft, W_b, ct_0..ct_{L-1}]
    vecs = jnp.concatenate([tfs, tft, tf['W_b']] + ct_list, axis=0)    # (3+L, C) f32

    args = (prototype_block, vecs, qkv_b, qkv_w, w_w, cw)
    in_specs = ([pl.BlockSpec((bt, N, C), lambda b: (b, 0, 0))]
                + [pl.BlockSpec(a.shape, lambda b, _nd=a.ndim: (0,) * _nd) for a in args[1:]])
    # Output kept (B, N, C): at C=32 the masked partial stores cost ~nothing; flattening to a
    # lane-dense (B, N*C) slab would need an in-kernel sublane->lane relayout that outweighs it.
    return pl.pallas_call(
        functools.partial(gan_kernel, k=k),
        out_shape=jax.ShapeDtypeStruct((B, N, C), jnp.float32),
        grid=(B // bt,),
        in_specs=in_specs,
        out_specs=pl.BlockSpec((bt, N, C), lambda b: (b, 0, 0)),
        compiler_params=pltpu.CompilerParams(
            dimension_semantics=("parallel",),          # grid steps shard across TCs (megacore)
            vmem_limit_bytes=32 * 1024 * 1024),         # safe on v5e/v6e (128 MiB) and v7x (64 MiB)
    )(*args)


# ------------------------------ parameters ----------------------------------- #
def init_params(key, c):
    inter = c // 2

    def uni(kk, shape, fan_in):
        bound = 1.0 / (fan_in ** 0.5)
        return jax.random.uniform(kk, shape, jnp.float32, -bound, bound)

    def bn(cc):
        return dict(g=jnp.ones((1, cc), jnp.float32), b=jnp.zeros((1, cc), jnp.float32),
                    m=jnp.zeros((1, cc), jnp.float32), v=jnp.ones((1, cc), jnp.float32))

    ks = jax.random.split(key, 11)
    tf = dict(
        bn=bn(c),
        theta_w=uni(ks[0], (c, inter), c), theta_b=uni(ks[1], (1, inter), c),
        phi_w=uni(ks[2], (c, inter), c), phi_b=uni(ks[3], (1, inter), c),
        g_w=uni(ks[4], (c, inter), c), g_b=uni(ks[5], (1, inter), c),
        W_w=uni(ks[6], (inter, c), inter), W_b=uni(ks[7], (1, c), inter),
    )
    convs = [dict(w=uni(ks[8 + i], (2 * c, c), 2 * c), bn=bn(c)) for i in range(3)]
    # TODO(synk): self.fc (Linear(C,1)) is defined in __init__ but never used in forward; omitted.
    return dict(tf=tf, convs=convs)


if __name__ == "__main__":
    B, N, C, K = 2, 16, 32, 10
    key = jax.random.PRNGKey(0)
    kx, kp = jax.random.split(key)
    x = jax.random.normal(kx, (B, N, C), dtype=jnp.float32)     # prototype_block (B, N, C)
    params = init_params(kp, C)

    fn = jax.jit(functools.partial(graph_attention_network, k=K))
    out = fn(x, params)
    jax.block_until_ready(out)
    assert out.shape == (B, N, C) and out.dtype == jnp.float32
    print("KERNEL_OK")
</pallas_src>

<mosaic_0001>
module attributes {stable_mosaic.version = 11 : i64} {
  func.func @gan_kernel(%arg0: i32, %arg1: memref<2x16x32xf32, #tpu.memory_space<vmem>>, %arg2: memref<6x32xf32, #tpu.memory_space<vmem>>, %arg3: memref<1x48xf32, #tpu.memory_space<vmem>>, %arg4: memref<32x48xbf16, #tpu.memory_space<vmem>>, %arg5: memref<16x32xbf16, #tpu.memory_space<vmem>>, %arg6: memref<3x32x64xbf16, #tpu.memory_space<vmem>>, %arg7: memref<2x16x32xf32, #tpu.memory_space<vmem>>) attributes {dimension_semantics = [#tpu.dimension_semantics<parallel>], iteration_bounds = array<i64: 1>, scalar_prefetch = 0 : i64, scratch_operands = 0 : i64, tpu.core_type = #tpu.core_type<tc>, window_params = [{transform_indices = @transform_0, window_bounds = array<i64: 2, 16, 32>}, {pipeline_mode = #tpu.pipeline_mode<synchronous>, transform_indices = @transform_1, window_bounds = array<i64: 6, 32>}, {pipeline_mode = #tpu.pipeline_mode<synchronous>, transform_indices = @transform_2, window_bounds = array<i64: 1, 48>}, {pipeline_mode = #tpu.pipeline_mode<synchronous>, transform_indices = @transform_3, window_bounds = array<i64: 32, 48>}, {pipeline_mode = #tpu.pipeline_mode<synchronous>, transform_indices = @transform_4, window_bounds = array<i64: 16, 32>}, {pipeline_mode = #tpu.pipeline_mode<synchronous>, transform_indices = @transform_5, window_bounds = array<i64: 3, 32, 64>}, {transform_indices = @transform_6, window_bounds = array<i64: 2, 16, 32>}]} {
    %c0 = arith.constant 0 : index
    %c0_0 = arith.constant 0 : index
    %0 = vector.load %arg2[%c0, %c0_0] : memref<6x32xf32, #tpu.memory_space<vmem>>, vector<6x32xf32>
    %1 = vector.extract_strided_slice %0 {offsets = [0, 0], sizes = [1, 32], strides = [1, 1]} : vector<6x32xf32> to vector<1x32xf32>
    %2 = vector.extract_strided_slice %0 {offsets = [1, 0], sizes = [1, 32], strides = [1, 1]} : vector<6x32xf32> to vector<1x32xf32>
    %3 = vector.extract_strided_slice %0 {offsets = [2, 0], sizes = [1, 32], strides = [1, 1]} : vector<6x32xf32> to vector<1x32xf32>
    %c0_1 = arith.constant 0 : index
    %c0_2 = arith.constant 0 : index
    %c0_3 = arith.constant 0 : index
    %4 = vector.load %arg1[%c0_1, %c0_2, %c0_3] : memref<2x16x32xf32, #tpu.memory_space<vmem>>, vector<2x16x32xf32>
    %5 = vector.shape_cast %4 : vector<2x16x32xf32> to vector<32x32xf32>
    %6 = vector.broadcast %1 : vector<1x32xf32> to vector<32x32xf32>
    %7 = arith.mulf %5, %6 : vector<32x32xf32>
    %8 = vector.broadcast %2 : vector<1x32xf32> to vector<32x32xf32>
    %9 = arith.addf %7, %8 : vector<32x32xf32>
    %cst = arith.constant 0.000000e+00 : f32
    %10 = vector.broadcast %cst : f32 to vector<32x32xf32>
    %11 = arith.maximumf %9, %10 : vector<32x32xf32>
    %12 = arith.truncf %11 : vector<32x32xf32> to vector<32x32xbf16>
    %c0_4 = arith.constant 0 : index
    %c0_5 = arith.constant 0 : index
    %13 = vector.load %arg4[%c0_4, %c0_5] : memref<32x48xbf16, #tpu.memory_space<vmem>>, vector<32x48xbf16>
    %cst_6 = arith.constant dense<0.000000e+00> : vector<32x48xf32>
    %14 = tpu.matmul %12, %13, %cst_6 {dimension_numbers = #tpu.dot_dimension_numbers<[1], [0], [0], [1], [0, 0, 1, 1], [], []>} : vector<32x32xbf16>, vector<32x48xbf16>, vector<32x48xf32> -> vector<32x48xf32>
    %c0_7 = arith.constant 0 : index
    %c0_8 = arith.constant 0 : index
    %15 = vector.load %arg3[%c0_7, %c0_8] : memref<1x48xf32, #tpu.memory_space<vmem>>, vector<1x48xf32>
    %16 = vector.broadcast %15 : vector<1x48xf32> to vector<32x48xf32>
    %17 = arith.addf %14, %16 : vector<32x48xf32>
    %18 = vector.extract_strided_slice %17 {offsets = [0, 0], sizes = [32, 16], strides = [1, 1]} : vector<32x48xf32> to vector<32x16xf32>
    %19 = vector.shape_cast %18 : vector<32x16xf32> to vector<2x16x16xf32>
    %20 = arith.truncf %19 : vector<2x16x16xf32> to vector<2x16x16xbf16>
    %21 = vector.extract_strided_slice %17 {offsets = [0, 16], sizes = [32, 16], strides = [1, 1]} : vector<32x48xf32> to vector<32x16xf32>
    %22 = vector.shape_cast %21 : vector<32x16xf32> to vector<2x16x16xf32>
    %23 = arith.truncf %22 : vector<2x16x16xf32> to vector<2x16x16xbf16>
    %24 = vector.extract_strided_slice %17 {offsets = [0, 32], sizes = [32, 16], strides = [1, 1]} : vector<32x48xf32> to vector<32x16xf32>
    %25 = vector.shape_cast %24 : vector<32x16xf32> to vector<2x16x16xf32>
    %26 = arith.truncf %25 : vector<2x16x16xf32> to vector<2x16x16xbf16>
    "tpu.trace_start"() <{level = 10 : i32, message = "bni,bmi->bnm"}> : () -> ()
    %cst_9 = arith.constant dense<0.000000e+00> : vector<2x16x16xf32>
    %27 = tpu.matmul %20, %23, %cst_9 {dimension_numbers = #tpu.dot_dimension_numbers<[2], [2], [1], [1], [0, 0, 0, 1, 1, 1], [0], [0]>} : vector<2x16x16xbf16>, vector<2x16x16xbf16>, vector<2x16x16xf32> -> vector<2x16x16xf32>
    "tpu.trace_stop"() : () -> ()
    %cst_10 = arith.constant dense<0xFF800000> : vector<2x16xf32>
    %28 = vector.multi_reduction <maximumf>, %27, %cst_10 [2] : vector<2x16x16xf32> to vector<2x16xf32>
    %29 = vector.shape_cast %28 : vector<2x16xf32> to vector<2x16x1xf32>
    %30 = vector.broadcast %29 : vector<2x16x1xf32> to vector<2x16x16xf32>
    %31 = arith.subf %27, %30 : vector<2x16x16xf32>
    %32 = math.exp %31 : vector<2x16x16xf32>
    %cst_11 = arith.constant dense<0.000000e+00> : vector<2x16xf32>
    %33 = vector.multi_reduction <add>, %32, %cst_11 [2] : vector<2x16x16xf32> to vector<2x16xf32>
    %34 = vector.shape_cast %33 : vector<2x16xf32> to vector<2x16x1xf32>
    %35 = tpu.reciprocal %34 {approx = true} : vector<2x16x1xf32> -> vector<2x16x1xf32>
    %36 = vector.broadcast %35 : vector<2x16x1xf32> to vector<2x16x16xf32>
    %37 = arith.mulf %32, %36 : vector<2x16x16xf32>
    %38 = arith.truncf %37 : vector<2x16x16xf32> to vector<2x16x16xbf16>
    "tpu.trace_start"() <{level = 10 : i32, message = "bnm,bmi->bni"}> : () -> ()
    %cst_12 = arith.constant dense<0.000000e+00> : vector<2x16x16xf32>
    %39 = tpu.matmul %38, %26, %cst_12 {dimension_numbers = #tpu.dot_dimension_numbers<[2], [1], [1], [2], [0, 0, 0, 1, 1, 2], [0], [0]>} : vector<2x16x16xbf16>, vector<2x16x16xbf16>, vector<2x16x16xf32> -> vector<2x16x16xf32>
    "tpu.trace_stop"() : () -> ()
    %40 = vector.shape_cast %39 : vector<2x16x16xf32> to vector<32x16xf32>
    %41 = arith.truncf %40 : vector<32x16xf32> to vector<32x16xbf16>
    %c0_13 = arith.constant 0 : index
    %c0_14 = arith.constant 0 : index
    %42 = vector.load %arg5[%c0_13, %c0_14] : memref<16x32xbf16, #tpu.memory_space<vmem>>, vector<16x32xbf16>
    %cst_15 = arith.constant dense<0.000000e+00> : vector<32x32xf32>
    %43 = tpu.matmul %41, %42, %cst_15 {dimension_numbers = #tpu.dot_dimension_numbers<[1], [0], [0], [1], [0, 0, 1, 1], [], []>} : vector<32x16xbf16>, vector<16x32xbf16>, vector<32x32xf32> -> vector<32x32xf32>
    %44 = vector.broadcast %3 : vector<1x32xf32> to vector<32x32xf32>
    %45 = arith.addf %43, %44 : vector<32x32xf32>
    %46 = arith.addf %5, %45 : vector<32x32xf32>
    %47 = tpu.iota {dimensions = array<i32: 2>} : vector<2x16x16xi32>
    %cst_16 = arith.constant 1.000000e+00 : f32
    %48 = vector.broadcast %cst_16 : f32 to vector<2x16x32xf32>
    %49 = arith.truncf %46 : vector<32x32xf32> to vector<32x32xbf16>
    %c0_17 = arith.constant 0 : index
    %c0_18 = arith.constant 0 : index
    %c0_19 = arith.constant 0 : index
    %50 = vector.load %arg6[%c0_17, %c0_18, %c0_19] : memref<3x32x64xbf16, #tpu.memory_space<vmem>>, vector<1x32x64xbf16>
    %51 = vector.shape_cast %50 : vector<1x32x64xbf16> to vector<32x64xbf16>
    %cst_20 = arith.constant dense<0.000000e+00> : vector<32x64xf32>
    %52 = tpu.matmul %49, %51, %cst_20 {dimension_numbers = #tpu.dot_dimension_numbers<[1], [0], [0], [1], [0, 0, 1, 1], [], []>} : vector<32x32xbf16>, vector<32x64xbf16>, vector<32x64xf32> -> vector<32x64xf32>
    %53 = vector.extract_strided_slice %52 {offsets = [0, 0], sizes = [32, 32], strides = [1, 1]} : vector<32x64xf32> to vector<32x32xf32>
    %54 = vector.shape_cast %53 : vector<32x32xf32> to vector<2x16x32xf32>
    %55 = arith.truncf %54 : vector<2x16x32xf32> to vector<2x16x32xbf16>
    %56 = vector.extract_strided_slice %52 {offsets = [0, 32], sizes = [32, 32], strides = [1, 1]} : vector<32x64xf32> to vector<32x32xf32>
    %57 = vector.extract_strided_slice %0 {offsets = [3, 0], sizes = [1, 32], strides = [1, 1]} : vector<6x32xf32> to vector<1x32xf32>
    %58 = vector.broadcast %57 : vector<1x32xf32> to vector<32x32xf32>
    %59 = arith.addf %56, %58 : vector<32x32xf32>
    %60 = vector.shape_cast %46 : vector<32x32xf32> to vector<2x16x32xf32>
    %61 = arith.truncf %60 : vector<2x16x32xf32> to vector<2x16x32xbf16>
    "tpu.trace_start"() <{level = 10 : i32, message = "bic,bjc->bij"}> : () -> ()
    %cst_21 = arith.constant dense<0.000000e+00> : vector<2x16x16xf32>
    %62 = tpu.matmul %61, %61, %cst_21 {dimension_numbers = #tpu.dot_dimension_numbers<[2], [2], [1], [1], [0, 0, 0, 1, 1, 1], [0], [0]>} : vector<2x16x32xbf16>, vector<2x16x32xbf16>, vector<2x16x16xf32> -> vector<2x16x16xf32>
    "tpu.trace_stop"() : () -> ()
    %63 = arith.mulf %60, %60 : vector<2x16x32xf32>
    "tpu.trace_start"() <{level = 10 : i32, message = "bic,bjc->bij"}> : () -> ()
    %cst_22 = arith.constant dense<0.000000e+00> : vector<2x16x16xf32>
    %64 = tpu.matmul %48, %63, %cst_22 {dimension_numbers = #tpu.dot_dimension_numbers<[2], [2], [1], [1], [0, 0, 0, 1, 1, 1], [0], [0]>} : vector<2x16x32xf32>, vector<2x16x32xf32>, vector<2x16x16xf32> -> vector<2x16x16xf32>
    "tpu.trace_stop"() : () -> ()
    %cst_23 = arith.constant 2.000000e+00 : f32
    %65 = vector.broadcast %cst_23 : f32 to vector<2x16x16xf32>
    %66 = arith.mulf %65, %62 : vector<2x16x16xf32>
    %67 = arith.subf %66, %64 : vector<2x16x16xf32>
    %cst_24 = arith.constant -1.000000e+30 : f32
    %68 = vector.broadcast %cst_24 : f32 to vector<2x16x32xf32>
    %c0_i32 = arith.constant 0 : i32
    %cst_25 = arith.constant dense<0xFF800000> : vector<2x16xf32>
    %69 = vector.multi_reduction <maximumf>, %67, %cst_25 [2] : vector<2x16x16xf32> to vector<2x16xf32>
    %70 = vector.shape_cast %69 : vector<2x16xf32> to vector<2x16x1xf32>
    %71 = vector.broadcast %70 : vector<2x16x1xf32> to vector<2x16x16xf32>
    %72 = arith.cmpf oeq, %67, %71 : vector<2x16x16xf32>
    %c16_i32 = arith.constant 16 : i32
    %73 = vector.broadcast %c16_i32 : i32 to vector<2x16x16xi32>
    %74 = arith.select %72, %47, %73 : vector<2x16x16xi1>, vector<2x16x16xi32>
    %cst_26 = arith.constant dense<2147483647> : vector<2x16xi32>
    %75 = vector.multi_reduction <minsi>, %74, %cst_26 [2] : vector<2x16x16xi32> to vector<2x16xi32>
    %76 = vector.shape_cast %75 : vector<2x16xi32> to vector<2x16x1xi32>
    %77 = vector.broadcast %76 : vector<2x16x1xi32> to vector<2x16x16xi32>
    %78 = arith.cmpi eq, %47, %77 : vector<2x16x16xi32>
    %79 = arith.extui %78 : vector<2x16x16xi1> to vector<2x16x16xi32>
    %80 = arith.sitofp %79 : vector<2x16x16xi32> to vector<2x16x16xf32>
    %81 = arith.truncf %80 : vector<2x16x16xf32> to vector<2x16x16xbf16>
    "tpu.trace_start"() <{level = 10 : i32, message = "bij,bjc->bic"}> : () -> ()
    %cst_27 = arith.constant dense<0.000000e+00> : vector<2x16x32xf32>
    %82 = tpu.matmul %81, %55, %cst_27 {dimension_numbers = #tpu.dot_dimension_numbers<[2], [1], [1], [2], [0, 0, 0, 1, 1, 2], [0], [0]>} : vector<2x16x16xbf16>, vector<2x16x32xbf16>, vector<2x16x32xf32> -> vector<2x16x32xf32>
    "tpu.trace_stop"() : () -> ()
    %83 = arith.maximumf %68, %82 : vector<2x16x32xf32>
    %cst_28 = arith.constant -1.000000e+30 : f32
    %84 = vector.broadcast %cst_28 : f32 to vector<2x16x16xf32>
    %85 = arith.select %78, %84, %67 : vector<2x16x16xi1>, vector<2x16x16xf32>
    %c1_i32 = arith.constant 1 : i32
    %cst_29 = arith.constant dense<0xFF800000> : vector<2x16xf32>
    %86 = vector.multi_reduction <maximumf>, %85, %cst_29 [2] : vector<2x16x16xf32> to vector<2x16xf32>
    %87 = vector.shape_cast %86 : vector<2x16xf32> to vector<2x16x1xf32>
    %88 = vector.broadcast %87 : vector<2x16x1xf32> to vector<2x16x16xf32>
    %89 = arith.cmpf oeq, %85, %88 : vector<2x16x16xf32>
    %c16_i32_30 = arith.constant 16 : i32
    %90 = vector.broadcast %c16_i32_30 : i32 to vector<2x16x16xi32>
    %91 = arith.select %89, %47, %90 : vector<2x16x16xi1>, vector<2x16x16xi32>
    %cst_31 = arith.constant dense<2147483647> : vector<2x16xi32>
    %92 = vector.multi_reduction <minsi>, %91, %cst_31 [2] : vector<2x16x16xi32> to vector<2x16xi32>
    %93 = vector.shape_cast %92 : vector<2x16xi32> to vector<2x16x1xi32>
    %94 = vector.broadcast %93 : vector<2x16x1xi32> to vector<2x16x16xi32>
    %95 = arith.cmpi eq, %47, %94 : vector<2x16x16xi32>
    %96 = arith.extui %95 : vector<2x16x16xi1> to vector<2x16x16xi32>
    %97 = arith.sitofp %96 : vector<2x16x16xi32> to vector<2x16x16xf32>
    %98 = arith.truncf %97 : vector<2x16x16xf32> to vector<2x16x16xbf16>
    "tpu.trace_start"() <{level = 10 : i32, message = "bij,bjc->bic"}> : () -> ()
    %cst_32 = arith.constant dense<0.000000e+00> : vector<2x16x32xf32>
    %99 = tpu.matmul %98, %55, %cst_32 {dimension_numbers = #tpu.dot_dimension_numbers<[2], [1], [1], [2], [0, 0, 0, 1, 1, 2], [0], [0]>} : vector<2x16x16xbf16>, vector<2x16x32xbf16>, vector<2x16x32xf32> -> vector<2x16x32xf32>
    "tpu.trace_stop"() : () -> ()
    %100 = arith.maximumf %83, %99 : vector<2x16x32xf32>
    %cst_33 = arith.constant -1.000000e+30 : f32
    %101 = vector.broadcast %cst_33 : f32 to vector<2x16x16xf32>
    %102 = arith.select %95, %101, %85 : vector<2x16x16xi1>, vector<2x16x16xf32>
    %c2_i32 = arith.constant 2 : i32
    %cst_34 = arith.constant dense<0xFF800000> : vector<2x16xf32>
    %103 = vector.multi_reduction <maximumf>, %102, %cst_34 [2] : vector<2x16x16xf32> to vector<2x16xf32>
    %104 = vector.shape_cast %103 : vector<2x16xf32> to vector<2x16x1xf32>
    %105 = vector.broadcast %104 : vector<2x16x1xf32> to vector<2x16x16xf32>
    %106 = arith.cmpf oeq, %102, %105 : vector<2x16x16xf32>
    %c16_i32_35 = arith.constant 16 : i32
    %107 = vector.broadcast %c16_i32_35 : i32 to vector<2x16x16xi32>
    %108 = arith.select %106, %47, %107 : vector<2x16x16xi1>, vector<2x16x16xi32>
    %cst_36 = arith.constant dense<2147483647> : vector<2x16xi32>
    %109 = vector.multi_reduction <minsi>, %108, %cst_36 [2] : vector<2x16x16xi32> to vector<2x16xi32>
    %110 = vector.shape_cast %109 : vector<2x16xi32> to vector<2x16x1xi32>
    %111 = vector.broadcast %110 : vector<2x16x1xi32> to vector<2x16x16xi32>
    %112 = arith.cmpi eq, %47, %111 : vector<2x16x16xi32>
    %113 = arith.extui %112 : vector<2x16x16xi1> to vector<2x16x16xi32>
    %114 = arith.sitofp %113 : vector<2x16x16xi32> to vector<2x16x16xf32>
    %115 = arith.truncf %114 : vector<2x16x16xf32> to vector<2x16x16xbf16>
    "tpu.trace_start"() <{level = 10 : i32, message = "bij,bjc->bic"}> : () -> ()
    %cst_37 = arith.constant dense<0.000000e+00> : vector<2x16x32xf32>
    %116 = tpu.matmul %115, %55, %cst_37 {dimension_numbers = #tpu.dot_dimension_numbers<[2], [1], [1], [2], [0, 0, 0, 1, 1, 2], [0], [0]>} : vector<2x16x16xbf16>, vector<2x16x32xbf16>, vector<2x16x32xf32> -> vector<2x16x32xf32>
    "tpu.trace_stop"() : () -> ()
    %117 = arith.maximumf %100, %116 : vector<2x16x32xf32>
    %cst_38 = arith.constant -1.000000e+30 : f32
    %118 = vector.broadcast %cst_38 : f32 to vector<2x16x16xf32>
    %119 = arith.select %112, %118, %102 : vector<2x16x16xi1>, vector<2x16x16xf32>
    %c3_i32 = arith.constant 3 : i32
    %cst_39 = arith.constant dense<0xFF800000> : vector<2x16xf32>
    %120 = vector.multi_reduction <maximumf>, %119, %cst_39 [2] : vector<2x16x16xf32> to vector<2x16xf32>
    %121 = vector.shape_cast %120 : vector<2x16xf32> to vector<2x16x1xf32>
    %122 = vector.broadcast %121 : vector<2x16x1xf32> to vector<2x16x16xf32>
    %123 = arith.cmpf oeq, %119, %122 : vector<2x16x16xf32>
    %c16_i32_40 = arith.constant 16 : i32
    %124 = vector.broadcast %c16_i32_40 : i32 to vector<2x16x16xi32>
    %125 = arith.select %123, %47, %124 : vector<2x16x16xi1>, vector<2x16x16xi32>
    %cst_41 = arith.constant dense<2147483647> : vector<2x16xi32>
    %126 = vector.multi_reduction <minsi>, %125, %cst_41 [2] : vector<2x16x16xi32> to vector<2x16xi32>
    %127 = vector.shape_cast %126 : vector<2x16xi32> to vector<2x16x1xi32>
    %128 = vector.broadcast %127 : vector<2x16x1xi32> to vector<2x16x16xi32>
    %129 = arith.cmpi eq, %47, %128 : vector<2x16x16xi32>
    %130 = arith.extui %129 : vector<2x16x16xi1> to vector<2x16x16xi32>
    %131 = arith.sitofp %130 : vector<2x16x16xi32> to vector<2x16x16xf32>
    %132 = arith.truncf %131 : vector<2x16x16xf32> to vector<2x16x16xbf16>
    "tpu.trace_start"() <{level = 10 : i32, message = "bij,bjc->bic"}> : () -> ()
    %cst_42 = arith.constant dense<0.000000e+00> : vector<2x16x32xf32>
    %133 = tpu.matmul %132, %55, %cst_42 {dimension_numbers = #tpu.dot_dimension_numbers<[2], [1], [1], [2], [0, 0, 0, 1, 1, 2], [0], [0]>} : vector<2x16x16xbf16>, vector<2x16x32xbf16>, vector<2x16x32xf32> -> vector<2x16x32xf32>
    "tpu.trace_stop"() : () -> ()
    %134 = arith.maximumf %117, %133 : vector<2x16x32xf32>
    %cst_43 = arith.constant -1.000000e+30 : f32
    %135 = vector.broadcast %cst_43 : f32 to vector<2x16x16xf32>
    %136 = arith.select %129, %135, %119 : vector<2x16x16xi1>, vector<2x16x16xf32>
    %c4_i32 = arith.constant 4 : i32
    %cst_44 = arith.constant dense<0xFF800000> : vector<2x16xf32>
    %137 = vector.multi_reduction <maximumf>, %136, %cst_44 [2] : vector<2x16x16xf32> to vector<2x16xf32>
    %138 = vector.shape_cast %137 : vector<2x16xf32> to vector<2x16x1xf32>
    %139 = vector.broadcast %138 : vector<2x16x1xf32> to vector<2x16x16xf32>
    %140 = arith.cmpf oeq, %136, %139 : vector<2x16x16xf32>
    %c16_i32_45 = arith.constant 16 : i32
    %141 = vector.broadcast %c16_i32_45 : i32 to vector<2x16x16xi32>
    %142 = arith.select %140, %47, %141 : vector<2x16x16xi1>, vector<2x16x16xi32>
    %cst_46 = arith.constant dense<2147483647> : vector<2x16xi32>
    %143 = vector.multi_reduction <minsi>, %142, %cst_46 [2] : vector<2x16x16xi32> to vector<2x16xi32>
    %144 = vector.shape_cast %143 : vector<2x16xi32> to vector<2x16x1xi32>
    %145 = vector.broadcast %144 : vector<2x16x1xi32> to vector<2x16x16xi32>
    %146 = arith.cmpi eq, %47, %145 : vector<2x16x16xi32>
    %147 = arith.extui %146 : vector<2x16x16xi1> to vector<2x16x16xi32>
    %148 = arith.sitofp %147 : vector<2x16x16xi32> to vector<2x16x16xf32>
    %149 = arith.truncf %148 : vector<2x16x16xf32> to vector<2x16x16xbf16>
    "tpu.trace_start"() <{level = 10 : i32, message = "bij,bjc->bic"}> : () -> ()
    %cst_47 = arith.constant dense<0.000000e+00> : vector<2x16x32xf32>
    %150 = tpu.matmul %149, %55, %cst_47 {dimension_numbers = #tpu.dot_dimension_numbers<[2], [1], [1], [2], [0, 0, 0, 1, 1, 2], [0], [0]>} : vector<2x16x16xbf16>, vector<2x16x32xbf16>, vector<2x16x32xf32> -> vector<2x16x32xf32>
    "tpu.trace_stop"() : () -> ()
    %151 = arith.maximumf %134, %150 : vector<2x16x32xf32>
    %cst_48 = arith.constant -1.000000e+30 : f32
    %152 = vector.broadcast %cst_48 : f32 to vector<2x16x16xf32>
    %153 = arith.select %146, %152, %136 : vector<2x16x16xi1>, vector<2x16x16xf32>
    %c5_i32 = arith.constant 5 : i32
    %cst_49 = arith.constant dense<0xFF800000> : vector<2x16xf32>
    %154 = vector.multi_reduction <maximumf>, %153, %cst_49 [2] : vector<2x16x16xf32> to vector<2x16xf32>
    %155 = vector.shape_cast %154 : vector<2x16xf32> to vector<2x16x1xf32>
    %156 = vector.broadcast %155 : vector<2x16x1xf32> to vector<2x16x16xf32>
    %157 = arith.cmpf oeq, %153, %156 : vector<2x16x16xf32>
    %c16_i32_50 = arith.constant 16 : i32
    %158 = vector.broadcast %c16_i32_50 : i32 to vector<2x16x16xi32>
    %159 = arith.select %157, %47, %158 : vector<2x16x16xi1>, vector<2x16x16xi32>
    %cst_51 = arith.constant dense<2147483647> : vector<2x16xi32>
    %160 = vector.multi_reduction <minsi>, %159, %cst_51 [2] : vector<2x16x16xi32> to vector<2x16xi32>
    %161 = vector.shape_cast %160 : vector<2x16xi32> to vector<2x16x1xi32>
    %162 = vector.broadcast %161 : vector<2x16x1xi32> to vector<2x16x16xi32>
    %163 = arith.cmpi eq, %47, %162 : vector<2x16x16xi32>
    %164 = arith.extui %163 : vector<2x16x16xi1> to vector<2x16x16xi32>
    %165 = arith.sitofp %164 : vector<2x16x16xi32> to vector<2x16x16xf32>
    %166 = arith.truncf %165 : vector<2x16x16xf32> to vector<2x16x16xbf16>
    "tpu.trace_start"() <{level = 10 : i32, message = "bij,bjc->bic"}> : () -> ()
    %cst_52 = arith.constant dense<0.000000e+00> : vector<2x16x32xf32>
    %167 = tpu.matmul %166, %55, %cst_52 {dimension_numbers = #tpu.dot_dimension_numbers<[2], [1], [1], [2], [0, 0, 0, 1, 1, 2], [0], [0]>} : vector<2x16x16xbf16>, vector<2x16x32xbf16>, vector<2x16x32xf32> -> vector<2x16x32xf32>
    "tpu.trace_stop"() : () -> ()
    %168 = arith.maximumf %151, %167 : vector<2x16x32xf32>
    %cst_53 = arith.constant -1.000000e+30 : f32
    %169 = vector.broadcast %cst_53 : f32 to vector<2x16x16xf32>
    %170 = arith.select %163, %169, %153 : vector<2x16x16xi1>, vector<2x16x16xf32>
    %c6_i32 = arith.constant 6 : i32
    %cst_54 = arith.constant dense<0xFF800000> : vector<2x16xf32>
    %171 = vector.multi_reduction <maximumf>, %170, %cst_54 [2] : vector<2x16x16xf32> to vector<2x16xf32>
    %172 = vector.shape_cast %171 : vector<2x16xf32> to vector<2x16x1xf32>
    %173 = vector.broadcast %172 : vector<2x16x1xf32> to vector<2x16x16xf32>
    %174 = arith.cmpf oeq, %170, %173 : vector<2x16x16xf32>
    %c16_i32_55 = arith.constant 16 : i32
    %175 = vector.broadcast %c16_i32_55 : i32 to vector<2x16x16xi32>
    %176 = arith.select %174, %47, %175 : vector<2x16x16xi1>, vector<2x16x16xi32>
    %cst_56 = arith.constant dense<2147483647> : vector<2x16xi32>
    %177 = vector.multi_reduction <minsi>, %176, %cst_56 [2] : vector<2x16x16xi32> to vector<2x16xi32>
    %178 = vector.shape_cast %177 : vector<2x16xi32> to vector<2x16x1xi32>
    %179 = vector.broadcast %178 : vector<2x16x1xi32> to vector<2x16x16xi32>
    %180 = arith.cmpi eq, %47, %179 : vector<2x16x16xi32>
    %181 = arith.extui %180 : vector<2x16x16xi1> to vector<2x16x16xi32>
    %182 = arith.sitofp %181 : vector<2x16x16xi32> to vector<2x16x16xf32>
    %183 = arith.truncf %182 : vector<2x16x16xf32> to vector<2x16x16xbf16>
    "tpu.trace_start"() <{level = 10 : i32, message = "bij,bjc->bic"}> : () -> ()
    %cst_57 = arith.constant dense<0.000000e+00> : vector<2x16x32xf32>
    %184 = tpu.matmul %183, %55, %cst_57 {dimension_numbers = #tpu.dot_dimension_numbers<[2], [1], [1], [2], [0, 0, 0, 1, 1, 2], [0], [0]>} : vector<2x16x16xbf16>, vector<2x16x32xbf16>, vector<2x16x32xf32> -> vector<2x16x32xf32>
    "tpu.trace_stop"() : () -> ()
    %185 = arith.maximumf %168, %184 : vector<2x16x32xf32>
    %cst_58 = arith.constant -1.000000e+30 : f32
    %186 = vector.broadcast %cst_58 : f32 to vector<2x16x16xf32>
    %187 = arith.select %180, %186, %170 : vector<2x16x16xi1>, vector<2x16x16xf32>
    %c7_i32 = arith.constant 7 : i32
    %cst_59 = arith.constant dense<0xFF800000> : vector<2x16xf32>
    %188 = vector.multi_reduction <maximumf>, %187, %cst_59 [2] : vector<2x16x16xf32> to vector<2x16xf32>
    %189 = vector.shape_cast %188 : vector<2x16xf32> to vector<2x16x1xf32>
    %190 = vector.broadcast %189 : vector<2x16x1xf32> to vector<2x16x16xf32>
    %191 = arith.cmpf oeq, %187, %190 : vector<2x16x16xf32>
    %c16_i32_60 = arith.constant 16 : i32
    %192 = vector.broadcast %c16_i32_60 : i32 to vector<2x16x16xi32>
    %193 = arith.select %191, %47, %192 : vector<2x16x16xi1>, vector<2x16x16xi32>
    %cst_61 = arith.constant dense<2147483647> : vector<2x16xi32>
    %194 = vector.multi_reduction <minsi>, %193, %cst_61 [2] : vector<2x16x16xi32> to vector<2x16xi32>
    %195 = vector.shape_cast %194 : vector<2x16xi32> to vector<2x16x1xi32>
    %196 = vector.broadcast %195 : vector<2x16x1xi32> to vector<2x16x16xi32>
    %197 = arith.cmpi eq, %47, %196 : vector<2x16x16xi32>
    %198 = arith.extui %197 : vector<2x16x16xi1> to vector<2x16x16xi32>
    %199 = arith.sitofp %198 : vector<2x16x16xi32> to vector<2x16x16xf32>
    %200 = arith.truncf %199 : vector<2x16x16xf32> to vector<2x16x16xbf16>
    "tpu.trace_start"() <{level = 10 : i32, message = "bij,bjc->bic"}> : () -> ()
    %cst_62 = arith.constant dense<0.000000e+00> : vector<2x16x32xf32>
    %201 = tpu.matmul %200, %55, %cst_62 {dimension_numbers = #tpu.dot_dimension_numbers<[2], [1], [1], [2], [0, 0, 0, 1, 1, 2], [0], [0]>} : vector<2x16x16xbf16>, vector<2x16x32xbf16>, vector<2x16x32xf32> -> vector<2x16x32xf32>
    "tpu.trace_stop"() : () -> ()
    %202 = arith.maximumf %185, %201 : vector<2x16x32xf32>
    %cst_63 = arith.constant -1.000000e+30 : f32
    %203 = vector.broadcast %cst_63 : f32 to vector<2x16x16xf32>
    %204 = arith.select %197, %203, %187 : vector<2x16x16xi1>, vector<2x16x16xf32>
    %c8_i32 = arith.constant 8 : i32
    %cst_64 = arith.constant dense<0xFF800000> : vector<2x16xf32>
    %205 = vector.multi_reduction <maximumf>, %204, %cst_64 [2] : vector<2x16x16xf32> to vector<2x16xf32>
    %206 = vector.shape_cast %205 : vector<2x16xf32> to vector<2x16x1xf32>
    %207 = vector.broadcast %206 : vector<2x16x1xf32> to vector<2x16x16xf32>
    %208 = arith.cmpf oeq, %204, %207 : vector<2x16x16xf32>
    %c16_i32_65 = arith.constant 16 : i32
    %209 = vector.broadcast %c16_i32_65 : i32 to vector<2x16x16xi32>
    %210 = arith.select %208, %47, %209 : vector<2x16x16xi1>, vector<2x16x16xi32>
    %cst_66 = arith.constant dense<2147483647> : vector<2x16xi32>
    %211 = vector.multi_reduction <minsi>, %210, %cst_66 [2] : vector<2x16x16xi32> to vector<2x16xi32>
    %212 = vector.shape_cast %211 : vector<2x16xi32> to vector<2x16x1xi32>
    %213 = vector.broadcast %212 : vector<2x16x1xi32> to vector<2x16x16xi32>
    %214 = arith.cmpi eq, %47, %213 : vector<2x16x16xi32>
    %215 = arith.extui %214 : vector<2x16x16xi1> to vector<2x16x16xi32>
    %216 = arith.sitofp %215 : vector<2x16x16xi32> to vector<2x16x16xf32>
    %217 = arith.truncf %216 : vector<2x16x16xf32> to vector<2x16x16xbf16>
    "tpu.trace_start"() <{level = 10 : i32, message = "bij,bjc->bic"}> : () -> ()
    %cst_67 = arith.constant dense<0.000000e+00> : vector<2x16x32xf32>
    %218 = tpu.matmul %217, %55, %cst_67 {dimension_numbers = #tpu.dot_dimension_numbers<[2], [1], [1], [2], [0, 0, 0, 1, 1, 2], [0], [0]>} : vector<2x16x16xbf16>, vector<2x16x32xbf16>, vector<2x16x32xf32> -> vector<2x16x32xf32>
    "tpu.trace_stop"() : () -> ()
    %219 = arith.maximumf %202, %218 : vector<2x16x32xf32>
    %cst_68 = arith.constant -1.000000e+30 : f32
    %220 = vector.broadcast %cst_68 : f32 to vector<2x16x16xf32>
    %221 = arith.select %214, %220, %204 : vector<2x16x16xi1>, vector<2x16x16xf32>
    %c9_i32 = arith.constant 9 : i32
    %cst_69 = arith.constant dense<0xFF800000> : vector<2x16xf32>
    %222 = vector.multi_reduction <maximumf>, %221, %cst_69 [2] : vector<2x16x16xf32> to vector<2x16xf32>
    %223 = vector.shape_cast %222 : vector<2x16xf32> to vector<2x16x1xf32>
    %224 = vector.broadcast %223 : vector<2x16x1xf32> to vector<2x16x16xf32>
    %225 = arith.cmpf oeq, %221, %224 : vector<2x16x16xf32>
    %c16_i32_70 = arith.constant 16 : i32
    %226 = vector.broadcast %c16_i32_70 : i32 to vector<2x16x16xi32>
    %227 = arith.select %225, %47, %226 : vector<2x16x16xi1>, vector<2x16x16xi32>
    %cst_71 = arith.constant dense<2147483647> : vector<2x16xi32>
    %228 = vector.multi_reduction <minsi>, %227, %cst_71 [2] : vector<2x16x16xi32> to vector<2x16xi32>
    %229 = vector.shape_cast %228 : vector<2x16xi32> to vector<2x16x1xi32>
    %230 = vector.broadcast %229 : vector<2x16x1xi32> to vector<2x16x16xi32>
    %231 = arith.cmpi eq, %47, %230 : vector<2x16x16xi32>
    %232 = arith.extui %231 : vector<2x16x16xi1> to vector<2x16x16xi32>
    %233 = arith.sitofp %232 : vector<2x16x16xi32> to vector<2x16x16xf32>
    %234 = arith.truncf %233 : vector<2x16x16xf32> to vector<2x16x16xbf16>
    "tpu.trace_start"() <{level = 10 : i32, message = "bij,bjc->bic"}> : () -> ()
    %cst_72 = arith.constant dense<0.000000e+00> : vector<2x16x32xf32>
    %235 = tpu.matmul %234, %55, %cst_72 {dimension_numbers = #tpu.dot_dimension_numbers<[2], [1], [1], [2], [0, 0, 0, 1, 1, 2], [0], [0]>} : vector<2x16x16xbf16>, vector<2x16x32xbf16>, vector<2x16x32xf32> -> vector<2x16x32xf32>
    "tpu.trace_stop"() : () -> ()
    %236 = arith.maximumf %219, %235 : vector<2x16x32xf32>
    %cst_73 = arith.constant -1.000000e+30 : f32
    %237 = vector.broadcast %cst_73 : f32 to vector<2x16x16xf32>
    %238 = arith.select %231, %237, %221 : vector<2x16x16xi1>, vector<2x16x16xf32>
    %239 = vector.shape_cast %236 : vector<2x16x32xf32> to vector<32x32xf32>
    %240 = arith.addf %239, %59 : vector<32x32xf32>
    %cst_74 = arith.constant 0.000000e+00 : f32
    %241 = vector.broadcast %cst_74 : f32 to vector<32x32xf32>
    %242 = arith.cmpf ogt, %240, %241 : vector<32x32xf32>
    %cst_75 = arith.constant 2.000000e-01 : f32
    %243 = vector.broadcast %cst_75 : f32 to vector<32x32xf32>
    %244 = arith.mulf %243, %240 : vector<32x32xf32>
    %245 = arith.select %242, %240, %244 : vector<32x32xi1>, vector<32x32xf32>
    %246 = arith.truncf %245 : vector<32x32xf32> to vector<32x32xbf16>
    %c1 = arith.constant 1 : index
    %c0_76 = arith.constant 0 : index
    %c0_77 = arith.constant 0 : index
    %247 = vector.load %arg6[%c1, %c0_76, %c0_77] : memref<3x32x64xbf16, #tpu.memory_space<vmem>>, vector<1x32x64xbf16>
    %248 = vector.shape_cast %247 : vector<1x32x64xbf16> to vector<32x64xbf16>
    %cst_78 = arith.constant dense<0.000000e+00> : vector<32x64xf32>
    %249 = tpu.matmul %246, %248, %cst_78 {dimension_numbers = #tpu.dot_dimension_numbers<[1], [0], [0], [1], [0, 0, 1, 1], [], []>} : vector<32x32xbf16>, vector<32x64xbf16>, vector<32x64xf32> -> vector<32x64xf32>
    %250 = vector.extract_strided_slice %249 {offsets = [0, 0], sizes = [32, 32], strides = [1, 1]} : vector<32x64xf32> to vector<32x32xf32>
    %251 = vector.shape_cast %250 : vector<32x32xf32> to vector<2x16x32xf32>
    %252 = arith.truncf %251 : vector<2x16x32xf32> to vector<2x16x32xbf16>
    %253 = vector.extract_strided_slice %249 {offsets = [0, 32], sizes = [32, 32], strides = [1, 1]} : vector<32x64xf32> to vector<32x32xf32>
    %254 = vector.extract_strided_slice %0 {offsets = [4, 0], sizes = [1, 32], strides = [1, 1]} : vector<6x32xf32> to vector<1x32xf32>
    %255 = vector.broadcast %254 : vector<1x32xf32> to vector<32x32xf32>
    %256 = arith.addf %253, %255 : vector<32x32xf32>
    %257 = vector.shape_cast %245 : vector<32x32xf32> to vector<2x16x32xf32>
    %258 = arith.truncf %257 : vector<2x16x32xf32> to vector<2x16x32xbf16>
    "tpu.trace_start"() <{level = 10 : i32, message = "bic,bjc->bij"}> : () -> ()
    %cst_79 = arith.constant dense<0.000000e+00> : vector<2x16x16xf32>
    %259 = tpu.matmul %258, %258, %cst_79 {dimension_numbers = #tpu.dot_dimension_numbers<[2], [2], [1], [1], [0, 0, 0, 1, 1, 1], [0], [0]>} : vector<2x16x32xbf16>, vector<2x16x32xbf16>, vector<2x16x16xf32> -> vector<2x16x16xf32>
    "tpu.trace_stop"() : () -> ()
    %260 = arith.mulf %257, %257 : vector<2x16x32xf32>
    "tpu.trace_start"() <{level = 10 : i32, message = "bic,bjc->bij"}> : () -> ()
    %cst_80 = arith.constant dense<0.000000e+00> : vector<2x16x16xf32>
    %261 = tpu.matmul %48, %260, %cst_80 {dimension_numbers = #tpu.dot_dimension_numbers<[2], [2], [1], [1], [0, 0, 0, 1, 1, 1], [0], [0]>} : vector<2x16x32xf32>, vector<2x16x32xf32>, vector<2x16x16xf32> -> vector<2x16x16xf32>
    "tpu.trace_stop"() : () -> ()
    %cst_81 = arith.constant 2.000000e+00 : f32
    %262 = vector.broadcast %cst_81 : f32 to vector<2x16x16xf32>
    %263 = arith.mulf %262, %259 : vector<2x16x16xf32>
    %264 = arith.subf %263, %261 : vector<2x16x16xf32>
    %cst_82 = arith.constant -1.000000e+30 : f32
    %265 = vector.broadcast %cst_82 : f32 to vector<2x16x32xf32>
    %c0_i32_83 = arith.constant 0 : i32
    %cst_84 = arith.constant dense<0xFF800000> : vector<2x16xf32>
    %266 = vector.multi_reduction <maximumf>, %264, %cst_84 [2] : vector<2x16x16xf32> to vector<2x16xf32>
    %267 = vector.shape_cast %266 : vector<2x16xf32> to vector<2x16x1xf32>
    %268 = vector.broadcast %267 : vector<2x16x1xf32> to vector<2x16x16xf32>
    %269 = arith.cmpf oeq, %264, %268 : vector<2x16x16xf32>
    %c16_i32_85 = arith.constant 16 : i32
    %270 = vector.broadcast %c16_i32_85 : i32 to vector<2x16x16xi32>
    %271 = arith.select %269, %47, %270 : vector<2x16x16xi1>, vector<2x16x16xi32>
    %cst_86 = arith.constant dense<2147483647> : vector<2x16xi32>
    %272 = vector.multi_reduction <minsi>, %271, %cst_86 [2] : vector<2x16x16xi32> to vector<2x16xi32>
    %273 = vector.shape_cast %272 : vector<2x16xi32> to vector<2x16x1xi32>
    %274 = vector.broadcast %273 : vector<2x16x1xi32> to vector<2x16x16xi32>
    %275 = arith.cmpi eq, %47, %274 : vector<2x16x16xi32>
    %276 = arith.extui %275 : vector<2x16x16xi1> to vector<2x16x16xi32>
    %277 = arith.sitofp %276 : vector<2x16x16xi32> to vector<2x16x16xf32>
    %278 = arith.truncf %277 : vector<2x16x16xf32> to vector<2x16x16xbf16>
    "tpu.trace_start"() <{level = 10 : i32, message = "bij,bjc->bic"}> : () -> ()
    %cst_87 = arith.constant dense<0.000000e+00> : vector<2x16x32xf32>
    %279 = tpu.matmul %278, %252, %cst_87 {dimension_numbers = #tpu.dot_dimension_numbers<[2], [1], [1], [2], [0, 0, 0, 1, 1, 2], [0], [0]>} : vector<2x16x16xbf16>, vector<2x16x32xbf16>, vector<2x16x32xf32> -> vector<2x16x32xf32>
    "tpu.trace_stop"() : () -> ()
    %280 = arith.maximumf %265, %279 : vector<2x16x32xf32>
    %cst_88 = arith.constant -1.000000e+30 : f32
    %281 = vector.broadcast %cst_88 : f32 to vector<2x16x16xf32>
    %282 = arith.select %275, %281, %264 : vector<2x16x16xi1>, vector<2x16x16xf32>
    %c1_i32_89 = arith.constant 1 : i32
    %cst_90 = arith.constant dense<0xFF800000> : vector<2x16xf32>
    %283 = vector.multi_reduction <maximumf>, %282, %cst_90 [2] : vector<2x16x16xf32> to vector<2x16xf32>
    %284 = vector.shape_cast %283 : vector<2x16xf32> to vector<2x16x1xf32>
    %285 = vector.broadcast %284 : vector<2x16x1xf32> to vector<2x16x16xf32>
    %286 = arith.cmpf oeq, %282, %285 : vector<2x16x16xf32>
    %c16_i32_91 = arith.constant 16 : i32
    %287 = vector.broadcast %c16_i32_91 : i32 to vector<2x16x16xi32>
    %288 = arith.select %286, %47, %287 : vector<2x16x16xi1>, vector<2x16x16xi32>
    %cst_92 = arith.constant dense<2147483647> : vector<2x16xi32>
    %289 = vector.multi_reduction <minsi>, %288, %cst_92 [2] : vector<2x16x16xi32> to vector<2x16xi32>
    %290 = vector.shape_cast %289 : vector<2x16xi32> to vector<2x16x1xi32>
    %291 = vector.broadcast %290 : vector<2x16x1xi32> to vector<2x16x16xi32>
    %292 = arith.cmpi eq, %47, %291 : vector<2x16x16xi32>
    %293 = arith.extui %292 : vector<2x16x16xi1> to vector<2x16x16xi32>
    %294 = arith.sitofp %293 : vector<2x16x16xi32> to vector<2x16x16xf32>
    %295 = arith.truncf %294 : vector<2x16x16xf32> to vector<2x16x16xbf16>
    "tpu.trace_start"() <{level = 10 : i32, message = "bij,bjc->bic"}> : () -> ()
    %cst_93 = arith.constant dense<0.000000e+00> : vector<2x16x32xf32>
    %296 = tpu.matmul %295, %252, %cst_93 {dimension_numbers = #tpu.dot_dimension_numbers<[2], [1], [1], [2], [0, 0, 0, 1, 1, 2], [0], [0]>} : vector<2x16x16xbf16>, vector<2x16x32xbf16>, vector<2x16x32xf32> -> vector<2x16x32xf32>
    "tpu.trace_stop"() : () -> ()
    %297 = arith.maximumf %280, %296 : vector<2x16x32xf32>
    %cst_94 = arith.constant -1.000000e+30 : f32
    %298 = vector.broadcast %cst_94 : f32 to vector<2x16x16xf32>
    %299 = arith.select %292, %298, %282 : vector<2x16x16xi1>, vector<2x16x16xf32>
    %c2_i32_95 = arith.constant 2 : i32
    %cst_96 = arith.constant dense<0xFF800000> : vector<2x16xf32>
    %300 = vector.multi_reduction <maximumf>, %299, %cst_96 [2] : vector<2x16x16xf32> to vector<2x16xf32>
    %301 = vector.shape_cast %300 : vector<2x16xf32> to vector<2x16x1xf32>
    %302 = vector.broadcast %301 : vector<2x16x1xf32> to vector<2x16x16xf32>
    %303 = arith.cmpf oeq, %299, %302 : vector<2x16x16xf32>
    %c16_i32_97 = arith.constant 16 : i32
    %304 = vector.broadcast %c16_i32_97 : i32 to vector<2x16x16xi32>
    %305 = arith.select %303, %47, %304 : vector<2x16x16xi1>, vector<2x16x16xi32>
    %cst_98 = arith.constant dense<2147483647> : vector<2x16xi32>
    %306 = vector.multi_reduction <minsi>, %305, %cst_98 [2] : vector<2x16x16xi32> to vector<2x16xi32>
    %307 = vector.shape_cast %306 : vector<2x16xi32> to vector<2x16x1xi32>
    %308 = vector.broadcast %307 : vector<2x16x1xi32> to vector<2x16x16xi32>
    %309 = arith.cmpi eq, %47, %308 : vector<2x16x16xi32>
    %310 = arith.extui %309 : vector<2x16x16xi1> to vector<2x16x16xi32>
    %311 = arith.sitofp %310 : vector<2x16x16xi32> to vector<2x16x16xf32>
    %312 = arith.truncf %311 : vector<2x16x16xf32> to vector<2x16x16xbf16>
    "tpu.trace_start"() <{level = 10 : i32, message = "bij,bjc->bic"}> : () -> ()
    %cst_99 = arith.constant dense<0.000000e+00> : vector<2x16x32xf32>
    %313 = tpu.matmul %312, %252, %cst_99 {dimension_numbers = #tpu.dot_dimension_numbers<[2], [1], [1], [2], [0, 0, 0, 1, 1, 2], [0], [0]>} : vector<2x16x16xbf16>, vector<2x16x32xbf16>, vector<2x16x32xf32> -> vector<2x16x32xf32>
    "tpu.trace_stop"() : () -> ()
    %314 = arith.maximumf %297, %313 : vector<2x16x32xf32>
    %cst_100 = arith.constant -1.000000e+30 : f32
    %315 = vector.broadcast %cst_100 : f32 to vector<2x16x16xf32>
    %316 = arith.select %309, %315, %299 : vector<2x16x16xi1>, vector<2x16x16xf32>
    %c3_i32_101 = arith.constant 3 : i32
    %cst_102 = arith.constant dense<0xFF800000> : vector<2x16xf32>
    %317 = vector.multi_reduction <maximumf>, %316, %cst_102 [2] : vector<2x16x16xf32> to vector<2x16xf32>
    %318 = vector.shape_cast %317 : vector<2x16xf32> to vector<2x16x1xf32>
    %319 = vector.broadcast %318 : vector<2x16x1xf32> to vector<2x16x16xf32>
    %320 = arith.cmpf oeq, %316, %319 : vector<2x16x16xf32>
    %c16_i32_103 = arith.constant 16 : i32
    %321 = vector.broadcast %c16_i32_103 : i32 to vector<2x16x16xi32>
    %322 = arith.select %320, %47, %321 : vector<2x16x16xi1>, vector<2x16x16xi32>
    %cst_104 = arith.constant dense<2147483647> : vector<2x16xi32>
    %323 = vector.multi_reduction <minsi>, %322, %cst_104 [2] : vector<2x16x16xi32> to vector<2x16xi32>
    %324 = vector.shape_cast %323 : vector<2x16xi32> to vector<2x16x1xi32>
    %325 = vector.broadcast %324 : vector<2x16x1xi32> to vector<2x16x16xi32>
    %326 = arith.cmpi eq, %47, %325 : vector<2x16x16xi32>
    %327 = arith.extui %326 : vector<2x16x16xi1> to vector<2x16x16xi32>
    %328 = arith.sitofp %327 : vector<2x16x16xi32> to vector<2x16x16xf32>
    %329 = arith.truncf %328 : vector<2x16x16xf32> to vector<2x16x16xbf16>
    "tpu.trace_start"() <{level = 10 : i32, message = "bij,bjc->bic"}> : () -> ()
    %cst_105 = arith.constant dense<0.000000e+00> : vector<2x16x32xf32>
    %330 = tpu.matmul %329, %252, %cst_105 {dimension_numbers = #tpu.dot_dimension_numbers<[2], [1], [1], [2], [0, 0, 0, 1, 1, 2], [0], [0]>} : vector<2x16x16xbf16>, vector<2x16x32xbf16>, vector<2x16x32xf32> -> vector<2x16x32xf32>
    "tpu.trace_stop"() : () -> ()
    %331 = arith.maximumf %314, %330 : vector<2x16x32xf32>
    %cst_106 = arith.constant -1.000000e+30 : f32
    %332 = vector.broadcast %cst_106 : f32 to vector<2x16x16xf32>
    %333 = arith.select %326, %332, %316 : vector<2x16x16xi1>, vector<2x16x16xf32>
    %c4_i32_107 = arith.constant 4 : i32
    %cst_108 = arith.constant dense<0xFF800000> : vector<2x16xf32>
    %334 = vector.multi_reduction <maximumf>, %333, %cst_108 [2] : vector<2x16x16xf32> to vector<2x16xf32>
    %335 = vector.shape_cast %334 : vector<2x16xf32> to vector<2x16x1xf32>
    %336 = vector.broadcast %335 : vector<2x16x1xf32> to vector<2x16x16xf32>
    %337 = arith.cmpf oeq, %333, %336 : vector<2x16x16xf32>
    %c16_i32_109 = arith.constant 16 : i32
    %338 = vector.broadcast %c16_i32_109 : i32 to vector<2x16x16xi32>
    %339 = arith.select %337, %47, %338 : vector<2x16x16xi1>, vector<2x16x16xi32>
    %cst_110 = arith.constant dense<2147483647> : vector<2x16xi32>
    %340 = vector.multi_reduction <minsi>, %339, %cst_110 [2] : vector<2x16x16xi32> to vector<2x16xi32>
    %341 = vector.shape_cast %340 : vector<2x16xi32> to vector<2x16x1xi32>
    %342 = vector.broadcast %341 : vector<2x16x1xi32> to vector<2x16x16xi32>
    %343 = arith.cmpi eq, %47, %342 : vector<2x16x16xi32>
    %344 = arith.extui %343 : vector<2x16x16xi1> to vector<2x16x16xi32>
    %345 = arith.sitofp %344 : vector<2x16x16xi32> to vector<2x16x16xf32>
    %346 = arith.truncf %345 : vector<2x16x16xf32> to vector<2x16x16xbf16>
    "tpu.trace_start"() <{level = 10 : i32, message = "bij,bjc->bic"}> : () -> ()
    %cst_111 = arith.constant dense<0.000000e+00> : vector<2x16x32xf32>
    %347 = tpu.matmul %346, %252, %cst_111 {dimension_numbers = #tpu.dot_dimension_numbers<[2], [1], [1], [2], [0, 0, 0, 1, 1, 2], [0], [0]>} : vector<2x16x16xbf16>, vector<2x16x32xbf16>, vector<2x16x32xf32> -> vector<2x16x32xf32>
    "tpu.trace_stop"() : () -> ()
    %348 = arith.maximumf %331, %347 : vector<2x16x32xf32>
    %cst_112 = arith.constant -1.000000e+30 : f32
    %349 = vector.broadcast %cst_112 : f32 to vector<2x16x16xf32>
    %350 = arith.select %343, %349, %333 : vector<2x16x16xi1>, vector<2x16x16xf32>
    %c5_i32_113 = arith.constant 5 : i32
    %cst_114 = arith.constant dense<0xFF800000> : vector<2x16xf32>
    %351 = vector.multi_reduction <maximumf>, %350, %cst_114 [2] : vector<2x16x16xf32> to vector<2x16xf32>
    %352 = vector.shape_cast %351 : vector<2x16xf32> to vector<2x16x1xf32>
    %353 = vector.broadcast %352 : vector<2x16x1xf32> to vector<2x16x16xf32>
    %354 = arith.cmpf oeq, %350, %353 : vector<2x16x16xf32>
    %c16_i32_115 = arith.constant 16 : i32
    %355 = vector.broadcast %c16_i32_115 : i32 to vector<2x16x16xi32>
    %356 = arith.select %354, %47, %355 : vector<2x16x16xi1>, vector<2x16x16xi32>
    %cst_116 = arith.constant dense<2147483647> : vector<2x16xi32>
    %357 = vector.multi_reduction <minsi>, %356, %cst_116 [2] : vector<2x16x16xi32> to vector<2x16xi32>
    %358 = vector.shape_cast %357 : vector<2x16xi32> to vector<2x16x1xi32>
    %359 = vector.broadcast %358 : vector<2x16x1xi32> to vector<2x16x16xi32>
    %360 = arith.cmpi eq, %47, %359 : vector<2x16x16xi32>
    %361 = arith.extui %360 : vector<2x16x16xi1> to vector<2x16x16xi32>
    %362 = arith.sitofp %361 : vector<2x16x16xi32> to vector<2x16x16xf32>
    %363 = arith.truncf %362 : vector<2x16x16xf32> to vector<2x16x16xbf16>
    "tpu.trace_start"() <{level = 10 : i32, message = "bij,bjc->bic"}> : () -> ()
    %cst_117 = arith.constant dense<0.000000e+00> : vector<2x16x32xf32>
    %364 = tpu.matmul %363, %252, %cst_117 {dimension_numbers = #tpu.dot_dimension_numbers<[2], [1], [1], [2], [0, 0, 0, 1, 1, 2], [0], [0]>} : vector<2x16x16xbf16>, vector<2x16x32xbf16>, vector<2x16x32xf32> -> vector<2x16x32xf32>
    "tpu.trace_stop"() : () -> ()
    %365 = arith.maximumf %348, %364 : vector<2x16x32xf32>
    %cst_118 = arith.constant -1.000000e+30 : f32
    %366 = vector.broadcast %cst_118 : f32 to vector<2x16x16xf32>
    %367 = arith.select %360, %366, %350 : vector<2x16x16xi1>, vector<2x16x16xf32>
    %c6_i32_119 = arith.constant 6 : i32
    %cst_120 = arith.constant dense<0xFF800000> : vector<2x16xf32>
    %368 = vector.multi_reduction <maximumf>, %367, %cst_120 [2] : vector<2x16x16xf32> to vector<2x16xf32>
    %369 = vector.shape_cast %368 : vector<2x16xf32> to vector<2x16x1xf32>
    %370 = vector.broadcast %369 : vector<2x16x1xf32> to vector<2x16x16xf32>
    %371 = arith.cmpf oeq, %367, %370 : vector<2x16x16xf32>
    %c16_i32_121 = arith.constant 16 : i32
    %372 = vector.broadcast %c16_i32_121 : i32 to vector<2x16x16xi32>
    %373 = arith.select %371, %47, %372 : vector<2x16x16xi1>, vector<2x16x16xi32>
    %cst_122 = arith.constant dense<2147483647> : vector<2x16xi32>
    %374 = vector.multi_reduction <minsi>, %373, %cst_122 [2] : vector<2x16x16xi32> to vector<2x16xi32>
    %375 = vector.shape_cast %374 : vector<2x16xi32> to vector<2x16x1xi32>
    %376 = vector.broadcast %375 : vector<2x16x1xi32> to vector<2x16x16xi32>
    %377 = arith.cmpi eq, %47, %376 : vector<2x16x16xi32>
    %378 = arith.extui %377 : vector<2x16x16xi1> to vector<2x16x16xi32>
    %379 = arith.sitofp %378 : vector<2x16x16xi32> to vector<2x16x16xf32>
    %380 = arith.truncf %379 : vector<2x16x16xf32> to vector<2x16x16xbf16>
    "tpu.trace_start"() <{level = 10 : i32, message = "bij,bjc->bic"}> : () -> ()
    %cst_123 = arith.constant dense<0.000000e+00> : vector<2x16x32xf32>
    %381 = tpu.matmul %380, %252, %cst_123 {dimension_numbers = #tpu.dot_dimension_numbers<[2], [1], [1], [2], [0, 0, 0, 1, 1, 2], [0], [0]>} : vector<2x16x16xbf16>, vector<2x16x32xbf16>, vector<2x16x32xf32> -> vector<2x16x32xf32>
    "tpu.trace_stop"() : () -> ()
    %382 = arith.maximumf %365, %381 : vector<2x16x32xf32>
    %cst_124 = arith.constant -1.000000e+30 : f32
    %383 = vector.broadcast %cst_124 : f32 to vector<2x16x16xf32>
    %384 = arith.select %377, %383, %367 : vector<2x16x16xi1>, vector<2x16x16xf32>
    %c7_i32_125 = arith.constant 7 : i32
    %cst_126 = arith.constant dense<0xFF800000> : vector<2x16xf32>
    %385 = vector.multi_reduction <maximumf>, %384, %cst_126 [2] : vector<2x16x16xf32> to vector<2x16xf32>
    %386 = vector.shape_cast %385 : vector<2x16xf32> to vector<2x16x1xf32>
    %387 = vector.broadcast %386 : vector<2x16x1xf32> to vector<2x16x16xf32>
    %388 = arith.cmpf oeq, %384, %387 : vector<2x16x16xf32>
    %c16_i32_127 = arith.constant 16 : i32
    %389 = vector.broadcast %c16_i32_127 : i32 to vector<2x16x16xi32>
    %390 = arith.select %388, %47, %389 : vector<2x16x16xi1>, vector<2x16x16xi32>
    %cst_128 = arith.constant dense<2147483647> : vector<2x16xi32>
    %391 = vector.multi_reduction <minsi>, %390, %cst_128 [2] : vector<2x16x16xi32> to vector<2x16xi32>
    %392 = vector.shape_cast %391 : vector<2x16xi32> to vector<2x16x1xi32>
    %393 = vector.broadcast %392 : vector<2x16x1xi32> to vector<2x16x16xi32>
    %394 = arith.cmpi eq, %47, %393 : vector<2x16x16xi32>
    %395 = arith.extui %394 : vector<2x16x16xi1> to vector<2x16x16xi32>
    %396 = arith.sitofp %395 : vector<2x16x16xi32> to vector<2x16x16xf32>
    %397 = arith.truncf %396 : vector<2x16x16xf32> to vector<2x16x16xbf16>
    "tpu.trace_start"() <{level = 10 : i32, message = "bij,bjc->bic"}> : () -> ()
    %cst_129 = arith.constant dense<0.000000e+00> : vector<2x16x32xf32>
    %398 = tpu.matmul %397, %252, %cst_129 {dimension_numbers = #tpu.dot_dimension_numbers<[2], [1], [1], [2], [0, 0, 0, 1, 1, 2], [0], [0]>} : vector<2x16x16xbf16>, vector<2x16x32xbf16>, vector<2x16x32xf32> -> vector<2x16x32xf32>
    "tpu.trace_stop"() : () -> ()
    %399 = arith.maximumf %382, %398 : vector<2x16x32xf32>
    %cst_130 = arith.constant -1.000000e+30 : f32
    %400 = vector.broadcast %cst_130 : f32 to vector<2x16x16xf32>
    %401 = arith.select %394, %400, %384 : vector<2x16x16xi1>, vector<2x16x16xf32>
    %c8_i32_131 = arith.constant 8 : i32
    %cst_132 = arith.constant dense<0xFF800000> : vector<2x16xf32>
    %402 = vector.multi_reduction <maximumf>, %401, %cst_132 [2] : vector<2x16x16xf32> to vector<2x16xf32>
    %403 = vector.shape_cast %402 : vector<2x16xf32> to vector<2x16x1xf32>
    %404 = vector.broadcast %403 : vector<2x16x1xf32> to vector<2x16x16xf32>
    %405 = arith.cmpf oeq, %401, %404 : vector<2x16x16xf32>
    %c16_i32_133 = arith.constant 16 : i32
    %406 = vector.broadcast %c16_i32_133 : i32 to vector<2x16x16xi32>
    %407 = arith.select %405, %47, %406 : vector<2x16x16xi1>, vector<2x16x16xi32>
    %cst_134 = arith.constant dense<2147483647> : vector<2x16xi32>
    %408 = vector.multi_reduction <minsi>, %407, %cst_134 [2] : vector<2x16x16xi32> to vector<2x16xi32>
    %409 = vector.shape_cast %408 : vector<2x16xi32> to vector<2x16x1xi32>
    %410 = vector.broadcast %409 : vector<2x16x1xi32> to vector<2x16x16xi32>
    %411 = arith.cmpi eq, %47, %410 : vector<2x16x16xi32>
    %412 = arith.extui %411 : vector<2x16x16xi1> to vector<2x16x16xi32>
    %413 = arith.sitofp %412 : vector<2x16x16xi32> to vector<2x16x16xf32>
    %414 = arith.truncf %413 : vector<2x16x16xf32> to vector<2x16x16xbf16>
    "tpu.trace_start"() <{level = 10 : i32, message = "bij,bjc->bic"}> : () -> ()
    %cst_135 = arith.constant dense<0.000000e+00> : vector<2x16x32xf32>
    %415 = tpu.matmul %414, %252, %cst_135 {dimension_numbers = #tpu.dot_dimension_numbers<[2], [1], [1], [2], [0, 0, 0, 1, 1, 2], [0], [0]>} : vector<2x16x16xbf16>, vector<2x16x32xbf16>, vector<2x16x32xf32> -> vector<2x16x32xf32>
    "tpu.trace_stop"() : () -> ()
    %416 = arith.maximumf %399, %415 : vector<2x16x32xf32>
    %cst_136 = arith.constant -1.000000e+30 : f32
    %417 = vector.broadcast %cst_136 : f32 to vector<2x16x16xf32>
    %418 = arith.select %411, %417, %401 : vector<2x16x16xi1>, vector<2x16x16xf32>
    %c9_i32_137 = arith.constant 9 : i32
    %cst_138 = arith.constant dense<0xFF800000> : vector<2x16xf32>
    %419 = vector.multi_reduction <maximumf>, %418, %cst_138 [2] : vector<2x16x16xf32> to vector<2x16xf32>
    %420 = vector.shape_cast %419 : vector<2x16xf32> to vector<2x16x1xf32>
    %421 = vector.broadcast %420 : vector<2x16x1xf32> to vector<2x16x16xf32>
    %422 = arith.cmpf oeq, %418, %421 : vector<2x16x16xf32>
    %c16_i32_139 = arith.constant 16 : i32
    %423 = vector.broadcast %c16_i32_139 : i32 to vector<2x16x16xi32>
    %424 = arith.select %422, %47, %423 : vector<2x16x16xi1>, vector<2x16x16xi32>
    %cst_140 = arith.constant dense<2147483647> : vector<2x16xi32>
    %425 = vector.multi_reduction <minsi>, %424, %cst_140 [2] : vector<2x16x16xi32> to vector<2x16xi32>
    %426 = vector.shape_cast %425 : vector<2x16xi32> to vector<2x16x1xi32>
    %427 = vector.broadcast %426 : vector<2x16x1xi32> to vector<2x16x16xi32>
    %428 = arith.cmpi eq, %47, %427 : vector<2x16x16xi32>
    %429 = arith.extui %428 : vector<2x16x16xi1> to vector<2x16x16xi32>
    %430 = arith.sitofp %429 : vector<2x16x16xi32> to vector<2x16x16xf32>
    %431 = arith.truncf %430 : vector<2x16x16xf32> to vector<2x16x16xbf16>
    "tpu.trace_start"() <{level = 10 : i32, message = "bij,bjc->bic"}> : () -> ()
    %cst_141 = arith.constant dense<0.000000e+00> : vector<2x16x32xf32>
    %432 = tpu.matmul %431, %252, %cst_141 {dimension_numbers = #tpu.dot_dimension_numbers<[2], [1], [1], [2], [0, 0, 0, 1, 1, 2], [0], [0]>} : vector<2x16x16xbf16>, vector<2x16x32xbf16>, vector<2x16x32xf32> -> vector<2x16x32xf32>
    "tpu.trace_stop"() : () -> ()
    %433 = arith.maximumf %416, %432 : vector<2x16x32xf32>
    %cst_142 = arith.constant -1.000000e+30 : f32
    %434 = vector.broadcast %cst_142 : f32 to vector<2x16x16xf32>
    %435 = arith.select %428, %434, %418 : vector<2x16x16xi1>, vector<2x16x16xf32>
    %436 = vector.shape_cast %433 : vector<2x16x32xf32> to vector<32x32xf32>
    %437 = arith.addf %436, %256 : vector<32x32xf32>
    %cst_143 = arith.constant 0.000000e+00 : f32
    %438 = vector.broadcast %cst_143 : f32 to vector<32x32xf32>
    %439 = arith.cmpf ogt, %437, %438 : vector<32x32xf32>
    %cst_144 = arith.constant 2.000000e-01 : f32
    %440 = vector.broadcast %cst_144 : f32 to vector<32x32xf32>
    %441 = arith.mulf %440, %437 : vector<32x32xf32>
    %442 = arith.select %439, %437, %441 : vector<32x32xi1>, vector<32x32xf32>
    %443 = arith.truncf %442 : vector<32x32xf32> to vector<32x32xbf16>
    %c2 = arith.constant 2 : index
    %c0_145 = arith.constant 0 : index
    %c0_146 = arith.constant 0 : index
    %444 = vector.load %arg6[%c2, %c0_145, %c0_146] : memref<3x32x64xbf16, #tpu.memory_space<vmem>>, vector<1x32x64xbf16>
    %445 = vector.shape_cast %444 : vector<1x32x64xbf16> to vector<32x64xbf16>
    %cst_147 = arith.constant dense<0.000000e+00> : vector<32x64xf32>
    %446 = tpu.matmul %443, %445, %cst_147 {dimension_numbers = #tpu.dot_dimension_numbers<[1], [0], [0], [1], [0, 0, 1, 1], [], []>} : vector<32x32xbf16>, vector<32x64xbf16>, vector<32x64xf32> -> vector<32x64xf32>
    %447 = vector.extract_strided_slice %446 {offsets = [0, 0], sizes = [32, 32], strides = [1, 1]} : vector<32x64xf32> to vector<32x32xf32>
    %448 = vector.shape_cast %447 : vector<32x32xf32> to vector<2x16x32xf32>
    %449 = arith.truncf %448 : vector<2x16x32xf32> to vector<2x16x32xbf16>
    %450 = vector.extract_strided_slice %446 {offsets = [0, 32], sizes = [32, 32], strides = [1, 1]} : vector<32x64xf32> to vector<32x32xf32>
    %451 = vector.extract_strided_slice %0 {offsets = [5, 0], sizes = [1, 32], strides = [1, 1]} : vector<6x32xf32> to vector<1x32xf32>
    %452 = vector.broadcast %451 : vector<1x32xf32> to vector<32x32xf32>
    %453 = arith.addf %450, %452 : vector<32x32xf32>
    %454 = vector.shape_cast %442 : vector<32x32xf32> to vector<2x16x32xf32>
    %455 = arith.truncf %454 : vector<2x16x32xf32> to vector<2x16x32xbf16>
    "tpu.trace_start"() <{level = 10 : i32, message = "bic,bjc->bij"}> : () -> ()
    %cst_148 = arith.constant dense<0.000000e+00> : vector<2x16x16xf32>
    %456 = tpu.matmul %455, %455, %cst_148 {dimension_numbers = #tpu.dot_dimension_numbers<[2], [2], [1], [1], [0, 0, 0, 1, 1, 1], [0], [0]>} : vector<2x16x32xbf16>, vector<2x16x32xbf16>, vector<2x16x16xf32> -> vector<2x16x16xf32>
    "tpu.trace_stop"() : () -> ()
    %457 = arith.mulf %454, %454 : vector<2x16x32xf32>
    "tpu.trace_start"() <{level = 10 : i32, message = "bic,bjc->bij"}> : () -> ()
    %cst_149 = arith.constant dense<0.000000e+00> : vector<2x16x16xf32>
    %458 = tpu.matmul %48, %457, %cst_149 {dimension_numbers = #tpu.dot_dimension_numbers<[2], [2], [1], [1], [0, 0, 0, 1, 1, 1], [0], [0]>} : vector<2x16x32xf32>, vector<2x16x32xf32>, vector<2x16x16xf32> -> vector<2x16x16xf32>
    "tpu.trace_stop"() : () -> ()
    %cst_150 = arith.constant 2.000000e+00 : f32
    %459 = vector.broadcast %cst_150 : f32 to vector<2x16x16xf32>
    %460 = arith.mulf %459, %456 : vector<2x16x16xf32>
    %461 = arith.subf %460, %458 : vector<2x16x16xf32>
    %cst_151 = arith.constant -1.000000e+30 : f32
    %462 = vector.broadcast %cst_151 : f32 to vector<2x16x32xf32>
    %c0_i32_152 = arith.constant 0 : i32
    %cst_153 = arith.constant dense<0xFF800000> : vector<2x16xf32>
    %463 = vector.multi_reduction <maximumf>, %461, %cst_153 [2] : vector<2x16x16xf32> to vector<2x16xf32>
    %464 = vector.shape_cast %463 : vector<2x16xf32> to vector<2x16x1xf32>
    %465 = vector.broadcast %464 : vector<2x16x1xf32> to vector<2x16x16xf32>
    %466 = arith.cmpf oeq, %461, %465 : vector<2x16x16xf32>
    %c16_i32_154 = arith.constant 16 : i32
    %467 = vector.broadcast %c16_i32_154 : i32 to vector<2x16x16xi32>
    %468 = arith.select %466, %47, %467 : vector<2x16x16xi1>, vector<2x16x16xi32>
    %cst_155 = arith.constant dense<2147483647> : vector<2x16xi32>
    %469 = vector.multi_reduction <minsi>, %468, %cst_155 [2] : vector<2x16x16xi32> to vector<2x16xi32>
    %470 = vector.shape_cast %469 : vector<2x16xi32> to vector<2x16x1xi32>
    %471 = vector.broadcast %470 : vector<2x16x1xi32> to vector<2x16x16xi32>
    %472 = arith.cmpi eq, %47, %471 : vector<2x16x16xi32>
    %473 = arith.extui %472 : vector<2x16x16xi1> to vector<2x16x16xi32>
    %474 = arith.sitofp %473 : vector<2x16x16xi32> to vector<2x16x16xf32>
    %475 = arith.truncf %474 : vector<2x16x16xf32> to vector<2x16x16xbf16>
    "tpu.trace_start"() <{level = 10 : i32, message = "bij,bjc->bic"}> : () -> ()
    %cst_156 = arith.constant dense<0.000000e+00> : vector<2x16x32xf32>
    %476 = tpu.matmul %475, %449, %cst_156 {dimension_numbers = #tpu.dot_dimension_numbers<[2], [1], [1], [2], [0, 0, 0, 1, 1, 2], [0], [0]>} : vector<2x16x16xbf16>, vector<2x16x32xbf16>, vector<2x16x32xf32> -> vector<2x16x32xf32>
    "tpu.trace_stop"() : () -> ()
    %477 = arith.maximumf %462, %476 : vector<2x16x32xf32>
    %cst_157 = arith.constant -1.000000e+30 : f32
    %478 = vector.broadcast %cst_157 : f32 to vector<2x16x16xf32>
    %479 = arith.select %472, %478, %461 : vector<2x16x16xi1>, vector<2x16x16xf32>
    %c1_i32_158 = arith.constant 1 : i32
    %cst_159 = arith.constant dense<0xFF800000> : vector<2x16xf32>
    %480 = vector.multi_reduction <maximumf>, %479, %cst_159 [2] : vector<2x16x16xf32> to vector<2x16xf32>
    %481 = vector.shape_cast %480 : vector<2x16xf32> to vector<2x16x1xf32>
    %482 = vector.broadcast %481 : vector<2x16x1xf32> to vector<2x16x16xf32>
    %483 = arith.cmpf oeq, %479, %482 : vector<2x16x16xf32>
    %c16_i32_160 = arith.constant 16 : i32
    %484 = vector.broadcast %c16_i32_160 : i32 to vector<2x16x16xi32>
    %485 = arith.select %483, %47, %484 : vector<2x16x16xi1>, vector<2x16x16xi32>
    %cst_161 = arith.constant dense<2147483647> : vector<2x16xi32>
    %486 = vector.multi_reduction <minsi>, %485, %cst_161 [2] : vector<2x16x16xi32> to vector<2x16xi32>
    %487 = vector.shape_cast %486 : vector<2x16xi32> to vector<2x16x1xi32>
    %488 = vector.broadcast %487 : vector<2x16x1xi32> to vector<2x16x16xi32>
    %489 = arith.cmpi eq, %47, %488 : vector<2x16x16xi32>
    %490 = arith.extui %489 : vector<2x16x16xi1> to vector<2x16x16xi32>
    %491 = arith.sitofp %490 : vector<2x16x16xi32> to vector<2x16x16xf32>
    %492 = arith.truncf %491 : vector<2x16x16xf32> to vector<2x16x16xbf16>
    "tpu.trace_start"() <{level = 10 : i32, message = "bij,bjc->bic"}> : () -> ()
    %cst_162 = arith.constant dense<0.000000e+00> : vector<2x16x32xf32>
    %493 = tpu.matmul %492, %449, %cst_162 {dimension_numbers = #tpu.dot_dimension_numbers<[2], [1], [1], [2], [0, 0, 0, 1, 1, 2], [0], [0]>} : vector<2x16x16xbf16>, vector<2x16x32xbf16>, vector<2x16x32xf32> -> vector<2x16x32xf32>
    "tpu.trace_stop"() : () -> ()
    %494 = arith.maximumf %477, %493 : vector<2x16x32xf32>
    %cst_163 = arith.constant -1.000000e+30 : f32
    %495 = vector.broadcast %cst_163 : f32 to vector<2x16x16xf32>
    %496 = arith.select %489, %495, %479 : vector<2x16x16xi1>, vector<2x16x16xf32>
    %c2_i32_164 = arith.constant 2 : i32
    %cst_165 = arith.constant dense<0xFF800000> : vector<2x16xf32>
    %497 = vector.multi_reduction <maximumf>, %496, %cst_165 [2] : vector<2x16x16xf32> to vector<2x16xf32>
    %498 = vector.shape_cast %497 : vector<2x16xf32> to vector<2x16x1xf32>
    %499 = vector.broadcast %498 : vector<2x16x1xf32> to vector<2x16x16xf32>
    %500 = arith.cmpf oeq, %496, %499 : vector<2x16x16xf32>
    %c16_i32_166 = arith.constant 16 : i32
    %501 = vector.broadcast %c16_i32_166 : i32 to vector<2x16x16xi32>
    %502 = arith.select %500, %47, %501 : vector<2x16x16xi1>, vector<2x16x16xi32>
    %cst_167 = arith.constant dense<2147483647> : vector<2x16xi32>
    %503 = vector.multi_reduction <minsi>, %502, %cst_167 [2] : vector<2x16x16xi32> to vector<2x16xi32>
    %504 = vector.shape_cast %503 : vector<2x16xi32> to vector<2x16x1xi32>
    %505 = vector.broadcast %504 : vector<2x16x1xi32> to vector<2x16x16xi32>
    %506 = arith.cmpi eq, %47, %505 : vector<2x16x16xi32>
    %507 = arith.extui %506 : vector<2x16x16xi1> to vector<2x16x16xi32>
    %508 = arith.sitofp %507 : vector<2x16x16xi32> to vector<2x16x16xf32>
    %509 = arith.truncf %508 : vector<2x16x16xf32> to vector<2x16x16xbf16>
    "tpu.trace_start"() <{level = 10 : i32, message = "bij,bjc->bic"}> : () -> ()
    %cst_168 = arith.constant dense<0.000000e+00> : vector<2x16x32xf32>
    %510 = tpu.matmul %509, %449, %cst_168 {dimension_numbers = #tpu.dot_dimension_numbers<[2], [1], [1], [2], [0, 0, 0, 1, 1, 2], [0], [0]>} : vector<2x16x16xbf16>, vector<2x16x32xbf16>, vector<2x16x32xf32> -> vector<2x16x32xf32>
    "tpu.trace_stop"() : () -> ()
    %511 = arith.maximumf %494, %510 : vector<2x16x32xf32>
    %cst_169 = arith.constant -1.000000e+30 : f32
    %512 = vector.broadcast %cst_169 : f32 to vector<2x16x16xf32>
    %513 = arith.select %506, %512, %496 : vector<2x16x16xi1>, vector<2x16x16xf32>
    %c3_i32_170 = arith.constant 3 : i32
    %cst_171 = arith.constant dense<0xFF800000> : vector<2x16xf32>
    %514 = vector.multi_reduction <maximumf>, %513, %cst_171 [2] : vector<2x16x16xf32> to vector<2x16xf32>
    %515 = vector.shape_cast %514 : vector<2x16xf32> to vector<2x16x1xf32>
    %516 = vector.broadcast %515 : vector<2x16x1xf32> to vector<2x16x16xf32>
    %517 = arith.cmpf oeq, %513, %516 : vector<2x16x16xf32>
    %c16_i32_172 = arith.constant 16 : i32
    %518 = vector.broadcast %c16_i32_172 : i32 to vector<2x16x16xi32>
    %519 = arith.select %517, %47, %518 : vector<2x16x16xi1>, vector<2x16x16xi32>
    %cst_173 = arith.constant dense<2147483647> : vector<2x16xi32>
    %520 = vector.multi_reduction <minsi>, %519, %cst_173 [2] : vector<2x16x16xi32> to vector<2x16xi32>
    %521 = vector.shape_cast %520 : vector<2x16xi32> to vector<2x16x1xi32>
    %522 = vector.broadcast %521 : vector<2x16x1xi32> to vector<2x16x16xi32>
    %523 = arith.cmpi eq, %47, %522 : vector<2x16x16xi32>
    %524 = arith.extui %523 : vector<2x16x16xi1> to vector<2x16x16xi32>
    %525 = arith.sitofp %524 : vector<2x16x16xi32> to vector<2x16x16xf32>
    %526 = arith.truncf %525 : vector<2x16x16xf32> to vector<2x16x16xbf16>
    "tpu.trace_start"() <{level = 10 : i32, message = "bij,bjc->bic"}> : () -> ()
    %cst_174 = arith.constant dense<0.000000e+00> : vector<2x16x32xf32>
    %527 = tpu.matmul %526, %449, %cst_174 {dimension_numbers = #tpu.dot_dimension_numbers<[2], [1], [1], [2], [0, 0, 0, 1, 1, 2], [0], [0]>} : vector<2x16x16xbf16>, vector<2x16x32xbf16>, vector<2x16x32xf32> -> vector<2x16x32xf32>
    "tpu.trace_stop"() : () -> ()
    %528 = arith.maximumf %511, %527 : vector<2x16x32xf32>
    %cst_175 = arith.constant -1.000000e+30 : f32
    %529 = vector.broadcast %cst_175 : f32 to vector<2x16x16xf32>
    %530 = arith.select %523, %529, %513 : vector<2x16x16xi1>, vector<2x16x16xf32>
    %c4_i32_176 = arith.constant 4 : i32
    %cst_177 = arith.constant dense<0xFF800000> : vector<2x16xf32>
    %531 = vector.multi_reduction <maximumf>, %530, %cst_177 [2] : vector<2x16x16xf32> to vector<2x16xf32>
    %532 = vector.shape_cast %531 : vector<2x16xf32> to vector<2x16x1xf32>
    %533 = vector.broadcast %532 : vector<2x16x1xf32> to vector<2x16x16xf32>
    %534 = arith.cmpf oeq, %530, %533 : vector<2x16x16xf32>
    %c16_i32_178 = arith.constant 16 : i32
    %535 = vector.broadcast %c16_i32_178 : i32 to vector<2x16x16xi32>
    %536 = arith.select %534, %47, %535 : vector<2x16x16xi1>, vector<2x16x16xi32>
    %cst_179 = arith.constant dense<2147483647> : vector<2x16xi32>
    %537 = vector.multi_reduction <minsi>, %536, %cst_179 [2] : vector<2x16x16xi32> to vector<2x16xi32>
    %538 = vector.shape_cast %537 : vector<2x16xi32> to vector<2x16x1xi32>
    %539 = vector.broadcast %538 : vector<2x16x1xi32> to vector<2x16x16xi32>
    %540 = arith.cmpi eq, %47, %539 : vector<2x16x16xi32>
    %541 = arith.extui %540 : vector<2x16x16xi1> to vector<2x16x16xi32>
    %542 = arith.sitofp %541 : vector<2x16x16xi32> to vector<2x16x16xf32>
    %543 = arith.truncf %542 : vector<2x16x16xf32> to vector<2x16x16xbf16>
    "tpu.trace_start"() <{level = 10 : i32, message = "bij,bjc->bic"}> : () -> ()
    %cst_180 = arith.constant dense<0.000000e+00> : vector<2x16x32xf32>
    %544 = tpu.matmul %543, %449, %cst_180 {dimension_numbers = #tpu.dot_dimension_numbers<[2], [1], [1], [2], [0, 0, 0, 1, 1, 2], [0], [0]>} : vector<2x16x16xbf16>, vector<2x16x32xbf16>, vector<2x16x32xf32> -> vector<2x16x32xf32>
    "tpu.trace_stop"() : () -> ()
    %545 = arith.maximumf %528, %544 : vector<2x16x32xf32>
    %cst_181 = arith.constant -1.000000e+30 : f32
    %546 = vector.broadcast %cst_181 : f32 to vector<2x16x16xf32>
    %547 = arith.select %540, %546, %530 : vector<2x16x16xi1>, vector<2x16x16xf32>
    %c5_i32_182 = arith.constant 5 : i32
    %cst_183 = arith.constant dense<0xFF800000> : vector<2x16xf32>
    %548 = vector.multi_reduction <maximumf>, %547, %cst_183 [2] : vector<2x16x16xf32> to vector<2x16xf32>
    %549 = vector.shape_cast %548 : vector<2x16xf32> to vector<2x16x1xf32>
    %550 = vector.broadcast %549 : vector<2x16x1xf32> to vector<2x16x16xf32>
    %551 = arith.cmpf oeq, %547, %550 : vector<2x16x16xf32>
    %c16_i32_184 = arith.constant 16 : i32
    %552 = vector.broadcast %c16_i32_184 : i32 to vector<2x16x16xi32>
    %553 = arith.select %551, %47, %552 : vector<2x16x16xi1>, vector<2x16x16xi32>
    %cst_185 = arith.constant dense<2147483647> : vector<2x16xi32>
    %554 = vector.multi_reduction <minsi>, %553, %cst_185 [2] : vector<2x16x16xi32> to vector<2x16xi32>
    %555 = vector.shape_cast %554 : vector<2x16xi32> to vector<2x16x1xi32>
    %556 = vector.broadcast %555 : vector<2x16x1xi32> to vector<2x16x16xi32>
    %557 = arith.cmpi eq, %47, %556 : vector<2x16x16xi32>
    %558 = arith.extui %557 : vector<2x16x16xi1> to vector<2x16x16xi32>
    %559 = arith.sitofp %558 : vector<2x16x16xi32> to vector<2x16x16xf32>
    %560 = arith.truncf %559 : vector<2x16x16xf32> to vector<2x16x16xbf16>
    "tpu.trace_start"() <{level = 10 : i32, message = "bij,bjc->bic"}> : () -> ()
    %cst_186 = arith.constant dense<0.000000e+00> : vector<2x16x32xf32>
    %561 = tpu.matmul %560, %449, %cst_186 {dimension_numbers = #tpu.dot_dimension_numbers<[2], [1], [1], [2], [0, 0, 0, 1, 1, 2], [0], [0]>} : vector<2x16x16xbf16>, vector<2x16x32xbf16>, vector<2x16x32xf32> -> vector<2x16x32xf32>
    "tpu.trace_stop"() : () -> ()
    %562 = arith.maximumf %545, %561 : vector<2x16x32xf32>
    %cst_187 = arith.constant -1.000000e+30 : f32
    %563 = vector.broadcast %cst_187 : f32 to vector<2x16x16xf32>
    %564 = arith.select %557, %563, %547 : vector<2x16x16xi1>, vector<2x16x16xf32>
    %c6_i32_188 = arith.constant 6 : i32
    %cst_189 = arith.constant dense<0xFF800000> : vector<2x16xf32>
    %565 = vector.multi_reduction <maximumf>, %564, %cst_189 [2] : vector<2x16x16xf32> to vector<2x16xf32>
    %566 = vector.shape_cast %565 : vector<2x16xf32> to vector<2x16x1xf32>
    %567 = vector.broadcast %566 : vector<2x16x1xf32> to vector<2x16x16xf32>
    %568 = arith.cmpf oeq, %564, %567 : vector<2x16x16xf32>
    %c16_i32_190 = arith.constant 16 : i32
    %569 = vector.broadcast %c16_i32_190 : i32 to vector<2x16x16xi32>
    %570 = arith.select %568, %47, %569 : vector<2x16x16xi1>, vector<2x16x16xi32>
    %cst_191 = arith.constant dense<2147483647> : vector<2x16xi32>
    %571 = vector.multi_reduction <minsi>, %570, %cst_191 [2] : vector<2x16x16xi32> to vector<2x16xi32>
    %572 = vector.shape_cast %571 : vector<2x16xi32> to vector<2x16x1xi32>
    %573 = vector.broadcast %572 : vector<2x16x1xi32> to vector<2x16x16xi32>
    %574 = arith.cmpi eq, %47, %573 : vector<2x16x16xi32>
    %575 = arith.extui %574 : vector<2x16x16xi1> to vector<2x16x16xi32>
    %576 = arith.sitofp %575 : vector<2x16x16xi32> to vector<2x16x16xf32>
    %577 = arith.truncf %576 : vector<2x16x16xf32> to vector<2x16x16xbf16>
    "tpu.trace_start"() <{level = 10 : i32, message = "bij,bjc->bic"}> : () -> ()
    %cst_192 = arith.constant dense<0.000000e+00> : vector<2x16x32xf32>
    %578 = tpu.matmul %577, %449, %cst_192 {dimension_numbers = #tpu.dot_dimension_numbers<[2], [1], [1], [2], [0, 0, 0, 1, 1, 2], [0], [0]>} : vector<2x16x16xbf16>, vector<2x16x32xbf16>, vector<2x16x32xf32> -> vector<2x16x32xf32>
    "tpu.trace_stop"() : () -> ()
    %579 = arith.maximumf %562, %578 : vector<2x16x32xf32>
    %cst_193 = arith.constant -1.000000e+30 : f32
    %580 = vector.broadcast %cst_193 : f32 to vector<2x16x16xf32>
    %581 = arith.select %574, %580, %564 : vector<2x16x16xi1>, vector<2x16x16xf32>
    %c7_i32_194 = arith.constant 7 : i32
    %cst_195 = arith.constant dense<0xFF800000> : vector<2x16xf32>
    %582 = vector.multi_reduction <maximumf>, %581, %cst_195 [2] : vector<2x16x16xf32> to vector<2x16xf32>
    %583 = vector.shape_cast %582 : vector<2x16xf32> to vector<2x16x1xf32>
    %584 = vector.broadcast %583 : vector<2x16x1xf32> to vector<2x16x16xf32>
    %585 = arith.cmpf oeq, %581, %584 : vector<2x16x16xf32>
    %c16_i32_196 = arith.constant 16 : i32
    %586 = vector.broadcast %c16_i32_196 : i32 to vector<2x16x16xi32>
    %587 = arith.select %585, %47, %586 : vector<2x16x16xi1>, vector<2x16x16xi32>
    %cst_197 = arith.constant dense<2147483647> : vector<2x16xi32>
    %588 = vector.multi_reduction <minsi>, %587, %cst_197 [2] : vector<2x16x16xi32> to vector<2x16xi32>
    %589 = vector.shape_cast %588 : vector<2x16xi32> to vector<2x16x1xi32>
    %590 = vector.broadcast %589 : vector<2x16x1xi32> to vector<2x16x16xi32>
    %591 = arith.cmpi eq, %47, %590 : vector<2x16x16xi32>
    %592 = arith.extui %591 : vector<2x16x16xi1> to vector<2x16x16xi32>
    %593 = arith.sitofp %592 : vector<2x16x16xi32> to vector<2x16x16xf32>
    %594 = arith.truncf %593 : vector<2x16x16xf32> to vector<2x16x16xbf16>
    "tpu.trace_start"() <{level = 10 : i32, message = "bij,bjc->bic"}> : () -> ()
    %cst_198 = arith.constant dense<0.000000e+00> : vector<2x16x32xf32>
    %595 = tpu.matmul %594, %449, %cst_198 {dimension_numbers = #tpu.dot_dimension_numbers<[2], [1], [1], [2], [0, 0, 0, 1, 1, 2], [0], [0]>} : vector<2x16x16xbf16>, vector<2x16x32xbf16>, vector<2x16x32xf32> -> vector<2x16x32xf32>
    "tpu.trace_stop"() : () -> ()
    %596 = arith.maximumf %579, %595 : vector<2x16x32xf32>
    %cst_199 = arith.constant -1.000000e+30 : f32
    %597 = vector.broadcast %cst_199 : f32 to vector<2x16x16xf32>
    %598 = arith.select %591, %597, %581 : vector<2x16x16xi1>, vector<2x16x16xf32>
    %c8_i32_200 = arith.constant 8 : i32
    %cst_201 = arith.constant dense<0xFF800000> : vector<2x16xf32>
    %599 = vector.multi_reduction <maximumf>, %598, %cst_201 [2] : vector<2x16x16xf32> to vector<2x16xf32>
    %600 = vector.shape_cast %599 : vector<2x16xf32> to vector<2x16x1xf32>
    %601 = vector.broadcast %600 : vector<2x16x1xf32> to vector<2x16x16xf32>
    %602 = arith.cmpf oeq, %598, %601 : vector<2x16x16xf32>
    %c16_i32_202 = arith.constant 16 : i32
    %603 = vector.broadcast %c16_i32_202 : i32 to vector<2x16x16xi32>
    %604 = arith.select %602, %47, %603 : vector<2x16x16xi1>, vector<2x16x16xi32>
    %cst_203 = arith.constant dense<2147483647> : vector<2x16xi32>
    %605 = vector.multi_reduction <minsi>, %604, %cst_203 [2] : vector<2x16x16xi32> to vector<2x16xi32>
    %606 = vector.shape_cast %605 : vector<2x16xi32> to vector<2x16x1xi32>
    %607 = vector.broadcast %606 : vector<2x16x1xi32> to vector<2x16x16xi32>
    %608 = arith.cmpi eq, %47, %607 : vector<2x16x16xi32>
    %609 = arith.extui %608 : vector<2x16x16xi1> to vector<2x16x16xi32>
    %610 = arith.sitofp %609 : vector<2x16x16xi32> to vector<2x16x16xf32>
    %611 = arith.truncf %610 : vector<2x16x16xf32> to vector<2x16x16xbf16>
    "tpu.trace_start"() <{level = 10 : i32, message = "bij,bjc->bic"}> : () -> ()
    %cst_204 = arith.constant dense<0.000000e+00> : vector<2x16x32xf32>
    %612 = tpu.matmul %611, %449, %cst_204 {dimension_numbers = #tpu.dot_dimension_numbers<[2], [1], [1], [2], [0, 0, 0, 1, 1, 2], [0], [0]>} : vector<2x16x16xbf16>, vector<2x16x32xbf16>, vector<2x16x32xf32> -> vector<2x16x32xf32>
    "tpu.trace_stop"() : () -> ()
    %613 = arith.maximumf %596, %612 : vector<2x16x32xf32>
    %cst_205 = arith.constant -1.000000e+30 : f32
    %614 = vector.broadcast %cst_205 : f32 to vector<2x16x16xf32>
    %615 = arith.select %608, %614, %598 : vector<2x16x16xi1>, vector<2x16x16xf32>
    %c9_i32_206 = arith.constant 9 : i32
    %cst_207 = arith.constant dense<0xFF800000> : vector<2x16xf32>
    %616 = vector.multi_reduction <maximumf>, %615, %cst_207 [2] : vector<2x16x16xf32> to vector<2x16xf32>
    %617 = vector.shape_cast %616 : vector<2x16xf32> to vector<2x16x1xf32>
    %618 = vector.broadcast %617 : vector<2x16x1xf32> to vector<2x16x16xf32>
    %619 = arith.cmpf oeq, %615, %618 : vector<2x16x16xf32>
    %c16_i32_208 = arith.constant 16 : i32
    %620 = vector.broadcast %c16_i32_208 : i32 to vector<2x16x16xi32>
    %621 = arith.select %619, %47, %620 : vector<2x16x16xi1>, vector<2x16x16xi32>
    %cst_209 = arith.constant dense<2147483647> : vector<2x16xi32>
    %622 = vector.multi_reduction <minsi>, %621, %cst_209 [2] : vector<2x16x16xi32> to vector<2x16xi32>
    %623 = vector.shape_cast %622 : vector<2x16xi32> to vector<2x16x1xi32>
    %624 = vector.broadcast %623 : vector<2x16x1xi32> to vector<2x16x16xi32>
    %625 = arith.cmpi eq, %47, %624 : vector<2x16x16xi32>
    %626 = arith.extui %625 : vector<2x16x16xi1> to vector<2x16x16xi32>
    %627 = arith.sitofp %626 : vector<2x16x16xi32> to vector<2x16x16xf32>
    %628 = arith.truncf %627 : vector<2x16x16xf32> to vector<2x16x16xbf16>
    "tpu.trace_start"() <{level = 10 : i32, message = "bij,bjc->bic"}> : () -> ()
    %cst_210 = arith.constant dense<0.000000e+00> : vector<2x16x32xf32>
    %629 = tpu.matmul %628, %449, %cst_210 {dimension_numbers = #tpu.dot_dimension_numbers<[2], [1], [1], [2], [0, 0, 0, 1, 1, 2], [0], [0]>} : vector<2x16x16xbf16>, vector<2x16x32xbf16>, vector<2x16x32xf32> -> vector<2x16x32xf32>
    "tpu.trace_stop"() : () -> ()
    %630 = arith.maximumf %613, %629 : vector<2x16x32xf32>
    %cst_211 = arith.constant -1.000000e+30 : f32
    %631 = vector.broadcast %cst_211 : f32 to vector<2x16x16xf32>
    %632 = arith.select %625, %631, %615 : vector<2x16x16xi1>, vector<2x16x16xf32>
    %633 = vector.shape_cast %630 : vector<2x16x32xf32> to vector<32x32xf32>
    %634 = arith.addf %633, %453 : vector<32x32xf32>
    %cst_212 = arith.constant 0.000000e+00 : f32
    %635 = vector.broadcast %cst_212 : f32 to vector<32x32xf32>
    %636 = arith.cmpf ogt, %634, %635 : vector<32x32xf32>
    %cst_213 = arith.constant 2.000000e-01 : f32
    %637 = vector.broadcast %cst_213 : f32 to vector<32x32xf32>
    %638 = arith.mulf %637, %634 : vector<32x32xf32>
    %639 = arith.select %636, %634, %638 : vector<32x32xi1>, vector<32x32xf32>
    %640 = vector.shape_cast %639 : vector<32x32xf32> to vector<2x16x32xf32>
    %c0_214 = arith.constant 0 : index
    %c0_215 = arith.constant 0 : index
    %c0_216 = arith.constant 0 : index
    %641 = vector.load %arg7[%c0_214, %c0_215, %c0_216] : memref<2x16x32xf32, #tpu.memory_space<vmem>>, vector<2x16x32xf32>
    tpu.vector_store %arg7[%c0_214, %c0_215, %c0_216], %640 {strides = array<i32>} : memref<2x16x32xf32, #tpu.memory_space<vmem>>, vector<2x16x32xf32>,
    return
  }
  func.func @transform_0(%arg0: i32) -> (i32, i32, i32) {
    %c0_i32 = arith.constant 0 : i32
    %c0_i32_0 = arith.constant 0 : i32
    %c0_i32_1 = arith.constant 0 : i32
    return %arg0, %c0_i32, %c0_i32_0 : i32, i32, i32
  }
  func.func @transform_1(%arg0: i32) -> (i32, i32) {
    %c0_i32 = arith.constant 0 : i32
    %c0_i32_0 = arith.constant 0 : i32
    %c0_i32_1 = arith.constant 0 : i32
    return %c0_i32, %c0_i32_0 : i32, i32
  }
  func.func @transform_2(%arg0: i32) -> (i32, i32) {
    %c0_i32 = arith.constant 0 : i32
    %c0_i32_0 = arith.constant 0 : i32
    %c0_i32_1 = arith.constant 0 : i32
    return %c0_i32, %c0_i32_0 : i32, i32
  }
  func.func @transform_3(%arg0: i32) -> (i32, i32) {
    %c0_i32 = arith.constant 0 : i32
    %c0_i32_0 = arith.constant 0 : i32
    %c0_i32_1 = arith.constant 0 : i32
    return %c0_i32, %c0_i32_0 : i32, i32
  }
  func.func @transform_4(%arg0: i32) -> (i32, i32) {
    %c0_i32 = arith.constant 0 : i32
    %c0_i32_0 = arith.constant 0 : i32
    %c0_i32_1 = arith.constant 0 : i32
    return %c0_i32, %c0_i32_0 : i32, i32
  }
  func.func @transform_5(%arg0: i32) -> (i32, i32, i32) {
    %c0_i32 = arith.constant 0 : i32
    %c0_i32_0 = arith.constant 0 : i32
    %c0_i32_1 = arith.constant 0 : i32
    %c0_i32_2 = arith.constant 0 : i32
    return %c0_i32, %c0_i32_0, %c0_i32_1 : i32, i32, i32
  }
  func.func @transform_6(%arg0: i32) -> (i32, i32, i32) {
    %c0_i32 = arith.constant 0 : i32
    %c0_i32_0 = arith.constant 0 : i32
    %c0_i32_1 = arith.constant 0 : i32
    return %arg0, %c0_i32, %c0_i32_0 : i32, i32, i32
  }
}

</mosaic_0001>

<llo_original>
// kernel: graph_attention_network.1
$region0: #{graph_attention_network.1}
  #allocation0 [shape = 'u32[]', space=smem, size = 0x4, offset = 0x4, fixed_abs, tag = 'smem constant byte address 0x4 - core index']
  #allocation1 [shape = 'u32[144,128]{1,0:T(1,128)}', space=vmem, size = 0x12000, scoped, tag = 'internal scratch']
  %s0 = inlined_call_operand.vmem [shape: f32[2,16,32], index: 0, kind: input, shape index: {}]
  %s1 = inlined_call_operand.vmem [shape: f32[6,32], index: 1, kind: input, shape index: {}]
  %s2 = inlined_call_operand.vmem [shape: f32[1,48], index: 2, kind: input, shape index: {}]
  %s3 = inlined_call_operand.vmem [shape: bf16[32,48], index: 3, kind: input, shape index: {}]
  %s4 = inlined_call_operand.vmem [shape: bf16[16,32], index: 4, kind: input, shape index: {}]
  %s5 = inlined_call_operand.vmem [shape: bf16[3,32,64], index: 5, kind: input, shape index: {}]
  %s6 = inlined_call_operand.hbm [shape: f32[2,16,32], index: 6, kind: output, shape index: {}]
  %s7 = sld [smem:[#allocation0]]
  $region34: #{graph_attention_network.1} parent=0
    _
  %s9 = ssub.s32 1, %s7
  %s10 = scalar_select 0, %s9, %s7
  $region1: #{graph_attention_network.1} parent=0
    #allocation2 [shape = 'u8[16384]{0}', space=vmem, size = 0x4000, scoped, tag = 'output window, operand 0, single buffered']
    #allocation3 [shape = 's32[1]{0}', space=sflag, size = 0x4, scoped, tag = 'scoped memory for graph_attention_network.1']
    %11 = vsyncpa [#allocation3], 0
    // Predicated region
    $region2: #{graph_attention_network.1} parent=1 // pred_check
      _
    $region3: #{graph_attention_network.1} parent=1 // pred_check_branch
      %13 = sbr.rel (0) target = $region5
    $region4: #{graph_attention_network.1} parent=1 // pred_region
      _
    $region5: #{graph_attention_network.1} parent=1 // pred_fallthru
      _
    // Predicated region
    $region6: #{graph_attention_network.1} parent=1 // pred_check
      _
    $region7: #{graph_attention_network.1} parent=1 // pred_check_branch
      %15 = sbr.rel (0) target = $region9
    $region8: #{graph_attention_network.1} parent=1 // pred_region
      _
    $region9: #{graph_attention_network.1} parent=1 // pred_fallthru
      _
    // Predicated region
    $region10: #{graph_attention_network.1} parent=1 // pred_check
      _
    $region11: #{graph_attention_network.1} parent=1 // pred_check_branch
      %17 = sbr.rel (0) target = $region13
    $region12: #{graph_attention_network.1} parent=1 // pred_region
      _
    $region13: #{graph_attention_network.1} parent=1 // pred_fallthru
      _
    // Predicated region
    $region14: #{graph_attention_network.1} parent=1 // pred_check
      _
    $region15: #{graph_attention_network.1} parent=1 // pred_check_branch
      %19 = sbr.rel (0) target = $region17
    $region16: #{graph_attention_network.1} parent=1 // pred_region
      _
    $region17: #{graph_attention_network.1} parent=1 // pred_fallthru
      _
    // Predicated region
    $region18: #{graph_attention_network.1} parent=1 // pred_check
      _
    $region19: #{graph_attention_network.1} parent=1 // pred_check_branch
      %21 = sbr.rel (0) target = $region21
    $region20: #{graph_attention_network.1} parent=1 // pred_region
      _
    $region21: #{graph_attention_network.1} parent=1 // pred_fallthru
      _
    // Predicated region
    $region22: #{graph_attention_network.1} parent=1 // pred_check
      _
    $region23: #{graph_attention_network.1} parent=1 // pred_check_branch
      %23 = sbr.rel (0) target = $region25
    $region24: #{graph_attention_network.1} parent=1 // pred_region
      _
    $region25: #{graph_attention_network.1} parent=1 // pred_fallthru
      _
    %v25 = vld [vmem:[%s1] sm:$0x3f]
    %v26 = vld [vmem:[%s0] sm:$0xff]
    %v27 = vld [vmem:[%s0 + $0x8] sm:$0xff]
    %v28 = vld [vmem:[%s0 + $0x10] sm:$0xff]
    %v29 = vld [vmem:[%s0 + $0x18] sm:$0xff]
    %v30 = vlaneseq
    %v31 = vshrl.u32 %v30, 7
    %v32 = vsub.s32 0, %v31
    %v33 = vrot.slane %v25, %v32
    %v34 = vmul.f32 %v26, %v33
    %v35 = vmul.f32 %v27, %v33
    %v36 = vmul.f32 %v28, %v33
    %v37 = vmul.f32 %v29, %v33
    %v38 = vlaneseq
    %v39 = vshrl.u32 %v38, 7
    %v40 = vsub.s32 1, %v39
    %v41 = vrot.slane %v25, %v40
    %v42 = vadd.f32 %v34, %v41
    %v43 = vadd.f32 %v35, %v41
    %v44 = vadd.f32 %v36, %v41
    %v45 = vadd.f32 %v37, %v41
    %v46 = vmax.f32 %v42, 0.0
    %v47 = vmax.f32 %v43, 0.0
    %v48 = vmax.f32 %v44, 0.0
    %v49 = vmax.f32 %v45, 0.0
    %v50 = vpack.c.bf16 %v47, %v46
    %v51 = vpack.c.bf16 %v49, %v48
    %v52 = vld [vmem:[%s3] sm:$0xf]
    %v53 = vld [vmem:[%s3 + $0x4] sm:$0xf]
    %v54 = vld [vmem:[%s3 + $0x8] sm:$0xf]
    %v55 = vld [vmem:[%s3 + $0xc] sm:$0xf]
    %v56 = vld [vmem:[%s2] sm:$0x1]
    %v58 = vlaneseq
    %v59 = vshrl.u32 %v58, 7
    %v60 = vsub.s32 0, %v59
    %v61 = vrot.slane %v56, %v60
    %v67 = vunpack.c.l.b16 %v52
    %v68 = vunpack.c.l.b16 %v53
    %v69 = vunpack.c.l.b16 %v54
    %v70 = vunpack.c.l.b16 %v55
    %v71 = vpack.c.b16 %v68, %v67
    %v72 = vpack.c.b16 %v70, %v69
    %vm75 = vcmask 261120
    %v77 = vsel %vm75, %v50, 0
    %v80 = vsel %vm75, %v51, 0
    %82 = vmatprep.subr.bf16.mxu0 0
    %83 = vmatpush1.bf16.msra.mxu0 %v71
    %84 = vmatprep.subr.bf16.mxu0 0
    %85 = vmatpush1.bf16.msra.mxu0 %v72
    %86 = vmatprep.subr.bf16.mxu0 0
    %87 = vmatpush1.bf16.msra.mxu0 0
    %88 = vmatprep.subr.bf16.mxu0 0
    %89 = vmatpush1.bf16.msra.mxu0 0
    %90 = vmatprep.subr.bf16.mxu0 0
    %91 = vmatpush1.bf16.msra.mxu0 0
    %92 = vmatprep.subr.bf16.mxu0 0
    %93 = vmatpush1.bf16.msra.mxu0 0
    %94 = vmatprep.subr.bf16.mxu0 0
    %95 = vmatpush1.bf16.msra.mxu0 0
    %96 = vmatprep.subr.bf16.mxu0 0
    %97 = vmatpush1.bf16.msra.mxu0 0
    %98 = vmatprep.subr.bf16.mxu0 0
    %99 = vmatpush1.bf16.msra.mxu0 0
    %100 = vmatprep.subr.bf16.mxu0 0
    %101 = vmatpush1.bf16.msra.mxu0 0
    %102 = vmatprep.subr.bf16.mxu0 0
    %103 = vmatpush1.bf16.msra.mxu0 0
    %104 = vmatprep.subr.bf16.mxu0 0
    %105 = vmatpush1.bf16.msra.mxu0 0
    %106 = vmatprep.subr.bf16.mxu0 0
    %107 = vmatpush1.bf16.msra.mxu0 0
    %108 = vmatprep.subr.bf16.mxu0 0
    %109 = vmatpush1.bf16.msra.mxu0 0
    %110 = vmatprep.subr.bf16.mxu0 0
    %111 = vmatpush1.bf16.msra.mxu0 0
    %112 = vmatprep.subr.bf16.mxu0 0
    %113 = vmatpush1.bf16.msra.mxu0 0
    %114 = vmatprep.mubr.bf16.mxu0 0
    %115 = vmatmul.mubr.bf16.gmra.mrb[0].mxu0 %v77
    %v116 = vpop.f32.mrb[0].mxu0
    %v117 = vadd.f32 %v61, %v116
    %v118 = vpop.f32.mrb[0].mxu0
    %v119 = vpop.f32.mrb[0].mxu0
    %v120 = vadd.f32 %v61, %v119
    %v121 = vpop.f32.mrb[0].mxu0
    %122 = vmatprep.mubr.bf16.mxu0 0
    %123 = vmatmul.mubr.bf16.gmra.mrb[0].mxu0 %v80
    %v124 = vpop.f32.mrb[0].mxu0
    %v125 = vadd.f32 %v61, %v124
    %v126 = vpop.f32.mrb[0].mxu0
    %v127 = vpop.f32.mrb[0].mxu0
    %v128 = vadd.f32 %v61, %v127
    %v129 = vpop.f32.mrb[0].mxu0
    %130 = vdwg.mxu0
    %v131 = vpack.c.bf16 %v120, %v117
    %v132 = vpack.c.bf16 %v128, %v125
    %134 = vrot.lane.b32.xlu0 %v131, 112
    %v135 = vpop.permute.xlu0 %134
    %vm136 = vcmask 130048
    %v138 = vsel %vm136, %v131, 0
    %v141 = vsel %vm136, %v135, 0
    %143 = vmatprep.subr.bf16.mxu0 0
    %144 = vmatpush1.bf16.xpose.msra.mxu0 %v141
    %145 = vmatprep.subr.bf16.mxu0 0
    %146 = vmatpush1.bf16.xpose.msra.mxu0 0
    %147 = vmatprep.subr.bf16.mxu0 0
    %148 = vmatpush1.bf16.xpose.msra.mxu0 0
    %149 = vmatprep.subr.bf16.mxu0 0
    %150 = vmatpush1.bf16.xpose.msra.mxu0 0
    %151 = vmatprep.subr.bf16.mxu0 0
    %152 = vmatpush1.bf16.xpose.msra.mxu0 0
    %153 = vmatprep.subr.bf16.mxu0 0
    %154 = vmatpush1.bf16.xpose.msra.mxu0 0
    %155 = vmatprep.subr.bf16.mxu0 0
    %156 = vmatpush1.bf16.xpose.msra.mxu0 0
    %157 = vmatprep.subr.bf16.mxu0 0
    %158 = vmatpush1.bf16.xpose.msra.mxu0 0
    %159 = vmatprep.subr.bf16.mxu0 0
    %160 = vmatpush1.bf16.xpose.msra.mxu0 0
    %161 = vmatprep.subr.bf16.mxu0 0
    %162 = vmatpush1.bf16.xpose.msra.mxu0 0
    %163 = vmatprep.subr.bf16.mxu0 0
    %164 = vmatpush1.bf16.xpose.msra.mxu0 0
    %165 = vmatprep.subr.bf16.mxu0 0
    %166 = vmatpush1.bf16.xpose.msra.mxu0 0
    %167 = vmatprep.subr.bf16.mxu0 0
    %168 = vmatpush1.bf16.xpose.msra.mxu0 0
    %169 = vmatprep.subr.bf16.mxu0 0
    %170 = vmatpush1.bf16.xpose.msra.mxu0 0
    %171 = vmatprep.subr.bf16.mxu0 0
    %172 = vmatpush1.bf16.xpose.msra.mxu0 0
    %173 = vmatprep.subr.bf16.mxu0 0
    %174 = vmatpush1.bf16.xpose.msra.mxu0 0
    %175 = vmatprep.mubr.bf16.mxu0 0
    %176 = vmatmul.mubr.bf16.gmra.mrb[0].mxu0 %v138
    %v177 = vpop.f32.mrb[0].mxu0
    %v178 = vadd.f32 0.0, %v177
    %v179 = vpop.f32.mrb[0].mxu0
    %v180 = vpop.f32.mrb[0].mxu0
    %v181 = vadd.f32 0.0, %v180
    %v182 = vpop.f32.mrb[0].mxu0
    %183 = vdwg.mxu0
    %185 = vrot.lane.b32.xlu0 %v132, 112
    %v186 = vpop.permute.xlu0 %185
    %v188 = vsel %vm136, %v132, 0
    %v191 = vsel %vm136, %v186, 0
    %193 = vmatprep.subr.bf16.mxu0 0
    %194 = vmatpush1.bf16.xpose.msra.mxu0 %v191
    %195 = vmatprep.subr.bf16.mxu0 0
    %196 = vmatpush1.bf16.xpose.msra.mxu0 0
    %197 = vmatprep.subr.bf16.mxu0 0
    %198 = vmatpush1.bf16.xpose.msra.mxu0 0
    %199 = vmatprep.subr.bf16.mxu0 0
    %200 = vmatpush1.bf16.xpose.msra.mxu0 0
    %201 = vmatprep.subr.bf16.mxu0 0
    %202 = vmatpush1.bf16.xpose.msra.mxu0 0
    %203 = vmatprep.subr.bf16.mxu0 0
    %204 = vmatpush1.bf16.xpose.msra.mxu0 0
    %205 = vmatprep.subr.bf16.mxu0 0
    %206 = vmatpush1.bf16.xpose.msra.mxu0 0
    %207 = vmatprep.subr.bf16.mxu0 0
    %208 = vmatpush1.bf16.xpose.msra.mxu0 0
    %209 = vmatprep.subr.bf16.mxu0 0
    %210 = vmatpush1.bf16.xpose.msra.mxu0 0
    %211 = vmatprep.subr.bf16.mxu0 0
    %212 = vmatpush1.bf16.xpose.msra.mxu0 0
    %213 = vmatprep.subr.bf16.mxu0 0
    %214 = vmatpush1.bf16.xpose.msra.mxu0 0
    %215 = vmatprep.subr.bf16.mxu0 0
    %216 = vmatpush1.bf16.xpose.msra.mxu0 0
    %217 = vmatprep.subr.bf16.mxu0 0
    %218 = vmatpush1.bf16.xpose.msra.mxu0 0
    %219 = vmatprep.subr.bf16.mxu0 0
    %220 = vmatpush1.bf16.xpose.msra.mxu0 0
    %221 = vmatprep.subr.bf16.mxu0 0
    %222 = vmatpush1.bf16.xpose.msra.mxu0 0
    %223 = vmatprep.subr.bf16.mxu0 0
    %224 = vmatpush1.bf16.xpose.msra.mxu0 0
    %225 = vmatprep.mubr.bf16.mxu0 0
    %226 = vmatmul.mubr.bf16.gmra.mrb[0].mxu0 %v188
    %v227 = vpop.f32.mrb[0].mxu0
    %v228 = vadd.f32 0.0, %v227
    %v229 = vpop.f32.mrb[0].mxu0
    %v230 = vpop.f32.mrb[0].mxu0
    %v231 = vadd.f32 0.0, %v230
    %v232 = vpop.f32.mrb[0].mxu0
    %233 = vdwg.mxu0
    %v234 = vsel %vm136, %v178, -inf
    %235 = vmax.xlane.f32.xlu0 %v234
    %v236 = vpop.xlane.xlu0 %235
    %v237 = vsel %vm136, %v181, -inf
    %238 = vmax.xlane.f32.xlu0 %v237
    %v239 = vpop.xlane.xlu0 %238
    %v240 = vsel %vm136, %v228, -inf
    %241 = vmax.xlane.f32.xlu0 %v240
    %v242 = vpop.xlane.xlu0 %241
    %v243 = vsel %vm136, %v231, -inf
    %244 = vmax.xlane.f32.xlu0 %v243
    %v245 = vpop.xlane.xlu0 %244
    %v246 = vsub.f32 %v178, %v236
    %v247 = vsub.f32 %v181, %v239
    %v248 = vsub.f32 %v228, %v242
    %v249 = vsub.f32 %v231, %v245
    %v250 = vmul.f32 %v246, 1.442695
    %v251 = vpow.pop %v250
    %v252 = vmul.f32 %v247, 1.442695
    %v253 = vpow.pop %v252
    %v254 = vmul.f32 %v248, 1.442695
    %v255 = vpow.pop %v254
    %v256 = vmul.f32 %v249, 1.442695
    %v257 = vpow.pop %v256
    %v258 = vsel %vm136, %v251, 0.0
    %259 = vadd.xlane.f32.xlu0 %v258
    %v260 = vpop.xlane.xlu0 %259
    %v261 = vsel %vm136, %v253, 0.0
    %262 = vadd.xlane.f32.xlu0 %v261
    %v263 = vpop.xlane.xlu0 %262
    %v264 = vsel %vm136, %v255, 0.0
    %265 = vadd.xlane.f32.xlu0 %v264
    %v266 = vpop.xlane.xlu0 %265
    %v267 = vsel %vm136, %v257, 0.0
    %268 = vadd.xlane.f32.xlu0 %v267
    %v269 = vpop.xlane.xlu0 %268
    %v270 = vrcp.pop %v260
    %v271 = vrcp.pop %v263
    %v272 = vrcp.pop %v266
    %v273 = vrcp.pop %v269
    %v274 = vmul.f32 %v251, %v270
    %v275 = vmul.f32 %v253, %v271
    %v276 = vmul.f32 %v255, %v272
    %v277 = vmul.f32 %v257, %v273
    %v278 = vpack.c.bf16 %v275, %v274
    %v279 = vpack.c.bf16 %v277, %v276
    %280 = vrot.lane.b32.xlu0 %v131, 96
    %v281 = vpop.permute.xlu0 %280
    %v284 = vsel %vm136, %v278, 0
    %286 = vmatprep.subr.bf16.mxu0 0
    %287 = vmatpush1.bf16.msra.mxu0 %v281
    %288 = vmatprep.subr.bf16.mxu0 0
    %289 = vmatpush1.bf16.msra.mxu0 0
    %290 = vmatprep.subr.bf16.mxu0 0
    %291 = vmatpush1.bf16.msra.mxu0 0
    %292 = vmatprep.subr.bf16.mxu0 0
    %293 = vmatpush1.bf16.msra.mxu0 0
    %294 = vmatprep.subr.bf16.mxu0 0
    %295 = vmatpush1.bf16.msra.mxu0 0
    %296 = vmatprep.subr.bf16.mxu0 0
    %297 = vmatpush1.bf16.msra.mxu0 0
    %298 = vmatprep.subr.bf16.mxu0 0
    %299 = vmatpush1.bf16.msra.mxu0 0
    %300 = vmatprep.subr.bf16.mxu0 0
    %301 = vmatpush1.bf16.msra.mxu0 0
    %302 = vmatprep.subr.bf16.mxu0 0
    %303 = vmatpush1.bf16.msra.mxu0 0
    %304 = vmatprep.subr.bf16.mxu0 0
    %305 = vmatpush1.bf16.msra.mxu0 0
    %306 = vmatprep.subr.bf16.mxu0 0
    %307 = vmatpush1.bf16.msra.mxu0 0
    %308 = vmatprep.subr.bf16.mxu0 0
    %309 = vmatpush1.bf16.msra.mxu0 0
    %310 = vmatprep.subr.bf16.mxu0 0
    %311 = vmatpush1.bf16.msra.mxu0 0
    %312 = vmatprep.subr.bf16.mxu0 0
    %313 = vmatpush1.bf16.msra.mxu0 0
    %314 = vmatprep.subr.bf16.mxu0 0
    %315 = vmatpush1.bf16.msra.mxu0 0
    %316 = vmatprep.subr.bf16.mxu0 0
    %317 = vmatpush1.bf16.msra.mxu0 0
    %318 = vmatprep.mubr.bf16.mxu0 0
    %319 = vmatmul.mubr.bf16.gmra.mrb[0].mxu0 %v284
    %v320 = vpop.f32.mrb[0].mxu0
    %v321 = vadd.f32 0.0, %v320
    %v322 = vpop.f32.mrb[0].mxu0
    %v323 = vpop.f32.mrb[0].mxu0
    %v324 = vadd.f32 0.0, %v323
    %v325 = vpop.f32.mrb[0].mxu0
    %326 = vdwg.mxu0
    %327 = vrot.lane.b32.xlu0 %v132, 96
    %v328 = vpop.permute.xlu0 %327
    %v331 = vsel %vm136, %v279, 0
    %333 = vmatprep.subr.bf16.mxu0 0
    %334 = vmatpush1.bf16.msra.mxu0 %v328
    %335 = vmatprep.subr.bf16.mxu0 0
    %336 = vmatpush1.bf16.msra.mxu0 0
    %337 = vmatprep.subr.bf16.mxu0 0
    %338 = vmatpush1.bf16.msra.mxu0 0
    %339 = vmatprep.subr.bf16.mxu0 0
    %340 = vmatpush1.bf16.msra.mxu0 0
    %341 = vmatprep.subr.bf16.mxu0 0
    %342 = vmatpush1.bf16.msra.mxu0 0
    %343 = vmatprep.subr.bf16.mxu0 0
    %344 = vmatpush1.bf16.msra.mxu0 0
    %345 = vmatprep.subr.bf16.mxu0 0
    %346 = vmatpush1.bf16.msra.mxu0 0
    %347 = vmatprep.subr.bf16.mxu0 0
    %348 = vmatpush1.bf16.msra.mxu0 0
    %349 = vmatprep.subr.bf16.mxu0 0
    %350 = vmatpush1.bf16.msra.mxu0 0
    %351 = vmatprep.subr.bf16.mxu0 0
    %352 = vmatpush1.bf16.msra.mxu0 0
    %353 = vmatprep.subr.bf16.mxu0 0
    %354 = vmatpush1.bf16.msra.mxu0 0
    %355 = vmatprep.subr.bf16.mxu0 0
    %356 = vmatpush1.bf16.msra.mxu0 0
    %357 = vmatprep.subr.bf16.mxu0 0
    %358 = vmatpush1.bf16.msra.mxu0 0
    %359 = vmatprep.subr.bf16.mxu0 0
    %360 = vmatpush1.bf16.msra.mxu0 0
    %361 = vmatprep.subr.bf16.mxu0 0
    %362 = vmatpush1.bf16.msra.mxu0 0
    %363 = vmatprep.subr.bf16.mxu0 0
    %364 = vmatpush1.bf16.msra.mxu0 0
    %365 = vmatprep.mubr.bf16.mxu0 0
    %366 = vmatmul.mubr.bf16.gmra.mrb[0].mxu0 %v331
    %v367 = vpop.f32.mrb[0].mxu0
    %v368 = vadd.f32 0.0, %v367
    %v369 = vpop.f32.mrb[0].mxu0
    %v370 = vpop.f32.mrb[0].mxu0
    %v371 = vadd.f32 0.0, %v370
    %v372 = vpop.f32.mrb[0].mxu0
    %373 = vdwg.mxu0
    %v374 = vpack.c.bf16 %v324, %v321
    %v375 = vpack.c.bf16 %v371, %v368
    %v376 = vld [vmem:[%s4] sm:$0xf]
    %v377 = vld [vmem:[%s4 + $0x4] sm:$0xf]
    %v378 = vlaneseq
    %v379 = vshrl.u32 %v378, 7
    %v380 = vsub.s32 2, %v379
    %v381 = vrot.slane %v25, %v380
    %v384 = vunpack.c.l.b16 %v376
    %v385 = vunpack.c.l.b16 %v377
    %v386 = vpack.c.b16 %v385, %v384
    %v389 = vsel %vm136, %v374, 0
    %v392 = vsel %vm136, %v375, 0
    %394 = vmatprep.subr.bf16.mxu0 0
    %395 = vmatpush1.bf16.msra.mxu0 %v386
    %396 = vmatprep.subr.bf16.mxu0 0
    %397 = vmatpush1.bf16.msra.mxu0 0
    %398 = vmatprep.subr.bf16.mxu0 0
    %399 = vmatpush1.bf16.msra.mxu0 0
    %400 = vmatprep.subr.bf16.mxu0 0
    %401 = vmatpush1.bf16.msra.mxu0 0
    %402 = vmatprep.subr.bf16.mxu0 0
    %403 = vmatpush1.bf16.msra.mxu0 0
    %404 = vmatprep.subr.bf16.mxu0 0
    %405 = vmatpush1.bf16.msra.mxu0 0
    %406 = vmatprep.subr.bf16.mxu0 0
    %407 = vmatpush1.bf16.msra.mxu0 0
    %408 = vmatprep.subr.bf16.mxu0 0
    %409 = vmatpush1.bf16.msra.mxu0 0
    %410 = vmatprep.subr.bf16.mxu0 0
    %411 = vmatpush1.bf16.msra.mxu0 0
    %412 = vmatprep.subr.bf16.mxu0 0
    %413 = vmatpush1.bf16.msra.mxu0 0
    %414 = vmatprep.subr.bf16.mxu0 0
    %415 = vmatpush1.bf16.msra.mxu0 0
    %416 = vmatprep.subr.bf16.mxu0 0
    %417 = vmatpush1.bf16.msra.mxu0 0
    %418 = vmatprep.subr.bf16.mxu0 0
    %419 = vmatpush1.bf16.msra.mxu0 0
    %420 = vmatprep.subr.bf16.mxu0 0
    %421 = vmatpush1.bf16.msra.mxu0 0
    %422 = vmatprep.subr.bf16.mxu0 0
    %423 = vmatpush1.bf16.msra.mxu0 0
    %424 = vmatprep.subr.bf16.mxu0 0
    %425 = vmatpush1.bf16.msra.mxu0 0
    %426 = vmatprep.mubr.bf16.mxu0 0
    %427 = vmatmul.mubr.bf16.gmra.mrb[0].mxu0 %v389
    %v428 = vpop.f32.mrb[0].mxu0
    %v429 = vadd.f32 %v381, %v428
    %v430 = vpop.f32.mrb[0].mxu0
    %v431 = vpop.f32.mrb[0].mxu0
    %v432 = vadd.f32 %v381, %v431
    %v433 = vpop.f32.mrb[0].mxu0
    %434 = vmatprep.mubr.bf16.mxu0 0
    %435 = vmatmul.mubr.bf16.gmra.mrb[0].mxu0 %v392
    %v436 = vpop.f32.mrb[0].mxu0
    %v437 = vadd.f32 %v381, %v436
    %v438 = vpop.f32.mrb[0].mxu0
    %v439 = vpop.f32.mrb[0].mxu0
    %v440 = vadd.f32 %v381, %v439
    %v441 = vpop.f32.mrb[0].mxu0
    %442 = vdwg.mxu0
    %v443 = vadd.f32 %v26, %v429
    %v444 = vadd.f32 %v27, %v432
    %v445 = vadd.f32 %v28, %v437
    %v446 = vadd.f32 %v29, %v440
    %v447 = vlaneseq
    %v448 = vand.u32 %v447, 127
    %v449 = vpack.c.bf16 %v444, %v443
    %v450 = vpack.c.bf16 %v446, %v445
    %v451 = vld [vmem:[%s5] sm:$0xf]
    %v452 = vld [vmem:[%s5 + $0x4] sm:$0xf]
    %v453 = vld [vmem:[%s5 + $0x8] sm:$0xf]
    %v454 = vld [vmem:[%s5 + $0xc] sm:$0xf]
    %v459 = vunpack.c.l.b16 %v451
    %v460 = vunpack.c.l.b16 %v452
    %v461 = vunpack.c.l.b16 %v453
    %v462 = vunpack.c.l.b16 %v454
    %v463 = vpack.c.b16 %v460, %v459
    %v464 = vpack.c.b16 %v462, %v461
    %v468 = vsel %vm75, %v449, 0
    %v471 = vsel %vm75, %v450, 0
    %473 = vmatprep.subr.bf16.mxu0 0
    %474 = vmatpush1.bf16.msra.mxu0 %v463
    %475 = vmatprep.subr.bf16.mxu0 0
    %476 = vmatpush1.bf16.msra.mxu0 %v464
    %477 = vmatprep.subr.bf16.mxu0 0
    %478 = vmatpush1.bf16.msra.mxu0 0
    %479 = vmatprep.subr.bf16.mxu0 0
    %480 = vmatpush1.bf16.msra.mxu0 0
    %481 = vmatprep.subr.bf16.mxu0 0
    %482 = vmatpush1.bf16.msra.mxu0 0
    %483 = vmatprep.subr.bf16.mxu0 0
    %484 = vmatpush1.bf16.msra.mxu0 0
    %485 = vmatprep.subr.bf16.mxu0 0
    %486 = vmatpush1.bf16.msra.mxu0 0
    %487 = vmatprep.subr.bf16.mxu0 0
    %488 = vmatpush1.bf16.msra.mxu0 0
    %489 = vmatprep.subr.bf16.mxu0 0
    %490 = vmatpush1.bf16.msra.mxu0 0
    %491 = vmatprep.subr.bf16.mxu0 0
    %492 = vmatpush1.bf16.msra.mxu0 0
    %493 = vmatprep.subr.bf16.mxu0 0
    %494 = vmatpush1.bf16.msra.mxu0 0
    %495 = vmatprep.subr.bf16.mxu0 0
    %496 = vmatpush1.bf16.msra.mxu0 0
    %497 = vmatprep.subr.bf16.mxu0 0
    %498 = vmatpush1.bf16.msra.mxu0 0
    %499 = vmatprep.subr.bf16.mxu0 0
    %500 = vmatpush1.bf16.msra.mxu0 0
    %501 = vmatprep.subr.bf16.mxu0 0
    %502 = vmatpush1.bf16.msra.mxu0 0
    %503 = vmatprep.subr.bf16.mxu0 0
    %504 = vmatpush1.bf16.msra.mxu0 0
    %505 = vmatprep.mubr.bf16.mxu0 0
    %506 = vmatmul.mubr.bf16.gmra.mrb[0].mxu0 %v468
    %v507 = vpop.f32.mrb[0].mxu0
    %v508 = vadd.f32 0.0, %v507
    %v509 = vpop.f32.mrb[0].mxu0
    %v510 = vpop.f32.mrb[0].mxu0
    %v511 = vadd.f32 0.0, %v510
    %v512 = vpop.f32.mrb[0].mxu0
    %513 = vmatprep.mubr.bf16.mxu0 0
    %514 = vmatmul.mubr.bf16.gmra.mrb[0].mxu0 %v471
    %v515 = vpop.f32.mrb[0].mxu0
    %v516 = vadd.f32 0.0, %v515
    %v517 = vpop.f32.mrb[0].mxu0
    %v518 = vpop.f32.mrb[0].mxu0
    %v519 = vadd.f32 0.0, %v518
    %v520 = vpop.f32.mrb[0].mxu0
    %521 = vdwg.mxu0
    %v522 = vpack.c.bf16 %v511, %v508
    %v523 = vpack.c.bf16 %v519, %v516
    %v524 = vlaneseq
    %v525 = vshrl.u32 %v524, 7
    %v526 = vsub.s32 3, %v525
    %v527 = vrot.slane %v25, %v526
    %529 = vrot.lane.b32.xlu0 %v527, 32
    %v530 = vpop.permute.xlu0 %529
    %v532 = vadd.f32 %v508, %v530
    %v533 = vadd.f32 %v511, %v530
    %v534 = vadd.f32 %v516, %v530
    %v535 = vadd.f32 %v519, %v530
    %536 = vmatprep.subr.bf16.mxu0 0
    %537 = vmatpush1.bf16.xpose.msra.mxu0 %v468
    %538 = vmatprep.subr.bf16.mxu0 0
    %539 = vmatpush1.bf16.xpose.msra.mxu0 0
    %540 = vmatprep.subr.bf16.mxu0 0
    %541 = vmatpush1.bf16.xpose.msra.mxu0 0
    %542 = vmatprep.subr.bf16.mxu0 0
    %543 = vmatpush1.bf16.xpose.msra.mxu0 0
    %544 = vmatprep.subr.bf16.mxu0 0
    %545 = vmatpush1.bf16.xpose.msra.mxu0 0
    %546 = vmatprep.subr.bf16.mxu0 0
    %547 = vmatpush1.bf16.xpose.msra.mxu0 0
    %548 = vmatprep.subr.bf16.mxu0 0
    %549 = vmatpush1.bf16.xpose.msra.mxu0 0
    %550 = vmatprep.subr.bf16.mxu0 0
    %551 = vmatpush1.bf16.xpose.msra.mxu0 0
    %552 = vmatprep.subr.bf16.mxu0 0
    %553 = vmatpush1.bf16.xpose.msra.mxu0 0
    %554 = vmatprep.subr.bf16.mxu0 0
    %555 = vmatpush1.bf16.xpose.msra.mxu0 0
    %556 = vmatprep.subr.bf16.mxu0 0
    %557 = vmatpush1.bf16.xpose.msra.mxu0 0
    %558 = vmatprep.subr.bf16.mxu0 0
    %559 = vmatpush1.bf16.xpose.msra.mxu0 0
    %560 = vmatprep.subr.bf16.mxu0 0
    %561 = vmatpush1.bf16.xpose.msra.mxu0 0
    %562 = vmatprep.subr.bf16.mxu0 0
    %563 = vmatpush1.bf16.xpose.msra.mxu0 0
    %564 = vmatprep.subr.bf16.mxu0 0
    %565 = vmatpush1.bf16.xpose.msra.mxu0 0
    %566 = vmatprep.subr.bf16.mxu0 0
    %567 = vmatpush1.bf16.xpose.msra.mxu0 0
    %568 = vmatprep.mubr.bf16.mxu0 0
    %569 = vmatmul.mubr.bf16.gmra.mrb[0].mxu0 %v468
    %v570 = vpop.f32.mrb[0].mxu0
    %v571 = vadd.f32 0.0, %v570
    %v572 = vpop.f32.mrb[0].mxu0
    %v573 = vpop.f32.mrb[0].mxu0
    %v574 = vadd.f32 0.0, %v573
    %v575 = vpop.f32.mrb[0].mxu0
    %576 = vdwg.mxu0
    %577 = vmatprep.subr.bf16.mxu0 0
    %578 = vmatpush1.bf16.xpose.msra.mxu0 %v471
    %579 = vmatprep.subr.bf16.mxu0 0
    %580 = vmatpush1.bf16.xpose.msra.mxu0 0
    %581 = vmatprep.subr.bf16.mxu0 0
    %582 = vmatpush1.bf16.xpose.msra.mxu0 0
    %583 = vmatprep.subr.bf16.mxu0 0
    %584 = vmatpush1.bf16.xpose.msra.mxu0 0
    %585 = vmatprep.subr.bf16.mxu0 0
    %586 = vmatpush1.bf16.xpose.msra.mxu0 0
    %587 = vmatprep.subr.bf16.mxu0 0
    %588 = vmatpush1.bf16.xpose.msra.mxu0 0
    %589 = vmatprep.subr.bf16.mxu0 0
    %590 = vmatpush1.bf16.xpose.msra.mxu0 0
    %591 = vmatprep.subr.bf16.mxu0 0
    %592 = vmatpush1.bf16.xpose.msra.mxu0 0
    %593 = vmatprep.subr.bf16.mxu0 0
    %594 = vmatpush1.bf16.xpose.msra.mxu0 0
    %595 = vmatprep.subr.bf16.mxu0 0
    %596 = vmatpush1.bf16.xpose.msra.mxu0 0
    %597 = vmatprep.subr.bf16.mxu0 0
    %598 = vmatpush1.bf16.xpose.msra.mxu0 0
    %599 = vmatprep.subr.bf16.mxu0 0
    %600 = vmatpush1.bf16.xpose.msra.mxu0 0
    %601 = vmatprep.subr.bf16.mxu0 0
    %602 = vmatpush1.bf16.xpose.msra.mxu0 0
    %603 = vmatprep.subr.bf16.mxu0 0
    %604 = vmatpush1.bf16.xpose.msra.mxu0 0
    %605 = vmatprep.subr.bf16.mxu0 0
    %606 = vmatpush1.bf16.xpose.msra.mxu0 0
    %607 = vmatprep.subr.bf16.mxu0 0
    %608 = vmatpush1.bf16.xpose.msra.mxu0 0
    %609 = vmatprep.mubr.bf16.mxu0 0
    %610 = vmatmul.mubr.bf16.gmra.mrb[0].mxu0 %v471
    %v611 = vpop.f32.mrb[0].mxu0
    %v612 = vadd.f32 0.0, %v611
    %v613 = vpop.f32.mrb[0].mxu0
    %v614 = vpop.f32.mrb[0].mxu0
    %v615 = vadd.f32 0.0, %v614
    %v616 = vpop.f32.mrb[0].mxu0
    %617 = vdwg.mxu0
    %v618 = vmul.f32 %v443, %v443
    %v619 = vmul.f32 %v444, %v444
    %v620 = vmul.f32 %v445, %v445
    %v621 = vmul.f32 %v446, %v446
    %v623 = vsel %vm75, 1.0, 0
    %v626 = vsel %vm75, %v618, 0
    %v629 = vsel %vm75, %v619, 0
    %631 = vmatprep.subr.mxu0 0.0
    %632 = vmatpush1.xpose.msra.mxu0 %v626
    %633 = vmatprep.subr.mxu0 0.0
    %634 = vmatpush1.xpose.msra.mxu0 %v629
    %635 = vmatprep.subr.mxu0 0.0
    %636 = vmatpush1.xpose.msra.mxu0 0.0
    %637 = vmatprep.subr.mxu0 0.0
    %638 = vmatpush1.xpose.msra.mxu0 0.0
    %639 = vmatprep.subr.mxu0 0.0
    %640 = vmatpush1.xpose.msra.mxu0 0.0
    %641 = vmatprep.subr.mxu0 0.0
    %642 = vmatpush1.xpose.msra.mxu0 0.0
    %643 = vmatprep.subr.mxu0 0.0
    %644 = vmatpush1.xpose.msra.mxu0 0.0
    %645 = vmatprep.subr.mxu0 0.0
    %646 = vmatpush1.xpose.msra.mxu0 0.0
    %647 = vmatprep.subr.mxu0 0.0
    %648 = vmatpush1.xpose.msra.mxu0 0.0
    %649 = vmatprep.subr.mxu0 0.0
    %650 = vmatpush1.xpose.msra.mxu0 0.0
    %651 = vmatprep.subr.mxu0 0.0
    %652 = vmatpush1.xpose.msra.mxu0 0.0
    %653 = vmatprep.subr.mxu0 0.0
    %654 = vmatpush1.xpose.msra.mxu0 0.0
    %655 = vmatprep.subr.mxu0 0.0
    %656 = vmatpush1.xpose.msra.mxu0 0.0
    %657 = vmatprep.subr.mxu0 0.0
    %658 = vmatpush1.xpose.msra.mxu0 0.0
    %659 = vmatprep.subr.mxu0 0.0
    %660 = vmatpush1.xpose.msra.mxu0 0.0
    %661 = vmatprep.subr.mxu0 0.0
    %662 = vmatpush1.xpose.msra.mxu0 0.0
    %663 = vmatprep.subr.mxu0 0.0
    %664 = vmatpush1.xpose.msra.mxu0 0.0
    %665 = vmatprep.subr.mxu0 0.0
    %666 = vmatpush1.xpose.msra.mxu0 0.0
    %667 = vmatprep.subr.mxu0 0.0
    %668 = vmatpush1.xpose.msra.mxu0 0.0
    %669 = vmatprep.subr.mxu0 0.0
    %670 = vmatpush1.xpose.msra.mxu0 0.0
    %671 = vmatprep.subr.mxu0 0.0
    %672 = vmatpush1.xpose.msra.mxu0 0.0
    %673 = vmatprep.subr.mxu0 0.0
    %674 = vmatpush1.xpose.msra.mxu0 0.0
    %675 = vmatprep.subr.mxu0 0.0
    %676 = vmatpush1.xpose.msra.mxu0 0.0
    %677 = vmatprep.subr.mxu0 0.0
    %678 = vmatpush1.xpose.msra.mxu0 0.0
    %679 = vmatprep.subr.mxu0 0.0
    %680 = vmatpush1.xpose.msra.mxu0 0.0
    %681 = vmatprep.subr.mxu0 0.0
    %682 = vmatpush1.xpose.msra.mxu0 0.0
    %683 = vmatprep.subr.mxu0 0.0
    %684 = vmatpush1.xpose.msra.mxu0 0.0
    %685 = vmatprep.subr.mxu0 0.0
    %686 = vmatpush1.xpose.msra.mxu0 0.0
    %687 = vmatprep.subr.mxu0 0.0
    %688 = vmatpush1.xpose.msra.mxu0 0.0
    %689 = vmatprep.subr.mxu0 0.0
    %690 = vmatpush1.xpose.msra.mxu0 0.0
    %691 = vmatprep.subr.mxu0 0.0
    %692 = vmatpush1.xpose.msra.mxu0 0.0
    %693 = vmatprep.subr.mxu0 0.0
    %694 = vmatpush1.xpose.msra.mxu0 0.0
    %695 = vmatprep.mubr.f32.mxu0 0.0
    %696 = vmatmul.mubr.f32.gmra.mrb[0].mxu0 %v623
    %v697 = vpop.f32.mrb[0].mxu0
    %v698 = vadd.f32 0.0, %v697
    %v699 = vpop.f32.mrb[0].mxu0
    %700 = vmatprep.mubr.f32.mxu0 0.0
    %701 = vmatmul.mubr.f32.gmra.mrb[0].mxu0 %v623
    %v702 = vpop.f32.mrb[0].mxu0
    %v703 = vadd.f32 0.0, %v702
    %v704 = vpop.f32.mrb[0].mxu0
    %705 = vdwg.mxu0
    %v707 = vsel %vm75, %v620, 0
    %v710 = vsel %vm75, %v621, 0
    %712 = vmatprep.subr.mxu0 0.0
    %713 = vmatpush1.xpose.msra.mxu0 %v707
    %714 = vmatprep.subr.mxu0 0.0
    %715 = vmatpush1.xpose.msra.mxu0 %v710
    %716 = vmatprep.subr.mxu0 0.0
    %717 = vmatpush1.xpose.msra.mxu0 0.0
    %718 = vmatprep.subr.mxu0 0.0
    %719 = vmatpush1.xpose.msra.mxu0 0.0
    %720 = vmatprep.subr.mxu0 0.0
    %721 = vmatpush1.xpose.msra.mxu0 0.0
    %722 = vmatprep.subr.mxu0 0.0
    %723 = vmatpush1.xpose.msra.mxu0 0.0
    %724 = vmatprep.subr.mxu0 0.0
    %725 = vmatpush1.xpose.msra.mxu0 0.0
    %726 = vmatprep.subr.mxu0 0.0
    %727 = vmatpush1.xpose.msra.mxu0 0.0
    %728 = vmatprep.subr.mxu0 0.0
    %729 = vmatpush1.xpose.msra.mxu0 0.0
    %730 = vmatprep.subr.mxu0 0.0
    %731 = vmatpush1.xpose.msra.mxu0 0.0
    %732 = vmatprep.subr.mxu0 0.0
    %733 = vmatpush1.xpose.msra.mxu0 0.0
    %734 = vmatprep.subr.mxu0 0.0
    %735 = vmatpush1.xpose.msra.mxu0 0.0
    %736 = vmatprep.subr.mxu0 0.0
    %737 = vmatpush1.xpose.msra.mxu0 0.0
    %738 = vmatprep.subr.mxu0 0.0
    %739 = vmatpush1.xpose.msra.mxu0 0.0
    %740 = vmatprep.subr.mxu0 0.0
    %741 = vmatpush1.xpose.msra.mxu0 0.0
    %742 = vmatprep.subr.mxu0 0.0
    %743 = vmatpush1.xpose.msra.mxu0 0.0
    %744 = vmatprep.subr.mxu0 0.0
    %745 = vmatpush1.xpose.msra.mxu0 0.0
    %746 = vmatprep.subr.mxu0 0.0
    %747 = vmatpush1.xpose.msra.mxu0 0.0
    %748 = vmatprep.subr.mxu0 0.0
    %749 = vmatpush1.xpose.msra.mxu0 0.0
    %750 = vmatprep.subr.mxu0 0.0
    %751 = vmatpush1.xpose.msra.mxu0 0.0
    %752 = vmatprep.subr.mxu0 0.0
    %753 = vmatpush1.xpose.msra.mxu0 0.0
    %754 = vmatprep.subr.mxu0 0.0
    %755 = vmatpush1.xpose.msra.mxu0 0.0
    %756 = vmatprep.subr.mxu0 0.0
    %757 = vmatpush1.xpose.msra.mxu0 0.0
    %758 = vmatprep.subr.mxu0 0.0
    %759 = vmatpush1.xpose.msra.mxu0 0.0
    %760 = vmatprep.subr.mxu0 0.0
    %761 = vmatpush1.xpose.msra.mxu0 0.0
    %762 = vmatprep.subr.mxu0 0.0
    %763 = vmatpush1.xpose.msra.mxu0 0.0
    %764 = vmatprep.subr.mxu0 0.0
    %765 = vmatpush1.xpose.msra.mxu0 0.0
    %766 = vmatprep.subr.mxu0 0.0
    %767 = vmatpush1.xpose.msra.mxu0 0.0
    %768 = vmatprep.subr.mxu0 0.0
    %769 = vmatpush1.xpose.msra.mxu0 0.0
    %770 = vmatprep.subr.mxu0 0.0
    %771 = vmatpush1.xpose.msra.mxu0 0.0
    %772 = vmatprep.subr.mxu0 0.0
    %773 = vmatpush1.xpose.msra.mxu0 0.0
    %774 = vmatprep.subr.mxu0 0.0
    %775 = vmatpush1.xpose.msra.mxu0 0.0
    %776 = vmatprep.mubr.f32.mxu0 0.0
    %777 = vmatmul.mubr.f32.gmra.mrb[0].mxu0 %v623
    %v778 = vpop.f32.mrb[0].mxu0
    %v779 = vadd.f32 0.0, %v778
    %v780 = vpop.f32.mrb[0].mxu0
    %781 = vmatprep.mubr.f32.mxu0 0.0
    %782 = vmatmul.mubr.f32.gmra.mrb[0].mxu0 %v623
    %v783 = vpop.f32.mrb[0].mxu0
    %v784 = vadd.f32 0.0, %v783
    %v785 = vpop.f32.mrb[0].mxu0
    %786 = vdwg.mxu0
    %v787 = vmul.f32 %v571, 2.0
    %v788 = vmul.f32 %v574, 2.0
    %v789 = vmul.f32 %v612, 2.0
    %v790 = vmul.f32 %v615, 2.0
    %v791 = vsub.f32 %v787, %v698
    %v792 = vsub.f32 %v788, %v703
    %v793 = vsub.f32 %v789, %v779
    %v794 = vsub.f32 %v790, %v784
    %v795 = vsel %vm136, %v791, -inf
    %796 = vmax.xlane.f32.xlu0 %v795
    %v797 = vpop.xlane.xlu0 %796
    %v798 = vsel %vm136, %v792, -inf
    %799 = vmax.xlane.f32.xlu0 %v798
    %v800 = vpop.xlane.xlu0 %799
    %v801 = vsel %vm136, %v793, -inf
    %802 = vmax.xlane.f32.xlu0 %v801
    %v803 = vpop.xlane.xlu0 %802
    %v804 = vsel %vm136, %v794, -inf
    %805 = vmax.xlane.f32.xlu0 %v804
    %v806 = vpop.xlane.xlu0 %805
    %vm807 = vcmp.eq.f32.partialorder %v791, %v797
    %vm808 = vcmp.eq.f32.partialorder %v792, %v800
    %vm809 = vcmp.eq.f32.partialorder %v793, %v803
    %vm810 = vcmp.eq.f32.partialorder %v794, %v806
    %v811 = vsel %vm807, %v448, 16
    %v812 = vsel %vm808, %v448, 16
    %v813 = vsel %vm809, %v448, 16
    %v814 = vsel %vm810, %v448, 16
    %v815 = vsel %vm136, %v811, 2147483647
    %v816 = vand.u32 %v815, 65535
    %v817 = vshra.s32 %v815, 16
    %v818 = vcvt.s32.f32 %v816
    %v819 = vcvt.s32.f32 %v817
    %820 = vmin.xlane.f32.xlu0 %v819
    %v821 = vpop.xlane.xlu0 %820
    %vm822 = vcmp.eq.f32.partialorder %v819, %v821
    %v823 = vsel %vm822, %v818, inf
    %824 = vmin.xlane.f32.xlu0 %v823
    %v825 = vpop.xlane.xlu0 %824
    %v826 = vcvt.f32.s32 %v825
    %v827 = vcvt.f32.s32 %v821
    %v828 = vshll.u32 %v827, 16
    %v829 = vadd.s32 %v828, %v826
    %v830 = vsel %vm136, %v812, 2147483647
    %v831 = vand.u32 %v830, 65535
    %v832 = vshra.s32 %v830, 16
    %v833 = vcvt.s32.f32 %v831
    %v834 = vcvt.s32.f32 %v832
    %835 = vmin.xlane.f32.xlu0 %v834
    %v836 = vpop.xlane.xlu0 %835
    %vm837 = vcmp.eq.f32.partialorder %v834, %v836
    %v838 = vsel %vm837, %v833, inf
    %839 = vmin.xlane.f32.xlu0 %v838
    %v840 = vpop.xlane.xlu0 %839
    %v841 = vcvt.f32.s32 %v840
    %v842 = vcvt.f32.s32 %v836
    %v843 = vshll.u32 %v842, 16
    %v844 = vadd.s32 %v843, %v841
    %v845 = vsel %vm136, %v813, 2147483647
    %v846 = vand.u32 %v845, 65535
    %v847 = vshra.s32 %v845, 16
    %v848 = vcvt.s32.f32 %v846
    %v849 = vcvt.s32.f32 %v847
    %850 = vmin.xlane.f32.xlu0 %v849
    %v851 = vpop.xlane.xlu0 %850
    %vm852 = vcmp.eq.f32.partialorder %v849, %v851
    %v853 = vsel %vm852, %v848, inf
    %854 = vmin.xlane.f32.xlu0 %v853
    %v855 = vpop.xlane.xlu0 %854
    %v856 = vcvt.f32.s32 %v855
    %v857 = vcvt.f32.s32 %v851
    %v858 = vshll.u32 %v857, 16
    %v859 = vadd.s32 %v858, %v856
    %v860 = vsel %vm136, %v814, 2147483647
    %v861 = vand.u32 %v860, 65535
    %v862 = vshra.s32 %v860, 16
    %v863 = vcvt.s32.f32 %v861
    %v864 = vcvt.s32.f32 %v862
    %865 = vmin.xlane.f32.xlu0 %v864
    %v866 = vpop.xlane.xlu0 %865
    %vm867 = vcmp.eq.f32.partialorder %v864, %v866
    %v868 = vsel %vm867, %v863, inf
    %869 = vmin.xlane.f32.xlu0 %v868
    %v870 = vpop.xlane.xlu0 %869
    %v871 = vcvt.f32.s32 %v870
    %v872 = vcvt.f32.s32 %v866
    %v873 = vshll.u32 %v872, 16
    %v874 = vadd.s32 %v873, %v871
    %vm875 = vcmp.eq.s32.totalorder %v448, %v829
    %vm876 = vcmp.eq.s32.totalorder %v448, %v844
    %vm877 = vcmp.eq.s32.totalorder %v448, %v859
    %vm878 = vcmp.eq.s32.totalorder %v448, %v874
    %v879 = vsel %vm875, 1, 0
    %v880 = vsel %vm876, 1, 0
    %v881 = vsel %vm877, 1, 0
    %v882 = vsel %vm878, 1, 0
    %v883 = vcvt.s32.f32 %v879
    %v884 = vcvt.s32.f32 %v880
    %v885 = vcvt.s32.f32 %v881
    %v886 = vcvt.s32.f32 %v882
    %v887 = vpack.c.bf16 %v884, %v883
    %v888 = vpack.c.bf16 %v886, %v885
    %v890 = vsel %vm136, %v887, 0
    %892 = vmatprep.subr.bf16.mxu0 0
    %893 = vmatpush1.bf16.msra.mxu0 %v522
    %894 = vmatprep.subr.bf16.mxu0 0
    %895 = vmatpush1.bf16.msra.mxu0 0
    %896 = vmatprep.subr.bf16.mxu0 0
    %897 = vmatpush1.bf16.msra.mxu0 0
    %898 = vmatprep.subr.bf16.mxu0 0
    %899 = vmatpush1.bf16.msra.mxu0 0
    %900 = vmatprep.subr.bf16.mxu0 0
    %901 = vmatpush1.bf16.msra.mxu0 0
    %902 = vmatprep.subr.bf16.mxu0 0
    %903 = vmatpush1.bf16.msra.mxu0 0
    %904 = vmatprep.subr.bf16.mxu0 0
    %905 = vmatpush1.bf16.msra.mxu0 0
    %906 = vmatprep.subr.bf16.mxu0 0
    %907 = vmatpush1.bf16.msra.mxu0 0
    %908 = vmatprep.subr.bf16.mxu0 0
    %909 = vmatpush1.bf16.msra.mxu0 0
    %910 = vmatprep.subr.bf16.mxu0 0
    %911 = vmatpush1.bf16.msra.mxu0 0
    %912 = vmatprep.subr.bf16.mxu0 0
    %913 = vmatpush1.bf16.msra.mxu0 0
    %914 = vmatprep.subr.bf16.mxu0 0
    %915 = vmatpush1.bf16.msra.mxu0 0
    %916 = vmatprep.subr.bf16.mxu0 0
    %917 = vmatpush1.bf16.msra.mxu0 0
    %918 = vmatprep.subr.bf16.mxu0 0
    %919 = vmatpush1.bf16.msra.mxu0 0
    %920 = vmatprep.subr.bf16.mxu0 0
    %921 = vmatpush1.bf16.msra.mxu0 0
    %922 = vmatprep.subr.bf16.mxu0 0
    %923 = vmatpush1.bf16.msra.mxu0 0
    %924 = vmatprep.mubr.bf16.mxu0 0
    %925 = vmatmul.mubr.bf16.gmra.mrb[0].mxu0 %v890
    %v926 = vpop.f32.mrb[0].mxu0
    %v927 = vadd.f32 0.0, %v926
    %v928 = vpop.f32.mrb[0].mxu0
    %v929 = vpop.f32.mrb[0].mxu0
    %v930 = vadd.f32 0.0, %v929
    %v931 = vpop.f32.mrb[0].mxu0
    %932 = vdwg.mxu0
    %v934 = vsel %vm136, %v888, 0
    %936 = vmatprep.subr.bf16.mxu0 0
    %937 = vmatpush1.bf16.msra.mxu0 %v523
    %938 = vmatprep.subr.bf16.mxu0 0
    %939 = vmatpush1.bf16.msra.mxu0 0
    %940 = vmatprep.subr.bf16.mxu0 0
    %941 = vmatpush1.bf16.msra.mxu0 0
    %942 = vmatprep.subr.bf16.mxu0 0
    %943 = vmatpush1.bf16.msra.mxu0 0
    %944 = vmatprep.subr.bf16.mxu0 0
    %945 = vmatpush1.bf16.msra.mxu0 0
    %946 = vmatprep.subr.bf16.mxu0 0
    %947 = vmatpush1.bf16.msra.mxu0 0
    %948 = vmatprep.subr.bf16.mxu0 0
    %949 = vmatpush1.bf16.msra.mxu0 0
    %950 = vmatprep.subr.bf16.mxu0 0
    %951 = vmatpush1.bf16.msra.mxu0 0
    %952 = vmatprep.subr.bf16.mxu0 0
    %953 = vmatpush1.bf16.msra.mxu0 0
    %954 = vmatprep.subr.bf16.mxu0 0
    %955 = vmatpush1.bf16.msra.mxu0 0
    %956 = vmatprep.subr.bf16.mxu0 0
    %957 = vmatpush1.bf16.msra.mxu0 0
    %958 = vmatprep.subr.bf16.mxu0 0
    %959 = vmatpush1.bf16.msra.mxu0 0
    %960 = vmatprep.subr.bf16.mxu0 0
    %961 = vmatpush1.bf16.msra.mxu0 0
    %962 = vmatprep.subr.bf16.mxu0 0
    %963 = vmatpush1.bf16.msra.mxu0 0
    %964 = vmatprep.subr.bf16.mxu0 0
    %965 = vmatpush1.bf16.msra.mxu0 0
    %966 = vmatprep.subr.bf16.mxu0 0
    %967 = vmatpush1.bf16.msra.mxu0 0
    %968 = vmatprep.mubr.bf16.mxu0 0
    %969 = vmatmul.mubr.bf16.gmra.mrb[0].mxu0 %v934
    %v970 = vpop.f32.mrb[0].mxu0
    %v971 = vadd.f32 0.0, %v970
    %v972 = vpop.f32.mrb[0].mxu0
    %v973 = vpop.f32.mrb[0].mxu0
    %v974 = vadd.f32 0.0, %v973
    %v975 = vpop.f32.mrb[0].mxu0
    %976 = vdwg.mxu0
    %v977 = vmax.f32 %v927, -1e+30
    %v978 = vmax.f32 %v930, -1e+30
    %v979 = vmax.f32 %v971, -1e+30
    %v980 = vmax.f32 %v974, -1e+30
    %v981 = vsel %vm875, -1e+30, %v791
    %v982 = vsel %vm876, -1e+30, %v792
    %v983 = vsel %vm877, -1e+30, %v793
    %v984 = vsel %vm878, -1e+30, %v794
    %v985 = vsel %vm136, %v981, -inf
    %986 = vmax.xlane.f32.xlu0 %v985
    %v987 = vpop.xlane.xlu0 %986
    %v988 = vsel %vm136, %v982, -inf
    %989 = vmax.xlane.f32.xlu0 %v988
    %v990 = vpop.xlane.xlu0 %989
    %v991 = vsel %vm136, %v983, -inf
    %992 = vmax.xlane.f32.xlu0 %v991
    %v993 = vpop.xlane.xlu0 %992
    %v994 = vsel %vm136, %v984, -inf
    %995 = vmax.xlane.f32.xlu0 %v994
    %v996 = vpop.xlane.xlu0 %995
    %vm997 = vcmp.eq.f32.partialorder %v981, %v987
    %vm998 = vcmp.eq.f32.partialorder %v982, %v990
    %vm999 = vcmp.eq.f32.partialorder %v983, %v993
    %vm1000 = vcmp.eq.f32.partialorder %v984, %v996
    %v1001 = vsel %vm997, %v448, 16
    %v1002 = vsel %vm998, %v448, 16
    %v1003 = vsel %vm999, %v448, 16
    %v1004 = vsel %vm1000, %v448, 16
    %v1005 = vsel %vm136, %v1001, 2147483647
    %v1006 = vand.u32 %v1005, 65535
    %v1007 = vshra.s32 %v1005, 16
    %v1008 = vcvt.s32.f32 %v1006
    %v1009 = vcvt.s32.f32 %v1007
    %1010 = vmin.xlane.f32.xlu0 %v1009
    %v1011 = vpop.xlane.xlu0 %1010
    %vm1012 = vcmp.eq.f32.partialorder %v1009, %v1011
    %v1013 = vsel %vm1012, %v1008, inf
    %1014 = vmin.xlane.f32.xlu0 %v1013
    %v1015 = vpop.xlane.xlu0 %1014
    %v1016 = vcvt.f32.s32 %v1015
    %v1017 = vcvt.f32.s32 %v1011
    %v1018 = vshll.u32 %v1017, 16
    %v1019 = vadd.s32 %v1018, %v1016
    %v1020 = vsel %vm136, %v1002, 2147483647
    %v1021 = vand.u32 %v1020, 65535
    %v1022 = vshra.s32 %v1020, 16
    %v1023 = vcvt.s32.f32 %v1021
    %v1024 = vcvt.s32.f32 %v1022
    %1025 = vmin.xlane.f32.xlu0 %v1024
    %v1026 = vpop.xlane.xlu0 %1025
    %vm1027 = vcmp.eq.f32.partialorder %v1024, %v1026
    %v1028 = vsel %vm1027, %v1023, inf
    %1029 = vmin.xlane.f32.xlu0 %v1028
    %v1030 = vpop.xlane.xlu0 %1029
    %v1031 = vcvt.f32.s32 %v1030
    %v1032 = vcvt.f32.s32 %v1026
    %v1033 = vshll.u32 %v1032, 16
    %v1034 = vadd.s32 %v1033, %v1031
    %v1035 = vsel %vm136, %v1003, 2147483647
    %v1036 = vand.u32 %v1035, 65535
    %v1037 = vshra.s32 %v1035, 16
    %v1038 = vcvt.s32.f32 %v1036
    %v1039 = vcvt.s32.f32 %v1037
    %1040 = vmin.xlane.f32.xlu0 %v1039
    %v1041 = vpop.xlane.xlu0 %1040
    %vm1042 = vcmp.eq.f32.partialorder %v1039, %v1041
    %v1043 = vsel %vm1042, %v1038, inf
    %1044 = vmin.xlane.f32.xlu0 %v1043
    %v1045 = vpop.xlane.xlu0 %1044
    %v1046 = vcvt.f32.s32 %v1045
    %v1047 = vcvt.f32.s32 %v1041
    %v1048 = vshll.u32 %v1047, 16
    %v1049 = vadd.s32 %v1048, %v1046
    %v1050 = vsel %vm136, %v1004, 2147483647
    %v1051 = vand.u32 %v1050, 65535
    %v1052 = vshra.s32 %v1050, 16
    %v1053 = vcvt.s32.f32 %v1051
    %v1054 = vcvt.s32.f32 %v1052
    %1055 = vmin.xlane.f32.xlu0 %v1054
    %v1056 = vpop.xlane.xlu0 %1055
    %vm1057 = vcmp.eq.f32.partialorder %v1054, %v1056
    %v1058 = vsel %vm1057, %v1053, inf
    %1059 = vmin.xlane.f32.xlu0 %v1058
    %v1060 = vpop.xlane.xlu0 %1059
    %v1061 = vcvt.f32.s32 %v1060
    %v1062 = vcvt.f32.s32 %v1056
    %v1063 = vshll.u32 %v1062, 16
    %v1064 = vadd.s32 %v1063, %v1061
    %vm1065 = vcmp.eq.s32.totalorder %v448, %v1019
    %vm1066 = vcmp.eq.s32.totalorder %v448, %v1034
    %vm1067 = vcmp.eq.s32.totalorder %v448, %v1049
    %vm1068 = vcmp.eq.s32.totalorder %v448, %v1064
    %v1069 = vsel %vm1065, 1, 0
    %v1070 = vsel %vm1066, 1, 0
    %v1071 = vsel %vm1067, 1, 0
    %v1072 = vsel %vm1068, 1, 0
    %v1073 = vcvt.s32.f32 %v1069
    %v1074 = vcvt.s32.f32 %v1070
    %v1075 = vcvt.s32.f32 %v1071
    %v1076 = vcvt.s32.f32 %v1072
    %v1077 = vpack.c.bf16 %v1074, %v1073
    %v1078 = vpack.c.bf16 %v1076, %v1075
    %v1080 = vsel %vm136, %v1077, 0
    %1082 = vmatprep.subr.bf16.mxu0 0
    %1083 = vmatpush1.bf16.msra.mxu0 %v522
    %1084 = vmatprep.subr.bf16.mxu0 0
    %1085 = vmatpush1.bf16.msra.mxu0 0
    %1086 = vmatprep.subr.bf16.mxu0 0
    %1087 = vmatpush1.bf16.msra.mxu0 0
    %1088 = vmatprep.subr.bf16.mxu0 0
    %1089 = vmatpush1.bf16.msra.mxu0 0
    %1090 = vmatprep.subr.bf16.mxu0 0
    %1091 = vmatpush1.bf16.msra.mxu0 0
    %1092 = vmatprep.subr.bf16.mxu0 0
    %1093 = vmatpush1.bf16.msra.mxu0 0
    %1094 = vmatprep.subr.bf16.mxu0 0
    %1095 = vmatpush1.bf16.msra.mxu0 0
    %1096 = vmatprep.subr.bf16.mxu0 0
    %1097 = vmatpush1.bf16.msra.mxu0 0
    %1098 = vmatprep.subr.bf16.mxu0 0
    %1099 = vmatpush1.bf16.msra.mxu0 0
    %1100 = vmatprep.subr.bf16.mxu0 0
    %1101 = vmatpush1.bf16.msra.mxu0 0
    %1102 = vmatprep.subr.bf16.mxu0 0
    %1103 = vmatpush1.bf16.msra.mxu0 0
    %1104 = vmatprep.subr.bf16.mxu0 0
    %1105 = vmatpush1.bf16.msra.mxu0 0
    %1106 = vmatprep.subr.bf16.mxu0 0
    %1107 = vmatpush1.bf16.msra.mxu0 0
    %1108 = vmatprep.subr.bf16.mxu0 0
    %1109 = vmatpush1.bf16.msra.mxu0 0
    %1110 = vmatprep.subr.bf16.mxu0 0
    %1111 = vmatpush1.bf16.msra.mxu0 0
    %1112 = vmatprep.subr.bf16.mxu0 0
    %1113 = vmatpush1.bf16.msra.mxu0 0
    %1114 = vmatprep.mubr.bf16.mxu0 0
    %1115 = vmatmul.mubr.bf16.gmra.mrb[0].mxu0 %v1080
    %v1116 = vpop.f32.mrb[0].mxu0
    %v1117 = vadd.f32 0.0, %v1116
    %v1118 = vpop.f32.mrb[0].mxu0
    %v1119 = vpop.f32.mrb[0].mxu0
    %v1120 = vadd.f32 0.0, %v1119
    %v1121 = vpop.f32.mrb[0].mxu0
    %1122 = vdwg.mxu0
    %v1124 = vsel %vm136, %v1078, 0
    %1126 = vmatprep.subr.bf16.mxu0 0
    %1127 = vmatpush1.bf16.msra.mxu0 %v523
    %1128 = vmatprep.subr.bf16.mxu0 0
    %1129 = vmatpush1.bf16.msra.mxu0 0
    %1130 = vmatprep.subr.bf16.mxu0 0
    %1131 = vmatpush1.bf16.msra.mxu0 0
    %1132 = vmatprep.subr.bf16.mxu0 0
    %1133 = vmatpush1.bf16.msra.mxu0 0
    %1134 = vmatprep.subr.bf16.mxu0 0
    %1135 = vmatpush1.bf16.msra.mxu0 0
    %1136 = vmatprep.subr.bf16.mxu0 0
    %1137 = vmatpush1.bf16.msra.mxu0 0
    %1138 = vmatprep.subr.bf16.mxu0 0
    %1139 = vmatpush1.bf16.msra.mxu0 0
    %1140 = vmatprep.subr.bf16.mxu0 0
    %1141 = vmatpush1.bf16.msra.mxu0 0
    %1142 = vmatprep.subr.bf16.mxu0 0
    %1143 = vmatpush1.bf16.msra.mxu0 0
    %1144 = vmatprep.subr.bf16.mxu0 0
    %1145 = vmatpush1.bf16.msra.mxu0 0
    %1146 = vmatprep.subr.bf16.mxu0 0
    %1147 = vmatpush1.bf16.msra.mxu0 0
    %1148 = vmatprep.subr.bf16.mxu0 0
    %1149 = vmatpush1.bf16.msra.mxu0 0
    %1150 = vmatprep.subr.bf16.mxu0 0
    %1151 = vmatpush1.bf16.msra.mxu0 0
    %1152 = vmatprep.subr.bf16.mxu0 0
    %1153 = vmatpush1.bf16.msra.mxu0 0
    %1154 = vmatprep.subr.bf16.mxu0 0
    %1155 = vmatpush1.bf16.msra.mxu0 0
    %1156 = vmatprep.subr.bf16.mxu0 0
    %1157 = vmatpush1.bf16.msra.mxu0 0
    %1158 = vmatprep.mubr.bf16.mxu0 0
    %1159 = vmatmul.mubr.bf16.gmra.mrb[0].mxu0 %v1124
    %v1160 = vpop.f32.mrb[0].mxu0
    %v1161 = vadd.f32 0.0, %v1160
    %v1162 = vpop.f32.mrb[0].mxu0
    %v1163 = vpop.f32.mrb[0].mxu0
    %v1164 = vadd.f32 0.0, %v1163
    %v1165 = vpop.f32.mrb[0].mxu0
    %1166 = vdwg.mxu0
    %v1167 = vmax.f32 %v977, %v1117
    %v1168 = vmax.f32 %v978, %v1120
    %v1169 = vmax.f32 %v979, %v1161
    %v1170 = vmax.f32 %v980, %v1164
    %v1171 = vsel %vm1065, -1e+30, %v981
    %v1172 = vsel %vm1066, -1e+30, %v982
    %v1173 = vsel %vm1067, -1e+30, %v983
    %v1174 = vsel %vm1068, -1e+30, %v984
    %v1175 = vsel %vm136, %v1171, -inf
    %1176 = vmax.xlane.f32.xlu0 %v1175
    %v1177 = vpop.xlane.xlu0 %1176
    %v1178 = vsel %vm136, %v1172, -inf
    %1179 = vmax.xlane.f32.xlu0 %v1178
    %v1180 = vpop.xlane.xlu0 %1179
    %v1181 = vsel %vm136, %v1173, -inf
    %1182 = vmax.xlane.f32.xlu0 %v1181
    %v1183 = vpop.xlane.xlu0 %1182
    %v1184 = vsel %vm136, %v1174, -inf
    %1185 = vmax.xlane.f32.xlu0 %v1184
    %v1186 = vpop.xlane.xlu0 %1185
    %vm1187 = vcmp.eq.f32.partialorder %v1171, %v1177
    %vm1188 = vcmp.eq.f32.partialorder %v1172, %v1180
    %vm1189 = vcmp.eq.f32.partialorder %v1173, %v1183
    %vm1190 = vcmp.eq.f32.partialorder %v1174, %v1186
    %v1191 = vsel %vm1187, %v448, 16
    %v1192 = vsel %vm1188, %v448, 16
    %v1193 = vsel %vm1189, %v448, 16
    %v1194 = vsel %vm1190, %v448, 16
    %v1195 = vsel %vm136, %v1191, 2147483647
    %v1196 = vand.u32 %v1195, 65535
    %v1197 = vshra.s32 %v1195, 16
    %v1198 = vcvt.s32.f32 %v1196
    %v1199 = vcvt.s32.f32 %v1197
    %1200 = vmin.xlane.f32.xlu0 %v1199
    %v1201 = vpop.xlane.xlu0 %1200
    %vm1202 = vcmp.eq.f32.partialorder %v1199, %v1201
    %v1203 = vsel %vm1202, %v1198, inf
    %1204 = vmin.xlane.f32.xlu0 %v1203
    %v1205 = vpop.xlane.xlu0 %1204
    %v1206 = vcvt.f32.s32 %v1205
    %v1207 = vcvt.f32.s32 %v1201
    %v1208 = vshll.u32 %v1207, 16
    %v1209 = vadd.s32 %v1208, %v1206
    %v1210 = vsel %vm136, %v1192, 2147483647
    %v1211 = vand.u32 %v1210, 65535
    %v1212 = vshra.s32 %v1210, 16
    %v1213 = vcvt.s32.f32 %v1211
    %v1214 = vcvt.s32.f32 %v1212
    %1215 = vmin.xlane.f32.xlu0 %v1214
    %v1216 = vpop.xlane.xlu0 %1215
    %vm1217 = vcmp.eq.f32.partialorder %v1214, %v1216
    %v1218 = vsel %vm1217, %v1213, inf
    %1219 = vmin.xlane.f32.xlu0 %v1218
    %v1220 = vpop.xlane.xlu0 %1219
    %v1221 = vcvt.f32.s32 %v1220
    %v1222 = vcvt.f32.s32 %v1216
    %v1223 = vshll.u32 %v1222, 16
    %v1224 = vadd.s32 %v1223, %v1221
    %v1225 = vsel %vm136, %v1193, 2147483647
    %v1226 = vand.u32 %v1225, 65535
    %v1227 = vshra.s32 %v1225, 16
    %v1228 = vcvt.s32.f32 %v1226
    %v1229 = vcvt.s32.f32 %v1227
    %1230 = vmin.xlane.f32.xlu0 %v1229
    %v1231 = vpop.xlane.xlu0 %1230
    %vm1232 = vcmp.eq.f32.partialorder %v1229, %v1231
    %v1233 = vsel %vm1232, %v1228, inf
    %1234 = vmin.xlane.f32.xlu0 %v1233
    %v1235 = vpop.xlane.xlu0 %1234
    %v1236 = vcvt.f32.s32 %v1235
    %v1237 = vcvt.f32.s32 %v1231
    %v1238 = vshll.u32 %v1237, 16
    %v1239 = vadd.s32 %v1238, %v1236
    %v1240 = vsel %vm136, %v1194, 2147483647
    %v1241 = vand.u32 %v1240, 65535
    %v1242 = vshra.s32 %v1240, 16
    %v1243 = vcvt.s32.f32 %v1241
    %v1244 = vcvt.s32.f32 %v1242
    %1245 = vmin.xlane.f32.xlu0 %v1244
    %v1246 = vpop.xlane.xlu0 %1245
    %vm1247 = vcmp.eq.f32.partialorder %v1244, %v1246
    %v1248 = vsel %vm1247, %v1243, inf
    %1249 = vmin.xlane.f32.xlu0 %v1248
    %v1250 = vpop.xlane.xlu0 %1249
    %v1251 = vcvt.f32.s32 %v1250
    %v1252 = vcvt.f32.s32 %v1246
    %v1253 = vshll.u32 %v1252, 16
    %v1254 = vadd.s32 %v1253, %v1251
    %vm1255 = vcmp.eq.s32.totalorder %v448, %v1209
    %vm1256 = vcmp.eq.s32.totalorder %v448, %v1224
    %vm1257 = vcmp.eq.s32.totalorder %v448, %v1239
    %vm1258 = vcmp.eq.s32.totalorder %v448, %v1254
    %v1259 = vsel %vm1255, 1, 0
    %v1260 = vsel %vm1256, 1, 0
    %v1261 = vsel %vm1257, 1, 0
    %v1262 = vsel %vm1258, 1, 0
    %v1263 = vcvt.s32.f32 %v1259
    %v1264 = vcvt.s32.f32 %v1260
    %v1265 = vcvt.s32.f32 %v1261
    %v1266 = vcvt.s32.f32 %v1262
    %v1267 = vpack.c.bf16 %v1264, %v1263
    %v1268 = vpack.c.bf16 %v1266, %v1265
    %v1270 = vsel %vm136, %v1267, 0
    %1272 = vmatprep.subr.bf16.mxu0 0
    %1273 = vmatpush1.bf16.msra.mxu0 %v522
    %1274 = vmatprep.subr.bf16.mxu0 0
    %1275 = vmatpush1.bf16.msra.mxu0 0
    %1276 = vmatprep.subr.bf16.mxu0 0
    %1277 = vmatpush1.bf16.msra.mxu0 0
    %1278 = vmatprep.subr.bf16.mxu0 0
    %1279 = vmatpush1.bf16.msra.mxu0 0
    %1280 = vmatprep.subr.bf16.mxu0 0
    %1281 = vmatpush1.bf16.msra.mxu0 0
    %1282 = vmatprep.subr.bf16.mxu0 0
    %1283 = vmatpush1.bf16.msra.mxu0 0
    %1284 = vmatprep.subr.bf16.mxu0 0
    %1285 = vmatpush1.bf16.msra.mxu0 0
    %1286 = vmatprep.subr.bf16.mxu0 0
    %1287 = vmatpush1.bf16.msra.mxu0 0
    %1288 = vmatprep.subr.bf16.mxu0 0
    %1289 = vmatpush1.bf16.msra.mxu0 0
    %1290 = vmatprep.subr.bf16.mxu0 0
    %1291 = vmatpush1.bf16.msra.mxu0 0
    %1292 = vmatprep.subr.bf16.mxu0 0
    %1293 = vmatpush1.bf16.msra.mxu0 0
    %1294 = vmatprep.subr.bf16.mxu0 0
    %1295 = vmatpush1.bf16.msra.mxu0 0
    %1296 = vmatprep.subr.bf16.mxu0 0
    %1297 = vmatpush1.bf16.msra.mxu0 0
    %1298 = vmatprep.subr.bf16.mxu0 0
    %1299 = vmatpush1.bf16.msra.mxu0 0
    %1300 = vmatprep.subr.bf16.mxu0 0
    %1301 = vmatpush1.bf16.msra.mxu0 0
    %1302 = vmatprep.subr.bf16.mxu0 0
    %1303 = vmatpush1.bf16.msra.mxu0 0
    %1304 = vmatprep.mubr.bf16.mxu0 0
    %1305 = vmatmul.mubr.bf16.gmra.mrb[0].mxu0 %v1270
    %v1306 = vpop.f32.mrb[0].mxu0
    %v1307 = vadd.f32 0.0, %v1306
    %v1308 = vpop.f32.mrb[0].mxu0
    %v1309 = vpop.f32.mrb[0].mxu0
    %v1310 = vadd.f32 0.0, %v1309
    %v1311 = vpop.f32.mrb[0].mxu0
    %1312 = vdwg.mxu0
    %v1314 = vsel %vm136, %v1268, 0
    %1316 = vmatprep.subr.bf16.mxu0 0
    %1317 = vmatpush1.bf16.msra.mxu0 %v523
    %1318 = vmatprep.subr.bf16.mxu0 0
    %1319 = vmatpush1.bf16.msra.mxu0 0
    %1320 = vmatprep.subr.bf16.mxu0 0
    %1321 = vmatpush1.bf16.msra.mxu0 0
    %1322 = vmatprep.subr.bf16.mxu0 0
    %1323 = vmatpush1.bf16.msra.mxu0 0
    %1324 = vmatprep.subr.bf16.mxu0 0
    %1325 = vmatpush1.bf16.msra.mxu0 0
    %1326 = vmatprep.subr.bf16.mxu0 0
    %1327 = vmatpush1.bf16.msra.mxu0 0
    %1328 = vmatprep.subr.bf16.mxu0 0
    %1329 = vmatpush1.bf16.msra.mxu0 0
    %1330 = vmatprep.subr.bf16.mxu0 0
    %1331 = vmatpush1.bf16.msra.mxu0 0
    %1332 = vmatprep.subr.bf16.mxu0 0
    %1333 = vmatpush1.bf16.msra.mxu0 0
    %1334 = vmatprep.subr.bf16.mxu0 0
    %1335 = vmatpush1.bf16.msra.mxu0 0
    %1336 = vmatprep.subr.bf16.mxu0 0
    %1337 = vmatpush1.bf16.msra.mxu0 0
    %1338 = vmatprep.subr.bf16.mxu0 0
    %1339 = vmatpush1.bf16.msra.mxu0 0
    %1340 = vmatprep.subr.bf16.mxu0 0
    %1341 = vmatpush1.bf16.msra.mxu0 0
    %1342 = vmatprep.subr.bf16.mxu0 0
    %1343 = vmatpush1.bf16.msra.mxu0 0
    %1344 = vmatprep.subr.bf16.mxu0 0
    %1345 = vmatpush1.bf16.msra.mxu0 0
    %1346 = vmatprep.subr.bf16.mxu0 0
    %1347 = vmatpush1.bf16.msra.mxu0 0
    %1348 = vmatprep.mubr.bf16.mxu0 0
    %1349 = vmatmul.mubr.bf16.gmra.mrb[0].mxu0 %v1314
    %v1350 = vpop.f32.mrb[0].mxu0
    %v1351 = vadd.f32 0.0, %v1350
    %v1352 = vpop.f32.mrb[0].mxu0
    %v1353 = vpop.f32.mrb[0].mxu0
    %v1354 = vadd.f32 0.0, %v1353
    %v1355 = vpop.f32.mrb[0].mxu0
    %1356 = vdwg.mxu0
    %v1357 = vmax.f32 %v1167, %v1307
    %v1358 = vmax.f32 %v1168, %v1310
    %v1359 = vmax.f32 %v1169, %v1351
    %v1360 = vmax.f32 %v1170, %v1354
    %v1361 = vsel %vm1255, -1e+30, %v1171
    %v1362 = vsel %vm1256, -1e+30, %v1172
    %v1363 = vsel %vm1257, -1e+30, %v1173
    %v1364 = vsel %vm1258, -1e+30, %v1174
    %v1365 = vsel %vm136, %v1361, -inf
    %1366 = vmax.xlane.f32.xlu0 %v1365
    %v1367 = vpop.xlane.xlu0 %1366
    %v1368 = vsel %vm136, %v1362, -inf
    %1369 = vmax.xlane.f32.xlu0 %v1368
    %v1370 = vpop.xlane.xlu0 %1369
    %v1371 = vsel %vm136, %v1363, -inf
    %1372 = vmax.xlane.f32.xlu0 %v1371
    %v1373 = vpop.xlane.xlu0 %1372
    %v1374 = vsel %vm136, %v1364, -inf
    %1375 = vmax.xlane.f32.xlu0 %v1374
    %v1376 = vpop.xlane.xlu0 %1375
    %vm1377 = vcmp.eq.f32.partialorder %v1361, %v1367
    %vm1378 = vcmp.eq.f32.partialorder %v1362, %v1370
    %vm1379 = vcmp.eq.f32.partialorder %v1363, %v1373
    %vm1380 = vcmp.eq.f32.partialorder %v1364, %v1376
    %v1381 = vsel %vm1377, %v448, 16
    %v1382 = vsel %vm1378, %v448, 16
    %v1383 = vsel %vm1379, %v448, 16
    %v1384 = vsel %vm1380, %v448, 16
    %v1385 = vsel %vm136, %v1381, 2147483647
    %v1386 = vand.u32 %v1385, 65535
    %v1387 = vshra.s32 %v1385, 16
    %v1388 = vcvt.s32.f32 %v1386
    %v1389 = vcvt.s32.f32 %v1387
    %1390 = vmin.xlane.f32.xlu0 %v1389
    %v1391 = vpop.xlane.xlu0 %1390
    %vm1392 = vcmp.eq.f32.partialorder %v1389, %v1391
    %v1393 = vsel %vm1392, %v1388, inf
    %1394 = vmin.xlane.f32.xlu0 %v1393
    %v1395 = vpop.xlane.xlu0 %1394
    %v1396 = vcvt.f32.s32 %v1395
    %v1397 = vcvt.f32.s32 %v1391
    %v1398 = vshll.u32 %v1397, 16
    %v1399 = vadd.s32 %v1398, %v1396
    %v1400 = vsel %vm136, %v1382, 2147483647
    %v1401 = vand.u32 %v1400, 65535
    %v1402 = vshra.s32 %v1400, 16
    %v1403 = vcvt.s32.f32 %v1401
    %v1404 = vcvt.s32.f32 %v1402
    %1405 = vmin.xlane.f32.xlu0 %v1404
    %v1406 = vpop.xlane.xlu0 %1405
    %vm1407 = vcmp.eq.f32.partialorder %v1404, %v1406
    %v1408 = vsel %vm1407, %v1403, inf
    %1409 = vmin.xlane.f32.xlu0 %v1408
    %v1410 = vpop.xlane.xlu0 %1409
    %v1411 = vcvt.f32.s32 %v1410
    %v1412 = vcvt.f32.s32 %v1406
    %v1413 = vshll.u32 %v1412, 16
    %v1414 = vadd.s32 %v1413, %v1411
    %v1415 = vsel %vm136, %v1383, 2147483647
    %v1416 = vand.u32 %v1415, 65535
    %v1417 = vshra.s32 %v1415, 16
    %v1418 = vcvt.s32.f32 %v1416
    %v1419 = vcvt.s32.f32 %v1417
    %1420 = vmin.xlane.f32.xlu0 %v1419
    %v1421 = vpop.xlane.xlu0 %1420
    %vm1422 = vcmp.eq.f32.partialorder %v1419, %v1421
    %v1423 = vsel %vm1422, %v1418, inf
    %1424 = vmin.xlane.f32.xlu0 %v1423
    %v1425 = vpop.xlane.xlu0 %1424
    %v1426 = vcvt.f32.s32 %v1425
    %v1427 = vcvt.f32.s32 %v1421
    %v1428 = vshll.u32 %v1427, 16
    %v1429 = vadd.s32 %v1428, %v1426
    %v1430 = vsel %vm136, %v1384, 2147483647
    %v1431 = vand.u32 %v1430, 65535
    %v1432 = vshra.s32 %v1430, 16
    %v1433 = vcvt.s32.f32 %v1431
    %v1434 = vcvt.s32.f32 %v1432
    %1435 = vmin.xlane.f32.xlu0 %v1434
    %v1436 = vpop.xlane.xlu0 %1435
    %vm1437 = vcmp.eq.f32.partialorder %v1434, %v1436
    %v1438 = vsel %vm1437, %v1433, inf
    %1439 = vmin.xlane.f32.xlu0 %v1438
    %v1440 = vpop.xlane.xlu0 %1439
    %v1441 = vcvt.f32.s32 %v1440
    %v1442 = vcvt.f32.s32 %v1436
    %v1443 = vshll.u32 %v1442, 16
    %v1444 = vadd.s32 %v1443, %v1441
    %vm1445 = vcmp.eq.s32.totalorder %v448, %v1399
    %vm1446 = vcmp.eq.s32.totalorder %v448, %v1414
    %vm1447 = vcmp.eq.s32.totalorder %v448, %v1429
    %vm1448 = vcmp.eq.s32.totalorder %v448, %v1444
    %v1449 = vsel %vm1445, 1, 0
    %v1450 = vsel %vm1446, 1, 0
    %v1451 = vsel %vm1447, 1, 0
    %v1452 = vsel %vm1448, 1, 0
    %v1453 = vcvt.s32.f32 %v1449
    %v1454 = vcvt.s32.f32 %v1450
    %v1455 = vcvt.s32.f32 %v1451
    %v1456 = vcvt.s32.f32 %v1452
    %v1457 = vpack.c.bf16 %v1454, %v1453
    %v1458 = vpack.c.bf16 %v1456, %v1455
    %v1460 = vsel %vm136, %v1457, 0
    %1462 = vmatprep.subr.bf16.mxu0 0
    %1463 = vmatpush1.bf16.msra.mxu0 %v522
    %1464 = vmatprep.subr.bf16.mxu0 0
    %1465 = vmatpush1.bf16.msra.mxu0 0
    %1466 = vmatprep.subr.bf16.mxu0 0
    %1467 = vmatpush1.bf16.msra.mxu0 0
    %1468 = vmatprep.subr.bf16.mxu0 0
    %1469 = vmatpush1.bf16.msra.mxu0 0
    %1470 = vmatprep.subr.bf16.mxu0 0
    %1471 = vmatpush1.bf16.msra.mxu0 0
    %1472 = vmatprep.subr.bf16.mxu0 0
    %1473 = vmatpush1.bf16.msra.mxu0 0
    %1474 = vmatprep.subr.bf16.mxu0 0
    %1475 = vmatpush1.bf16.msra.mxu0 0
    %1476 = vmatprep.subr.bf16.mxu0 0
    %1477 = vmatpush1.bf16.msra.mxu0 0
    %1478 = vmatprep.subr.bf16.mxu0 0
    %1479 = vmatpush1.bf16.msra.mxu0 0
    %1480 = vmatprep.subr.bf16.mxu0 0
    %1481 = vmatpush1.bf16.msra.mxu0 0
    %1482 = vmatprep.subr.bf16.mxu0 0
    %1483 = vmatpush1.bf16.msra.mxu0 0
    %1484 = vmatprep.subr.bf16.mxu0 0
    %1485 = vmatpush1.bf16.msra.mxu0 0
    %1486 = vmatprep.subr.bf16.mxu0 0
    %1487 = vmatpush1.bf16.msra.mxu0 0
    %1488 = vmatprep.subr.bf16.mxu0 0
    %1489 = vmatpush1.bf16.msra.mxu0 0
    %1490 = vmatprep.subr.bf16.mxu0 0
    %1491 = vmatpush1.bf16.msra.mxu0 0
    %1492 = vmatprep.subr.bf16.mxu0 0
    %1493 = vmatpush1.bf16.msra.mxu0 0
    %1494 = vmatprep.mubr.bf16.mxu0 0
    %1495 = vmatmul.mubr.bf16.gmra.mrb[0].mxu0 %v1460
    %v1496 = vpop.f32.mrb[0].mxu0
    %v1497 = vadd.f32 0.0, %v1496
    %v1498 = vpop.f32.mrb[0].mxu0
    %v1499 = vpop.f32.mrb[0].mxu0
    %v1500 = vadd.f32 0.0, %v1499
    %v1501 = vpop.f32.mrb[0].mxu0
    %1502 = vdwg.mxu0
    %v1504 = vsel %vm136, %v1458, 0
    %1506 = vmatprep.subr.bf16.mxu0 0
    %1507 = vmatpush1.bf16.msra.mxu0 %v523
    %1508 = vmatprep.subr.bf16.mxu0 0
    %1509 = vmatpush1.bf16.msra.mxu0 0
    %1510 = vmatprep.subr.bf16.mxu0 0
    %1511 = vmatpush1.bf16.msra.mxu0 0
    %1512 = vmatprep.subr.bf16.mxu0 0
    %1513 = vmatpush1.bf16.msra.mxu0 0
    %1514 = vmatprep.subr.bf16.mxu0 0
    %1515 = vmatpush1.bf16.msra.mxu0 0
    %1516 = vmatprep.subr.bf16.mxu0 0
    %1517 = vmatpush1.bf16.msra.mxu0 0
    %1518 = vmatprep.subr.bf16.mxu0 0
    %1519 = vmatpush1.bf16.msra.mxu0 0
    %1520 = vmatprep.subr.bf16.mxu0 0
    %1521 = vmatpush1.bf16.msra.mxu0 0
    %1522 = vmatprep.subr.bf16.mxu0 0
    %1523 = vmatpush1.bf16.msra.mxu0 0
    %1524 = vmatprep.subr.bf16.mxu0 0
    %1525 = vmatpush1.bf16.msra.mxu0 0
    %1526 = vmatprep.subr.bf16.mxu0 0
    %1527 = vmatpush1.bf16.msra.mxu0 0
    %1528 = vmatprep.subr.bf16.mxu0 0
    %1529 = vmatpush1.bf16.msra.mxu0 0
    %1530 = vmatprep.subr.bf16.mxu0 0
    %1531 = vmatpush1.bf16.msra.mxu0 0
    %1532 = vmatprep.subr.bf16.mxu0 0
    %1533 = vmatpush1.bf16.msra.mxu0 0
    %1534 = vmatprep.subr.bf16.mxu0 0
    %1535 = vmatpush1.bf16.msra.mxu0 0
    %1536 = vmatprep.subr.bf16.mxu0 0
    %1537 = vmatpush1.bf16.msra.mxu0 0
    %1538 = vmatprep.mubr.bf16.mxu0 0
    %1539 = vmatmul.mubr.bf16.gmra.mrb[0].mxu0 %v1504
    %v1540 = vpop.f32.mrb[0].mxu0
    %v1541 = vadd.f32 0.0, %v1540
    %v1542 = vpop.f32.mrb[0].mxu0
    %v1543 = vpop.f32.mrb[0].mxu0
    %v1544 = vadd.f32 0.0, %v1543
    %v1545 = vpop.f32.mrb[0].mxu0
    %1546 = vdwg.mxu0
    %v1547 = vmax.f32 %v1357, %v1497
    %v1548 = vmax.f32 %v1358, %v1500
    %v1549 = vmax.f32 %v1359, %v1541
    %v1550 = vmax.f32 %v1360, %v1544
    %v1551 = vsel %vm1445, -1e+30, %v1361
    %v1552 = vsel %vm1446, -1e+30, %v1362
    %v1553 = vsel %vm1447, -1e+30, %v1363
    %v1554 = vsel %vm1448, -1e+30, %v1364
    %v1555 = vsel %vm136, %v1551, -inf
    %1556 = vmax.xlane.f32.xlu0 %v1555
    %v1557 = vpop.xlane.xlu0 %1556
    %v1558 = vsel %vm136, %v1552, -inf
    %1559 = vmax.xlane.f32.xlu0 %v1558
    %v1560 = vpop.xlane.xlu0 %1559
    %v1561 = vsel %vm136, %v1553, -inf
    %1562 = vmax.xlane.f32.xlu0 %v1561
    %v1563 = vpop.xlane.xlu0 %1562
    %v1564 = vsel %vm136, %v1554, -inf
    %1565 = vmax.xlane.f32.xlu0 %v1564
    %v1566 = vpop.xlane.xlu0 %1565
    %vm1567 = vcmp.eq.f32.partialorder %v1551, %v1557
    %vm1568 = vcmp.eq.f32.partialorder %v1552, %v1560
    %vm1569 = vcmp.eq.f32.partialorder %v1553, %v1563
    %vm1570 = vcmp.eq.f32.partialorder %v1554, %v1566
    %v1571 = vsel %vm1567, %v448, 16
    %v1572 = vsel %vm1568, %v448, 16
    %v1573 = vsel %vm1569, %v448, 16
    %v1574 = vsel %vm1570, %v448, 16
    %v1575 = vsel %vm136, %v1571, 2147483647
    %v1576 = vand.u32 %v1575, 65535
    %v1577 = vshra.s32 %v1575, 16
    %v1578 = vcvt.s32.f32 %v1576
    %v1579 = vcvt.s32.f32 %v1577
    %1580 = vmin.xlane.f32.xlu0 %v1579
    %v1581 = vpop.xlane.xlu0 %1580
    %vm1582 = vcmp.eq.f32.partialorder %v1579, %v1581
    %v1583 = vsel %vm1582, %v1578, inf
    %1584 = vmin.xlane.f32.xlu0 %v1583
    %v1585 = vpop.xlane.xlu0 %1584
    %v1586 = vcvt.f32.s32 %v1585
    %v1587 = vcvt.f32.s32 %v1581
    %v1588 = vshll.u32 %v1587, 16
    %v1589 = vadd.s32 %v1588, %v1586
    %v1590 = vsel %vm136, %v1572, 2147483647
    %v1591 = vand.u32 %v1590, 65535
    %v1592 = vshra.s32 %v1590, 16
    %v1593 = vcvt.s32.f32 %v1591
    %v1594 = vcvt.s32.f32 %v1592
    %1595 = vmin.xlane.f32.xlu0 %v1594
    %v1596 = vpop.xlane.xlu0 %1595
    %vm1597 = vcmp.eq.f32.partialorder %v1594, %v1596
    %v1598 = vsel %vm1597, %v1593, inf
    %1599 = vmin.xlane.f32.xlu0 %v1598
    %v1600 = vpop.xlane.xlu0 %1599
    %v1601 = vcvt.f32.s32 %v1600
    %v1602 = vcvt.f32.s32 %v1596
    %v1603 = vshll.u32 %v1602, 16
    %v1604 = vadd.s32 %v1603, %v1601
    %v1605 = vsel %vm136, %v1573, 2147483647
    %v1606 = vand.u32 %v1605, 65535
    %v1607 = vshra.s32 %v1605, 16
    %v1608 = vcvt.s32.f32 %v1606
    %v1609 = vcvt.s32.f32 %v1607
    %1610 = vmin.xlane.f32.xlu0 %v1609
    %v1611 = vpop.xlane.xlu0 %1610
    %vm1612 = vcmp.eq.f32.partialorder %v1609, %v1611
    %v1613 = vsel %vm1612, %v1608, inf
    %1614 = vmin.xlane.f32.xlu0 %v1613
    %v1615 = vpop.xlane.xlu0 %1614
    %v1616 = vcvt.f32.s32 %v1615
    %v1617 = vcvt.f32.s32 %v1611
    %v1618 = vshll.u32 %v1617, 16
    %v1619 = vadd.s32 %v1618, %v1616
    %v1620 = vsel %vm136, %v1574, 2147483647
    %v1621 = vand.u32 %v1620, 65535
    %v1622 = vshra.s32 %v1620, 16
    %v1623 = vcvt.s32.f32 %v1621
    %v1624 = vcvt.s32.f32 %v1622
    %1625 = vmin.xlane.f32.xlu0 %v1624
    %v1626 = vpop.xlane.xlu0 %1625
    %vm1627 = vcmp.eq.f32.partialorder %v1624, %v1626
    %v1628 = vsel %vm1627, %v1623, inf
    %1629 = vmin.xlane.f32.xlu0 %v1628
    %v1630 = vpop.xlane.xlu0 %1629
    %v1631 = vcvt.f32.s32 %v1630
    %v1632 = vcvt.f32.s32 %v1626
    %v1633 = vshll.u32 %v1632, 16
    %v1634 = vadd.s32 %v1633, %v1631
    %vm1635 = vcmp.eq.s32.totalorder %v448, %v1589
    %vm1636 = vcmp.eq.s32.totalorder %v448, %v1604
    %vm1637 = vcmp.eq.s32.totalorder %v448, %v1619
    %vm1638 = vcmp.eq.s32.totalorder %v448, %v1634
    %v1639 = vsel %vm1635, 1, 0
    %v1640 = vsel %vm1636, 1, 0
    %v1641 = vsel %vm1637, 1, 0
    %v1642 = vsel %vm1638, 1, 0
    %v1643 = vcvt.s32.f32 %v1639
    %v1644 = vcvt.s32.f32 %v1640
    %v1645 = vcvt.s32.f32 %v1641
    %v1646 = vcvt.s32.f32 %v1642
    %v1647 = vpack.c.bf16 %v1644, %v1643
    %v1648 = vpack.c.bf16 %v1646, %v1645
    %v1650 = vsel %vm136, %v1647, 0
    %1652 = vmatprep.subr.bf16.mxu0 0
    %1653 = vmatpush1.bf16.msra.mxu0 %v522
    %1654 = vmatprep.subr.bf16.mxu0 0
    %1655 = vmatpush1.bf16.msra.mxu0 0
    %1656 = vmatprep.subr.bf16.mxu0 0
    %1657 = vmatpush1.bf16.msra.mxu0 0
    %1658 = vmatprep.subr.bf16.mxu0 0
    %1659 = vmatpush1.bf16.msra.mxu0 0
    %1660 = vmatprep.subr.bf16.mxu0 0
    %1661 = vmatpush1.bf16.msra.mxu0 0
    %1662 = vmatprep.subr.bf16.mxu0 0
    %1663 = vmatpush1.bf16.msra.mxu0 0
    %1664 = vmatprep.subr.bf16.mxu0 0
    %1665 = vmatpush1.bf16.msra.mxu0 0
    %1666 = vmatprep.subr.bf16.mxu0 0
    %1667 = vmatpush1.bf16.msra.mxu0 0
    %1668 = vmatprep.subr.bf16.mxu0 0
    %1669 = vmatpush1.bf16.msra.mxu0 0
    %1670 = vmatprep.subr.bf16.mxu0 0
    %1671 = vmatpush1.bf16.msra.mxu0 0
    %1672 = vmatprep.subr.bf16.mxu0 0
    %1673 = vmatpush1.bf16.msra.mxu0 0
    %1674 = vmatprep.subr.bf16.mxu0 0
    %1675 = vmatpush1.bf16.msra.mxu0 0
    %1676 = vmatprep.subr.bf16.mxu0 0
    %1677 = vmatpush1.bf16.msra.mxu0 0
    %1678 = vmatprep.subr.bf16.mxu0 0
    %1679 = vmatpush1.bf16.msra.mxu0 0
    %1680 = vmatprep.subr.bf16.mxu0 0
    %1681 = vmatpush1.bf16.msra.mxu0 0
    %1682 = vmatprep.subr.bf16.mxu0 0
    %1683 = vmatpush1.bf16.msra.mxu0 0
    %1684 = vmatprep.mubr.bf16.mxu0 0
    %1685 = vmatmul.mubr.bf16.gmra.mrb[0].mxu0 %v1650
    %v1686 = vpop.f32.mrb[0].mxu0
    %v1687 = vadd.f32 0.0, %v1686
    %v1688 = vpop.f32.mrb[0].mxu0
    %v1689 = vpop.f32.mrb[0].mxu0
    %v1690 = vadd.f32 0.0, %v1689
    %v1691 = vpop.f32.mrb[0].mxu0
    %1692 = vdwg.mxu0
    %v1694 = vsel %vm136, %v1648, 0
    %1696 = vmatprep.subr.bf16.mxu0 0
    %1697 = vmatpush1.bf16.msra.mxu0 %v523
    %1698 = vmatprep.subr.bf16.mxu0 0
    %1699 = vmatpush1.bf16.msra.mxu0 0
    %1700 = vmatprep.subr.bf16.mxu0 0
    %1701 = vmatpush1.bf16.msra.mxu0 0
    %1702 = vmatprep.subr.bf16.mxu0 0
    %1703 = vmatpush1.bf16.msra.mxu0 0
    %1704 = vmatprep.subr.bf16.mxu0 0
    %1705 = vmatpush1.bf16.msra.mxu0 0
    %1706 = vmatprep.subr.bf16.mxu0 0
    %1707 = vmatpush1.bf16.msra.mxu0 0
    %1708 = vmatprep.subr.bf16.mxu0 0
    %1709 = vmatpush1.bf16.msra.mxu0 0
    %1710 = vmatprep.subr.bf16.mxu0 0
    %1711 = vmatpush1.bf16.msra.mxu0 0
    %1712 = vmatprep.subr.bf16.mxu0 0
    %1713 = vmatpush1.bf16.msra.mxu0 0
    %1714 = vmatprep.subr.bf16.mxu0 0
    %1715 = vmatpush1.bf16.msra.mxu0 0
    %1716 = vmatprep.subr.bf16.mxu0 0
    %1717 = vmatpush1.bf16.msra.mxu0 0
    %1718 = vmatprep.subr.bf16.mxu0 0
    %1719 = vmatpush1.bf16.msra.mxu0 0
    %1720 = vmatprep.subr.bf16.mxu0 0
    %1721 = vmatpush1.bf16.msra.mxu0 0
    %1722 = vmatprep.subr.bf16.mxu0 0
    %1723 = vmatpush1.bf16.msra.mxu0 0
    %1724 = vmatprep.subr.bf16.mxu0 0
    %1725 = vmatpush1.bf16.msra.mxu0 0
    %1726 = vmatprep.subr.bf16.mxu0 0
    %1727 = vmatpush1.bf16.msra.mxu0 0
    %1728 = vmatprep.mubr.bf16.mxu0 0
    %1729 = vmatmul.mubr.bf16.gmra.mrb[0].mxu0 %v1694
    %v1730 = vpop.f32.mrb[0].mxu0
    %v1731 = vadd.f32 0.0, %v1730
    %v1732 = vpop.f32.mrb[0].mxu0
    %v1733 = vpop.f32.mrb[0].mxu0
    %v1734 = vadd.f32 0.0, %v1733
    %v1735 = vpop.f32.mrb[0].mxu0
    %1736 = vdwg.mxu0
    %v1737 = vmax.f32 %v1547, %v1687
    %v1738 = vmax.f32 %v1548, %v1690
    %v1739 = vmax.f32 %v1549, %v1731
    %v1740 = vmax.f32 %v1550, %v1734
    %v1741 = vsel %vm1635, -1e+30, %v1551
    %v1742 = vsel %vm1636, -1e+30, %v1552
    %v1743 = vsel %vm1637, -1e+30, %v1553
    %v1744 = vsel %vm1638, -1e+30, %v1554
    %v1745 = vsel %vm136, %v1741, -inf
    %1746 = vmax.xlane.f32.xlu0 %v1745
    %v1747 = vpop.xlane.xlu0 %1746
    %v1748 = vsel %vm136, %v1742, -inf
    %1749 = vmax.xlane.f32.xlu0 %v1748
    %v1750 = vpop.xlane.xlu0 %1749
    %v1751 = vsel %vm136, %v1743, -inf
    %1752 = vmax.xlane.f32.xlu0 %v1751
    %v1753 = vpop.xlane.xlu0 %1752
    %v1754 = vsel %vm136, %v1744, -inf
    %1755 = vmax.xlane.f32.xlu0 %v1754
    %v1756 = vpop.xlane.xlu0 %1755
    %vm1757 = vcmp.eq.f32.partialorder %v1741, %v1747
    %vm1758 = vcmp.eq.f32.partialorder %v1742, %v1750
    %vm1759 = vcmp.eq.f32.partialorder %v1743, %v1753
    %vm1760 = vcmp.eq.f32.partialorder %v1744, %v1756
    %v1761 = vsel %vm1757, %v448, 16
    %v1762 = vsel %vm1758, %v448, 16
    %v1763 = vsel %vm1759, %v448, 16
    %v1764 = vsel %vm1760, %v448, 16
    %v1765 = vsel %vm136, %v1761, 2147483647
    %v1766 = vand.u32 %v1765, 65535
    %v1767 = vshra.s32 %v1765, 16
    %v1768 = vcvt.s32.f32 %v1766
    %v1769 = vcvt.s32.f32 %v1767
    %1770 = vmin.xlane.f32.xlu0 %v1769
    %v1771 = vpop.xlane.xlu0 %1770
    %vm1772 = vcmp.eq.f32.partialorder %v1769, %v1771
    %v1773 = vsel %vm1772, %v1768, inf
    %1774 = vmin.xlane.f32.xlu0 %v1773
    %v1775 = vpop.xlane.xlu0 %1774
    %v1776 = vcvt.f32.s32 %v1775
    %v1777 = vcvt.f32.s32 %v1771
    %v1778 = vshll.u32 %v1777, 16
    %v1779 = vadd.s32 %v1778, %v1776
    %v1780 = vsel %vm136, %v1762, 2147483647
    %v1781 = vand.u32 %v1780, 65535
    %v1782 = vshra.s32 %v1780, 16
    %v1783 = vcvt.s32.f32 %v1781
    %v1784 = vcvt.s32.f32 %v1782
    %1785 = vmin.xlane.f32.xlu0 %v1784
    %v1786 = vpop.xlane.xlu0 %1785
    %vm1787 = vcmp.eq.f32.partialorder %v1784, %v1786
    %v1788 = vsel %vm1787, %v1783, inf
    %1789 = vmin.xlane.f32.xlu0 %v1788
    %v1790 = vpop.xlane.xlu0 %1789
    %v1791 = vcvt.f32.s32 %v1790
    %v1792 = vcvt.f32.s32 %v1786
    %v1793 = vshll.u32 %v1792, 16
    %v1794 = vadd.s32 %v1793, %v1791
    %v1795 = vsel %vm136, %v1763, 2147483647
    %v1796 = vand.u32 %v1795, 65535
    %v1797 = vshra.s32 %v1795, 16
    %v1798 = vcvt.s32.f32 %v1796
    %v1799 = vcvt.s32.f32 %v1797
    %1800 = vmin.xlane.f32.xlu0 %v1799
    %v1801 = vpop.xlane.xlu0 %1800
    %vm1802 = vcmp.eq.f32.partialorder %v1799, %v1801
    %v1803 = vsel %vm1802, %v1798, inf
    %1804 = vmin.xlane.f32.xlu0 %v1803
    %v1805 = vpop.xlane.xlu0 %1804
    %v1806 = vcvt.f32.s32 %v1805
    %v1807 = vcvt.f32.s32 %v1801
    %v1808 = vshll.u32 %v1807, 16
    %v1809 = vadd.s32 %v1808, %v1806
    %v1810 = vsel %vm136, %v1764, 2147483647
    %v1811 = vand.u32 %v1810, 65535
    %v1812 = vshra.s32 %v1810, 16
    %v1813 = vcvt.s32.f32 %v1811
    %v1814 = vcvt.s32.f32 %v1812
    %1815 = vmin.xlane.f32.xlu0 %v1814
    %v1816 = vpop.xlane.xlu0 %1815
    %vm1817 = vcmp.eq.f32.partialorder %v1814, %v1816
    %v1818 = vsel %vm1817, %v1813, inf
    %1819 = vmin.xlane.f32.xlu0 %v1818
    %v1820 = vpop.xlane.xlu0 %1819
    %v1821 = vcvt.f32.s32 %v1820
    %v1822 = vcvt.f32.s32 %v1816
    %v1823 = vshll.u32 %v1822, 16
    %v1824 = vadd.s32 %v1823, %v1821
    %vm1825 = vcmp.eq.s32.totalorder %v448, %v1779
    %vm1826 = vcmp.eq.s32.totalorder %v448, %v1794
    %vm1827 = vcmp.eq.s32.totalorder %v448, %v1809
    %vm1828 = vcmp.eq.s32.totalorder %v448, %v1824
    %v1829 = vsel %vm1825, 1, 0
    %v1830 = vsel %vm1826, 1, 0
    %v1831 = vsel %vm1827, 1, 0
    %v1832 = vsel %vm1828, 1, 0
    %v1833 = vcvt.s32.f32 %v1829
    %v1834 = vcvt.s32.f32 %v1830
    %v1835 = vcvt.s32.f32 %v1831
    %v1836 = vcvt.s32.f32 %v1832
    %v1837 = vpack.c.bf16 %v1834, %v1833
    %v1838 = vpack.c.bf16 %v1836, %v1835
    %v1840 = vsel %vm136, %v1837, 0
    %1842 = vmatprep.subr.bf16.mxu0 0
    %1843 = vmatpush1.bf16.msra.mxu0 %v522
    %1844 = vmatprep.subr.bf16.mxu0 0
    %1845 = vmatpush1.bf16.msra.mxu0 0
    %1846 = vmatprep.subr.bf16.mxu0 0
    %1847 = vmatpush1.bf16.msra.mxu0 0
    %1848 = vmatprep.subr.bf16.mxu0 0
    %1849 = vmatpush1.bf16.msra.mxu0 0
    %1850 = vmatprep.subr.bf16.mxu0 0
    %1851 = vmatpush1.bf16.msra.mxu0 0
    %1852 = vmatprep.subr.bf16.mxu0 0
    %1853 = vmatpush1.bf16.msra.mxu0 0
    %1854 = vmatprep.subr.bf16.mxu0 0
    %1855 = vmatpush1.bf16.msra.mxu0 0
    %1856 = vmatprep.subr.bf16.mxu0 0
    %1857 = vmatpush1.bf16.msra.mxu0 0
    %1858 = vmatprep.subr.bf16.mxu0 0
    %1859 = vmatpush1.bf16.msra.mxu0 0
    %1860 = vmatprep.subr.bf16.mxu0 0
    %1861 = vmatpush1.bf16.msra.mxu0 0
    %1862 = vmatprep.subr.bf16.mxu0 0
    %1863 = vmatpush1.bf16.msra.mxu0 0
    %1864 = vmatprep.subr.bf16.mxu0 0
    %1865 = vmatpush1.bf16.msra.mxu0 0
    %1866 = vmatprep.subr.bf16.mxu0 0
    %1867 = vmatpush1.bf16.msra.mxu0 0
    %1868 = vmatprep.subr.bf16.mxu0 0
    %1869 = vmatpush1.bf16.msra.mxu0 0
    %1870 = vmatprep.subr.bf16.mxu0 0
    %1871 = vmatpush1.bf16.msra.mxu0 0
    %1872 = vmatprep.subr.bf16.mxu0 0
    %1873 = vmatpush1.bf16.msra.mxu0 0
    %1874 = vmatprep.mubr.bf16.mxu0 0
    %1875 = vmatmul.mubr.bf16.gmra.mrb[0].mxu0 %v1840
    %v1876 = vpop.f32.mrb[0].mxu0
    %v1877 = vadd.f32 0.0, %v1876
    %v1878 = vpop.f32.mrb[0].mxu0
    %v1879 = vpop.f32.mrb[0].mxu0
    %v1880 = vadd.f32 0.0, %v1879
    %v1881 = vpop.f32.mrb[0].mxu0
    %1882 = vdwg.mxu0
    %v1884 = vsel %vm136, %v1838, 0
    %1886 = vmatprep.subr.bf16.mxu0 0
    %1887 = vmatpush1.bf16.msra.mxu0 %v523
    %1888 = vmatprep.subr.bf16.mxu0 0
    %1889 = vmatpush1.bf16.msra.mxu0 0
    %1890 = vmatprep.subr.bf16.mxu0 0
    %1891 = vmatpush1.bf16.msra.mxu0 0
    %1892 = vmatprep.subr.bf16.mxu0 0
    %1893 = vmatpush1.bf16.msra.mxu0 0
    %1894 = vmatprep.subr.bf16.mxu0 0
    %1895 = vmatpush1.bf16.msra.mxu0 0
    %1896 = vmatprep.subr.bf16.mxu0 0
    %1897 = vmatpush1.bf16.msra.mxu0 0
    %1898 = vmatprep.subr.bf16.mxu0 0
    %1899 = vmatpush1.bf16.msra.mxu0 0
    %1900 = vmatprep.subr.bf16.mxu0 0
    %1901 = vmatpush1.bf16.msra.mxu0 0
    %1902 = vmatprep.subr.bf16.mxu0 0
    %1903 = vmatpush1.bf16.msra.mxu0 0
    %1904 = vmatprep.subr.bf16.mxu0 0
    %1905 = vmatpush1.bf16.msra.mxu0 0
    %1906 = vmatprep.subr.bf16.mxu0 0
    %1907 = vmatpush1.bf16.msra.mxu0 0
    %1908 = vmatprep.subr.bf16.mxu0 0
    %1909 = vmatpush1.bf16.msra.mxu0 0
    %1910 = vmatprep.subr.bf16.mxu0 0
    %1911 = vmatpush1.bf16.msra.mxu0 0
    %1912 = vmatprep.subr.bf16.mxu0 0
    %1913 = vmatpush1.bf16.msra.mxu0 0
    %1914 = vmatprep.subr.bf16.mxu0 0
    %1915 = vmatpush1.bf16.msra.mxu0 0
    %1916 = vmatprep.subr.bf16.mxu0 0
    %1917 = vmatpush1.bf16.msra.mxu0 0
    %1918 = vmatprep.mubr.bf16.mxu0 0
    %1919 = vmatmul.mubr.bf16.gmra.mrb[0].mxu0 %v1884
    %v1920 = vpop.f32.mrb[0].mxu0
    %v1921 = vadd.f32 0.0, %v1920
    %v1922 = vpop.f32.mrb[0].mxu0
    %v1923 = vpop.f32.mrb[0].mxu0
    %v1924 = vadd.f32 0.0, %v1923
    %v1925 = vpop.f32.mrb[0].mxu0
    %1926 = vdwg.mxu0
    %v1927 = vmax.f32 %v1737, %v1877
    %v1928 = vmax.f32 %v1738, %v1880
    %v1929 = vmax.f32 %v1739, %v1921
    %v1930 = vmax.f32 %v1740, %v1924
    %v1931 = vsel %vm1825, -1e+30, %v1741
    %v1932 = vsel %vm1826, -1e+30, %v1742
    %v1933 = vsel %vm1827, -1e+30, %v1743
    %v1934 = vsel %vm1828, -1e+30, %v1744
    %v1935 = vsel %vm136, %v1931, -inf
    %1936 = vmax.xlane.f32.xlu0 %v1935
    %v1937 = vpop.xlane.xlu0 %1936
    %v1938 = vsel %vm136, %v1932, -inf
    %1939 = vmax.xlane.f32.xlu0 %v1938
    %v1940 = vpop.xlane.xlu0 %1939
    %v1941 = vsel %vm136, %v1933, -inf
    %1942 = vmax.xlane.f32.xlu0 %v1941
    %v1943 = vpop.xlane.xlu0 %1942
    %v1944 = vsel %vm136, %v1934, -inf
    %1945 = vmax.xlane.f32.xlu0 %v1944
    %v1946 = vpop.xlane.xlu0 %1945
    %vm1947 = vcmp.eq.f32.partialorder %v1931, %v1937
    %vm1948 = vcmp.eq.f32.partialorder %v1932, %v1940
    %vm1949 = vcmp.eq.f32.partialorder %v1933, %v1943
    %vm1950 = vcmp.eq.f32.partialorder %v1934, %v1946
    %v1951 = vsel %vm1947, %v448, 16
    %v1952 = vsel %vm1948, %v448, 16
    %v1953 = vsel %vm1949, %v448, 16
    %v1954 = vsel %vm1950, %v448, 16
    %v1955 = vsel %vm136, %v1951, 2147483647
    %v1956 = vand.u32 %v1955, 65535
    %v1957 = vshra.s32 %v1955, 16
    %v1958 = vcvt.s32.f32 %v1956
    %v1959 = vcvt.s32.f32 %v1957
    %1960 = vmin.xlane.f32.xlu0 %v1959
    %v1961 = vpop.xlane.xlu0 %1960
    %vm1962 = vcmp.eq.f32.partialorder %v1959, %v1961
    %v1963 = vsel %vm1962, %v1958, inf
    %1964 = vmin.xlane.f32.xlu0 %v1963
    %v1965 = vpop.xlane.xlu0 %1964
    %v1966 = vcvt.f32.s32 %v1965
    %v1967 = vcvt.f32.s32 %v1961
    %v1968 = vshll.u32 %v1967, 16
    %v1969 = vadd.s32 %v1968, %v1966
    %v1970 = vsel %vm136, %v1952, 2147483647
    %v1971 = vand.u32 %v1970, 65535
    %v1972 = vshra.s32 %v1970, 16
    %v1973 = vcvt.s32.f32 %v1971
    %v1974 = vcvt.s32.f32 %v1972
    %1975 = vmin.xlane.f32.xlu0 %v1974
    %v1976 = vpop.xlane.xlu0 %1975
    %vm1977 = vcmp.eq.f32.partialorder %v1974, %v1976
    %v1978 = vsel %vm1977, %v1973, inf
    %1979 = vmin.xlane.f32.xlu0 %v1978
    %v1980 = vpop.xlane.xlu0 %1979
    %v1981 = vcvt.f32.s32 %v1980
    %v1982 = vcvt.f32.s32 %v1976
    %v1983 = vshll.u32 %v1982, 16
    %v1984 = vadd.s32 %v1983, %v1981
    %v1985 = vsel %vm136, %v1953, 2147483647
    %v1986 = vand.u32 %v1985, 65535
    %v1987 = vshra.s32 %v1985, 16
    %v1988 = vcvt.s32.f32 %v1986
    %v1989 = vcvt.s32.f32 %v1987
    %1990 = vmin.xlane.f32.xlu0 %v1989
    %v1991 = vpop.xlane.xlu0 %1990
    %vm1992 = vcmp.eq.f32.partialorder %v1989, %v1991
    %v1993 = vsel %vm1992, %v1988, inf
    %1994 = vmin.xlane.f32.xlu0 %v1993
    %v1995 = vpop.xlane.xlu0 %1994
    %v1996 = vcvt.f32.s32 %v1995
    %v1997 = vcvt.f32.s32 %v1991
    %v1998 = vshll.u32 %v1997, 16
    %v1999 = vadd.s32 %v1998, %v1996
    %v2000 = vsel %vm136, %v1954, 2147483647
    %v2001 = vand.u32 %v2000, 65535
    %v2002 = vshra.s32 %v2000, 16
    %v2003 = vcvt.s32.f32 %v2001
    %v2004 = vcvt.s32.f32 %v2002
    %2005 = vmin.xlane.f32.xlu0 %v2004
    %v2006 = vpop.xlane.xlu0 %2005
    %vm2007 = vcmp.eq.f32.partialorder %v2004, %v2006
    %v2008 = vsel %vm2007, %v2003, inf
    %2009 = vmin.xlane.f32.xlu0 %v2008
    %v2010 = vpop.xlane.xlu0 %2009
    %v2011 = vcvt.f32.s32 %v2010
    %v2012 = vcvt.f32.s32 %v2006
    %v2013 = vshll.u32 %v2012, 16
    %v2014 = vadd.s32 %v2013, %v2011
    %vm2015 = vcmp.eq.s32.totalorder %v448, %v1969
    %vm2016 = vcmp.eq.s32.totalorder %v448, %v1984
    %vm2017 = vcmp.eq.s32.totalorder %v448, %v1999
    %vm2018 = vcmp.eq.s32.totalorder %v448, %v2014
    %v2019 = vsel %vm2015, 1, 0
    %v2020 = vsel %vm2016, 1, 0
    %v2021 = vsel %vm2017, 1, 0
    %v2022 = vsel %vm2018, 1, 0
    %v2023 = vcvt.s32.f32 %v2019
    %v2024 = vcvt.s32.f32 %v2020
    %v2025 = vcvt.s32.f32 %v2021
    %v2026 = vcvt.s32.f32 %v2022
    %v2027 = vpack.c.bf16 %v2024, %v2023
    %v2028 = vpack.c.bf16 %v2026, %v2025
    %v2030 = vsel %vm136, %v2027, 0
    %2032 = vmatprep.subr.bf16.mxu0 0
    %2033 = vmatpush1.bf16.msra.mxu0 %v522
    %2034 = vmatprep.subr.bf16.mxu0 0
    %2035 = vmatpush1.bf16.msra.mxu0 0
    %2036 = vmatprep.subr.bf16.mxu0 0
    %2037 = vmatpush1.bf16.msra.mxu0 0
    %2038 = vmatprep.subr.bf16.mxu0 0
    %2039 = vmatpush1.bf16.msra.mxu0 0
    %2040 = vmatprep.subr.bf16.mxu0 0
    %2041 = vmatpush1.bf16.msra.mxu0 0
    %2042 = vmatprep.subr.bf16.mxu0 0
    %2043 = vmatpush1.bf16.msra.mxu0 0
    %2044 = vmatprep.subr.bf16.mxu0 0
    %2045 = vmatpush1.bf16.msra.mxu0 0
    %2046 = vmatprep.subr.bf16.mxu0 0
    %2047 = vmatpush1.bf16.msra.mxu0 0
    %2048 = vmatprep.subr.bf16.mxu0 0
    %2049 = vmatpush1.bf16.msra.mxu0 0
    %2050 = vmatprep.subr.bf16.mxu0 0
    %2051 = vmatpush1.bf16.msra.mxu0 0
    %2052 = vmatprep.subr.bf16.mxu0 0
    %2053 = vmatpush1.bf16.msra.mxu0 0
    %2054 = vmatprep.subr.bf16.mxu0 0
    %2055 = vmatpush1.bf16.msra.mxu0 0
    %2056 = vmatprep.subr.bf16.mxu0 0
    %2057 = vmatpush1.bf16.msra.mxu0 0
    %2058 = vmatprep.subr.bf16.mxu0 0
    %2059 = vmatpush1.bf16.msra.mxu0 0
    %2060 = vmatprep.subr.bf16.mxu0 0
    %2061 = vmatpush1.bf16.msra.mxu0 0
    %2062 = vmatprep.subr.bf16.mxu0 0
    %2063 = vmatpush1.bf16.msra.mxu0 0
    %2064 = vmatprep.mubr.bf16.mxu0 0
    %2065 = vmatmul.mubr.bf16.gmra.mrb[0].mxu0 %v2030
    %v2066 = vpop.f32.mrb[0].mxu0
    %v2067 = vadd.f32 0.0, %v2066
    %v2068 = vpop.f32.mrb[0].mxu0
    %v2069 = vpop.f32.mrb[0].mxu0
    %v2070 = vadd.f32 0.0, %v2069
    %v2071 = vpop.f32.mrb[0].mxu0
    %2072 = vdwg.mxu0
    %v2074 = vsel %vm136, %v2028, 0
    %2076 = vmatprep.subr.bf16.mxu0 0
    %2077 = vmatpush1.bf16.msra.mxu0 %v523
    %2078 = vmatprep.subr.bf16.mxu0 0
    %2079 = vmatpush1.bf16.msra.mxu0 0
    %2080 = vmatprep.subr.bf16.mxu0 0
    %2081 = vmatpush1.bf16.msra.mxu0 0
    %2082 = vmatprep.subr.bf16.mxu0 0
    %2083 = vmatpush1.bf16.msra.mxu0 0
    %2084 = vmatprep.subr.bf16.mxu0 0
    %2085 = vmatpush1.bf16.msra.mxu0 0
    %2086 = vmatprep.subr.bf16.mxu0 0
    %2087 = vmatpush1.bf16.msra.mxu0 0
    %2088 = vmatprep.subr.bf16.mxu0 0
    %2089 = vmatpush1.bf16.msra.mxu0 0
    %2090 = vmatprep.subr.bf16.mxu0 0
    %2091 = vmatpush1.bf16.msra.mxu0 0
    %2092 = vmatprep.subr.bf16.mxu0 0
    %2093 = vmatpush1.bf16.msra.mxu0 0
    %2094 = vmatprep.subr.bf16.mxu0 0
    %2095 = vmatpush1.bf16.msra.mxu0 0
    %2096 = vmatprep.subr.bf16.mxu0 0
    %2097 = vmatpush1.bf16.msra.mxu0 0
    %2098 = vmatprep.subr.bf16.mxu0 0
    %2099 = vmatpush1.bf16.msra.mxu0 0
    %2100 = vmatprep.subr.bf16.mxu0 0
    %2101 = vmatpush1.bf16.msra.mxu0 0
    %2102 = vmatprep.subr.bf16.mxu0 0
    %2103 = vmatpush1.bf16.msra.mxu0 0
    %2104 = vmatprep.subr.bf16.mxu0 0
    %2105 = vmatpush1.bf16.msra.mxu0 0
    %2106 = vmatprep.subr.bf16.mxu0 0
    %2107 = vmatpush1.bf16.msra.mxu0 0
    %2108 = vmatprep.mubr.bf16.mxu0 0
    %2109 = vmatmul.mubr.bf16.gmra.mrb[0].mxu0 %v2074
    %v2110 = vpop.f32.mrb[0].mxu0
    %v2111 = vadd.f32 0.0, %v2110
    %v2112 = vpop.f32.mrb[0].mxu0
    %v2113 = vpop.f32.mrb[0].mxu0
    %v2114 = vadd.f32 0.0, %v2113
    %v2115 = vpop.f32.mrb[0].mxu0
    %2116 = vdwg.mxu0
    %v2117 = vmax.f32 %v1927, %v2067
    %v2118 = vmax.f32 %v1928, %v2070
    %v2119 = vmax.f32 %v1929, %v2111
    %v2120 = vmax.f32 %v1930, %v2114
    %v2121 = vsel %vm2015, -1e+30, %v1931
    %v2122 = vsel %vm2016, -1e+30, %v1932
    %v2123 = vsel %vm2017, -1e+30, %v1933
    %v2124 = vsel %vm2018, -1e+30, %v1934
    %v2125 = vsel %vm136, %v2121, -inf
    %2126 = vmax.xlane.f32.xlu0 %v2125
    %v2127 = vpop.xlane.xlu0 %2126
    %v2128 = vsel %vm136, %v2122, -inf
    %2129 = vmax.xlane.f32.xlu0 %v2128
    %v2130 = vpop.xlane.xlu0 %2129
    %v2131 = vsel %vm136, %v2123, -inf
    %2132 = vmax.xlane.f32.xlu0 %v2131
    %v2133 = vpop.xlane.xlu0 %2132
    %v2134 = vsel %vm136, %v2124, -inf
    %2135 = vmax.xlane.f32.xlu0 %v2134
    %v2136 = vpop.xlane.xlu0 %2135
    %vm2137 = vcmp.eq.f32.partialorder %v2121, %v2127
    %vm2138 = vcmp.eq.f32.partialorder %v2122, %v2130
    %vm2139 = vcmp.eq.f32.partialorder %v2123, %v2133
    %vm2140 = vcmp.eq.f32.partialorder %v2124, %v2136
    %v2141 = vsel %vm2137, %v448, 16
    %v2142 = vsel %vm2138, %v448, 16
    %v2143 = vsel %vm2139, %v448, 16
    %v2144 = vsel %vm2140, %v448, 16
    %v2145 = vsel %vm136, %v2141, 2147483647
    %v2146 = vand.u32 %v2145, 65535
    %v2147 = vshra.s32 %v2145, 16
    %v2148 = vcvt.s32.f32 %v2146
    %v2149 = vcvt.s32.f32 %v2147
    %2150 = vmin.xlane.f32.xlu0 %v2149
    %v2151 = vpop.xlane.xlu0 %2150
    %vm2152 = vcmp.eq.f32.partialorder %v2149, %v2151
    %v2153 = vsel %vm2152, %v2148, inf
    %2154 = vmin.xlane.f32.xlu0 %v2153
    %v2155 = vpop.xlane.xlu0 %2154
    %v2156 = vcvt.f32.s32 %v2155
    %v2157 = vcvt.f32.s32 %v2151
    %v2158 = vshll.u32 %v2157, 16
    %v2159 = vadd.s32 %v2158, %v2156
    %v2160 = vsel %vm136, %v2142, 2147483647
    %v2161 = vand.u32 %v2160, 65535
    %v2162 = vshra.s32 %v2160, 16
    %v2163 = vcvt.s32.f32 %v2161
    %v2164 = vcvt.s32.f32 %v2162
    %2165 = vmin.xlane.f32.xlu0 %v2164
    %v2166 = vpop.xlane.xlu0 %2165
    %vm2167 = vcmp.eq.f32.partialorder %v2164, %v2166
    %v2168 = vsel %vm2167, %v2163, inf
    %2169 = vmin.xlane.f32.xlu0 %v2168
    %v2170 = vpop.xlane.xlu0 %2169
    %v2171 = vcvt.f32.s32 %v2170
    %v2172 = vcvt.f32.s32 %v2166
    %v2173 = vshll.u32 %v2172, 16
    %v2174 = vadd.s32 %v2173, %v2171
    %v2175 = vsel %vm136, %v2143, 2147483647
    %v2176 = vand.u32 %v2175, 65535
    %v2177 = vshra.s32 %v2175, 16
    %v2178 = vcvt.s32.f32 %v2176
    %v2179 = vcvt.s32.f32 %v2177
    %2180 = vmin.xlane.f32.xlu0 %v2179
    %v2181 = vpop.xlane.xlu0 %2180
    %vm2182 = vcmp.eq.f32.partialorder %v2179, %v2181
    %v2183 = vsel %vm2182, %v2178, inf
    %2184 = vmin.xlane.f32.xlu0 %v2183
    %v2185 = vpop.xlane.xlu0 %2184
    %v2186 = vcvt.f32.s32 %v2185
    %v2187 = vcvt.f32.s32 %v2181
    %v2188 = vshll.u32 %v2187, 16
    %v2189 = vadd.s32 %v2188, %v2186
    %v2190 = vsel %vm136, %v2144, 2147483647
    %v2191 = vand.u32 %v2190, 65535
    %v2192 = vshra.s32 %v2190, 16
    %v2193 = vcvt.s32.f32 %v2191
    %v2194 = vcvt.s32.f32 %v2192
    %2195 = vmin.xlane.f32.xlu0 %v2194
    %v2196 = vpop.xlane.xlu0 %2195
    %vm2197 = vcmp.eq.f32.partialorder %v2194, %v2196
    %v2198 = vsel %vm2197, %v2193, inf
    %2199 = vmin.xlane.f32.xlu0 %v2198
    %v2200 = vpop.xlane.xlu0 %2199
    %v2201 = vcvt.f32.s32 %v2200
    %v2202 = vcvt.f32.s32 %v2196
    %v2203 = vshll.u32 %v2202, 16
    %v2204 = vadd.s32 %v2203, %v2201
    %vm2205 = vcmp.eq.s32.totalorder %v448, %v2159
    %vm2206 = vcmp.eq.s32.totalorder %v448, %v2174
    %vm2207 = vcmp.eq.s32.totalorder %v448, %v2189
    %vm2208 = vcmp.eq.s32.totalorder %v448, %v2204
    %v2209 = vsel %vm2205, 1, 0
    %v2210 = vsel %vm2206, 1, 0
    %v2211 = vsel %vm2207, 1, 0
    %v2212 = vsel %vm2208, 1, 0
    %v2213 = vcvt.s32.f32 %v2209
    %v2214 = vcvt.s32.f32 %v2210
    %v2215 = vcvt.s32.f32 %v2211
    %v2216 = vcvt.s32.f32 %v2212
    %v2217 = vpack.c.bf16 %v2214, %v2213
    %v2218 = vpack.c.bf16 %v2216, %v2215
    %v2220 = vsel %vm136, %v2217, 0
    %2222 = vmatprep.subr.bf16.mxu0 0
    %2223 = vmatpush1.bf16.msra.mxu0 %v522
    %2224 = vmatprep.subr.bf16.mxu0 0
    %2225 = vmatpush1.bf16.msra.mxu0 0
    %2226 = vmatprep.subr.bf16.mxu0 0
    %2227 = vmatpush1.bf16.msra.mxu0 0
    %2228 = vmatprep.subr.bf16.mxu0 0
    %2229 = vmatpush1.bf16.msra.mxu0 0
    %2230 = vmatprep.subr.bf16.mxu0 0
    %2231 = vmatpush1.bf16.msra.mxu0 0
    %2232 = vmatprep.subr.bf16.mxu0 0
    %2233 = vmatpush1.bf16.msra.mxu0 0
    %2234 = vmatprep.subr.bf16.mxu0 0
    %2235 = vmatpush1.bf16.msra.mxu0 0
    %2236 = vmatprep.subr.bf16.mxu0 0
    %2237 = vmatpush1.bf16.msra.mxu0 0
    %2238 = vmatprep.subr.bf16.mxu0 0
    %2239 = vmatpush1.bf16.msra.mxu0 0
    %2240 = vmatprep.subr.bf16.mxu0 0
    %2241 = vmatpush1.bf16.msra.mxu0 0
    %2242 = vmatprep.subr.bf16.mxu0 0
    %2243 = vmatpush1.bf16.msra.mxu0 0
    %2244 = vmatprep.subr.bf16.mxu0 0
    %2245 = vmatpush1.bf16.msra.mxu0 0
    %2246 = vmatprep.subr.bf16.mxu0 0
    %2247 = vmatpush1.bf16.msra.mxu0 0
    %2248 = vmatprep.subr.bf16.mxu0 0
    %2249 = vmatpush1.bf16.msra.mxu0 0
    %2250 = vmatprep.subr.bf16.mxu0 0
    %2251 = vmatpush1.bf16.msra.mxu0 0
    %2252 = vmatprep.subr.bf16.mxu0 0
    %2253 = vmatpush1.bf16.msra.mxu0 0
    %2254 = vmatprep.mubr.bf16.mxu0 0
    %2255 = vmatmul.mubr.bf16.gmra.mrb[0].mxu0 %v2220
    %v2256 = vpop.f32.mrb[0].mxu0
    %v2257 = vadd.f32 0.0, %v2256
    %v2258 = vpop.f32.mrb[0].mxu0
    %v2259 = vpop.f32.mrb[0].mxu0
    %v2260 = vadd.f32 0.0, %v2259
    %v2261 = vpop.f32.mrb[0].mxu0
    %2262 = vdwg.mxu0
    %v2264 = vsel %vm136, %v2218, 0
    %2266 = vmatprep.subr.bf16.mxu0 0
    %2267 = vmatpush1.bf16.msra.mxu0 %v523
    %2268 = vmatprep.subr.bf16.mxu0 0
    %2269 = vmatpush1.bf16.msra.mxu0 0
    %2270 = vmatprep.subr.bf16.mxu0 0
    %2271 = vmatpush1.bf16.msra.mxu0 0
    %2272 = vmatprep.subr.bf16.mxu0 0
    %2273 = vmatpush1.bf16.msra.mxu0 0
    %2274 = vmatprep.subr.bf16.mxu0 0
    %2275 = vmatpush1.bf16.msra.mxu0 0
    %2276 = vmatprep.subr.bf16.mxu0 0
    %2277 = vmatpush1.bf16.msra.mxu0 0
    %2278 = vmatprep.subr.bf16.mxu0 0
    %2279 = vmatpush1.bf16.msra.mxu0 0
    %2280 = vmatprep.subr.bf16.mxu0 0
    %2281 = vmatpush1.bf16.msra.mxu0 0
    %2282 = vmatprep.subr.bf16.mxu0 0
    %2283 = vmatpush1.bf16.msra.mxu0 0
    %2284 = vmatprep.subr.bf16.mxu0 0
    %2285 = vmatpush1.bf16.msra.mxu0 0
    %2286 = vmatprep.subr.bf16.mxu0 0
    %2287 = vmatpush1.bf16.msra.mxu0 0
    %2288 = vmatprep.subr.bf16.mxu0 0
    %2289 = vmatpush1.bf16.msra.mxu0 0
    %2290 = vmatprep.subr.bf16.mxu0 0
    %2291 = vmatpush1.bf16.msra.mxu0 0
    %2292 = vmatprep.subr.bf16.mxu0 0
    %2293 = vmatpush1.bf16.msra.mxu0 0
    %2294 = vmatprep.subr.bf16.mxu0 0
    %2295 = vmatpush1.bf16.msra.mxu0 0
    %2296 = vmatprep.subr.bf16.mxu0 0
    %2297 = vmatpush1.bf16.msra.mxu0 0
    %2298 = vmatprep.mubr.bf16.mxu0 0
    %2299 = vmatmul.mubr.bf16.gmra.mrb[0].mxu0 %v2264
    %v2300 = vpop.f32.mrb[0].mxu0
    %v2301 = vadd.f32 0.0, %v2300
    %v2302 = vpop.f32.mrb[0].mxu0
    %v2303 = vpop.f32.mrb[0].mxu0
    %v2304 = vadd.f32 0.0, %v2303
    %v2305 = vpop.f32.mrb[0].mxu0
    %2306 = vdwg.mxu0
    %v2307 = vmax.f32 %v2117, %v2257
    %v2308 = vmax.f32 %v2118, %v2260
    %v2309 = vmax.f32 %v2119, %v2301
    %v2310 = vmax.f32 %v2120, %v2304
    %v2311 = vsel %vm2205, -1e+30, %v2121
    %v2312 = vsel %vm2206, -1e+30, %v2122
    %v2313 = vsel %vm2207, -1e+30, %v2123
    %v2314 = vsel %vm2208, -1e+30, %v2124
    %v2315 = vsel %vm136, %v2311, -inf
    %2316 = vmax.xlane.f32.xlu0 %v2315
    %v2317 = vpop.xlane.xlu0 %2316
    %v2318 = vsel %vm136, %v2312, -inf
    %2319 = vmax.xlane.f32.xlu0 %v2318
    %v2320 = vpop.xlane.xlu0 %2319
    %v2321 = vsel %vm136, %v2313, -inf
    %2322 = vmax.xlane.f32.xlu0 %v2321
    %v2323 = vpop.xlane.xlu0 %2322
    %v2324 = vsel %vm136, %v2314, -inf
    %2325 = vmax.xlane.f32.xlu0 %v2324
    %v2326 = vpop.xlane.xlu0 %2325
    %vm2327 = vcmp.eq.f32.partialorder %v2311, %v2317
    %vm2328 = vcmp.eq.f32.partialorder %v2312, %v2320
    %vm2329 = vcmp.eq.f32.partialorder %v2313, %v2323
    %vm2330 = vcmp.eq.f32.partialorder %v2314, %v2326
    %v2331 = vsel %vm2327, %v448, 16
    %v2332 = vsel %vm2328, %v448, 16
    %v2333 = vsel %vm2329, %v448, 16
    %v2334 = vsel %vm2330, %v448, 16
    %v2335 = vsel %vm136, %v2331, 2147483647
    %v2336 = vand.u32 %v2335, 65535
    %v2337 = vshra.s32 %v2335, 16
    %v2338 = vcvt.s32.f32 %v2336
    %v2339 = vcvt.s32.f32 %v2337
    %2340 = vmin.xlane.f32.xlu0 %v2339
    %v2341 = vpop.xlane.xlu0 %2340
    %vm2342 = vcmp.eq.f32.partialorder %v2339, %v2341
    %v2343 = vsel %vm2342, %v2338, inf
    %2344 = vmin.xlane.f32.xlu0 %v2343
    %v2345 = vpop.xlane.xlu0 %2344
    %v2346 = vcvt.f32.s32 %v2345
    %v2347 = vcvt.f32.s32 %v2341
    %v2348 = vshll.u32 %v2347, 16
    %v2349 = vadd.s32 %v2348, %v2346
    %v2350 = vsel %vm136, %v2332, 2147483647
    %v2351 = vand.u32 %v2350, 65535
    %v2352 = vshra.s32 %v2350, 16
    %v2353 = vcvt.s32.f32 %v2351
    %v2354 = vcvt.s32.f32 %v2352
    %2355 = vmin.xlane.f32.xlu0 %v2354
    %v2356 = vpop.xlane.xlu0 %2355
    %vm2357 = vcmp.eq.f32.partialorder %v2354, %v2356
    %v2358 = vsel %vm2357, %v2353, inf
    %2359 = vmin.xlane.f32.xlu0 %v2358
    %v2360 = vpop.xlane.xlu0 %2359
    %v2361 = vcvt.f32.s32 %v2360
    %v2362 = vcvt.f32.s32 %v2356
    %v2363 = vshll.u32 %v2362, 16
    %v2364 = vadd.s32 %v2363, %v2361
    %v2365 = vsel %vm136, %v2333, 2147483647
    %v2366 = vand.u32 %v2365, 65535
    %v2367 = vshra.s32 %v2365, 16
    %v2368 = vcvt.s32.f32 %v2366
    %v2369 = vcvt.s32.f32 %v2367
    %2370 = vmin.xlane.f32.xlu0 %v2369
    %v2371 = vpop.xlane.xlu0 %2370
    %vm2372 = vcmp.eq.f32.partialorder %v2369, %v2371
    %v2373 = vsel %vm2372, %v2368, inf
    %2374 = vmin.xlane.f32.xlu0 %v2373
    %v2375 = vpop.xlane.xlu0 %2374
    %v2376 = vcvt.f32.s32 %v2375
    %v2377 = vcvt.f32.s32 %v2371
    %v2378 = vshll.u32 %v2377, 16
    %v2379 = vadd.s32 %v2378, %v2376
    %v2380 = vsel %vm136, %v2334, 2147483647
    %v2381 = vand.u32 %v2380, 65535
    %v2382 = vshra.s32 %v2380, 16
    %v2383 = vcvt.s32.f32 %v2381
    %v2384 = vcvt.s32.f32 %v2382
    %2385 = vmin.xlane.f32.xlu0 %v2384
    %v2386 = vpop.xlane.xlu0 %2385
    %vm2387 = vcmp.eq.f32.partialorder %v2384, %v2386
    %v2388 = vsel %vm2387, %v2383, inf
    %2389 = vmin.xlane.f32.xlu0 %v2388
    %v2390 = vpop.xlane.xlu0 %2389
    %v2391 = vcvt.f32.s32 %v2390
    %v2392 = vcvt.f32.s32 %v2386
    %v2393 = vshll.u32 %v2392, 16
    %v2394 = vadd.s32 %v2393, %v2391
    %vm2395 = vcmp.eq.s32.totalorder %v448, %v2349
    %vm2396 = vcmp.eq.s32.totalorder %v448, %v2364
    %vm2397 = vcmp.eq.s32.totalorder %v448, %v2379
    %vm2398 = vcmp.eq.s32.totalorder %v448, %v2394
    %v2399 = vsel %vm2395, 1, 0
    %v2400 = vsel %vm2396, 1, 0
    %v2401 = vsel %vm2397, 1, 0
    %v2402 = vsel %vm2398, 1, 0
    %v2403 = vcvt.s32.f32 %v2399
    %v2404 = vcvt.s32.f32 %v2400
    %v2405 = vcvt.s32.f32 %v2401
    %v2406 = vcvt.s32.f32 %v2402
    %v2407 = vpack.c.bf16 %v2404, %v2403
    %v2408 = vpack.c.bf16 %v2406, %v2405
    %v2410 = vsel %vm136, %v2407, 0
    %2412 = vmatprep.subr.bf16.mxu0 0
    %2413 = vmatpush1.bf16.msra.mxu0 %v522
    %2414 = vmatprep.subr.bf16.mxu0 0
    %2415 = vmatpush1.bf16.msra.mxu0 0
    %2416 = vmatprep.subr.bf16.mxu0 0
    %2417 = vmatpush1.bf16.msra.mxu0 0
    %2418 = vmatprep.subr.bf16.mxu0 0
    %2419 = vmatpush1.bf16.msra.mxu0 0
    %2420 = vmatprep.subr.bf16.mxu0 0
    %2421 = vmatpush1.bf16.msra.mxu0 0
    %2422 = vmatprep.subr.bf16.mxu0 0
    %2423 = vmatpush1.bf16.msra.mxu0 0
    %2424 = vmatprep.subr.bf16.mxu0 0
    %2425 = vmatpush1.bf16.msra.mxu0 0
    %2426 = vmatprep.subr.bf16.mxu0 0
    %2427 = vmatpush1.bf16.msra.mxu0 0
    %2428 = vmatprep.subr.bf16.mxu0 0
    %2429 = vmatpush1.bf16.msra.mxu0 0
    %2430 = vmatprep.subr.bf16.mxu0 0
    %2431 = vmatpush1.bf16.msra.mxu0 0
    %2432 = vmatprep.subr.bf16.mxu0 0
    %2433 = vmatpush1.bf16.msra.mxu0 0
    %2434 = vmatprep.subr.bf16.mxu0 0
    %2435 = vmatpush1.bf16.msra.mxu0 0
    %2436 = vmatprep.subr.bf16.mxu0 0
    %2437 = vmatpush1.bf16.msra.mxu0 0
    %2438 = vmatprep.subr.bf16.mxu0 0
    %2439 = vmatpush1.bf16.msra.mxu0 0
    %2440 = vmatprep.subr.bf16.mxu0 0
    %2441 = vmatpush1.bf16.msra.mxu0 0
    %2442 = vmatprep.subr.bf16.mxu0 0
    %2443 = vmatpush1.bf16.msra.mxu0 0
    %2444 = vmatprep.mubr.bf16.mxu0 0
    %2445 = vmatmul.mubr.bf16.gmra.mrb[0].mxu0 %v2410
    %v2446 = vpop.f32.mrb[0].mxu0
    %v2447 = vadd.f32 0.0, %v2446
    %v2448 = vpop.f32.mrb[0].mxu0
    %v2449 = vpop.f32.mrb[0].mxu0
    %v2450 = vadd.f32 0.0, %v2449
    %v2451 = vpop.f32.mrb[0].mxu0
    %2452 = vdwg.mxu0
    %v2454 = vsel %vm136, %v2408, 0
    %2456 = vmatprep.subr.bf16.mxu0 0
    %2457 = vmatpush1.bf16.msra.mxu0 %v523
    %2458 = vmatprep.subr.bf16.mxu0 0
    %2459 = vmatpush1.bf16.msra.mxu0 0
    %2460 = vmatprep.subr.bf16.mxu0 0
    %2461 = vmatpush1.bf16.msra.mxu0 0
    %2462 = vmatprep.subr.bf16.mxu0 0
    %2463 = vmatpush1.bf16.msra.mxu0 0
    %2464 = vmatprep.subr.bf16.mxu0 0
    %2465 = vmatpush1.bf16.msra.mxu0 0
    %2466 = vmatprep.subr.bf16.mxu0 0
    %2467 = vmatpush1.bf16.msra.mxu0 0
    %2468 = vmatprep.subr.bf16.mxu0 0
    %2469 = vmatpush1.bf16.msra.mxu0 0
    %2470 = vmatprep.subr.bf16.mxu0 0
    %2471 = vmatpush1.bf16.msra.mxu0 0
    %2472 = vmatprep.subr.bf16.mxu0 0
    %2473 = vmatpush1.bf16.msra.mxu0 0
    %2474 = vmatprep.subr.bf16.mxu0 0
    %2475 = vmatpush1.bf16.msra.mxu0 0
    %2476 = vmatprep.subr.bf16.mxu0 0
    %2477 = vmatpush1.bf16.msra.mxu0 0
    %2478 = vmatprep.subr.bf16.mxu0 0
    %2479 = vmatpush1.bf16.msra.mxu0 0
    %2480 = vmatprep.subr.bf16.mxu0 0
    %2481 = vmatpush1.bf16.msra.mxu0 0
    %2482 = vmatprep.subr.bf16.mxu0 0
    %2483 = vmatpush1.bf16.msra.mxu0 0
    %2484 = vmatprep.subr.bf16.mxu0 0
    %2485 = vmatpush1.bf16.msra.mxu0 0
    %2486 = vmatprep.subr.bf16.mxu0 0
    %2487 = vmatpush1.bf16.msra.mxu0 0
    %2488 = vmatprep.mubr.bf16.mxu0 0
    %2489 = vmatmul.mubr.bf16.gmra.mrb[0].mxu0 %v2454
    %v2490 = vpop.f32.mrb[0].mxu0
    %v2491 = vadd.f32 0.0, %v2490
    %v2492 = vpop.f32.mrb[0].mxu0
    %v2493 = vpop.f32.mrb[0].mxu0
    %v2494 = vadd.f32 0.0, %v2493
    %v2495 = vpop.f32.mrb[0].mxu0
    %2496 = vdwg.mxu0
    %v2497 = vmax.f32 %v2307, %v2447
    %v2498 = vmax.f32 %v2308, %v2450
    %v2499 = vmax.f32 %v2309, %v2491
    %v2500 = vmax.f32 %v2310, %v2494
    %v2501 = vsel %vm2395, -1e+30, %v2311
    %v2502 = vsel %vm2396, -1e+30, %v2312
    %v2503 = vsel %vm2397, -1e+30, %v2313
    %v2504 = vsel %vm2398, -1e+30, %v2314
    %v2505 = vsel %vm136, %v2501, -inf
    %2506 = vmax.xlane.f32.xlu0 %v2505
    %v2507 = vpop.xlane.xlu0 %2506
    %v2508 = vsel %vm136, %v2502, -inf
    %2509 = vmax.xlane.f32.xlu0 %v2508
    %v2510 = vpop.xlane.xlu0 %2509
    %v2511 = vsel %vm136, %v2503, -inf
    %2512 = vmax.xlane.f32.xlu0 %v2511
    %v2513 = vpop.xlane.xlu0 %2512
    %v2514 = vsel %vm136, %v2504, -inf
    %2515 = vmax.xlane.f32.xlu0 %v2514
    %v2516 = vpop.xlane.xlu0 %2515
    %vm2517 = vcmp.eq.f32.partialorder %v2501, %v2507
    %vm2518 = vcmp.eq.f32.partialorder %v2502, %v2510
    %vm2519 = vcmp.eq.f32.partialorder %v2503, %v2513
    %vm2520 = vcmp.eq.f32.partialorder %v2504, %v2516
    %v2521 = vsel %vm2517, %v448, 16
    %v2522 = vsel %vm2518, %v448, 16
    %v2523 = vsel %vm2519, %v448, 16
    %v2524 = vsel %vm2520, %v448, 16
    %v2525 = vsel %vm136, %v2521, 2147483647
    %v2526 = vand.u32 %v2525, 65535
    %v2527 = vshra.s32 %v2525, 16
    %v2528 = vcvt.s32.f32 %v2526
    %v2529 = vcvt.s32.f32 %v2527
    %2530 = vmin.xlane.f32.xlu0 %v2529
    %v2531 = vpop.xlane.xlu0 %2530
    %vm2532 = vcmp.eq.f32.partialorder %v2529, %v2531
    %v2533 = vsel %vm2532, %v2528, inf
    %2534 = vmin.xlane.f32.xlu0 %v2533
    %v2535 = vpop.xlane.xlu0 %2534
    %v2536 = vcvt.f32.s32 %v2535
    %v2537 = vcvt.f32.s32 %v2531
    %v2538 = vshll.u32 %v2537, 16
    %v2539 = vadd.s32 %v2538, %v2536
    %v2540 = vsel %vm136, %v2522, 2147483647
    %v2541 = vand.u32 %v2540, 65535
    %v2542 = vshra.s32 %v2540, 16
    %v2543 = vcvt.s32.f32 %v2541
    %v2544 = vcvt.s32.f32 %v2542
    %2545 = vmin.xlane.f32.xlu0 %v2544
    %v2546 = vpop.xlane.xlu0 %2545
    %vm2547 = vcmp.eq.f32.partialorder %v2544, %v2546
    %v2548 = vsel %vm2547, %v2543, inf
    %2549 = vmin.xlane.f32.xlu0 %v2548
    %v2550 = vpop.xlane.xlu0 %2549
    %v2551 = vcvt.f32.s32 %v2550
    %v2552 = vcvt.f32.s32 %v2546
    %v2553 = vshll.u32 %v2552, 16
    %v2554 = vadd.s32 %v2553, %v2551
    %v2555 = vsel %vm136, %v2523, 2147483647
    %v2556 = vand.u32 %v2555, 65535
    %v2557 = vshra.s32 %v2555, 16
    %v2558 = vcvt.s32.f32 %v2556
    %v2559 = vcvt.s32.f32 %v2557
    %2560 = vmin.xlane.f32.xlu0 %v2559
    %v2561 = vpop.xlane.xlu0 %2560
    %vm2562 = vcmp.eq.f32.partialorder %v2559, %v2561
    %v2563 = vsel %vm2562, %v2558, inf
    %2564 = vmin.xlane.f32.xlu0 %v2563
    %v2565 = vpop.xlane.xlu0 %2564
    %v2566 = vcvt.f32.s32 %v2565
    %v2567 = vcvt.f32.s32 %v2561
    %v2568 = vshll.u32 %v2567, 16
    %v2569 = vadd.s32 %v2568, %v2566
    %v2570 = vsel %vm136, %v2524, 2147483647
    %v2571 = vand.u32 %v2570, 65535
    %v2572 = vshra.s32 %v2570, 16
    %v2573 = vcvt.s32.f32 %v2571
    %v2574 = vcvt.s32.f32 %v2572
    %2575 = vmin.xlane.f32.xlu0 %v2574
    %v2576 = vpop.xlane.xlu0 %2575
    %vm2577 = vcmp.eq.f32.partialorder %v2574, %v2576
    %v2578 = vsel %vm2577, %v2573, inf
    %2579 = vmin.xlane.f32.xlu0 %v2578
    %v2580 = vpop.xlane.xlu0 %2579
    %v2581 = vcvt.f32.s32 %v2580
    %v2582 = vcvt.f32.s32 %v2576
    %v2583 = vshll.u32 %v2582, 16
    %v2584 = vadd.s32 %v2583, %v2581
    %vm2585 = vcmp.eq.s32.totalorder %v448, %v2539
    %vm2586 = vcmp.eq.s32.totalorder %v448, %v2554
    %vm2587 = vcmp.eq.s32.totalorder %v448, %v2569
    %vm2588 = vcmp.eq.s32.totalorder %v448, %v2584
    %v2589 = vsel %vm2585, 1, 0
    %v2590 = vsel %vm2586, 1, 0
    %v2591 = vsel %vm2587, 1, 0
    %v2592 = vsel %vm2588, 1, 0
    %v2593 = vcvt.s32.f32 %v2589
    %v2594 = vcvt.s32.f32 %v2590
    %v2595 = vcvt.s32.f32 %v2591
    %v2596 = vcvt.s32.f32 %v2592
    %v2597 = vpack.c.bf16 %v2594, %v2593
    %v2598 = vpack.c.bf16 %v2596, %v2595
    %v2600 = vsel %vm136, %v2597, 0
    %2602 = vmatprep.subr.bf16.mxu0 0
    %2603 = vmatpush1.bf16.msra.mxu0 %v522
    %2604 = vmatprep.subr.bf16.mxu0 0
    %2605 = vmatpush1.bf16.msra.mxu0 0
    %2606 = vmatprep.subr.bf16.mxu0 0
    %2607 = vmatpush1.bf16.msra.mxu0 0
    %2608 = vmatprep.subr.bf16.mxu0 0
    %2609 = vmatpush1.bf16.msra.mxu0 0
    %2610 = vmatprep.subr.bf16.mxu0 0
    %2611 = vmatpush1.bf16.msra.mxu0 0
    %2612 = vmatprep.subr.bf16.mxu0 0
    %2613 = vmatpush1.bf16.msra.mxu0 0
    %2614 = vmatprep.subr.bf16.mxu0 0
    %2615 = vmatpush1.bf16.msra.mxu0 0
    %2616 = vmatprep.subr.bf16.mxu0 0
    %2617 = vmatpush1.bf16.msra.mxu0 0
    %2618 = vmatprep.subr.bf16.mxu0 0
    %2619 = vmatpush1.bf16.msra.mxu0 0
    %2620 = vmatprep.subr.bf16.mxu0 0
    %2621 = vmatpush1.bf16.msra.mxu0 0
    %2622 = vmatprep.subr.bf16.mxu0 0
    %2623 = vmatpush1.bf16.msra.mxu0 0
    %2624 = vmatprep.subr.bf16.mxu0 0
    %2625 = vmatpush1.bf16.msra.mxu0 0
    %2626 = vmatprep.subr.bf16.mxu0 0
    %2627 = vmatpush1.bf16.msra.mxu0 0
    %2628 = vmatprep.subr.bf16.mxu0 0
    %2629 = vmatpush1.bf16.msra.mxu0 0
    %2630 = vmatprep.subr.bf16.mxu0 0
    %2631 = vmatpush1.bf16.msra.mxu0 0
    %2632 = vmatprep.subr.bf16.mxu0 0
    %2633 = vmatpush1.bf16.msra.mxu0 0
    %2634 = vmatprep.mubr.bf16.mxu0 0
    %2635 = vmatmul.mubr.bf16.gmra.mrb[0].mxu0 %v2600
    %v2636 = vpop.f32.mrb[0].mxu0
    %v2637 = vadd.f32 0.0, %v2636
    %v2638 = vpop.f32.mrb[0].mxu0
    %v2639 = vpop.f32.mrb[0].mxu0
    %v2640 = vadd.f32 0.0, %v2639
    %v2641 = vpop.f32.mrb[0].mxu0
    %2642 = vdwg.mxu0
    %v2644 = vsel %vm136, %v2598, 0
    %2646 = vmatprep.subr.bf16.mxu0 0
    %2647 = vmatpush1.bf16.msra.mxu0 %v523
    %2648 = vmatprep.subr.bf16.mxu0 0
    %2649 = vmatpush1.bf16.msra.mxu0 0
    %2650 = vmatprep.subr.bf16.mxu0 0
    %2651 = vmatpush1.bf16.msra.mxu0 0
    %2652 = vmatprep.subr.bf16.mxu0 0
    %2653 = vmatpush1.bf16.msra.mxu0 0
    %2654 = vmatprep.subr.bf16.mxu0 0
    %2655 = vmatpush1.bf16.msra.mxu0 0
    %2656 = vmatprep.subr.bf16.mxu0 0
    %2657 = vmatpush1.bf16.msra.mxu0 0
    %2658 = vmatprep.subr.bf16.mxu0 0
    %2659 = vmatpush1.bf16.msra.mxu0 0
    %2660 = vmatprep.subr.bf16.mxu0 0
    %2661 = vmatpush1.bf16.msra.mxu0 0
    %2662 = vmatprep.subr.bf16.mxu0 0
    %2663 = vmatpush1.bf16.msra.mxu0 0
    %2664 = vmatprep.subr.bf16.mxu0 0
    %2665 = vmatpush1.bf16.msra.mxu0 0
    %2666 = vmatprep.subr.bf16.mxu0 0
    %2667 = vmatpush1.bf16.msra.mxu0 0
    %2668 = vmatprep.subr.bf16.mxu0 0
    %2669 = vmatpush1.bf16.msra.mxu0 0
    %2670 = vmatprep.subr.bf16.mxu0 0
    %2671 = vmatpush1.bf16.msra.mxu0 0
    %2672 = vmatprep.subr.bf16.mxu0 0
    %2673 = vmatpush1.bf16.msra.mxu0 0
    %2674 = vmatprep.subr.bf16.mxu0 0
    %2675 = vmatpush1.bf16.msra.mxu0 0
    %2676 = vmatprep.subr.bf16.mxu0 0
    %2677 = vmatpush1.bf16.msra.mxu0 0
    %2678 = vmatprep.mubr.bf16.mxu0 0
    %2679 = vmatmul.mubr.bf16.gmra.mrb[0].mxu0 %v2644
    %v2680 = vpop.f32.mrb[0].mxu0
    %v2681 = vadd.f32 0.0, %v2680
    %v2682 = vpop.f32.mrb[0].mxu0
    %v2683 = vpop.f32.mrb[0].mxu0
    %v2684 = vadd.f32 0.0, %v2683
    %v2685 = vpop.f32.mrb[0].mxu0
    %2686 = vdwg.mxu0
    %v2687 = vmax.f32 %v2497, %v2637
    %v2688 = vmax.f32 %v2498, %v2640
    %v2689 = vmax.f32 %v2499, %v2681
    %v2690 = vmax.f32 %v2500, %v2684
    %2695 = vrot.lane.b32.xlu0 %v532, 96
    %v2696 = vpop.permute.xlu0 %2695
    %2697 = vrot.lane.b32.xlu0 %v533, 96
    %v2698 = vpop.permute.xlu0 %2697
    %2699 = vrot.lane.b32.xlu0 %v534, 96
    %v2700 = vpop.permute.xlu0 %2699
    %2701 = vrot.lane.b32.xlu0 %v535, 96
    %v2702 = vpop.permute.xlu0 %2701
    %v2707 = vadd.f32 %v2687, %v2696
    %v2708 = vadd.f32 %v2688, %v2698
    %v2709 = vadd.f32 %v2689, %v2700
    %v2710 = vadd.f32 %v2690, %v2702
    %vm2711 = vcmp.gt.f32.partialorder %v2707, 0.0
    %vm2712 = vcmp.gt.f32.partialorder %v2708, 0.0
    %vm2713 = vcmp.gt.f32.partialorder %v2709, 0.0
    %vm2714 = vcmp.gt.f32.partialorder %v2710, 0.0
    %v2715 = vmul.f32 %v2707, 0.2
    %v2716 = vmul.f32 %v2708, 0.2
    %v2717 = vmul.f32 %v2709, 0.2
    %v2718 = vmul.f32 %v2710, 0.2
    %v2719 = vsel %vm2711, %v2707, %v2715
    %v2720 = vsel %vm2712, %v2708, %v2716
    %v2721 = vsel %vm2713, %v2709, %v2717
    %v2722 = vsel %vm2714, %v2710, %v2718
    %v2723 = vpack.c.bf16 %v2720, %v2719
    %v2724 = vpack.c.bf16 %v2722, %v2721
    %s2725 = scalar_lea.vmem %s5, 16
    %v2726 = vld [vmem:[%s2725] sm:$0xf]
    %v2727 = vld [vmem:[%s2725 + $0x4] sm:$0xf]
    %v2728 = vld [vmem:[%s2725 + $0x8] sm:$0xf]
    %v2729 = vld [vmem:[%s2725 + $0xc] sm:$0xf]
    %v2734 = vunpack.c.l.b16 %v2726
    %v2735 = vunpack.c.l.b16 %v2727
    %v2736 = vunpack.c.l.b16 %v2728
    %v2737 = vunpack.c.l.b16 %v2729
    %v2738 = vpack.c.b16 %v2735, %v2734
    %v2739 = vpack.c.b16 %v2737, %v2736
    %v2743 = vsel %vm75, %v2723, 0
    %v2746 = vsel %vm75, %v2724, 0
    %2748 = vmatprep.subr.bf16.mxu0 0
    %2749 = vmatpush1.bf16.msra.mxu0 %v2738
    %2750 = vmatprep.subr.bf16.mxu0 0
    %2751 = vmatpush1.bf16.msra.mxu0 %v2739
    %2752 = vmatprep.subr.bf16.mxu0 0
    %2753 = vmatpush1.bf16.msra.mxu0 0
    %2754 = vmatprep.subr.bf16.mxu0 0
    %2755 = vmatpush1.bf16.msra.mxu0 0
    %2756 = vmatprep.subr.bf16.mxu0 0
    %2757 = vmatpush1.bf16.msra.mxu0 0
    %2758 = vmatprep.subr.bf16.mxu0 0
    %2759 = vmatpush1.bf16.msra.mxu0 0
    %2760 = vmatprep.subr.bf16.mxu0 0
    %2761 = vmatpush1.bf16.msra.mxu0 0
    %2762 = vmatprep.subr.bf16.mxu0 0
    %2763 = vmatpush1.bf16.msra.mxu0 0
    %2764 = vmatprep.subr.bf16.mxu0 0
    %2765 = vmatpush1.bf16.msra.mxu0 0
    %2766 = vmatprep.subr.bf16.mxu0 0
    %2767 = vmatpush1.bf16.msra.mxu0 0
    %2768 = vmatprep.subr.bf16.mxu0 0
    %2769 = vmatpush1.bf16.msra.mxu0 0
    %2770 = vmatprep.subr.bf16.mxu0 0
    %2771 = vmatpush1.bf16.msra.mxu0 0
    %2772 = vmatprep.subr.bf16.mxu0 0
    %2773 = vmatpush1.bf16.msra.mxu0 0
    %2774 = vmatprep.subr.bf16.mxu0 0
    %2775 = vmatpush1.bf16.msra.mxu0 0
    %2776 = vmatprep.subr.bf16.mxu0 0
    %2777 = vmatpush1.bf16.msra.mxu0 0
    %2778 = vmatprep.subr.bf16.mxu0 0
    %2779 = vmatpush1.bf16.msra.mxu0 0
    %2780 = vmatprep.mubr.bf16.mxu0 0
    %2781 = vmatmul.mubr.bf16.gmra.mrb[0].mxu0 %v2743
    %v2782 = vpop.f32.mrb[0].mxu0
    %v2783 = vadd.f32 0.0, %v2782
    %v2784 = vpop.f32.mrb[0].mxu0
    %v2785 = vpop.f32.mrb[0].mxu0
    %v2786 = vadd.f32 0.0, %v2785
    %v2787 = vpop.f32.mrb[0].mxu0
    %2788 = vmatprep.mubr.bf16.mxu0 0
    %2789 = vmatmul.mubr.bf16.gmra.mrb[0].mxu0 %v2746
    %v2790 = vpop.f32.mrb[0].mxu0
    %v2791 = vadd.f32 0.0, %v2790
    %v2792 = vpop.f32.mrb[0].mxu0
    %v2793 = vpop.f32.mrb[0].mxu0
    %v2794 = vadd.f32 0.0, %v2793
    %v2795 = vpop.f32.mrb[0].mxu0
    %2796 = vdwg.mxu0
    %v2797 = vpack.c.bf16 %v2786, %v2783
    %v2798 = vpack.c.bf16 %v2794, %v2791
    %v2799 = vlaneseq
    %v2800 = vshrl.u32 %v2799, 7
    %v2801 = vsub.s32 4, %v2800
    %v2802 = vrot.slane %v25, %v2801
    %2804 = vrot.lane.b32.xlu0 %v2802, 32
    %v2805 = vpop.permute.xlu0 %2804
    %v2807 = vadd.f32 %v2783, %v2805
    %v2808 = vadd.f32 %v2786, %v2805
    %v2809 = vadd.f32 %v2791, %v2805
    %v2810 = vadd.f32 %v2794, %v2805
    %2811 = vmatprep.subr.bf16.mxu0 0
    %2812 = vmatpush1.bf16.xpose.msra.mxu0 %v2743
    %2813 = vmatprep.subr.bf16.mxu0 0
    %2814 = vmatpush1.bf16.xpose.msra.mxu0 0
    %2815 = vmatprep.subr.bf16.mxu0 0
    %2816 = vmatpush1.bf16.xpose.msra.mxu0 0
    %2817 = vmatprep.subr.bf16.mxu0 0
    %2818 = vmatpush1.bf16.xpose.msra.mxu0 0
    %2819 = vmatprep.subr.bf16.mxu0 0
    %2820 = vmatpush1.bf16.xpose.msra.mxu0 0
    %2821 = vmatprep.subr.bf16.mxu0 0
    %2822 = vmatpush1.bf16.xpose.msra.mxu0 0
    %2823 = vmatprep.subr.bf16.mxu0 0
    %2824 = vmatpush1.bf16.xpose.msra.mxu0 0
    %2825 = vmatprep.subr.bf16.mxu0 0
    %2826 = vmatpush1.bf16.xpose.msra.mxu0 0
    %2827 = vmatprep.subr.bf16.mxu0 0
    %2828 = vmatpush1.bf16.xpose.msra.mxu0 0
    %2829 = vmatprep.subr.bf16.mxu0 0
    %2830 = vmatpush1.bf16.xpose.msra.mxu0 0
    %2831 = vmatprep.subr.bf16.mxu0 0
    %2832 = vmatpush1.bf16.xpose.msra.mxu0 0
    %2833 = vmatprep.subr.bf16.mxu0 0
    %2834 = vmatpush1.bf16.xpose.msra.mxu0 0
    %2835 = vmatprep.subr.bf16.mxu0 0
    %2836 = vmatpush1.bf16.xpose.msra.mxu0 0
    %2837 = vmatprep.subr.bf16.mxu0 0
    %2838 = vmatpush1.bf16.xpose.msra.mxu0 0
    %2839 = vmatprep.subr.bf16.mxu0 0
    %2840 = vmatpush1.bf16.xpose.msra.mxu0 0
    %2841 = vmatprep.subr.bf16.mxu0 0
    %2842 = vmatpush1.bf16.xpose.msra.mxu0 0
    %2843 = vmatprep.mubr.bf16.mxu0 0
    %2844 = vmatmul.mubr.bf16.gmra.mrb[0].mxu0 %v2743
    %v2845 = vpop.f32.mrb[0].mxu0
    %v2846 = vadd.f32 0.0, %v2845
    %v2847 = vpop.f32.mrb[0].mxu0
    %v2848 = vpop.f32.mrb[0].mxu0
    %v2849 = vadd.f32 0.0, %v2848
    %v2850 = vpop.f32.mrb[0].mxu0
    %2851 = vdwg.mxu0
    %2852 = vmatprep.subr.bf16.mxu0 0
    %2853 = vmatpush1.bf16.xpose.msra.mxu0 %v2746
    %2854 = vmatprep.subr.bf16.mxu0 0
    %2855 = vmatpush1.bf16.xpose.msra.mxu0 0
    %2856 = vmatprep.subr.bf16.mxu0 0
    %2857 = vmatpush1.bf16.xpose.msra.mxu0 0
    %2858 = vmatprep.subr.bf16.mxu0 0
    %2859 = vmatpush1.bf16.xpose.msra.mxu0 0
    %2860 = vmatprep.subr.bf16.mxu0 0
    %2861 = vmatpush1.bf16.xpose.msra.mxu0 0
    %2862 = vmatprep.subr.bf16.mxu0 0
    %2863 = vmatpush1.bf16.xpose.msra.mxu0 0
    %2864 = vmatprep.subr.bf16.mxu0 0
    %2865 = vmatpush1.bf16.xpose.msra.mxu0 0
    %2866 = vmatprep.subr.bf16.mxu0 0
    %2867 = vmatpush1.bf16.xpose.msra.mxu0 0
    %2868 = vmatprep.subr.bf16.mxu0 0
    %2869 = vmatpush1.bf16.xpose.msra.mxu0 0
    %2870 = vmatprep.subr.bf16.mxu0 0
    %2871 = vmatpush1.bf16.xpose.msra.mxu0 0
    %2872 = vmatprep.subr.bf16.mxu0 0
    %2873 = vmatpush1.bf16.xpose.msra.mxu0 0
    %2874 = vmatprep.subr.bf16.mxu0 0
    %2875 = vmatpush1.bf16.xpose.msra.mxu0 0
    %2876 = vmatprep.subr.bf16.mxu0 0
    %2877 = vmatpush1.bf16.xpose.msra.mxu0 0
    %2878 = vmatprep.subr.bf16.mxu0 0
    %2879 = vmatpush1.bf16.xpose.msra.mxu0 0
    %2880 = vmatprep.subr.bf16.mxu0 0
    %2881 = vmatpush1.bf16.xpose.msra.mxu0 0
    %2882 = vmatprep.subr.bf16.mxu0 0
    %2883 = vmatpush1.bf16.xpose.msra.mxu0 0
    %2884 = vmatprep.mubr.bf16.mxu0 0
    %2885 = vmatmul.mubr.bf16.gmra.mrb[0].mxu0 %v2746
    %v2886 = vpop.f32.mrb[0].mxu0
    %v2887 = vadd.f32 0.0, %v2886
    %v2888 = vpop.f32.mrb[0].mxu0
    %v2889 = vpop.f32.mrb[0].mxu0
    %v2890 = vadd.f32 0.0, %v2889
    %v2891 = vpop.f32.mrb[0].mxu0
    %2892 = vdwg.mxu0
    %v2893 = vmul.f32 %v2719, %v2719
    %v2894 = vmul.f32 %v2720, %v2720
    %v2895 = vmul.f32 %v2721, %v2721
    %v2896 = vmul.f32 %v2722, %v2722
    %v2898 = vsel %vm75, %v2893, 0
    %v2901 = vsel %vm75, %v2894, 0
    %2903 = vmatprep.subr.mxu0 0.0
    %2904 = vmatpush1.xpose.msra.mxu0 %v2898
    %2905 = vmatprep.subr.mxu0 0.0
    %2906 = vmatpush1.xpose.msra.mxu0 %v2901
    %2907 = vmatprep.subr.mxu0 0.0
    %2908 = vmatpush1.xpose.msra.mxu0 0.0
    %2909 = vmatprep.subr.mxu0 0.0
    %2910 = vmatpush1.xpose.msra.mxu0 0.0
    %2911 = vmatprep.subr.mxu0 0.0
    %2912 = vmatpush1.xpose.msra.mxu0 0.0
    %2913 = vmatprep.subr.mxu0 0.0
    %2914 = vmatpush1.xpose.msra.mxu0 0.0
    %2915 = vmatprep.subr.mxu0 0.0
    %2916 = vmatpush1.xpose.msra.mxu0 0.0
    %2917 = vmatprep.subr.mxu0 0.0
    %2918 = vmatpush1.xpose.msra.mxu0 0.0
    %2919 = vmatprep.subr.mxu0 0.0
    %2920 = vmatpush1.xpose.msra.mxu0 0.0
    %2921 = vmatprep.subr.mxu0 0.0
    %2922 = vmatpush1.xpose.msra.mxu0 0.0
    %2923 = vmatprep.subr.mxu0 0.0
    %2924 = vmatpush1.xpose.msra.mxu0 0.0
    %2925 = vmatprep.subr.mxu0 0.0
    %2926 = vmatpush1.xpose.msra.mxu0 0.0
    %2927 = vmatprep.subr.mxu0 0.0
    %2928 = vmatpush1.xpose.msra.mxu0 0.0
    %2929 = vmatprep.subr.mxu0 0.0
    %2930 = vmatpush1.xpose.msra.mxu0 0.0
    %2931 = vmatprep.subr.mxu0 0.0
    %2932 = vmatpush1.xpose.msra.mxu0 0.0
    %2933 = vmatprep.subr.mxu0 0.0
    %2934 = vmatpush1.xpose.msra.mxu0 0.0
    %2935 = vmatprep.subr.mxu0 0.0
    %2936 = vmatpush1.xpose.msra.mxu0 0.0
    %2937 = vmatprep.subr.mxu0 0.0
    %2938 = vmatpush1.xpose.msra.mxu0 0.0
    %2939 = vmatprep.subr.mxu0 0.0
    %2940 = vmatpush1.xpose.msra.mxu0 0.0
    %2941 = vmatprep.subr.mxu0 0.0
    %2942 = vmatpush1.xpose.msra.mxu0 0.0
    %2943 = vmatprep.subr.mxu0 0.0
    %2944 = vmatpush1.xpose.msra.mxu0 0.0
    %2945 = vmatprep.subr.mxu0 0.0
    %2946 = vmatpush1.xpose.msra.mxu0 0.0
    %2947 = vmatprep.subr.mxu0 0.0
    %2948 = vmatpush1.xpose.msra.mxu0 0.0
    %2949 = vmatprep.subr.mxu0 0.0
    %2950 = vmatpush1.xpose.msra.mxu0 0.0
    %2951 = vmatprep.subr.mxu0 0.0
    %2952 = vmatpush1.xpose.msra.mxu0 0.0
    %2953 = vmatprep.subr.mxu0 0.0
    %2954 = vmatpush1.xpose.msra.mxu0 0.0
    %2955 = vmatprep.subr.mxu0 0.0
    %2956 = vmatpush1.xpose.msra.mxu0 0.0
    %2957 = vmatprep.subr.mxu0 0.0
    %2958 = vmatpush1.xpose.msra.mxu0 0.0
    %2959 = vmatprep.subr.mxu0 0.0
    %2960 = vmatpush1.xpose.msra.mxu0 0.0
    %2961 = vmatprep.subr.mxu0 0.0
    %2962 = vmatpush1.xpose.msra.mxu0 0.0
    %2963 = vmatprep.subr.mxu0 0.0
    %2964 = vmatpush1.xpose.msra.mxu0 0.0
    %2965 = vmatprep.subr.mxu0 0.0
    %2966 = vmatpush1.xpose.msra.mxu0 0.0
    %2967 = vmatprep.mubr.f32.mxu0 0.0
    %2968 = vmatmul.mubr.f32.gmra.mrb[0].mxu0 %v623
    %v2969 = vpop.f32.mrb[0].mxu0
    %v2970 = vadd.f32 0.0, %v2969
    %v2971 = vpop.f32.mrb[0].mxu0
    %2972 = vmatprep.mubr.f32.mxu0 0.0
    %2973 = vmatmul.mubr.f32.gmra.mrb[0].mxu0 %v623
    %v2974 = vpop.f32.mrb[0].mxu0
    %v2975 = vadd.f32 0.0, %v2974
    %v2976 = vpop.f32.mrb[0].mxu0
    %2977 = vdwg.mxu0
    %v2979 = vsel %vm75, %v2895, 0
    %v2982 = vsel %vm75, %v2896, 0
    %2984 = vmatprep.subr.mxu0 0.0
    %2985 = vmatpush1.xpose.msra.mxu0 %v2979
    %2986 = vmatprep.subr.mxu0 0.0
    %2987 = vmatpush1.xpose.msra.mxu0 %v2982
    %2988 = vmatprep.subr.mxu0 0.0
    %2989 = vmatpush1.xpose.msra.mxu0 0.0
    %2990 = vmatprep.subr.mxu0 0.0
    %2991 = vmatpush1.xpose.msra.mxu0 0.0
    %2992 = vmatprep.subr.mxu0 0.0
    %2993 = vmatpush1.xpose.msra.mxu0 0.0
    %2994 = vmatprep.subr.mxu0 0.0
    %2995 = vmatpush1.xpose.msra.mxu0 0.0
    %2996 = vmatprep.subr.mxu0 0.0
    %2997 = vmatpush1.xpose.msra.mxu0 0.0
    %2998 = vmatprep.subr.mxu0 0.0
    %2999 = vmatpush1.xpose.msra.mxu0 0.0
    %3000 = vmatprep.subr.mxu0 0.0
    %3001 = vmatpush1.xpose.msra.mxu0 0.0
    %3002 = vmatprep.subr.mxu0 0.0
    %3003 = vmatpush1.xpose.msra.mxu0 0.0
    %3004 = vmatprep.subr.mxu0 0.0
    %3005 = vmatpush1.xpose.msra.mxu0 0.0
    %3006 = vmatprep.subr.mxu0 0.0
    %3007 = vmatpush1.xpose.msra.mxu0 0.0
    %3008 = vmatprep.subr.mxu0 0.0
    %3009 = vmatpush1.xpose.msra.mxu0 0.0
    %3010 = vmatprep.subr.mxu0 0.0
    %3011 = vmatpush1.xpose.msra.mxu0 0.0
    %3012 = vmatprep.subr.mxu0 0.0
    %3013 = vmatpush1.xpose.msra.mxu0 0.0
    %3014 = vmatprep.subr.mxu0 0.0
    %3015 = vmatpush1.xpose.msra.mxu0 0.0
    %3016 = vmatprep.subr.mxu0 0.0
    %3017 = vmatpush1.xpose.msra.mxu0 0.0
    %3018 = vmatprep.subr.mxu0 0.0
    %3019 = vmatpush1.xpose.msra.mxu0 0.0
    %3020 = vmatprep.subr.mxu0 0.0
    %3021 = vmatpush1.xpose.msra.mxu0 0.0
    %3022 = vmatprep.subr.mxu0 0.0
    %3023 = vmatpush1.xpose.msra.mxu0 0.0
    %3024 = vmatprep.subr.mxu0 0.0
    %3025 = vmatpush1.xpose.msra.mxu0 0.0
    %3026 = vmatprep.subr.mxu0 0.0
    %3027 = vmatpush1.xpose.msra.mxu0 0.0
    %3028 = vmatprep.subr.mxu0 0.0
    %3029 = vmatpush1.xpose.msra.mxu0 0.0
    %3030 = vmatprep.subr.mxu0 0.0
    %3031 = vmatpush1.xpose.msra.mxu0 0.0
    %3032 = vmatprep.subr.mxu0 0.0
    %3033 = vmatpush1.xpose.msra.mxu0 0.0
    %3034 = vmatprep.subr.mxu0 0.0
    %3035 = vmatpush1.xpose.msra.mxu0 0.0
    %3036 = vmatprep.subr.mxu0 0.0
    %3037 = vmatpush1.xpose.msra.mxu0 0.0
    %3038 = vmatprep.subr.mxu0 0.0
    %3039 = vmatpush1.xpose.msra.mxu0 0.0
    %3040 = vmatprep.subr.mxu0 0.0
    %3041 = vmatpush1.xpose.msra.mxu0 0.0
    %3042 = vmatprep.subr.mxu0 0.0
    %3043 = vmatpush1.xpose.msra.mxu0 0.0
    %3044 = vmatprep.subr.mxu0 0.0
    %3045 = vmatpush1.xpose.msra.mxu0 0.0
    %3046 = vmatprep.subr.mxu0 0.0
    %3047 = vmatpush1.xpose.msra.mxu0 0.0
    %3048 = vmatprep.mubr.f32.mxu0 0.0
    %3049 = vmatmul.mubr.f32.gmra.mrb[0].mxu0 %v623
    %v3050 = vpop.f32.mrb[0].mxu0
    %v3051 = vadd.f32 0.0, %v3050
    %v3052 = vpop.f32.mrb[0].mxu0
    %3053 = vmatprep.mubr.f32.mxu0 0.0
    %3054 = vmatmul.mubr.f32.gmra.mrb[0].mxu0 %v623
    %v3055 = vpop.f32.mrb[0].mxu0
    %v3056 = vadd.f32 0.0, %v3055
    %v3057 = vpop.f32.mrb[0].mxu0
    %3058 = vdwg.mxu0
    %v3059 = vmul.f32 %v2846, 2.0
    %v3060 = vmul.f32 %v2849, 2.0
    %v3061 = vmul.f32 %v2887, 2.0
    %v3062 = vmul.f32 %v2890, 2.0
    %v3063 = vsub.f32 %v3059, %v2970
    %v3064 = vsub.f32 %v3060, %v2975
    %v3065 = vsub.f32 %v3061, %v3051
    %v3066 = vsub.f32 %v3062, %v3056
    %v3067 = vsel %vm136, %v3063, -inf
    %3068 = vmax.xlane.f32.xlu0 %v3067
    %v3069 = vpop.xlane.xlu0 %3068
    %v3070 = vsel %vm136, %v3064, -inf
    %3071 = vmax.xlane.f32.xlu0 %v3070
    %v3072 = vpop.xlane.xlu0 %3071
    %v3073 = vsel %vm136, %v3065, -inf
    %3074 = vmax.xlane.f32.xlu0 %v3073
    %v3075 = vpop.xlane.xlu0 %3074
    %v3076 = vsel %vm136, %v3066, -inf
    %3077 = vmax.xlane.f32.xlu0 %v3076
    %v3078 = vpop.xlane.xlu0 %3077
    %vm3079 = vcmp.eq.f32.partialorder %v3063, %v3069
    %vm3080 = vcmp.eq.f32.partialorder %v3064, %v3072
    %vm3081 = vcmp.eq.f32.partialorder %v3065, %v3075
    %vm3082 = vcmp.eq.f32.partialorder %v3066, %v3078
    %v3083 = vsel %vm3079, %v448, 16
    %v3084 = vsel %vm3080, %v448, 16
    %v3085 = vsel %vm3081, %v448, 16
    %v3086 = vsel %vm3082, %v448, 16
    %v3087 = vsel %vm136, %v3083, 2147483647
    %v3088 = vand.u32 %v3087, 65535
    %v3089 = vshra.s32 %v3087, 16
    %v3090 = vcvt.s32.f32 %v3088
    %v3091 = vcvt.s32.f32 %v3089
    %3092 = vmin.xlane.f32.xlu0 %v3091
    %v3093 = vpop.xlane.xlu0 %3092
    %vm3094 = vcmp.eq.f32.partialorder %v3091, %v3093
    %v3095 = vsel %vm3094, %v3090, inf
    %3096 = vmin.xlane.f32.xlu0 %v3095
    %v3097 = vpop.xlane.xlu0 %3096
    %v3098 = vcvt.f32.s32 %v3097
    %v3099 = vcvt.f32.s32 %v3093
    %v3100 = vshll.u32 %v3099, 16
    %v3101 = vadd.s32 %v3100, %v3098
    %v3102 = vsel %vm136, %v3084, 2147483647
    %v3103 = vand.u32 %v3102, 65535
    %v3104 = vshra.s32 %v3102, 16
    %v3105 = vcvt.s32.f32 %v3103
    %v3106 = vcvt.s32.f32 %v3104
    %3107 = vmin.xlane.f32.xlu0 %v3106
    %v3108 = vpop.xlane.xlu0 %3107
    %vm3109 = vcmp.eq.f32.partialorder %v3106, %v3108
    %v3110 = vsel %vm3109, %v3105, inf
    %3111 = vmin.xlane.f32.xlu0 %v3110
    %v3112 = vpop.xlane.xlu0 %3111
    %v3113 = vcvt.f32.s32 %v3112
    %v3114 = vcvt.f32.s32 %v3108
    %v3115 = vshll.u32 %v3114, 16
    %v3116 = vadd.s32 %v3115, %v3113
    %v3117 = vsel %vm136, %v3085, 2147483647
    %v3118 = vand.u32 %v3117, 65535
    %v3119 = vshra.s32 %v3117, 16
    %v3120 = vcvt.s32.f32 %v3118
    %v3121 = vcvt.s32.f32 %v3119
    %3122 = vmin.xlane.f32.xlu0 %v3121
    %v3123 = vpop.xlane.xlu0 %3122
    %vm3124 = vcmp.eq.f32.partialorder %v3121, %v3123
    %v3125 = vsel %vm3124, %v3120, inf
    %3126 = vmin.xlane.f32.xlu0 %v3125
    %v3127 = vpop.xlane.xlu0 %3126
    %v3128 = vcvt.f32.s32 %v3127
    %v3129 = vcvt.f32.s32 %v3123
    %v3130 = vshll.u32 %v3129, 16
    %v3131 = vadd.s32 %v3130, %v3128
    %v3132 = vsel %vm136, %v3086, 2147483647
    %v3133 = vand.u32 %v3132, 65535
    %v3134 = vshra.s32 %v3132, 16
    %v3135 = vcvt.s32.f32 %v3133
    %v3136 = vcvt.s32.f32 %v3134
    %3137 = vmin.xlane.f32.xlu0 %v3136
    %v3138 = vpop.xlane.xlu0 %3137
    %vm3139 = vcmp.eq.f32.partialorder %v3136, %v3138
    %v3140 = vsel %vm3139, %v3135, inf
    %3141 = vmin.xlane.f32.xlu0 %v3140
    %v3142 = vpop.xlane.xlu0 %3141
    %v3143 = vcvt.f32.s32 %v3142
    %v3144 = vcvt.f32.s32 %v3138
    %v3145 = vshll.u32 %v3144, 16
    %v3146 = vadd.s32 %v3145, %v3143
    %vm3147 = vcmp.eq.s32.totalorder %v448, %v3101
    %vm3148 = vcmp.eq.s32.totalorder %v448, %v3116
    %vm3149 = vcmp.eq.s32.totalorder %v448, %v3131
    %vm3150 = vcmp.eq.s32.totalorder %v448, %v3146
    %v3151 = vsel %vm3147, 1, 0
    %v3152 = vsel %vm3148, 1, 0
    %v3153 = vsel %vm3149, 1, 0
    %v3154 = vsel %vm3150, 1, 0
    %v3155 = vcvt.s32.f32 %v3151
    %v3156 = vcvt.s32.f32 %v3152
    %v3157 = vcvt.s32.f32 %v3153
    %v3158 = vcvt.s32.f32 %v3154
    %v3159 = vpack.c.bf16 %v3156, %v3155
    %v3160 = vpack.c.bf16 %v3158, %v3157
    %v3162 = vsel %vm136, %v3159, 0
    %3164 = vmatprep.subr.bf16.mxu0 0
    %3165 = vmatpush1.bf16.msra.mxu0 %v2797
    %3166 = vmatprep.subr.bf16.mxu0 0
    %3167 = vmatpush1.bf16.msra.mxu0 0
    %3168 = vmatprep.subr.bf16.mxu0 0
    %3169 = vmatpush1.bf16.msra.mxu0 0
    %3170 = vmatprep.subr.bf16.mxu0 0
    %3171 = vmatpush1.bf16.msra.mxu0 0
    %3172 = vmatprep.subr.bf16.mxu0 0
    %3173 = vmatpush1.bf16.msra.mxu0 0
    %3174 = vmatprep.subr.bf16.mxu0 0
    %3175 = vmatpush1.bf16.msra.mxu0 0
    %3176 = vmatprep.subr.bf16.mxu0 0
    %3177 = vmatpush1.bf16.msra.mxu0 0
    %3178 = vmatprep.subr.bf16.mxu0 0
    %3179 = vmatpush1.bf16.msra.mxu0 0
    %3180 = vmatprep.subr.bf16.mxu0 0
    %3181 = vmatpush1.bf16.msra.mxu0 0
    %3182 = vmatprep.subr.bf16.mxu0 0
    %3183 = vmatpush1.bf16.msra.mxu0 0
    %3184 = vmatprep.subr.bf16.mxu0 0
    %3185 = vmatpush1.bf16.msra.mxu0 0
    %3186 = vmatprep.subr.bf16.mxu0 0
    %3187 = vmatpush1.bf16.msra.mxu0 0
    %3188 = vmatprep.subr.bf16.mxu0 0
    %3189 = vmatpush1.bf16.msra.mxu0 0
    %3190 = vmatprep.subr.bf16.mxu0 0
    %3191 = vmatpush1.bf16.msra.mxu0 0
    %3192 = vmatprep.subr.bf16.mxu0 0
    %3193 = vmatpush1.bf16.msra.mxu0 0
    %3194 = vmatprep.subr.bf16.mxu0 0
    %3195 = vmatpush1.bf16.msra.mxu0 0
    %3196 = vmatprep.mubr.bf16.mxu0 0
    %3197 = vmatmul.mubr.bf16.gmra.mrb[0].mxu0 %v3162
    %v3198 = vpop.f32.mrb[0].mxu0
    %v3199 = vadd.f32 0.0, %v3198
    %v3200 = vpop.f32.mrb[0].mxu0
    %v3201 = vpop.f32.mrb[0].mxu0
    %v3202 = vadd.f32 0.0, %v3201
    %v3203 = vpop.f32.mrb[0].mxu0
    %3204 = vdwg.mxu0
    %v3206 = vsel %vm136, %v3160, 0
    %3208 = vmatprep.subr.bf16.mxu0 0
    %3209 = vmatpush1.bf16.msra.mxu0 %v2798
    %3210 = vmatprep.subr.bf16.mxu0 0
    %3211 = vmatpush1.bf16.msra.mxu0 0
    %3212 = vmatprep.subr.bf16.mxu0 0
    %3213 = vmatpush1.bf16.msra.mxu0 0
    %3214 = vmatprep.subr.bf16.mxu0 0
    %3215 = vmatpush1.bf16.msra.mxu0 0
    %3216 = vmatprep.subr.bf16.mxu0 0
    %3217 = vmatpush1.bf16.msra.mxu0 0
    %3218 = vmatprep.subr.bf16.mxu0 0
    %3219 = vmatpush1.bf16.msra.mxu0 0
    %3220 = vmatprep.subr.bf16.mxu0 0
    %3221 = vmatpush1.bf16.msra.mxu0 0
    %3222 = vmatprep.subr.bf16.mxu0 0
    %3223 = vmatpush1.bf16.msra.mxu0 0
    %3224 = vmatprep.subr.bf16.mxu0 0
    %3225 = vmatpush1.bf16.msra.mxu0 0
    %3226 = vmatprep.subr.bf16.mxu0 0
    %3227 = vmatpush1.bf16.msra.mxu0 0
    %3228 = vmatprep.subr.bf16.mxu0 0
    %3229 = vmatpush1.bf16.msra.mxu0 0
    %3230 = vmatprep.subr.bf16.mxu0 0
    %3231 = vmatpush1.bf16.msra.mxu0 0
    %3232 = vmatprep.subr.bf16.mxu0 0
    %3233 = vmatpush1.bf16.msra.mxu0 0
    %3234 = vmatprep.subr.bf16.mxu0 0
    %3235 = vmatpush1.bf16.msra.mxu0 0
    %3236 = vmatprep.subr.bf16.mxu0 0
    %3237 = vmatpush1.bf16.msra.mxu0 0
    %3238 = vmatprep.subr.bf16.mxu0 0
    %3239 = vmatpush1.bf16.msra.mxu0 0
    %3240 = vmatprep.mubr.bf16.mxu0 0
    %3241 = vmatmul.mubr.bf16.gmra.mrb[0].mxu0 %v3206
    %v3242 = vpop.f32.mrb[0].mxu0
    %v3243 = vadd.f32 0.0, %v3242
    %v3244 = vpop.f32.mrb[0].mxu0
    %v3245 = vpop.f32.mrb[0].mxu0
    %v3246 = vadd.f32 0.0, %v3245
    %v3247 = vpop.f32.mrb[0].mxu0
    %3248 = vdwg.mxu0
    %v3249 = vmax.f32 %v3199, -1e+30
    %v3250 = vmax.f32 %v3202, -1e+30
    %v3251 = vmax.f32 %v3243, -1e+30
    %v3252 = vmax.f32 %v3246, -1e+30
    %v3253 = vsel %vm3147, -1e+30, %v3063
    %v3254 = vsel %vm3148, -1e+30, %v3064
    %v3255 = vsel %vm3149, -1e+30, %v3065
    %v3256 = vsel %vm3150, -1e+30, %v3066
    %v3257 = vsel %vm136, %v3253, -inf
    %3258 = vmax.xlane.f32.xlu0 %v3257
    %v3259 = vpop.xlane.xlu0 %3258
    %v3260 = vsel %vm136, %v3254, -inf
    %3261 = vmax.xlane.f32.xlu0 %v3260
    %v3262 = vpop.xlane.xlu0 %3261
    %v3263 = vsel %vm136, %v3255, -inf
    %3264 = vmax.xlane.f32.xlu0 %v3263
    %v3265 = vpop.xlane.xlu0 %3264
    %v3266 = vsel %vm136, %v3256, -inf
    %3267 = vmax.xlane.f32.xlu0 %v3266
    %v3268 = vpop.xlane.xlu0 %3267
    %vm3269 = vcmp.eq.f32.partialorder %v3253, %v3259
    %vm3270 = vcmp.eq.f32.partialorder %v3254, %v3262
    %vm3271 = vcmp.eq.f32.partialorder %v3255, %v3265
    %vm3272 = vcmp.eq.f32.partialorder %v3256, %v3268
    %v3273 = vsel %vm3269, %v448, 16
    %v3274 = vsel %vm3270, %v448, 16
    %v3275 = vsel %vm3271, %v448, 16
    %v3276 = vsel %vm3272, %v448, 16
    %v3277 = vsel %vm136, %v3273, 2147483647
    %v3278 = vand.u32 %v3277, 65535
    %v3279 = vshra.s32 %v3277, 16
    %v3280 = vcvt.s32.f32 %v3278
    %v3281 = vcvt.s32.f32 %v3279
    %3282 = vmin.xlane.f32.xlu0 %v3281
    %v3283 = vpop.xlane.xlu0 %3282
    %vm3284 = vcmp.eq.f32.partialorder %v3281, %v3283
    %v3285 = vsel %vm3284, %v3280, inf
    %3286 = vmin.xlane.f32.xlu0 %v3285
    %v3287 = vpop.xlane.xlu0 %3286
    %v3288 = vcvt.f32.s32 %v3287
    %v3289 = vcvt.f32.s32 %v3283
    %v3290 = vshll.u32 %v3289, 16
    %v3291 = vadd.s32 %v3290, %v3288
    %v3292 = vsel %vm136, %v3274, 2147483647
    %v3293 = vand.u32 %v3292, 65535
    %v3294 = vshra.s32 %v3292, 16
    %v3295 = vcvt.s32.f32 %v3293
    %v3296 = vcvt.s32.f32 %v3294
    %3297 = vmin.xlane.f32.xlu0 %v3296
    %v3298 = vpop.xlane.xlu0 %3297
    %vm3299 = vcmp.eq.f32.partialorder %v3296, %v3298
    %v3300 = vsel %vm3299, %v3295, inf
    %3301 = vmin.xlane.f32.xlu0 %v3300
    %v3302 = vpop.xlane.xlu0 %3301
    %v3303 = vcvt.f32.s32 %v3302
    %v3304 = vcvt.f32.s32 %v3298
    %v3305 = vshll.u32 %v3304, 16
    %v3306 = vadd.s32 %v3305, %v3303
    %v3307 = vsel %vm136, %v3275, 2147483647
    %v3308 = vand.u32 %v3307, 65535
    %v3309 = vshra.s32 %v3307, 16
    %v3310 = vcvt.s32.f32 %v3308
    %v3311 = vcvt.s32.f32 %v3309
    %3312 = vmin.xlane.f32.xlu0 %v3311
    %v3313 = vpop.xlane.xlu0 %3312
    %vm3314 = vcmp.eq.f32.partialorder %v3311, %v3313
    %v3315 = vsel %vm3314, %v3310, inf
    %3316 = vmin.xlane.f32.xlu0 %v3315
    %v3317 = vpop.xlane.xlu0 %3316
    %v3318 = vcvt.f32.s32 %v3317
    %v3319 = vcvt.f32.s32 %v3313
    %v3320 = vshll.u32 %v3319, 16
    %v3321 = vadd.s32 %v3320, %v3318
    %v3322 = vsel %vm136, %v3276, 2147483647
    %v3323 = vand.u32 %v3322, 65535
    %v3324 = vshra.s32 %v3322, 16
    %v3325 = vcvt.s32.f32 %v3323
    %v3326 = vcvt.s32.f32 %v3324
    %3327 = vmin.xlane.f32.xlu0 %v3326
    %v3328 = vpop.xlane.xlu0 %3327
    %vm3329 = vcmp.eq.f32.partialorder %v3326, %v3328
    %v3330 = vsel %vm3329, %v3325, inf
    %3331 = vmin.xlane.f32.xlu0 %v3330
    %v3332 = vpop.xlane.xlu0 %3331
    %v3333 = vcvt.f32.s32 %v3332
    %v3334 = vcvt.f32.s32 %v3328
    %v3335 = vshll.u32 %v3334, 16
    %v3336 = vadd.s32 %v3335, %v3333
    %vm3337 = vcmp.eq.s32.totalorder %v448, %v3291
    %vm3338 = vcmp.eq.s32.totalorder %v448, %v3306
    %vm3339 = vcmp.eq.s32.totalorder %v448, %v3321
    %vm3340 = vcmp.eq.s32.totalorder %v448, %v3336
    %v3341 = vsel %vm3337, 1, 0
    %v3342 = vsel %vm3338, 1, 0
    %v3343 = vsel %vm3339, 1, 0
    %v3344 = vsel %vm3340, 1, 0
    %v3345 = vcvt.s32.f32 %v3341
    %v3346 = vcvt.s32.f32 %v3342
    %v3347 = vcvt.s32.f32 %v3343
    %v3348 = vcvt.s32.f32 %v3344
    %v3349 = vpack.c.bf16 %v3346, %v3345
    %v3350 = vpack.c.bf16 %v3348, %v3347
    %v3352 = vsel %vm136, %v3349, 0
    %3354 = vmatprep.subr.bf16.mxu0 0
    %3355 = vmatpush1.bf16.msra.mxu0 %v2797
    %3356 = vmatprep.subr.bf16.mxu0 0
    %3357 = vmatpush1.bf16.msra.mxu0 0
    %3358 = vmatprep.subr.bf16.mxu0 0
    %3359 = vmatpush1.bf16.msra.mxu0 0
    %3360 = vmatprep.subr.bf16.mxu0 0
    %3361 = vmatpush1.bf16.msra.mxu0 0
    %3362 = vmatprep.subr.bf16.mxu0 0
    %3363 = vmatpush1.bf16.msra.mxu0 0
    %3364 = vmatprep.subr.bf16.mxu0 0
    %3365 = vmatpush1.bf16.msra.mxu0 0
    %3366 = vmatprep.subr.bf16.mxu0 0
    %3367 = vmatpush1.bf16.msra.mxu0 0
    %3368 = vmatprep.subr.bf16.mxu0 0
    %3369 = vmatpush1.bf16.msra.mxu0 0
    %3370 = vmatprep.subr.bf16.mxu0 0
    %3371 = vmatpush1.bf16.msra.mxu0 0
    %3372 = vmatprep.subr.bf16.mxu0 0
    %3373 = vmatpush1.bf16.msra.mxu0 0
    %3374 = vmatprep.subr.bf16.mxu0 0
    %3375 = vmatpush1.bf16.msra.mxu0 0
    %3376 = vmatprep.subr.bf16.mxu0 0
    %3377 = vmatpush1.bf16.msra.mxu0 0
    %3378 = vmatprep.subr.bf16.mxu0 0
    %3379 = vmatpush1.bf16.msra.mxu0 0
    %3380 = vmatprep.subr.bf16.mxu0 0
    %3381 = vmatpush1.bf16.msra.mxu0 0
    %3382 = vmatprep.subr.bf16.mxu0 0
    %3383 = vmatpush1.bf16.msra.mxu0 0
    %3384 = vmatprep.subr.bf16.mxu0 0
    %3385 = vmatpush1.bf16.msra.mxu0 0
    %3386 = vmatprep.mubr.bf16.mxu0 0
    %3387 = vmatmul.mubr.bf16.gmra.mrb[0].mxu0 %v3352
    %v3388 = vpop.f32.mrb[0].mxu0
    %v3389 = vadd.f32 0.0, %v3388
    %v3390 = vpop.f32.mrb[0].mxu0
    %v3391 = vpop.f32.mrb[0].mxu0
    %v3392 = vadd.f32 0.0, %v3391
    %v3393 = vpop.f32.mrb[0].mxu0
    %3394 = vdwg.mxu0
    %v3396 = vsel %vm136, %v3350, 0
    %3398 = vmatprep.subr.bf16.mxu0 0
    %3399 = vmatpush1.bf16.msra.mxu0 %v2798
    %3400 = vmatprep.subr.bf16.mxu0 0
    %3401 = vmatpush1.bf16.msra.mxu0 0
    %3402 = vmatprep.subr.bf16.mxu0 0
    %3403 = vmatpush1.bf16.msra.mxu0 0
    %3404 = vmatprep.subr.bf16.mxu0 0
    %3405 = vmatpush1.bf16.msra.mxu0 0
    %3406 = vmatprep.subr.bf16.mxu0 0
    %3407 = vmatpush1.bf16.msra.mxu0 0
    %3408 = vmatprep.subr.bf16.mxu0 0
    %3409 = vmatpush1.bf16.msra.mxu0 0
    %3410 = vmatprep.subr.bf16.mxu0 0
    %3411 = vmatpush1.bf16.msra.mxu0 0
    %3412 = vmatprep.subr.bf16.mxu0 0
    %3413 = vmatpush1.bf16.msra.mxu0 0
    %3414 = vmatprep.subr.bf16.mxu0 0
    %3415 = vmatpush1.bf16.msra.mxu0 0
    %3416 = vmatprep.subr.bf16.mxu0 0
    %3417 = vmatpush1.bf16.msra.mxu0 0
    %3418 = vmatprep.subr.bf16.mxu0 0
    %3419 = vmatpush1.bf16.msra.mxu0 0
    %3420 = vmatprep.subr.bf16.mxu0 0
    %3421 = vmatpush1.bf16.msra.mxu0 0
    %3422 = vmatprep.subr.bf16.mxu0 0
    %3423 = vmatpush1.bf16.msra.mxu0 0
    %3424 = vmatprep.subr.bf16.mxu0 0
    %3425 = vmatpush1.bf16.msra.mxu0 0
    %3426 = vmatprep.subr.bf16.mxu0 0
    %3427 = vmatpush1.bf16.msra.mxu0 0
    %3428 = vmatprep.subr.bf16.mxu0 0
    %3429 = vmatpush1.bf16.msra.mxu0 0
    %3430 = vmatprep.mubr.bf16.mxu0 0
    %3431 = vmatmul.mubr.bf16.gmra.mrb[0].mxu0 %v3396
    %v3432 = vpop.f32.mrb[0].mxu0
    %v3433 = vadd.f32 0.0, %v3432
    %v3434 = vpop.f32.mrb[0].mxu0
    %v3435 = vpop.f32.mrb[0].mxu0
    %v3436 = vadd.f32 0.0, %v3435
    %v3437 = vpop.f32.mrb[0].mxu0
    %3438 = vdwg.mxu0
    %v3439 = vmax.f32 %v3249, %v3389
    %v3440 = vmax.f32 %v3250, %v3392
    %v3441 = vmax.f32 %v3251, %v3433
    %v3442 = vmax.f32 %v3252, %v3436
    %v3443 = vsel %vm3337, -1e+30, %v3253
    %v3444 = vsel %vm3338, -1e+30, %v3254
    %v3445 = vsel %vm3339, -1e+30, %v3255
    %v3446 = vsel %vm3340, -1e+30, %v3256
    %v3447 = vsel %vm136, %v3443, -inf
    %3448 = vmax.xlane.f32.xlu0 %v3447
    %v3449 = vpop.xlane.xlu0 %3448
    %v3450 = vsel %vm136, %v3444, -inf
    %3451 = vmax.xlane.f32.xlu0 %v3450
    %v3452 = vpop.xlane.xlu0 %3451
    %v3453 = vsel %vm136, %v3445, -inf
    %3454 = vmax.xlane.f32.xlu0 %v3453
    %v3455 = vpop.xlane.xlu0 %3454
    %v3456 = vsel %vm136, %v3446, -inf
    %3457 = vmax.xlane.f32.xlu0 %v3456
    %v3458 = vpop.xlane.xlu0 %3457
    %vm3459 = vcmp.eq.f32.partialorder %v3443, %v3449
    %vm3460 = vcmp.eq.f32.partialorder %v3444, %v3452
    %vm3461 = vcmp.eq.f32.partialorder %v3445, %v3455
    %vm3462 = vcmp.eq.f32.partialorder %v3446, %v3458
    %v3463 = vsel %vm3459, %v448, 16
    %v3464 = vsel %vm3460, %v448, 16
    %v3465 = vsel %vm3461, %v448, 16
    %v3466 = vsel %vm3462, %v448, 16
    %v3467 = vsel %vm136, %v3463, 2147483647
    %v3468 = vand.u32 %v3467, 65535
    %v3469 = vshra.s32 %v3467, 16
    %v3470 = vcvt.s32.f32 %v3468
    %v3471 = vcvt.s32.f32 %v3469
    %3472 = vmin.xlane.f32.xlu0 %v3471
    %v3473 = vpop.xlane.xlu0 %3472
    %vm3474 = vcmp.eq.f32.partialorder %v3471, %v3473
    %v3475 = vsel %vm3474, %v3470, inf
    %3476 = vmin.xlane.f32.xlu0 %v3475
    %v3477 = vpop.xlane.xlu0 %3476
    %v3478 = vcvt.f32.s32 %v3477
    %v3479 = vcvt.f32.s32 %v3473
    %v3480 = vshll.u32 %v3479, 16
    %v3481 = vadd.s32 %v3480, %v3478
    %v3482 = vsel %vm136, %v3464, 2147483647
    %v3483 = vand.u32 %v3482, 65535
    %v3484 = vshra.s32 %v3482, 16
    %v3485 = vcvt.s32.f32 %v3483
    %v3486 = vcvt.s32.f32 %v3484
    %3487 = vmin.xlane.f32.xlu0 %v3486
    %v3488 = vpop.xlane.xlu0 %3487
    %vm3489 = vcmp.eq.f32.partialorder %v3486, %v3488
    %v3490 = vsel %vm3489, %v3485, inf
    %3491 = vmin.xlane.f32.xlu0 %v3490
    %v3492 = vpop.xlane.xlu0 %3491
    %v3493 = vcvt.f32.s32 %v3492
    %v3494 = vcvt.f32.s32 %v3488
    %v3495 = vshll.u32 %v3494, 16
    %v3496 = vadd.s32 %v3495, %v3493
    %v3497 = vsel %vm136, %v3465, 2147483647
    %v3498 = vand.u32 %v3497, 65535
    %v3499 = vshra.s32 %v3497, 16
    %v3500 = vcvt.s32.f32 %v3498
    %v3501 = vcvt.s32.f32 %v3499
    %3502 = vmin.xlane.f32.xlu0 %v3501
    %v3503 = vpop.xlane.xlu0 %3502
    %vm3504 = vcmp.eq.f32.partialorder %v3501, %v3503
    %v3505 = vsel %vm3504, %v3500, inf
    %3506 = vmin.xlane.f32.xlu0 %v3505
    %v3507 = vpop.xlane.xlu0 %3506
    %v3508 = vcvt.f32.s32 %v3507
    %v3509 = vcvt.f32.s32 %v3503
    %v3510 = vshll.u32 %v3509, 16
    %v3511 = vadd.s32 %v3510, %v3508
    %v3512 = vsel %vm136, %v3466, 2147483647
    %v3513 = vand.u32 %v3512, 65535
    %v3514 = vshra.s32 %v3512, 16
    %v3515 = vcvt.s32.f32 %v3513
    %v3516 = vcvt.s32.f32 %v3514
    %3517 = vmin.xlane.f32.xlu0 %v3516
    %v3518 = vpop.xlane.xlu0 %3517
    %vm3519 = vcmp.eq.f32.partialorder %v3516, %v3518
    %v3520 = vsel %vm3519, %v3515, inf
    %3521 = vmin.xlane.f32.xlu0 %v3520
    %v3522 = vpop.xlane.xlu0 %3521
    %v3523 = vcvt.f32.s32 %v3522
    %v3524 = vcvt.f32.s32 %v3518
    %v3525 = vshll.u32 %v3524, 16
    %v3526 = vadd.s32 %v3525, %v3523
    %vm3527 = vcmp.eq.s32.totalorder %v448, %v3481
    %vm3528 = vcmp.eq.s32.totalorder %v448, %v3496
    %vm3529 = vcmp.eq.s32.totalorder %v448, %v3511
    %vm3530 = vcmp.eq.s32.totalorder %v448, %v3526
    %v3531 = vsel %vm3527, 1, 0
    %v3532 = vsel %vm3528, 1, 0
    %v3533 = vsel %vm3529, 1, 0
    %v3534 = vsel %vm3530, 1, 0
    %v3535 = vcvt.s32.f32 %v3531
    %v3536 = vcvt.s32.f32 %v3532
    %v3537 = vcvt.s32.f32 %v3533
    %v3538 = vcvt.s32.f32 %v3534
    %v3539 = vpack.c.bf16 %v3536, %v3535
    %v3540 = vpack.c.bf16 %v3538, %v3537
    %v3542 = vsel %vm136, %v3539, 0
    %3544 = vmatprep.subr.bf16.mxu0 0
    %3545 = vmatpush1.bf16.msra.mxu0 %v2797
    %3546 = vmatprep.subr.bf16.mxu0 0
    %3547 = vmatpush1.bf16.msra.mxu0 0
    %3548 = vmatprep.subr.bf16.mxu0 0
    %3549 = vmatpush1.bf16.msra.mxu0 0
    %3550 = vmatprep.subr.bf16.mxu0 0
    %3551 = vmatpush1.bf16.msra.mxu0 0
    %3552 = vmatprep.subr.bf16.mxu0 0
    %3553 = vmatpush1.bf16.msra.mxu0 0
    %3554 = vmatprep.subr.bf16.mxu0 0
    %3555 = vmatpush1.bf16.msra.mxu0 0
    %3556 = vmatprep.subr.bf16.mxu0 0
    %3557 = vmatpush1.bf16.msra.mxu0 0
    %3558 = vmatprep.subr.bf16.mxu0 0
    %3559 = vmatpush1.bf16.msra.mxu0 0
    %3560 = vmatprep.subr.bf16.mxu0 0
    %3561 = vmatpush1.bf16.msra.mxu0 0
    %3562 = vmatprep.subr.bf16.mxu0 0
    %3563 = vmatpush1.bf16.msra.mxu0 0
    %3564 = vmatprep.subr.bf16.mxu0 0
    %3565 = vmatpush1.bf16.msra.mxu0 0
    %3566 = vmatprep.subr.bf16.mxu0 0
    %3567 = vmatpush1.bf16.msra.mxu0 0
    %3568 = vmatprep.subr.bf16.mxu0 0
    %3569 = vmatpush1.bf16.msra.mxu0 0
    %3570 = vmatprep.subr.bf16.mxu0 0
    %3571 = vmatpush1.bf16.msra.mxu0 0
    %3572 = vmatprep.subr.bf16.mxu0 0
    %3573 = vmatpush1.bf16.msra.mxu0 0
    %3574 = vmatprep.subr.bf16.mxu0 0
    %3575 = vmatpush1.bf16.msra.mxu0 0
    %3576 = vmatprep.mubr.bf16.mxu0 0
    %3577 = vmatmul.mubr.bf16.gmra.mrb[0].mxu0 %v3542
    %v3578 = vpop.f32.mrb[0].mxu0
    %v3579 = vadd.f32 0.0, %v3578
    %v3580 = vpop.f32.mrb[0].mxu0
    %v3581 = vpop.f32.mrb[0].mxu0
    %v3582 = vadd.f32 0.0, %v3581
    %v3583 = vpop.f32.mrb[0].mxu0
    %3584 = vdwg.mxu0
    %v3586 = vsel %vm136, %v3540, 0
    %3588 = vmatprep.subr.bf16.mxu0 0
    %3589 = vmatpush1.bf16.msra.mxu0 %v2798
    %3590 = vmatprep.subr.bf16.mxu0 0
    %3591 = vmatpush1.bf16.msra.mxu0 0
    %3592 = vmatprep.subr.bf16.mxu0 0
    %3593 = vmatpush1.bf16.msra.mxu0 0
    %3594 = vmatprep.subr.bf16.mxu0 0
    %3595 = vmatpush1.bf16.msra.mxu0 0
    %3596 = vmatprep.subr.bf16.mxu0 0
    %3597 = vmatpush1.bf16.msra.mxu0 0
    %3598 = vmatprep.subr.bf16.mxu0 0
    %3599 = vmatpush1.bf16.msra.mxu0 0
    %3600 = vmatprep.subr.bf16.mxu0 0
    %3601 = vmatpush1.bf16.msra.mxu0 0
    %3602 = vmatprep.subr.bf16.mxu0 0
    %3603 = vmatpush1.bf16.msra.mxu0 0
    %3604 = vmatprep.subr.bf16.mxu0 0
    %3605 = vmatpush1.bf16.msra.mxu0 0
    %3606 = vmatprep.subr.bf16.mxu0 0
    %3607 = vmatpush1.bf16.msra.mxu0 0
    %3608 = vmatprep.subr.bf16.mxu0 0
    %3609 = vmatpush1.bf16.msra.mxu0 0
    %3610 = vmatprep.subr.bf16.mxu0 0
    %3611 = vmatpush1.bf16.msra.mxu0 0
    %3612 = vmatprep.subr.bf16.mxu0 0
    %3613 = vmatpush1.bf16.msra.mxu0 0
    %3614 = vmatprep.subr.bf16.mxu0 0
    %3615 = vmatpush1.bf16.msra.mxu0 0
    %3616 = vmatprep.subr.bf16.mxu0 0
    %3617 = vmatpush1.bf16.msra.mxu0 0
    %3618 = vmatprep.subr.bf16.mxu0 0
    %3619 = vmatpush1.bf16.msra.mxu0 0
    %3620 = vmatprep.mubr.bf16.mxu0 0
    %3621 = vmatmul.mubr.bf16.gmra.mrb[0].mxu0 %v3586
    %v3622 = vpop.f32.mrb[0].mxu0
    %v3623 = vadd.f32 0.0, %v3622
    %v3624 = vpop.f32.mrb[0].mxu0
    %v3625 = vpop.f32.mrb[0].mxu0
    %v3626 = vadd.f32 0.0, %v3625
    %v3627 = vpop.f32.mrb[0].mxu0
    %3628 = vdwg.mxu0
    %v3629 = vmax.f32 %v3439, %v3579
    %v3630 = vmax.f32 %v3440, %v3582
    %v3631 = vmax.f32 %v3441, %v3623
    %v3632 = vmax.f32 %v3442, %v3626
    %v3633 = vsel %vm3527, -1e+30, %v3443
    %v3634 = vsel %vm3528, -1e+30, %v3444
    %v3635 = vsel %vm3529, -1e+30, %v3445
    %v3636 = vsel %vm3530, -1e+30, %v3446
    %v3637 = vsel %vm136, %v3633, -inf
    %3638 = vmax.xlane.f32.xlu0 %v3637
    %v3639 = vpop.xlane.xlu0 %3638
    %v3640 = vsel %vm136, %v3634, -inf
    %3641 = vmax.xlane.f32.xlu0 %v3640
    %v3642 = vpop.xlane.xlu0 %3641
    %v3643 = vsel %vm136, %v3635, -inf
    %3644 = vmax.xlane.f32.xlu0 %v3643
    %v3645 = vpop.xlane.xlu0 %3644
    %v3646 = vsel %vm136, %v3636, -inf
    %3647 = vmax.xlane.f32.xlu0 %v3646
    %v3648 = vpop.xlane.xlu0 %3647
    %vm3649 = vcmp.eq.f32.partialorder %v3633, %v3639
    %vm3650 = vcmp.eq.f32.partialorder %v3634, %v3642
    %vm3651 = vcmp.eq.f32.partialorder %v3635, %v3645
    %vm3652 = vcmp.eq.f32.partialorder %v3636, %v3648
    %v3653 = vsel %vm3649, %v448, 16
    %v3654 = vsel %vm3650, %v448, 16
    %v3655 = vsel %vm3651, %v448, 16
    %v3656 = vsel %vm3652, %v448, 16
    %v3657 = vsel %vm136, %v3653, 2147483647
    %v3658 = vand.u32 %v3657, 65535
    %v3659 = vshra.s32 %v3657, 16
    %v3660 = vcvt.s32.f32 %v3658
    %v3661 = vcvt.s32.f32 %v3659
    %3662 = vmin.xlane.f32.xlu0 %v3661
    %v3663 = vpop.xlane.xlu0 %3662
    %vm3664 = vcmp.eq.f32.partialorder %v3661, %v3663
    %v3665 = vsel %vm3664, %v3660, inf
    %3666 = vmin.xlane.f32.xlu0 %v3665
    %v3667 = vpop.xlane.xlu0 %3666
    %v3668 = vcvt.f32.s32 %v3667
    %v3669 = vcvt.f32.s32 %v3663
    %v3670 = vshll.u32 %v3669, 16
    %v3671 = vadd.s32 %v3670, %v3668
    %v3672 = vsel %vm136, %v3654, 2147483647
    %v3673 = vand.u32 %v3672, 65535
    %v3674 = vshra.s32 %v3672, 16
    %v3675 = vcvt.s32.f32 %v3673
    %v3676 = vcvt.s32.f32 %v3674
    %3677 = vmin.xlane.f32.xlu0 %v3676
    %v3678 = vpop.xlane.xlu0 %3677
    %vm3679 = vcmp.eq.f32.partialorder %v3676, %v3678
    %v3680 = vsel %vm3679, %v3675, inf
    %3681 = vmin.xlane.f32.xlu0 %v3680
    %v3682 = vpop.xlane.xlu0 %3681
    %v3683 = vcvt.f32.s32 %v3682
    %v3684 = vcvt.f32.s32 %v3678
    %v3685 = vshll.u32 %v3684, 16
    %v3686 = vadd.s32 %v3685, %v3683
    %v3687 = vsel %vm136, %v3655, 2147483647
    %v3688 = vand.u32 %v3687, 65535
    %v3689 = vshra.s32 %v3687, 16
    %v3690 = vcvt.s32.f32 %v3688
    %v3691 = vcvt.s32.f32 %v3689
    %3692 = vmin.xlane.f32.xlu0 %v3691
    %v3693 = vpop.xlane.xlu0 %3692
    %vm3694 = vcmp.eq.f32.partialorder %v3691, %v3693
    %v3695 = vsel %vm3694, %v3690, inf
    %3696 = vmin.xlane.f32.xlu0 %v3695
    %v3697 = vpop.xlane.xlu0 %3696
    %v3698 = vcvt.f32.s32 %v3697
    %v3699 = vcvt.f32.s32 %v3693
    %v3700 = vshll.u32 %v3699, 16
    %v3701 = vadd.s32 %v3700, %v3698
    %v3702 = vsel %vm136, %v3656, 2147483647
    %v3703 = vand.u32 %v3702, 65535
    %v3704 = vshra.s32 %v3702, 16
    %v3705 = vcvt.s32.f32 %v3703
    %v3706 = vcvt.s32.f32 %v3704
    %3707 = vmin.xlane.f32.xlu0 %v3706
    %v3708 = vpop.xlane.xlu0 %3707
    %vm3709 = vcmp.eq.f32.partialorder %v3706, %v3708
    %v3710 = vsel %vm3709, %v3705, inf
    %3711 = vmin.xlane.f32.xlu0 %v3710
    %v3712 = vpop.xlane.xlu0 %3711
    %v3713 = vcvt.f32.s32 %v3712
    %v3714 = vcvt.f32.s32 %v3708
    %v3715 = vshll.u32 %v3714, 16
    %v3716 = vadd.s32 %v3715, %v3713
    %vm3717 = vcmp.eq.s32.totalorder %v448, %v3671
    %vm3718 = vcmp.eq.s32.totalorder %v448, %v3686
    %vm3719 = vcmp.eq.s32.totalorder %v448, %v3701
    %vm3720 = vcmp.eq.s32.totalorder %v448, %v3716
    %v3721 = vsel %vm3717, 1, 0
    %v3722 = vsel %vm3718, 1, 0
    %v3723 = vsel %vm3719, 1, 0
    %v3724 = vsel %vm3720, 1, 0
    %v3725 = vcvt.s32.f32 %v3721
    %v3726 = vcvt.s32.f32 %v3722
    %v3727 = vcvt.s32.f32 %v3723
    %v3728 = vcvt.s32.f32 %v3724
    %v3729 = vpack.c.bf16 %v3726, %v3725
    %v3730 = vpack.c.bf16 %v3728, %v3727
    %v3732 = vsel %vm136, %v3729, 0
    %3734 = vmatprep.subr.bf16.mxu0 0
    %3735 = vmatpush1.bf16.msra.mxu0 %v2797
    %3736 = vmatprep.subr.bf16.mxu0 0
    %3737 = vmatpush1.bf16.msra.mxu0 0
    %3738 = vmatprep.subr.bf16.mxu0 0
    %3739 = vmatpush1.bf16.msra.mxu0 0
    %3740 = vmatprep.subr.bf16.mxu0 0
    %3741 = vmatpush1.bf16.msra.mxu0 0
    %3742 = vmatprep.subr.bf16.mxu0 0
    %3743 = vmatpush1.bf16.msra.mxu0 0
    %3744 = vmatprep.subr.bf16.mxu0 0
    %3745 = vmatpush1.bf16.msra.mxu0 0
    %3746 = vmatprep.subr.bf16.mxu0 0
    %3747 = vmatpush1.bf16.msra.mxu0 0
    %3748 = vmatprep.subr.bf16.mxu0 0
    %3749 = vmatpush1.bf16.msra.mxu0 0
    %3750 = vmatprep.subr.bf16.mxu0 0
    %3751 = vmatpush1.bf16.msra.mxu0 0
    %3752 = vmatprep.subr.bf16.mxu0 0
    %3753 = vmatpush1.bf16.msra.mxu0 0
    %3754 = vmatprep.subr.bf16.mxu0 0
    %3755 = vmatpush1.bf16.msra.mxu0 0
    %3756 = vmatprep.subr.bf16.mxu0 0
    %3757 = vmatpush1.bf16.msra.mxu0 0
    %3758 = vmatprep.subr.bf16.mxu0 0
    %3759 = vmatpush1.bf16.msra.mxu0 0
    %3760 = vmatprep.subr.bf16.mxu0 0
    %3761 = vmatpush1.bf16.msra.mxu0 0
    %3762 = vmatprep.subr.bf16.mxu0 0
    %3763 = vmatpush1.bf16.msra.mxu0 0
    %3764 = vmatprep.subr.bf16.mxu0 0
    %3765 = vmatpush1.bf16.msra.mxu0 0
    %3766 = vmatprep.mubr.bf16.mxu0 0
    %3767 = vmatmul.mubr.bf16.gmra.mrb[0].mxu0 %v3732
    %v3768 = vpop.f32.mrb[0].mxu0
    %v3769 = vadd.f32 0.0, %v3768
    %v3770 = vpop.f32.mrb[0].mxu0
    %v3771 = vpop.f32.mrb[0].mxu0
    %v3772 = vadd.f32 0.0, %v3771
    %v3773 = vpop.f32.mrb[0].mxu0
    %3774 = vdwg.mxu0
    %v3776 = vsel %vm136, %v3730, 0
    %3778 = vmatprep.subr.bf16.mxu0 0
    %3779 = vmatpush1.bf16.msra.mxu0 %v2798
    %3780 = vmatprep.subr.bf16.mxu0 0
    %3781 = vmatpush1.bf16.msra.mxu0 0
    %3782 = vmatprep.subr.bf16.mxu0 0
    %3783 = vmatpush1.bf16.msra.mxu0 0
    %3784 = vmatprep.subr.bf16.mxu0 0
    %3785 = vmatpush1.bf16.msra.mxu0 0
    %3786 = vmatprep.subr.bf16.mxu0 0
    %3787 = vmatpush1.bf16.msra.mxu0 0
    %3788 = vmatprep.subr.bf16.mxu0 0
    %3789 = vmatpush1.bf16.msra.mxu0 0
    %3790 = vmatprep.subr.bf16.mxu0 0
    %3791 = vmatpush1.bf16.msra.mxu0 0
    %3792 = vmatprep.subr.bf16.mxu0 0
    %3793 = vmatpush1.bf16.msra.mxu0 0
    %3794 = vmatprep.subr.bf16.mxu0 0
    %3795 = vmatpush1.bf16.msra.mxu0 0
    %3796 = vmatprep.subr.bf16.mxu0 0
    %3797 = vmatpush1.bf16.msra.mxu0 0
    %3798 = vmatprep.subr.bf16.mxu0 0
    %3799 = vmatpush1.bf16.msra.mxu0 0
    %3800 = vmatprep.subr.bf16.mxu0 0
    %3801 = vmatpush1.bf16.msra.mxu0 0
    %3802 = vmatprep.subr.bf16.mxu0 0
    %3803 = vmatpush1.bf16.msra.mxu0 0
    %3804 = vmatprep.subr.bf16.mxu0 0
    %3805 = vmatpush1.bf16.msra.mxu0 0
    %3806 = vmatprep.subr.bf16.mxu0 0
    %3807 = vmatpush1.bf16.msra.mxu0 0
    %3808 = vmatprep.subr.bf16.mxu0 0
    %3809 = vmatpush1.bf16.msra.mxu0 0
    %3810 = vmatprep.mubr.bf16.mxu0 0
    %3811 = vmatmul.mubr.bf16.gmra.mrb[0].mxu0 %v3776
    %v3812 = vpop.f32.mrb[0].mxu0
    %v3813 = vadd.f32 0.0, %v3812
    %v3814 = vpop.f32.mrb[0].mxu0
    %v3815 = vpop.f32.mrb[0].mxu0
    %v3816 = vadd.f32 0.0, %v3815
    %v3817 = vpop.f32.mrb[0].mxu0
    %3818 = vdwg.mxu0
    %v3819 = vmax.f32 %v3629, %v3769
    %v3820 = vmax.f32 %v3630, %v3772
    %v3821 = vmax.f32 %v3631, %v3813
    %v3822 = vmax.f32 %v3632, %v3816
    %v3823 = vsel %vm3717, -1e+30, %v3633
    %v3824 = vsel %vm3718, -1e+30, %v3634
    %v3825 = vsel %vm3719, -1e+30, %v3635
    %v3826 = vsel %vm3720, -1e+30, %v3636
    %v3827 = vsel %vm136, %v3823, -inf
    %3828 = vmax.xlane.f32.xlu0 %v3827
    %v3829 = vpop.xlane.xlu0 %3828
    %v3830 = vsel %vm136, %v3824, -inf
    %3831 = vmax.xlane.f32.xlu0 %v3830
    %v3832 = vpop.xlane.xlu0 %3831
    %v3833 = vsel %vm136, %v3825, -inf
    %3834 = vmax.xlane.f32.xlu0 %v3833
    %v3835 = vpop.xlane.xlu0 %3834
    %v3836 = vsel %vm136, %v3826, -inf
    %3837 = vmax.xlane.f32.xlu0 %v3836
    %v3838 = vpop.xlane.xlu0 %3837
    %vm3839 = vcmp.eq.f32.partialorder %v3823, %v3829
    %vm3840 = vcmp.eq.f32.partialorder %v3824, %v3832
    %vm3841 = vcmp.eq.f32.partialorder %v3825, %v3835
    %vm3842 = vcmp.eq.f32.partialorder %v3826, %v3838
    %v3843 = vsel %vm3839, %v448, 16
    %v3844 = vsel %vm3840, %v448, 16
    %v3845 = vsel %vm3841, %v448, 16
    %v3846 = vsel %vm3842, %v448, 16
    %v3847 = vsel %vm136, %v3843, 2147483647
    %v3848 = vand.u32 %v3847, 65535
    %v3849 = vshra.s32 %v3847, 16
    %v3850 = vcvt.s32.f32 %v3848
    %v3851 = vcvt.s32.f32 %v3849
    %3852 = vmin.xlane.f32.xlu0 %v3851
    %v3853 = vpop.xlane.xlu0 %3852
    %vm3854 = vcmp.eq.f32.partialorder %v3851, %v3853
    %v3855 = vsel %vm3854, %v3850, inf
    %3856 = vmin.xlane.f32.xlu0 %v3855
    %v3857 = vpop.xlane.xlu0 %3856
    %v3858 = vcvt.f32.s32 %v3857
    %v3859 = vcvt.f32.s32 %v3853
    %v3860 = vshll.u32 %v3859, 16
    %v3861 = vadd.s32 %v3860, %v3858
    %v3862 = vsel %vm136, %v3844, 2147483647
    %v3863 = vand.u32 %v3862, 65535
    %v3864 = vshra.s32 %v3862, 16
    %v3865 = vcvt.s32.f32 %v3863
    %v3866 = vcvt.s32.f32 %v3864
    %3867 = vmin.xlane.f32.xlu0 %v3866
    %v3868 = vpop.xlane.xlu0 %3867
    %vm3869 = vcmp.eq.f32.partialorder %v3866, %v3868
    %v3870 = vsel %vm3869, %v3865, inf
    %3871 = vmin.xlane.f32.xlu0 %v3870
    %v3872 = vpop.xlane.xlu0 %3871
    %v3873 = vcvt.f32.s32 %v3872
    %v3874 = vcvt.f32.s32 %v3868
    %v3875 = vshll.u32 %v3874, 16
    %v3876 = vadd.s32 %v3875, %v3873
    %v3877 = vsel %vm136, %v3845, 2147483647
    %v3878 = vand.u32 %v3877, 65535
    %v3879 = vshra.s32 %v3877, 16
    %v3880 = vcvt.s32.f32 %v3878
    %v3881 = vcvt.s32.f32 %v3879
    %3882 = vmin.xlane.f32.xlu0 %v3881
    %v3883 = vpop.xlane.xlu0 %3882
    %vm3884 = vcmp.eq.f32.partialorder %v3881, %v3883
    %v3885 = vsel %vm3884, %v3880, inf
    %3886 = vmin.xlane.f32.xlu0 %v3885
    %v3887 = vpop.xlane.xlu0 %3886
    %v3888 = vcvt.f32.s32 %v3887
    %v3889 = vcvt.f32.s32 %v3883
    %v3890 = vshll.u32 %v3889, 16
    %v3891 = vadd.s32 %v3890, %v3888
    %v3892 = vsel %vm136, %v3846, 2147483647
    %v3893 = vand.u32 %v3892, 65535
    %v3894 = vshra.s32 %v3892, 16
    %v3895 = vcvt.s32.f32 %v3893
    %v3896 = vcvt.s32.f32 %v3894
    %3897 = vmin.xlane.f32.xlu0 %v3896
    %v3898 = vpop.xlane.xlu0 %3897
    %vm3899 = vcmp.eq.f32.partialorder %v3896, %v3898
    %v3900 = vsel %vm3899, %v3895, inf
    %3901 = vmin.xlane.f32.xlu0 %v3900
    %v3902 = vpop.xlane.xlu0 %3901
    %v3903 = vcvt.f32.s32 %v3902
    %v3904 = vcvt.f32.s32 %v3898
    %v3905 = vshll.u32 %v3904, 16
    %v3906 = vadd.s32 %v3905, %v3903
    %vm3907 = vcmp.eq.s32.totalorder %v448, %v3861
    %vm3908 = vcmp.eq.s32.totalorder %v448, %v3876
    %vm3909 = vcmp.eq.s32.totalorder %v448, %v3891
    %vm3910 = vcmp.eq.s32.totalorder %v448, %v3906
    %v3911 = vsel %vm3907, 1, 0
    %v3912 = vsel %vm3908, 1, 0
    %v3913 = vsel %vm3909, 1, 0
    %v3914 = vsel %vm3910, 1, 0
    %v3915 = vcvt.s32.f32 %v3911
    %v3916 = vcvt.s32.f32 %v3912
    %v3917 = vcvt.s32.f32 %v3913
    %v3918 = vcvt.s32.f32 %v3914
    %v3919 = vpack.c.bf16 %v3916, %v3915
    %v3920 = vpack.c.bf16 %v3918, %v3917
    %v3922 = vsel %vm136, %v3919, 0
    %3924 = vmatprep.subr.bf16.mxu0 0
    %3925 = vmatpush1.bf16.msra.mxu0 %v2797
    %3926 = vmatprep.subr.bf16.mxu0 0
    %3927 = vmatpush1.bf16.msra.mxu0 0
    %3928 = vmatprep.subr.bf16.mxu0 0
    %3929 = vmatpush1.bf16.msra.mxu0 0
    %3930 = vmatprep.subr.bf16.mxu0 0
    %3931 = vmatpush1.bf16.msra.mxu0 0
    %3932 = vmatprep.subr.bf16.mxu0 0
    %3933 = vmatpush1.bf16.msra.mxu0 0
    %3934 = vmatprep.subr.bf16.mxu0 0
    %3935 = vmatpush1.bf16.msra.mxu0 0
    %3936 = vmatprep.subr.bf16.mxu0 0
    %3937 = vmatpush1.bf16.msra.mxu0 0
    %3938 = vmatprep.subr.bf16.mxu0 0
    %3939 = vmatpush1.bf16.msra.mxu0 0
    %3940 = vmatprep.subr.bf16.mxu0 0
    %3941 = vmatpush1.bf16.msra.mxu0 0
    %3942 = vmatprep.subr.bf16.mxu0 0
    %3943 = vmatpush1.bf16.msra.mxu0 0
    %3944 = vmatprep.subr.bf16.mxu0 0
    %3945 = vmatpush1.bf16.msra.mxu0 0
    %3946 = vmatprep.subr.bf16.mxu0 0
    %3947 = vmatpush1.bf16.msra.mxu0 0
    %3948 = vmatprep.subr.bf16.mxu0 0
    %3949 = vmatpush1.bf16.msra.mxu0 0
    %3950 = vmatprep.subr.bf16.mxu0 0
    %3951 = vmatpush1.bf16.msra.mxu0 0
    %3952 = vmatprep.subr.bf16.mxu0 0
    %3953 = vmatpush1.bf16.msra.mxu0 0
    %3954 = vmatprep.subr.bf16.mxu0 0
    %3955 = vmatpush1.bf16.msra.mxu0 0
    %3956 = vmatprep.mubr.bf16.mxu0 0
    %3957 = vmatmul.mubr.bf16.gmra.mrb[0].mxu0 %v3922
    %v3958 = vpop.f32.mrb[0].mxu0
    %v3959 = vadd.f32 0.0, %v3958
    %v3960 = vpop.f32.mrb[0].mxu0
    %v3961 = vpop.f32.mrb[0].mxu0
    %v3962 = vadd.f32 0.0, %v3961
    %v3963 = vpop.f32.mrb[0].mxu0
    %3964 = vdwg.mxu0
    %v3966 = vsel %vm136, %v3920, 0
    %3968 = vmatprep.subr.bf16.mxu0 0
    %3969 = vmatpush1.bf16.msra.mxu0 %v2798
    %3970 = vmatprep.subr.bf16.mxu0 0
    %3971 = vmatpush1.bf16.msra.mxu0 0
    %3972 = vmatprep.subr.bf16.mxu0 0
    %3973 = vmatpush1.bf16.msra.mxu0 0
    %3974 = vmatprep.subr.bf16.mxu0 0
    %3975 = vmatpush1.bf16.msra.mxu0 0
    %3976 = vmatprep.subr.bf16.mxu0 0
    %3977 = vmatpush1.bf16.msra.mxu0 0
    %3978 = vmatprep.subr.bf16.mxu0 0
    %3979 = vmatpush1.bf16.msra.mxu0 0
    %3980 = vmatprep.subr.bf16.mxu0 0
    %3981 = vmatpush1.bf16.msra.mxu0 0
    %3982 = vmatprep.subr.bf16.mxu0 0
    %3983 = vmatpush1.bf16.msra.mxu0 0
    %3984 = vmatprep.subr.bf16.mxu0 0
    %3985 = vmatpush1.bf16.msra.mxu0 0
    %3986 = vmatprep.subr.bf16.mxu0 0
    %3987 = vmatpush1.bf16.msra.mxu0 0
    %3988 = vmatprep.subr.bf16.mxu0 0
    %3989 = vmatpush1.bf16.msra.mxu0 0
    %3990 = vmatprep.subr.bf16.mxu0 0
    %3991 = vmatpush1.bf16.msra.mxu0 0
    %3992 = vmatprep.subr.bf16.mxu0 0
    %3993 = vmatpush1.bf16.msra.mxu0 0
    %3994 = vmatprep.subr.bf16.mxu0 0
    %3995 = vmatpush1.bf16.msra.mxu0 0
    %3996 = vmatprep.subr.bf16.mxu0 0
    %3997 = vmatpush1.bf16.msra.mxu0 0
    %3998 = vmatprep.subr.bf16.mxu0 0
    %3999 = vmatpush1.bf16.msra.mxu0 0
    %4000 = vmatprep.mubr.bf16.mxu0 0
    %4001 = vmatmul.mubr.bf16.gmra.mrb[0].mxu0 %v3966
    %v4002 = vpop.f32.mrb[0].mxu0
    %v4003 = vadd.f32 0.0, %v4002
    %v4004 = vpop.f32.mrb[0].mxu0
    %v4005 = vpop.f32.mrb[0].mxu0
    %v4006 = vadd.f32 0.0, %v4005
    %v4007 = vpop.f32.mrb[0].mxu0
    %4008 = vdwg.mxu0
    %v4009 = vmax.f32 %v3819, %v3959
    %v4010 = vmax.f32 %v3820, %v3962
    %v4011 = vmax.f32 %v3821, %v4003
    %v4012 = vmax.f32 %v3822, %v4006
    %v4013 = vsel %vm3907, -1e+30, %v3823
    %v4014 = vsel %vm3908, -1e+30, %v3824
    %v4015 = vsel %vm3909, -1e+30, %v3825
    %v4016 = vsel %vm3910, -1e+30, %v3826
    %v4017 = vsel %vm136, %v4013, -inf
    %4018 = vmax.xlane.f32.xlu0 %v4017
    %v4019 = vpop.xlane.xlu0 %4018
    %v4020 = vsel %vm136, %v4014, -inf
    %4021 = vmax.xlane.f32.xlu0 %v4020
    %v4022 = vpop.xlane.xlu0 %4021
    %v4023 = vsel %vm136, %v4015, -inf
    %4024 = vmax.xlane.f32.xlu0 %v4023
    %v4025 = vpop.xlane.xlu0 %4024
    %v4026 = vsel %vm136, %v4016, -inf
    %4027 = vmax.xlane.f32.xlu0 %v4026
    %v4028 = vpop.xlane.xlu0 %4027
    %vm4029 = vcmp.eq.f32.partialorder %v4013, %v4019
    %vm4030 = vcmp.eq.f32.partialorder %v4014, %v4022
    %vm4031 = vcmp.eq.f32.partialorder %v4015, %v4025
    %vm4032 = vcmp.eq.f32.partialorder %v4016, %v4028
    %v4033 = vsel %vm4029, %v448, 16
    %v4034 = vsel %vm4030, %v448, 16
    %v4035 = vsel %vm4031, %v448, 16
    %v4036 = vsel %vm4032, %v448, 16
    %v4037 = vsel %vm136, %v4033, 2147483647
    %v4038 = vand.u32 %v4037, 65535
    %v4039 = vshra.s32 %v4037, 16
    %v4040 = vcvt.s32.f32 %v4038
    %v4041 = vcvt.s32.f32 %v4039
    %4042 = vmin.xlane.f32.xlu0 %v4041
    %v4043 = vpop.xlane.xlu0 %4042
    %vm4044 = vcmp.eq.f32.partialorder %v4041, %v4043
    %v4045 = vsel %vm4044, %v4040, inf
    %4046 = vmin.xlane.f32.xlu0 %v4045
    %v4047 = vpop.xlane.xlu0 %4046
    %v4048 = vcvt.f32.s32 %v4047
    %v4049 = vcvt.f32.s32 %v4043
    %v4050 = vshll.u32 %v4049, 16
    %v4051 = vadd.s32 %v4050, %v4048
    %v4052 = vsel %vm136, %v4034, 2147483647
    %v4053 = vand.u32 %v4052, 65535
    %v4054 = vshra.s32 %v4052, 16
    %v4055 = vcvt.s32.f32 %v4053
    %v4056 = vcvt.s32.f32 %v4054
    %4057 = vmin.xlane.f32.xlu0 %v4056
    %v4058 = vpop.xlane.xlu0 %4057
    %vm4059 = vcmp.eq.f32.partialorder %v4056, %v4058
    %v4060 = vsel %vm4059, %v4055, inf
    %4061 = vmin.xlane.f32.xlu0 %v4060
    %v4062 = vpop.xlane.xlu0 %4061
    %v4063 = vcvt.f32.s32 %v4062
    %v4064 = vcvt.f32.s32 %v4058
    %v4065 = vshll.u32 %v4064, 16
    %v4066 = vadd.s32 %v4065, %v4063
    %v4067 = vsel %vm136, %v4035, 2147483647
    %v4068 = vand.u32 %v4067, 65535
    %v4069 = vshra.s32 %v4067, 16
    %v4070 = vcvt.s32.f32 %v4068
    %v4071 = vcvt.s32.f32 %v4069
    %4072 = vmin.xlane.f32.xlu0 %v4071
    %v4073 = vpop.xlane.xlu0 %4072
    %vm4074 = vcmp.eq.f32.partialorder %v4071, %v4073
    %v4075 = vsel %vm4074, %v4070, inf
    %4076 = vmin.xlane.f32.xlu0 %v4075
    %v4077 = vpop.xlane.xlu0 %4076
    %v4078 = vcvt.f32.s32 %v4077
    %v4079 = vcvt.f32.s32 %v4073
    %v4080 = vshll.u32 %v4079, 16
    %v4081 = vadd.s32 %v4080, %v4078
    %v4082 = vsel %vm136, %v4036, 2147483647
    %v4083 = vand.u32 %v4082, 65535
    %v4084 = vshra.s32 %v4082, 16
    %v4085 = vcvt.s32.f32 %v4083
    %v4086 = vcvt.s32.f32 %v4084
    %4087 = vmin.xlane.f32.xlu0 %v4086
    %v4088 = vpop.xlane.xlu0 %4087
    %vm4089 = vcmp.eq.f32.partialorder %v4086, %v4088
    %v4090 = vsel %vm4089, %v4085, inf
    %4091 = vmin.xlane.f32.xlu0 %v4090
    %v4092 = vpop.xlane.xlu0 %4091
    %v4093 = vcvt.f32.s32 %v4092
    %v4094 = vcvt.f32.s32 %v4088
    %v4095 = vshll.u32 %v4094, 16
    %v4096 = vadd.s32 %v4095, %v4093
    %vm4097 = vcmp.eq.s32.totalorder %v448, %v4051
    %vm4098 = vcmp.eq.s32.totalorder %v448, %v4066
    %vm4099 = vcmp.eq.s32.totalorder %v448, %v4081
    %vm4100 = vcmp.eq.s32.totalorder %v448, %v4096
    %v4101 = vsel %vm4097, 1, 0
    %v4102 = vsel %vm4098, 1, 0
    %v4103 = vsel %vm4099, 1, 0
    %v4104 = vsel %vm4100, 1, 0
    %v4105 = vcvt.s32.f32 %v4101
    %v4106 = vcvt.s32.f32 %v4102
    %v4107 = vcvt.s32.f32 %v4103
    %v4108 = vcvt.s32.f32 %v4104
    %v4109 = vpack.c.bf16 %v4106, %v4105
    %v4110 = vpack.c.bf16 %v4108, %v4107
    %v4112 = vsel %vm136, %v4109, 0
    %4114 = vmatprep.subr.bf16.mxu0 0
    %4115 = vmatpush1.bf16.msra.mxu0 %v2797
    %4116 = vmatprep.subr.bf16.mxu0 0
    %4117 = vmatpush1.bf16.msra.mxu0 0
    %4118 = vmatprep.subr.bf16.mxu0 0
    %4119 = vmatpush1.bf16.msra.mxu0 0
    %4120 = vmatprep.subr.bf16.mxu0 0
    %4121 = vmatpush1.bf16.msra.mxu0 0
    %4122 = vmatprep.subr.bf16.mxu0 0
    %4123 = vmatpush1.bf16.msra.mxu0 0
    %4124 = vmatprep.subr.bf16.mxu0 0
    %4125 = vmatpush1.bf16.msra.mxu0 0
    %4126 = vmatprep.subr.bf16.mxu0 0
    %4127 = vmatpush1.bf16.msra.mxu0 0
    %4128 = vmatprep.subr.bf16.mxu0 0
    %4129 = vmatpush1.bf16.msra.mxu0 0
    %4130 = vmatprep.subr.bf16.mxu0 0
    %4131 = vmatpush1.bf16.msra.mxu0 0
    %4132 = vmatprep.subr.bf16.mxu0 0
    %4133 = vmatpush1.bf16.msra.mxu0 0
    %4134 = vmatprep.subr.bf16.mxu0 0
    %4135 = vmatpush1.bf16.msra.mxu0 0
    %4136 = vmatprep.subr.bf16.mxu0 0
    %4137 = vmatpush1.bf16.msra.mxu0 0
    %4138 = vmatprep.subr.bf16.mxu0 0
    %4139 = vmatpush1.bf16.msra.mxu0 0
    %4140 = vmatprep.subr.bf16.mxu0 0
    %4141 = vmatpush1.bf16.msra.mxu0 0
    %4142 = vmatprep.subr.bf16.mxu0 0
    %4143 = vmatpush1.bf16.msra.mxu0 0
    %4144 = vmatprep.subr.bf16.mxu0 0
    %4145 = vmatpush1.bf16.msra.mxu0 0
    %4146 = vmatprep.mubr.bf16.mxu0 0
    %4147 = vmatmul.mubr.bf16.gmra.mrb[0].mxu0 %v4112
    %v4148 = vpop.f32.mrb[0].mxu0
    %v4149 = vadd.f32 0.0, %v4148
    %v4150 = vpop.f32.mrb[0].mxu0
    %v4151 = vpop.f32.mrb[0].mxu0
    %v4152 = vadd.f32 0.0, %v4151
    %v4153 = vpop.f32.mrb[0].mxu0
    %4154 = vdwg.mxu0
    %v4156 = vsel %vm136, %v4110, 0
    %4158 = vmatprep.subr.bf16.mxu0 0
    %4159 = vmatpush1.bf16.msra.mxu0 %v2798
    %4160 = vmatprep.subr.bf16.mxu0 0
    %4161 = vmatpush1.bf16.msra.mxu0 0
    %4162 = vmatprep.subr.bf16.mxu0 0
    %4163 = vmatpush1.bf16.msra.mxu0 0
    %4164 = vmatprep.subr.bf16.mxu0 0
    %4165 = vmatpush1.bf16.msra.mxu0 0
    %4166 = vmatprep.subr.bf16.mxu0 0
    %4167 = vmatpush1.bf16.msra.mxu0 0
    %4168 = vmatprep.subr.bf16.mxu0 0
    %4169 = vmatpush1.bf16.msra.mxu0 0
    %4170 = vmatprep.subr.bf16.mxu0 0
    %4171 = vmatpush1.bf16.msra.mxu0 0
    %4172 = vmatprep.subr.bf16.mxu0 0
    %4173 = vmatpush1.bf16.msra.mxu0 0
    %4174 = vmatprep.subr.bf16.mxu0 0
    %4175 = vmatpush1.bf16.msra.mxu0 0
    %4176 = vmatprep.subr.bf16.mxu0 0
    %4177 = vmatpush1.bf16.msra.mxu0 0
    %4178 = vmatprep.subr.bf16.mxu0 0
    %4179 = vmatpush1.bf16.msra.mxu0 0
    %4180 = vmatprep.subr.bf16.mxu0 0
    %4181 = vmatpush1.bf16.msra.mxu0 0
    %4182 = vmatprep.subr.bf16.mxu0 0
    %4183 = vmatpush1.bf16.msra.mxu0 0
    %4184 = vmatprep.subr.bf16.mxu0 0
    %4185 = vmatpush1.bf16.msra.mxu0 0
    %4186 = vmatprep.subr.bf16.mxu0 0
    %4187 = vmatpush1.bf16.msra.mxu0 0
    %4188 = vmatprep.subr.bf16.mxu0 0
    %4189 = vmatpush1.bf16.msra.mxu0 0
    %4190 = vmatprep.mubr.bf16.mxu0 0
    %4191 = vmatmul.mubr.bf16.gmra.mrb[0].mxu0 %v4156
    %v4192 = vpop.f32.mrb[0].mxu0
    %v4193 = vadd.f32 0.0, %v4192
    %v4194 = vpop.f32.mrb[0].mxu0
    %v4195 = vpop.f32.mrb[0].mxu0
    %v4196 = vadd.f32 0.0, %v4195
    %v4197 = vpop.f32.mrb[0].mxu0
    %4198 = vdwg.mxu0
    %v4199 = vmax.f32 %v4009, %v4149
    %v4200 = vmax.f32 %v4010, %v4152
    %v4201 = vmax.f32 %v4011, %v4193
    %v4202 = vmax.f32 %v4012, %v4196
    %v4203 = vsel %vm4097, -1e+30, %v4013
    %v4204 = vsel %vm4098, -1e+30, %v4014
    %v4205 = vsel %vm4099, -1e+30, %v4015
    %v4206 = vsel %vm4100, -1e+30, %v4016
    %v4207 = vsel %vm136, %v4203, -inf
    %4208 = vmax.xlane.f32.xlu0 %v4207
    %v4209 = vpop.xlane.xlu0 %4208
    %v4210 = vsel %vm136, %v4204, -inf
    %4211 = vmax.xlane.f32.xlu0 %v4210
    %v4212 = vpop.xlane.xlu0 %4211
    %v4213 = vsel %vm136, %v4205, -inf
    %4214 = vmax.xlane.f32.xlu0 %v4213
    %v4215 = vpop.xlane.xlu0 %4214
    %v4216 = vsel %vm136, %v4206, -inf
    %4217 = vmax.xlane.f32.xlu0 %v4216
    %v4218 = vpop.xlane.xlu0 %4217
    %vm4219 = vcmp.eq.f32.partialorder %v4203, %v4209
    %vm4220 = vcmp.eq.f32.partialorder %v4204, %v4212
    %vm4221 = vcmp.eq.f32.partialorder %v4205, %v4215
    %vm4222 = vcmp.eq.f32.partialorder %v4206, %v4218
    %v4223 = vsel %vm4219, %v448, 16
    %v4224 = vsel %vm4220, %v448, 16
    %v4225 = vsel %vm4221, %v448, 16
    %v4226 = vsel %vm4222, %v448, 16
    %v4227 = vsel %vm136, %v4223, 2147483647
    %v4228 = vand.u32 %v4227, 65535
    %v4229 = vshra.s32 %v4227, 16
    %v4230 = vcvt.s32.f32 %v4228
    %v4231 = vcvt.s32.f32 %v4229
    %4232 = vmin.xlane.f32.xlu0 %v4231
    %v4233 = vpop.xlane.xlu0 %4232
    %vm4234 = vcmp.eq.f32.partialorder %v4231, %v4233
    %v4235 = vsel %vm4234, %v4230, inf
    %4236 = vmin.xlane.f32.xlu0 %v4235
    %v4237 = vpop.xlane.xlu0 %4236
    %v4238 = vcvt.f32.s32 %v4237
    %v4239 = vcvt.f32.s32 %v4233
    %v4240 = vshll.u32 %v4239, 16
    %v4241 = vadd.s32 %v4240, %v4238
    %v4242 = vsel %vm136, %v4224, 2147483647
    %v4243 = vand.u32 %v4242, 65535
    %v4244 = vshra.s32 %v4242, 16
    %v4245 = vcvt.s32.f32 %v4243
    %v4246 = vcvt.s32.f32 %v4244
    %4247 = vmin.xlane.f32.xlu0 %v4246
    %v4248 = vpop.xlane.xlu0 %4247
    %vm4249 = vcmp.eq.f32.partialorder %v4246, %v4248
    %v4250 = vsel %vm4249, %v4245, inf
    %4251 = vmin.xlane.f32.xlu0 %v4250
    %v4252 = vpop.xlane.xlu0 %4251
    %v4253 = vcvt.f32.s32 %v4252
    %v4254 = vcvt.f32.s32 %v4248
    %v4255 = vshll.u32 %v4254, 16
    %v4256 = vadd.s32 %v4255, %v4253
    %v4257 = vsel %vm136, %v4225, 2147483647
    %v4258 = vand.u32 %v4257, 65535
    %v4259 = vshra.s32 %v4257, 16
    %v4260 = vcvt.s32.f32 %v4258
    %v4261 = vcvt.s32.f32 %v4259
    %4262 = vmin.xlane.f32.xlu0 %v4261
    %v4263 = vpop.xlane.xlu0 %4262
    %vm4264 = vcmp.eq.f32.partialorder %v4261, %v4263
    %v4265 = vsel %vm4264, %v4260, inf
    %4266 = vmin.xlane.f32.xlu0 %v4265
    %v4267 = vpop.xlane.xlu0 %4266
    %v4268 = vcvt.f32.s32 %v4267
    %v4269 = vcvt.f32.s32 %v4263
    %v4270 = vshll.u32 %v4269, 16
    %v4271 = vadd.s32 %v4270, %v4268
    %v4272 = vsel %vm136, %v4226, 2147483647
    %v4273 = vand.u32 %v4272, 65535
    %v4274 = vshra.s32 %v4272, 16
    %v4275 = vcvt.s32.f32 %v4273
    %v4276 = vcvt.s32.f32 %v4274
    %4277 = vmin.xlane.f32.xlu0 %v4276
    %v4278 = vpop.xlane.xlu0 %4277
    %vm4279 = vcmp.eq.f32.partialorder %v4276, %v4278
    %v4280 = vsel %vm4279, %v4275, inf
    %4281 = vmin.xlane.f32.xlu0 %v4280
    %v4282 = vpop.xlane.xlu0 %4281
    %v4283 = vcvt.f32.s32 %v4282
    %v4284 = vcvt.f32.s32 %v4278
    %v4285 = vshll.u32 %v4284, 16
    %v4286 = vadd.s32 %v4285, %v4283
    %vm4287 = vcmp.eq.s32.totalorder %v448, %v4241
    %vm4288 = vcmp.eq.s32.totalorder %v448, %v4256
    %vm4289 = vcmp.eq.s32.totalorder %v448, %v4271
    %vm4290 = vcmp.eq.s32.totalorder %v448, %v4286
    %v4291 = vsel %vm4287, 1, 0
    %v4292 = vsel %vm4288, 1, 0
    %v4293 = vsel %vm4289, 1, 0
    %v4294 = vsel %vm4290, 1, 0
    %v4295 = vcvt.s32.f32 %v4291
    %v4296 = vcvt.s32.f32 %v4292
    %v4297 = vcvt.s32.f32 %v4293
    %v4298 = vcvt.s32.f32 %v4294
    %v4299 = vpack.c.bf16 %v4296, %v4295
    %v4300 = vpack.c.bf16 %v4298, %v4297
    %v4302 = vsel %vm136, %v4299, 0
    %4304 = vmatprep.subr.bf16.mxu0 0
    %4305 = vmatpush1.bf16.msra.mxu0 %v2797
    %4306 = vmatprep.subr.bf16.mxu0 0
    %4307 = vmatpush1.bf16.msra.mxu0 0
    %4308 = vmatprep.subr.bf16.mxu0 0
    %4309 = vmatpush1.bf16.msra.mxu0 0
    %4310 = vmatprep.subr.bf16.mxu0 0
    %4311 = vmatpush1.bf16.msra.mxu0 0
    %4312 = vmatprep.subr.bf16.mxu0 0
    %4313 = vmatpush1.bf16.msra.mxu0 0
    %4314 = vmatprep.subr.bf16.mxu0 0
    %4315 = vmatpush1.bf16.msra.mxu0 0
    %4316 = vmatprep.subr.bf16.mxu0 0
    %4317 = vmatpush1.bf16.msra.mxu0 0
    %4318 = vmatprep.subr.bf16.mxu0 0
    %4319 = vmatpush1.bf16.msra.mxu0 0
    %4320 = vmatprep.subr.bf16.mxu0 0
    %4321 = vmatpush1.bf16.msra.mxu0 0
    %4322 = vmatprep.subr.bf16.mxu0 0
    %4323 = vmatpush1.bf16.msra.mxu0 0
    %4324 = vmatprep.subr.bf16.mxu0 0
    %4325 = vmatpush1.bf16.msra.mxu0 0
    %4326 = vmatprep.subr.bf16.mxu0 0
    %4327 = vmatpush1.bf16.msra.mxu0 0
    %4328 = vmatprep.subr.bf16.mxu0 0
    %4329 = vmatpush1.bf16.msra.mxu0 0
    %4330 = vmatprep.subr.bf16.mxu0 0
    %4331 = vmatpush1.bf16.msra.mxu0 0
    %4332 = vmatprep.subr.bf16.mxu0 0
    %4333 = vmatpush1.bf16.msra.mxu0 0
    %4334 = vmatprep.subr.bf16.mxu0 0
    %4335 = vmatpush1.bf16.msra.mxu0 0
    %4336 = vmatprep.mubr.bf16.mxu0 0
    %4337 = vmatmul.mubr.bf16.gmra.mrb[0].mxu0 %v4302
    %v4338 = vpop.f32.mrb[0].mxu0
    %v4339 = vadd.f32 0.0, %v4338
    %v4340 = vpop.f32.mrb[0].mxu0
    %v4341 = vpop.f32.mrb[0].mxu0
    %v4342 = vadd.f32 0.0, %v4341
    %v4343 = vpop.f32.mrb[0].mxu0
    %4344 = vdwg.mxu0
    %v4346 = vsel %vm136, %v4300, 0
    %4348 = vmatprep.subr.bf16.mxu0 0
    %4349 = vmatpush1.bf16.msra.mxu0 %v2798
    %4350 = vmatprep.subr.bf16.mxu0 0
    %4351 = vmatpush1.bf16.msra.mxu0 0
    %4352 = vmatprep.subr.bf16.mxu0 0
    %4353 = vmatpush1.bf16.msra.mxu0 0
    %4354 = vmatprep.subr.bf16.mxu0 0
    %4355 = vmatpush1.bf16.msra.mxu0 0
    %4356 = vmatprep.subr.bf16.mxu0 0
    %4357 = vmatpush1.bf16.msra.mxu0 0
    %4358 = vmatprep.subr.bf16.mxu0 0
    %4359 = vmatpush1.bf16.msra.mxu0 0
    %4360 = vmatprep.subr.bf16.mxu0 0
    %4361 = vmatpush1.bf16.msra.mxu0 0
    %4362 = vmatprep.subr.bf16.mxu0 0
    %4363 = vmatpush1.bf16.msra.mxu0 0
    %4364 = vmatprep.subr.bf16.mxu0 0
    %4365 = vmatpush1.bf16.msra.mxu0 0
    %4366 = vmatprep.subr.bf16.mxu0 0
    %4367 = vmatpush1.bf16.msra.mxu0 0
    %4368 = vmatprep.subr.bf16.mxu0 0
    %4369 = vmatpush1.bf16.msra.mxu0 0
    %4370 = vmatprep.subr.bf16.mxu0 0
    %4371 = vmatpush1.bf16.msra.mxu0 0
    %4372 = vmatprep.subr.bf16.mxu0 0
    %4373 = vmatpush1.bf16.msra.mxu0 0
    %4374 = vmatprep.subr.bf16.mxu0 0
    %4375 = vmatpush1.bf16.msra.mxu0 0
    %4376 = vmatprep.subr.bf16.mxu0 0
    %4377 = vmatpush1.bf16.msra.mxu0 0
    %4378 = vmatprep.subr.bf16.mxu0 0
    %4379 = vmatpush1.bf16.msra.mxu0 0
    %4380 = vmatprep.mubr.bf16.mxu0 0
    %4381 = vmatmul.mubr.bf16.gmra.mrb[0].mxu0 %v4346
    %v4382 = vpop.f32.mrb[0].mxu0
    %v4383 = vadd.f32 0.0, %v4382
    %v4384 = vpop.f32.mrb[0].mxu0
    %v4385 = vpop.f32.mrb[0].mxu0
    %v4386 = vadd.f32 0.0, %v4385
    %v4387 = vpop.f32.mrb[0].mxu0
    %4388 = vdwg.mxu0
    %v4389 = vmax.f32 %v4199, %v4339
    %v4390 = vmax.f32 %v4200, %v4342
    %v4391 = vmax.f32 %v4201, %v4383
    %v4392 = vmax.f32 %v4202, %v4386
    %v4393 = vsel %vm4287, -1e+30, %v4203
    %v4394 = vsel %vm4288, -1e+30, %v4204
    %v4395 = vsel %vm4289, -1e+30, %v4205
    %v4396 = vsel %vm4290, -1e+30, %v4206
    %v4397 = vsel %vm136, %v4393, -inf
    %4398 = vmax.xlane.f32.xlu0 %v4397
    %v4399 = vpop.xlane.xlu0 %4398
    %v4400 = vsel %vm136, %v4394, -inf
    %4401 = vmax.xlane.f32.xlu0 %v4400
    %v4402 = vpop.xlane.xlu0 %4401
    %v4403 = vsel %vm136, %v4395, -inf
    %4404 = vmax.xlane.f32.xlu0 %v4403
    %v4405 = vpop.xlane.xlu0 %4404
    %v4406 = vsel %vm136, %v4396, -inf
    %4407 = vmax.xlane.f32.xlu0 %v4406
    %v4408 = vpop.xlane.xlu0 %4407
    %vm4409 = vcmp.eq.f32.partialorder %v4393, %v4399
    %vm4410 = vcmp.eq.f32.partialorder %v4394, %v4402
    %vm4411 = vcmp.eq.f32.partialorder %v4395, %v4405
    %vm4412 = vcmp.eq.f32.partialorder %v4396, %v4408
    %v4413 = vsel %vm4409, %v448, 16
    %v4414 = vsel %vm4410, %v448, 16
    %v4415 = vsel %vm4411, %v448, 16
    %v4416 = vsel %vm4412, %v448, 16
    %v4417 = vsel %vm136, %v4413, 2147483647
    %v4418 = vand.u32 %v4417, 65535
    %v4419 = vshra.s32 %v4417, 16
    %v4420 = vcvt.s32.f32 %v4418
    %v4421 = vcvt.s32.f32 %v4419
    %4422 = vmin.xlane.f32.xlu0 %v4421
    %v4423 = vpop.xlane.xlu0 %4422
    %vm4424 = vcmp.eq.f32.partialorder %v4421, %v4423
    %v4425 = vsel %vm4424, %v4420, inf
    %4426 = vmin.xlane.f32.xlu0 %v4425
    %v4427 = vpop.xlane.xlu0 %4426
    %v4428 = vcvt.f32.s32 %v4427
    %v4429 = vcvt.f32.s32 %v4423
    %v4430 = vshll.u32 %v4429, 16
    %v4431 = vadd.s32 %v4430, %v4428
    %v4432 = vsel %vm136, %v4414, 2147483647
    %v4433 = vand.u32 %v4432, 65535
    %v4434 = vshra.s32 %v4432, 16
    %v4435 = vcvt.s32.f32 %v4433
    %v4436 = vcvt.s32.f32 %v4434
    %4437 = vmin.xlane.f32.xlu0 %v4436
    %v4438 = vpop.xlane.xlu0 %4437
    %vm4439 = vcmp.eq.f32.partialorder %v4436, %v4438
    %v4440 = vsel %vm4439, %v4435, inf
    %4441 = vmin.xlane.f32.xlu0 %v4440
    %v4442 = vpop.xlane.xlu0 %4441
    %v4443 = vcvt.f32.s32 %v4442
    %v4444 = vcvt.f32.s32 %v4438
    %v4445 = vshll.u32 %v4444, 16
    %v4446 = vadd.s32 %v4445, %v4443
    %v4447 = vsel %vm136, %v4415, 2147483647
    %v4448 = vand.u32 %v4447, 65535
    %v4449 = vshra.s32 %v4447, 16
    %v4450 = vcvt.s32.f32 %v4448
    %v4451 = vcvt.s32.f32 %v4449
    %4452 = vmin.xlane.f32.xlu0 %v4451
    %v4453 = vpop.xlane.xlu0 %4452
    %vm4454 = vcmp.eq.f32.partialorder %v4451, %v4453
    %v4455 = vsel %vm4454, %v4450, inf
    %4456 = vmin.xlane.f32.xlu0 %v4455
    %v4457 = vpop.xlane.xlu0 %4456
    %v4458 = vcvt.f32.s32 %v4457
    %v4459 = vcvt.f32.s32 %v4453
    %v4460 = vshll.u32 %v4459, 16
    %v4461 = vadd.s32 %v4460, %v4458
    %v4462 = vsel %vm136, %v4416, 2147483647
    %v4463 = vand.u32 %v4462, 65535
    %v4464 = vshra.s32 %v4462, 16
    %v4465 = vcvt.s32.f32 %v4463
    %v4466 = vcvt.s32.f32 %v4464
    %4467 = vmin.xlane.f32.xlu0 %v4466
    %v4468 = vpop.xlane.xlu0 %4467
    %vm4469 = vcmp.eq.f32.partialorder %v4466, %v4468
    %v4470 = vsel %vm4469, %v4465, inf
    %4471 = vmin.xlane.f32.xlu0 %v4470
    %v4472 = vpop.xlane.xlu0 %4471
    %v4473 = vcvt.f32.s32 %v4472
    %v4474 = vcvt.f32.s32 %v4468
    %v4475 = vshll.u32 %v4474, 16
    %v4476 = vadd.s32 %v4475, %v4473
    %vm4477 = vcmp.eq.s32.totalorder %v448, %v4431
    %vm4478 = vcmp.eq.s32.totalorder %v448, %v4446
    %vm4479 = vcmp.eq.s32.totalorder %v448, %v4461
    %vm4480 = vcmp.eq.s32.totalorder %v448, %v4476
    %v4481 = vsel %vm4477, 1, 0
    %v4482 = vsel %vm4478, 1, 0
    %v4483 = vsel %vm4479, 1, 0
    %v4484 = vsel %vm4480, 1, 0
    %v4485 = vcvt.s32.f32 %v4481
    %v4486 = vcvt.s32.f32 %v4482
    %v4487 = vcvt.s32.f32 %v4483
    %v4488 = vcvt.s32.f32 %v4484
    %v4489 = vpack.c.bf16 %v4486, %v4485
    %v4490 = vpack.c.bf16 %v4488, %v4487
    %v4492 = vsel %vm136, %v4489, 0
    %4494 = vmatprep.subr.bf16.mxu0 0
    %4495 = vmatpush1.bf16.msra.mxu0 %v2797
    %4496 = vmatprep.subr.bf16.mxu0 0
    %4497 = vmatpush1.bf16.msra.mxu0 0
    %4498 = vmatprep.subr.bf16.mxu0 0
    %4499 = vmatpush1.bf16.msra.mxu0 0
    %4500 = vmatprep.subr.bf16.mxu0 0
    %4501 = vmatpush1.bf16.msra.mxu0 0
    %4502 = vmatprep.subr.bf16.mxu0 0
    %4503 = vmatpush1.bf16.msra.mxu0 0
    %4504 = vmatprep.subr.bf16.mxu0 0
    %4505 = vmatpush1.bf16.msra.mxu0 0
    %4506 = vmatprep.subr.bf16.mxu0 0
    %4507 = vmatpush1.bf16.msra.mxu0 0
    %4508 = vmatprep.subr.bf16.mxu0 0
    %4509 = vmatpush1.bf16.msra.mxu0 0
    %4510 = vmatprep.subr.bf16.mxu0 0
    %4511 = vmatpush1.bf16.msra.mxu0 0
    %4512 = vmatprep.subr.bf16.mxu0 0
    %4513 = vmatpush1.bf16.msra.mxu0 0
    %4514 = vmatprep.subr.bf16.mxu0 0
    %4515 = vmatpush1.bf16.msra.mxu0 0
    %4516 = vmatprep.subr.bf16.mxu0 0
    %4517 = vmatpush1.bf16.msra.mxu0 0
    %4518 = vmatprep.subr.bf16.mxu0 0
    %4519 = vmatpush1.bf16.msra.mxu0 0
    %4520 = vmatprep.subr.bf16.mxu0 0
    %4521 = vmatpush1.bf16.msra.mxu0 0
    %4522 = vmatprep.subr.bf16.mxu0 0
    %4523 = vmatpush1.bf16.msra.mxu0 0
    %4524 = vmatprep.subr.bf16.mxu0 0
    %4525 = vmatpush1.bf16.msra.mxu0 0
    %4526 = vmatprep.mubr.bf16.mxu0 0
    %4527 = vmatmul.mubr.bf16.gmra.mrb[0].mxu0 %v4492
    %v4528 = vpop.f32.mrb[0].mxu0
    %v4529 = vadd.f32 0.0, %v4528
    %v4530 = vpop.f32.mrb[0].mxu0
    %v4531 = vpop.f32.mrb[0].mxu0
    %v4532 = vadd.f32 0.0, %v4531
    %v4533 = vpop.f32.mrb[0].mxu0
    %4534 = vdwg.mxu0
    %v4536 = vsel %vm136, %v4490, 0
    %4538 = vmatprep.subr.bf16.mxu0 0
    %4539 = vmatpush1.bf16.msra.mxu0 %v2798
    %4540 = vmatprep.subr.bf16.mxu0 0
    %4541 = vmatpush1.bf16.msra.mxu0 0
    %4542 = vmatprep.subr.bf16.mxu0 0
    %4543 = vmatpush1.bf16.msra.mxu0 0
    %4544 = vmatprep.subr.bf16.mxu0 0
    %4545 = vmatpush1.bf16.msra.mxu0 0
    %4546 = vmatprep.subr.bf16.mxu0 0
    %4547 = vmatpush1.bf16.msra.mxu0 0
    %4548 = vmatprep.subr.bf16.mxu0 0
    %4549 = vmatpush1.bf16.msra.mxu0 0
    %4550 = vmatprep.subr.bf16.mxu0 0
    %4551 = vmatpush1.bf16.msra.mxu0 0
    %4552 = vmatprep.subr.bf16.mxu0 0
    %4553 = vmatpush1.bf16.msra.mxu0 0
    %4554 = vmatprep.subr.bf16.mxu0 0
    %4555 = vmatpush1.bf16.msra.mxu0 0
    %4556 = vmatprep.subr.bf16.mxu0 0
    %4557 = vmatpush1.bf16.msra.mxu0 0
    %4558 = vmatprep.subr.bf16.mxu0 0
    %4559 = vmatpush1.bf16.msra.mxu0 0
    %4560 = vmatprep.subr.bf16.mxu0 0
    %4561 = vmatpush1.bf16.msra.mxu0 0
    %4562 = vmatprep.subr.bf16.mxu0 0
    %4563 = vmatpush1.bf16.msra.mxu0 0
    %4564 = vmatprep.subr.bf16.mxu0 0
    %4565 = vmatpush1.bf16.msra.mxu0 0
    %4566 = vmatprep.subr.bf16.mxu0 0
    %4567 = vmatpush1.bf16.msra.mxu0 0
    %4568 = vmatprep.subr.bf16.mxu0 0
    %4569 = vmatpush1.bf16.msra.mxu0 0
    %4570 = vmatprep.mubr.bf16.mxu0 0
    %4571 = vmatmul.mubr.bf16.gmra.mrb[0].mxu0 %v4536
    %v4572 = vpop.f32.mrb[0].mxu0
    %v4573 = vadd.f32 0.0, %v4572
    %v4574 = vpop.f32.mrb[0].mxu0
    %v4575 = vpop.f32.mrb[0].mxu0
    %v4576 = vadd.f32 0.0, %v4575
    %v4577 = vpop.f32.mrb[0].mxu0
    %4578 = vdwg.mxu0
    %v4579 = vmax.f32 %v4389, %v4529
    %v4580 = vmax.f32 %v4390, %v4532
    %v4581 = vmax.f32 %v4391, %v4573
    %v4582 = vmax.f32 %v4392, %v4576
    %v4583 = vsel %vm4477, -1e+30, %v4393
    %v4584 = vsel %vm4478, -1e+30, %v4394
    %v4585 = vsel %vm4479, -1e+30, %v4395
    %v4586 = vsel %vm4480, -1e+30, %v4396
    %v4587 = vsel %vm136, %v4583, -inf
    %4588 = vmax.xlane.f32.xlu0 %v4587
    %v4589 = vpop.xlane.xlu0 %4588
    %v4590 = vsel %vm136, %v4584, -inf
    %4591 = vmax.xlane.f32.xlu0 %v4590
    %v4592 = vpop.xlane.xlu0 %4591
    %v4593 = vsel %vm136, %v4585, -inf
    %4594 = vmax.xlane.f32.xlu0 %v4593
    %v4595 = vpop.xlane.xlu0 %4594
    %v4596 = vsel %vm136, %v4586, -inf
    %4597 = vmax.xlane.f32.xlu0 %v4596
    %v4598 = vpop.xlane.xlu0 %4597
    %vm4599 = vcmp.eq.f32.partialorder %v4583, %v4589
    %vm4600 = vcmp.eq.f32.partialorder %v4584, %v4592
    %vm4601 = vcmp.eq.f32.partialorder %v4585, %v4595
    %vm4602 = vcmp.eq.f32.partialorder %v4586, %v4598
    %v4603 = vsel %vm4599, %v448, 16
    %v4604 = vsel %vm4600, %v448, 16
    %v4605 = vsel %vm4601, %v448, 16
    %v4606 = vsel %vm4602, %v448, 16
    %v4607 = vsel %vm136, %v4603, 2147483647
    %v4608 = vand.u32 %v4607, 65535
    %v4609 = vshra.s32 %v4607, 16
    %v4610 = vcvt.s32.f32 %v4608
    %v4611 = vcvt.s32.f32 %v4609
    %4612 = vmin.xlane.f32.xlu0 %v4611
    %v4613 = vpop.xlane.xlu0 %4612
    %vm4614 = vcmp.eq.f32.partialorder %v4611, %v4613
    %v4615 = vsel %vm4614, %v4610, inf
    %4616 = vmin.xlane.f32.xlu0 %v4615
    %v4617 = vpop.xlane.xlu0 %4616
    %v4618 = vcvt.f32.s32 %v4617
    %v4619 = vcvt.f32.s32 %v4613
    %v4620 = vshll.u32 %v4619, 16
    %v4621 = vadd.s32 %v4620, %v4618
    %v4622 = vsel %vm136, %v4604, 2147483647
    %v4623 = vand.u32 %v4622, 65535
    %v4624 = vshra.s32 %v4622, 16
    %v4625 = vcvt.s32.f32 %v4623
    %v4626 = vcvt.s32.f32 %v4624
    %4627 = vmin.xlane.f32.xlu0 %v4626
    %v4628 = vpop.xlane.xlu0 %4627
    %vm4629 = vcmp.eq.f32.partialorder %v4626, %v4628
    %v4630 = vsel %vm4629, %v4625, inf
    %4631 = vmin.xlane.f32.xlu0 %v4630
    %v4632 = vpop.xlane.xlu0 %4631
    %v4633 = vcvt.f32.s32 %v4632
    %v4634 = vcvt.f32.s32 %v4628
    %v4635 = vshll.u32 %v4634, 16
    %v4636 = vadd.s32 %v4635, %v4633
    %v4637 = vsel %vm136, %v4605, 2147483647
    %v4638 = vand.u32 %v4637, 65535
    %v4639 = vshra.s32 %v4637, 16
    %v4640 = vcvt.s32.f32 %v4638
    %v4641 = vcvt.s32.f32 %v4639
    %4642 = vmin.xlane.f32.xlu0 %v4641
    %v4643 = vpop.xlane.xlu0 %4642
    %vm4644 = vcmp.eq.f32.partialorder %v4641, %v4643
    %v4645 = vsel %vm4644, %v4640, inf
    %4646 = vmin.xlane.f32.xlu0 %v4645
    %v4647 = vpop.xlane.xlu0 %4646
    %v4648 = vcvt.f32.s32 %v4647
    %v4649 = vcvt.f32.s32 %v4643
    %v4650 = vshll.u32 %v4649, 16
    %v4651 = vadd.s32 %v4650, %v4648
    %v4652 = vsel %vm136, %v4606, 2147483647
    %v4653 = vand.u32 %v4652, 65535
    %v4654 = vshra.s32 %v4652, 16
    %v4655 = vcvt.s32.f32 %v4653
    %v4656 = vcvt.s32.f32 %v4654
    %4657 = vmin.xlane.f32.xlu0 %v4656
    %v4658 = vpop.xlane.xlu0 %4657
    %vm4659 = vcmp.eq.f32.partialorder %v4656, %v4658
    %v4660 = vsel %vm4659, %v4655, inf
    %4661 = vmin.xlane.f32.xlu0 %v4660
    %v4662 = vpop.xlane.xlu0 %4661
    %v4663 = vcvt.f32.s32 %v4662
    %v4664 = vcvt.f32.s32 %v4658
    %v4665 = vshll.u32 %v4664, 16
    %v4666 = vadd.s32 %v4665, %v4663
    %vm4667 = vcmp.eq.s32.totalorder %v448, %v4621
    %vm4668 = vcmp.eq.s32.totalorder %v448, %v4636
    %vm4669 = vcmp.eq.s32.totalorder %v448, %v4651
    %vm4670 = vcmp.eq.s32.totalorder %v448, %v4666
    %v4671 = vsel %vm4667, 1, 0
    %v4672 = vsel %vm4668, 1, 0
    %v4673 = vsel %vm4669, 1, 0
    %v4674 = vsel %vm4670, 1, 0
    %v4675 = vcvt.s32.f32 %v4671
    %v4676 = vcvt.s32.f32 %v4672
    %v4677 = vcvt.s32.f32 %v4673
    %v4678 = vcvt.s32.f32 %v4674
    %v4679 = vpack.c.bf16 %v4676, %v4675
    %v4680 = vpack.c.bf16 %v4678, %v4677
    %v4682 = vsel %vm136, %v4679, 0
    %4684 = vmatprep.subr.bf16.mxu0 0
    %4685 = vmatpush1.bf16.msra.mxu0 %v2797
    %4686 = vmatprep.subr.bf16.mxu0 0
    %4687 = vmatpush1.bf16.msra.mxu0 0
    %4688 = vmatprep.subr.bf16.mxu0 0
    %4689 = vmatpush1.bf16.msra.mxu0 0
    %4690 = vmatprep.subr.bf16.mxu0 0
    %4691 = vmatpush1.bf16.msra.mxu0 0
    %4692 = vmatprep.subr.bf16.mxu0 0
    %4693 = vmatpush1.bf16.msra.mxu0 0
    %4694 = vmatprep.subr.bf16.mxu0 0
    %4695 = vmatpush1.bf16.msra.mxu0 0
    %4696 = vmatprep.subr.bf16.mxu0 0
    %4697 = vmatpush1.bf16.msra.mxu0 0
    %4698 = vmatprep.subr.bf16.mxu0 0
    %4699 = vmatpush1.bf16.msra.mxu0 0
    %4700 = vmatprep.subr.bf16.mxu0 0
    %4701 = vmatpush1.bf16.msra.mxu0 0
    %4702 = vmatprep.subr.bf16.mxu0 0
    %4703 = vmatpush1.bf16.msra.mxu0 0
    %4704 = vmatprep.subr.bf16.mxu0 0
    %4705 = vmatpush1.bf16.msra.mxu0 0
    %4706 = vmatprep.subr.bf16.mxu0 0
    %4707 = vmatpush1.bf16.msra.mxu0 0
    %4708 = vmatprep.subr.bf16.mxu0 0
    %4709 = vmatpush1.bf16.msra.mxu0 0
    %4710 = vmatprep.subr.bf16.mxu0 0
    %4711 = vmatpush1.bf16.msra.mxu0 0
    %4712 = vmatprep.subr.bf16.mxu0 0
    %4713 = vmatpush1.bf16.msra.mxu0 0
    %4714 = vmatprep.subr.bf16.mxu0 0
    %4715 = vmatpush1.bf16.msra.mxu0 0
    %4716 = vmatprep.mubr.bf16.mxu0 0
    %4717 = vmatmul.mubr.bf16.gmra.mrb[0].mxu0 %v4682
    %v4718 = vpop.f32.mrb[0].mxu0
    %v4719 = vadd.f32 0.0, %v4718
    %v4720 = vpop.f32.mrb[0].mxu0
    %v4721 = vpop.f32.mrb[0].mxu0
    %v4722 = vadd.f32 0.0, %v4721
    %v4723 = vpop.f32.mrb[0].mxu0
    %4724 = vdwg.mxu0
    %v4726 = vsel %vm136, %v4680, 0
    %4728 = vmatprep.subr.bf16.mxu0 0
    %4729 = vmatpush1.bf16.msra.mxu0 %v2798
    %4730 = vmatprep.subr.bf16.mxu0 0
    %4731 = vmatpush1.bf16.msra.mxu0 0
    %4732 = vmatprep.subr.bf16.mxu0 0
    %4733 = vmatpush1.bf16.msra.mxu0 0
    %4734 = vmatprep.subr.bf16.mxu0 0
    %4735 = vmatpush1.bf16.msra.mxu0 0
    %4736 = vmatprep.subr.bf16.mxu0 0
    %4737 = vmatpush1.bf16.msra.mxu0 0
    %4738 = vmatprep.subr.bf16.mxu0 0
    %4739 = vmatpush1.bf16.msra.mxu0 0
    %4740 = vmatprep.subr.bf16.mxu0 0
    %4741 = vmatpush1.bf16.msra.mxu0 0
    %4742 = vmatprep.subr.bf16.mxu0 0
    %4743 = vmatpush1.bf16.msra.mxu0 0
    %4744 = vmatprep.subr.bf16.mxu0 0
    %4745 = vmatpush1.bf16.msra.mxu0 0
    %4746 = vmatprep.subr.bf16.mxu0 0
    %4747 = vmatpush1.bf16.msra.mxu0 0
    %4748 = vmatprep.subr.bf16.mxu0 0
    %4749 = vmatpush1.bf16.msra.mxu0 0
    %4750 = vmatprep.subr.bf16.mxu0 0
    %4751 = vmatpush1.bf16.msra.mxu0 0
    %4752 = vmatprep.subr.bf16.mxu0 0
    %4753 = vmatpush1.bf16.msra.mxu0 0
    %4754 = vmatprep.subr.bf16.mxu0 0
    %4755 = vmatpush1.bf16.msra.mxu0 0
    %4756 = vmatprep.subr.bf16.mxu0 0
    %4757 = vmatpush1.bf16.msra.mxu0 0
    %4758 = vmatprep.subr.bf16.mxu0 0
    %4759 = vmatpush1.bf16.msra.mxu0 0
    %4760 = vmatprep.mubr.bf16.mxu0 0
    %4761 = vmatmul.mubr.bf16.gmra.mrb[0].mxu0 %v4726
    %v4762 = vpop.f32.mrb[0].mxu0
    %v4763 = vadd.f32 0.0, %v4762
    %v4764 = vpop.f32.mrb[0].mxu0
    %v4765 = vpop.f32.mrb[0].mxu0
    %v4766 = vadd.f32 0.0, %v4765
    %v4767 = vpop.f32.mrb[0].mxu0
    %4768 = vdwg.mxu0
    %v4769 = vmax.f32 %v4579, %v4719
    %v4770 = vmax.f32 %v4580, %v4722
    %v4771 = vmax.f32 %v4581, %v4763
    %v4772 = vmax.f32 %v4582, %v4766
    %v4773 = vsel %vm4667, -1e+30, %v4583
    %v4774 = vsel %vm4668, -1e+30, %v4584
    %v4775 = vsel %vm4669, -1e+30, %v4585
    %v4776 = vsel %vm4670, -1e+30, %v4586
    %v4777 = vsel %vm136, %v4773, -inf
    %4778 = vmax.xlane.f32.xlu0 %v4777
    %v4779 = vpop.xlane.xlu0 %4778
    %v4780 = vsel %vm136, %v4774, -inf
    %4781 = vmax.xlane.f32.xlu0 %v4780
    %v4782 = vpop.xlane.xlu0 %4781
    %v4783 = vsel %vm136, %v4775, -inf
    %4784 = vmax.xlane.f32.xlu0 %v4783
    %v4785 = vpop.xlane.xlu0 %4784
    %v4786 = vsel %vm136, %v4776, -inf
    %4787 = vmax.xlane.f32.xlu0 %v4786
    %v4788 = vpop.xlane.xlu0 %4787
    %vm4789 = vcmp.eq.f32.partialorder %v4773, %v4779
    %vm4790 = vcmp.eq.f32.partialorder %v4774, %v4782
    %vm4791 = vcmp.eq.f32.partialorder %v4775, %v4785
    %vm4792 = vcmp.eq.f32.partialorder %v4776, %v4788
    %v4793 = vsel %vm4789, %v448, 16
    %v4794 = vsel %vm4790, %v448, 16
    %v4795 = vsel %vm4791, %v448, 16
    %v4796 = vsel %vm4792, %v448, 16
    %v4797 = vsel %vm136, %v4793, 2147483647
    %v4798 = vand.u32 %v4797, 65535
    %v4799 = vshra.s32 %v4797, 16
    %v4800 = vcvt.s32.f32 %v4798
    %v4801 = vcvt.s32.f32 %v4799
    %4802 = vmin.xlane.f32.xlu0 %v4801
    %v4803 = vpop.xlane.xlu0 %4802
    %vm4804 = vcmp.eq.f32.partialorder %v4801, %v4803
    %v4805 = vsel %vm4804, %v4800, inf
    %4806 = vmin.xlane.f32.xlu0 %v4805
    %v4807 = vpop.xlane.xlu0 %4806
    %v4808 = vcvt.f32.s32 %v4807
    %v4809 = vcvt.f32.s32 %v4803
    %v4810 = vshll.u32 %v4809, 16
    %v4811 = vadd.s32 %v4810, %v4808
    %v4812 = vsel %vm136, %v4794, 2147483647
    %v4813 = vand.u32 %v4812, 65535
    %v4814 = vshra.s32 %v4812, 16
    %v4815 = vcvt.s32.f32 %v4813
    %v4816 = vcvt.s32.f32 %v4814
    %4817 = vmin.xlane.f32.xlu0 %v4816
    %v4818 = vpop.xlane.xlu0 %4817
    %vm4819 = vcmp.eq.f32.partialorder %v4816, %v4818
    %v4820 = vsel %vm4819, %v4815, inf
    %4821 = vmin.xlane.f32.xlu0 %v4820
    %v4822 = vpop.xlane.xlu0 %4821
    %v4823 = vcvt.f32.s32 %v4822
    %v4824 = vcvt.f32.s32 %v4818
    %v4825 = vshll.u32 %v4824, 16
    %v4826 = vadd.s32 %v4825, %v4823
    %v4827 = vsel %vm136, %v4795, 2147483647
    %v4828 = vand.u32 %v4827, 65535
    %v4829 = vshra.s32 %v4827, 16
    %v4830 = vcvt.s32.f32 %v4828
    %v4831 = vcvt.s32.f32 %v4829
    %4832 = vmin.xlane.f32.xlu0 %v4831
    %v4833 = vpop.xlane.xlu0 %4832
    %vm4834 = vcmp.eq.f32.partialorder %v4831, %v4833
    %v4835 = vsel %vm4834, %v4830, inf
    %4836 = vmin.xlane.f32.xlu0 %v4835
    %v4837 = vpop.xlane.xlu0 %4836
    %v4838 = vcvt.f32.s32 %v4837
    %v4839 = vcvt.f32.s32 %v4833
    %v4840 = vshll.u32 %v4839, 16
    %v4841 = vadd.s32 %v4840, %v4838
    %v4842 = vsel %vm136, %v4796, 2147483647
    %v4843 = vand.u32 %v4842, 65535
    %v4844 = vshra.s32 %v4842, 16
    %v4845 = vcvt.s32.f32 %v4843
    %v4846 = vcvt.s32.f32 %v4844
    %4847 = vmin.xlane.f32.xlu0 %v4846
    %v4848 = vpop.xlane.xlu0 %4847
    %vm4849 = vcmp.eq.f32.partialorder %v4846, %v4848
    %v4850 = vsel %vm4849, %v4845, inf
    %4851 = vmin.xlane.f32.xlu0 %v4850
    %v4852 = vpop.xlane.xlu0 %4851
    %v4853 = vcvt.f32.s32 %v4852
    %v4854 = vcvt.f32.s32 %v4848
    %v4855 = vshll.u32 %v4854, 16
    %v4856 = vadd.s32 %v4855, %v4853
    %vm4857 = vcmp.eq.s32.totalorder %v448, %v4811
    %vm4858 = vcmp.eq.s32.totalorder %v448, %v4826
    %vm4859 = vcmp.eq.s32.totalorder %v448, %v4841
    %vm4860 = vcmp.eq.s32.totalorder %v448, %v4856
    %v4861 = vsel %vm4857, 1, 0
    %v4862 = vsel %vm4858, 1, 0
    %v4863 = vsel %vm4859, 1, 0
    %v4864 = vsel %vm4860, 1, 0
    %v4865 = vcvt.s32.f32 %v4861
    %v4866 = vcvt.s32.f32 %v4862
    %v4867 = vcvt.s32.f32 %v4863
    %v4868 = vcvt.s32.f32 %v4864
    %v4869 = vpack.c.bf16 %v4866, %v4865
    %v4870 = vpack.c.bf16 %v4868, %v4867
    %v4872 = vsel %vm136, %v4869, 0
    %4874 = vmatprep.subr.bf16.mxu0 0
    %4875 = vmatpush1.bf16.msra.mxu0 %v2797
    %4876 = vmatprep.subr.bf16.mxu0 0
    %4877 = vmatpush1.bf16.msra.mxu0 0
    %4878 = vmatprep.subr.bf16.mxu0 0
    %4879 = vmatpush1.bf16.msra.mxu0 0
    %4880 = vmatprep.subr.bf16.mxu0 0
    %4881 = vmatpush1.bf16.msra.mxu0 0
    %4882 = vmatprep.subr.bf16.mxu0 0
    %4883 = vmatpush1.bf16.msra.mxu0 0
    %4884 = vmatprep.subr.bf16.mxu0 0
    %4885 = vmatpush1.bf16.msra.mxu0 0
    %4886 = vmatprep.subr.bf16.mxu0 0
    %4887 = vmatpush1.bf16.msra.mxu0 0
    %4888 = vmatprep.subr.bf16.mxu0 0
    %4889 = vmatpush1.bf16.msra.mxu0 0
    %4890 = vmatprep.subr.bf16.mxu0 0
    %4891 = vmatpush1.bf16.msra.mxu0 0
    %4892 = vmatprep.subr.bf16.mxu0 0
    %4893 = vmatpush1.bf16.msra.mxu0 0
    %4894 = vmatprep.subr.bf16.mxu0 0
    %4895 = vmatpush1.bf16.msra.mxu0 0
    %4896 = vmatprep.subr.bf16.mxu0 0
    %4897 = vmatpush1.bf16.msra.mxu0 0
    %4898 = vmatprep.subr.bf16.mxu0 0
    %4899 = vmatpush1.bf16.msra.mxu0 0
    %4900 = vmatprep.subr.bf16.mxu0 0
    %4901 = vmatpush1.bf16.msra.mxu0 0
    %4902 = vmatprep.subr.bf16.mxu0 0
    %4903 = vmatpush1.bf16.msra.mxu0 0
    %4904 = vmatprep.subr.bf16.mxu0 0
    %4905 = vmatpush1.bf16.msra.mxu0 0
    %4906 = vmatprep.mubr.bf16.mxu0 0
    %4907 = vmatmul.mubr.bf16.gmra.mrb[0].mxu0 %v4872
    %v4908 = vpop.f32.mrb[0].mxu0
    %v4909 = vadd.f32 0.0, %v4908
    %v4910 = vpop.f32.mrb[0].mxu0
    %v4911 = vpop.f32.mrb[0].mxu0
    %v4912 = vadd.f32 0.0, %v4911
    %v4913 = vpop.f32.mrb[0].mxu0
    %4914 = vdwg.mxu0
    %v4916 = vsel %vm136, %v4870, 0
    %4918 = vmatprep.subr.bf16.mxu0 0
    %4919 = vmatpush1.bf16.msra.mxu0 %v2798
    %4920 = vmatprep.subr.bf16.mxu0 0
    %4921 = vmatpush1.bf16.msra.mxu0 0
    %4922 = vmatprep.subr.bf16.mxu0 0
    %4923 = vmatpush1.bf16.msra.mxu0 0
    %4924 = vmatprep.subr.bf16.mxu0 0
    %4925 = vmatpush1.bf16.msra.mxu0 0
    %4926 = vmatprep.subr.bf16.mxu0 0
    %4927 = vmatpush1.bf16.msra.mxu0 0
    %4928 = vmatprep.subr.bf16.mxu0 0
    %4929 = vmatpush1.bf16.msra.mxu0 0
    %4930 = vmatprep.subr.bf16.mxu0 0
    %4931 = vmatpush1.bf16.msra.mxu0 0
    %4932 = vmatprep.subr.bf16.mxu0 0
    %4933 = vmatpush1.bf16.msra.mxu0 0
    %4934 = vmatprep.subr.bf16.mxu0 0
    %4935 = vmatpush1.bf16.msra.mxu0 0
    %4936 = vmatprep.subr.bf16.mxu0 0
    %4937 = vmatpush1.bf16.msra.mxu0 0
    %4938 = vmatprep.subr.bf16.mxu0 0
    %4939 = vmatpush1.bf16.msra.mxu0 0
    %4940 = vmatprep.subr.bf16.mxu0 0
    %4941 = vmatpush1.bf16.msra.mxu0 0
    %4942 = vmatprep.subr.bf16.mxu0 0
    %4943 = vmatpush1.bf16.msra.mxu0 0
    %4944 = vmatprep.subr.bf16.mxu0 0
    %4945 = vmatpush1.bf16.msra.mxu0 0
    %4946 = vmatprep.subr.bf16.mxu0 0
    %4947 = vmatpush1.bf16.msra.mxu0 0
    %4948 = vmatprep.subr.bf16.mxu0 0
    %4949 = vmatpush1.bf16.msra.mxu0 0
    %4950 = vmatprep.mubr.bf16.mxu0 0
    %4951 = vmatmul.mubr.bf16.gmra.mrb[0].mxu0 %v4916
    %v4952 = vpop.f32.mrb[0].mxu0
    %v4953 = vadd.f32 0.0, %v4952
    %v4954 = vpop.f32.mrb[0].mxu0
    %v4955 = vpop.f32.mrb[0].mxu0
    %v4956 = vadd.f32 0.0, %v4955
    %v4957 = vpop.f32.mrb[0].mxu0
    %4958 = vdwg.mxu0
    %v4959 = vmax.f32 %v4769, %v4909
    %v4960 = vmax.f32 %v4770, %v4912
    %v4961 = vmax.f32 %v4771, %v4953
    %v4962 = vmax.f32 %v4772, %v4956
    %4967 = vrot.lane.b32.xlu0 %v2807, 96
    %v4968 = vpop.permute.xlu0 %4967
    %4969 = vrot.lane.b32.xlu0 %v2808, 96
    %v4970 = vpop.permute.xlu0 %4969
    %4971 = vrot.lane.b32.xlu0 %v2809, 96
    %v4972 = vpop.permute.xlu0 %4971
    %4973 = vrot.lane.b32.xlu0 %v2810, 96
    %v4974 = vpop.permute.xlu0 %4973
    %v4979 = vadd.f32 %v4959, %v4968
    %v4980 = vadd.f32 %v4960, %v4970
    %v4981 = vadd.f32 %v4961, %v4972
    %v4982 = vadd.f32 %v4962, %v4974
    %vm4983 = vcmp.gt.f32.partialorder %v4979, 0.0
    %vm4984 = vcmp.gt.f32.partialorder %v4980, 0.0
    %vm4985 = vcmp.gt.f32.partialorder %v4981, 0.0
    %vm4986 = vcmp.gt.f32.partialorder %v4982, 0.0
    %v4987 = vmul.f32 %v4979, 0.2
    %v4988 = vmul.f32 %v4980, 0.2
    %v4989 = vmul.f32 %v4981, 0.2
    %v4990 = vmul.f32 %v4982, 0.2
    %v4991 = vsel %vm4983, %v4979, %v4987
    %v4992 = vsel %vm4984, %v4980, %v4988
    %v4993 = vsel %vm4985, %v4981, %v4989
    %v4994 = vsel %vm4986, %v4982, %v4990
    %v4995 = vpack.c.bf16 %v4992, %v4991
    %v4996 = vpack.c.bf16 %v4994, %v4993
    %s4997 = scalar_lea.vmem %s5, 32
    %v4998 = vld [vmem:[%s4997] sm:$0xf]
    %v4999 = vld [vmem:[%s4997 + $0x4] sm:$0xf]
    %v5000 = vld [vmem:[%s4997 + $0x8] sm:$0xf]
    %v5001 = vld [vmem:[%s4997 + $0xc] sm:$0xf]
    %v5006 = vunpack.c.l.b16 %v4998
    %v5007 = vunpack.c.l.b16 %v4999
    %v5008 = vunpack.c.l.b16 %v5000
    %v5009 = vunpack.c.l.b16 %v5001
    %v5010 = vpack.c.b16 %v5007, %v5006
    %v5011 = vpack.c.b16 %v5009, %v5008
    %v5015 = vsel %vm75, %v4995, 0
    %v5018 = vsel %vm75, %v4996, 0
    %5020 = vmatprep.subr.bf16.mxu0 0
    %5021 = vmatpush1.bf16.msra.mxu0 %v5010
    %5022 = vmatprep.subr.bf16.mxu0 0
    %5023 = vmatpush1.bf16.msra.mxu0 %v5011
    %5024 = vmatprep.subr.bf16.mxu0 0
    %5025 = vmatpush1.bf16.msra.mxu0 0
    %5026 = vmatprep.subr.bf16.mxu0 0
    %5027 = vmatpush1.bf16.msra.mxu0 0
    %5028 = vmatprep.subr.bf16.mxu0 0
    %5029 = vmatpush1.bf16.msra.mxu0 0
    %5030 = vmatprep.subr.bf16.mxu0 0
    %5031 = vmatpush1.bf16.msra.mxu0 0
    %5032 = vmatprep.subr.bf16.mxu0 0
    %5033 = vmatpush1.bf16.msra.mxu0 0
    %5034 = vmatprep.subr.bf16.mxu0 0
    %5035 = vmatpush1.bf16.msra.mxu0 0
    %5036 = vmatprep.subr.bf16.mxu0 0
    %5037 = vmatpush1.bf16.msra.mxu0 0
    %5038 = vmatprep.subr.bf16.mxu0 0
    %5039 = vmatpush1.bf16.msra.mxu0 0
    %5040 = vmatprep.subr.bf16.mxu0 0
    %5041 = vmatpush1.bf16.msra.mxu0 0
    %5042 = vmatprep.subr.bf16.mxu0 0
    %5043 = vmatpush1.bf16.msra.mxu0 0
    %5044 = vmatprep.subr.bf16.mxu0 0
    %5045 = vmatpush1.bf16.msra.mxu0 0
    %5046 = vmatprep.subr.bf16.mxu0 0
    %5047 = vmatpush1.bf16.msra.mxu0 0
    %5048 = vmatprep.subr.bf16.mxu0 0
    %5049 = vmatpush1.bf16.msra.mxu0 0
    %5050 = vmatprep.subr.bf16.mxu0 0
    %5051 = vmatpush1.bf16.msra.mxu0 0
    %5052 = vmatprep.mubr.bf16.mxu0 0
    %5053 = vmatmul.mubr.bf16.gmra.mrb[0].mxu0 %v5015
    %v5054 = vpop.f32.mrb[0].mxu0
    %v5055 = vadd.f32 0.0, %v5054
    %v5056 = vpop.f32.mrb[0].mxu0
    %v5057 = vpop.f32.mrb[0].mxu0
    %v5058 = vadd.f32 0.0, %v5057
    %v5059 = vpop.f32.mrb[0].mxu0
    %5060 = vmatprep.mubr.bf16.mxu0 0
    %5061 = vmatmul.mubr.bf16.gmra.mrb[0].mxu0 %v5018
    %v5062 = vpop.f32.mrb[0].mxu0
    %v5063 = vadd.f32 0.0, %v5062
    %v5064 = vpop.f32.mrb[0].mxu0
    %v5065 = vpop.f32.mrb[0].mxu0
    %v5066 = vadd.f32 0.0, %v5065
    %v5067 = vpop.f32.mrb[0].mxu0
    %5068 = vdwg.mxu0
    %v5069 = vpack.c.bf16 %v5058, %v5055
    %v5070 = vpack.c.bf16 %v5066, %v5063
    %v5071 = vlaneseq
    %v5072 = vshrl.u32 %v5071, 7
    %v5073 = vsub.s32 5, %v5072
    %v5074 = vrot.slane %v25, %v5073
    %5076 = vrot.lane.b32.xlu0 %v5074, 32
    %v5077 = vpop.permute.xlu0 %5076
    %v5079 = vadd.f32 %v5055, %v5077
    %v5080 = vadd.f32 %v5058, %v5077
    %v5081 = vadd.f32 %v5063, %v5077
    %v5082 = vadd.f32 %v5066, %v5077
    %5083 = vmatprep.subr.bf16.mxu0 0
    %5084 = vmatpush1.bf16.xpose.msra.mxu0 %v5015
    %5085 = vmatprep.subr.bf16.mxu0 0
    %5086 = vmatpush1.bf16.xpose.msra.mxu0 0
    %5087 = vmatprep.subr.bf16.mxu0 0
    %5088 = vmatpush1.bf16.xpose.msra.mxu0 0
    %5089 = vmatprep.subr.bf16.mxu0 0
    %5090 = vmatpush1.bf16.xpose.msra.mxu0 0
    %5091 = vmatprep.subr.bf16.mxu0 0
    %5092 = vmatpush1.bf16.xpose.msra.mxu0 0
    %5093 = vmatprep.subr.bf16.mxu0 0
    %5094 = vmatpush1.bf16.xpose.msra.mxu0 0
    %5095 = vmatprep.subr.bf16.mxu0 0
    %5096 = vmatpush1.bf16.xpose.msra.mxu0 0
    %5097 = vmatprep.subr.bf16.mxu0 0
    %5098 = vmatpush1.bf16.xpose.msra.mxu0 0
    %5099 = vmatprep.subr.bf16.mxu0 0
    %5100 = vmatpush1.bf16.xpose.msra.mxu0 0
    %5101 = vmatprep.subr.bf16.mxu0 0
    %5102 = vmatpush1.bf16.xpose.msra.mxu0 0
    %5103 = vmatprep.subr.bf16.mxu0 0
    %5104 = vmatpush1.bf16.xpose.msra.mxu0 0
    %5105 = vmatprep.subr.bf16.mxu0 0
    %5106 = vmatpush1.bf16.xpose.msra.mxu0 0
    %5107 = vmatprep.subr.bf16.mxu0 0
    %5108 = vmatpush1.bf16.xpose.msra.mxu0 0
    %5109 = vmatprep.subr.bf16.mxu0 0
    %5110 = vmatpush1.bf16.xpose.msra.mxu0 0
    %5111 = vmatprep.subr.bf16.mxu0 0
    %5112 = vmatpush1.bf16.xpose.msra.mxu0 0
    %5113 = vmatprep.subr.bf16.mxu0 0
    %5114 = vmatpush1.bf16.xpose.msra.mxu0 0
    %5115 = vmatprep.mubr.bf16.mxu0 0
    %5116 = vmatmul.mubr.bf16.gmra.mrb[0].mxu0 %v5015
    %v5117 = vpop.f32.mrb[0].mxu0
    %v5118 = vadd.f32 0.0, %v5117
    %v5119 = vpop.f32.mrb[0].mxu0
    %v5120 = vpop.f32.mrb[0].mxu0
    %v5121 = vadd.f32 0.0, %v5120
    %v5122 = vpop.f32.mrb[0].mxu0
    %5123 = vdwg.mxu0
    %5124 = vmatprep.subr.bf16.mxu0 0
    %5125 = vmatpush1.bf16.xpose.msra.mxu0 %v5018
    %5126 = vmatprep.subr.bf16.mxu0 0
    %5127 = vmatpush1.bf16.xpose.msra.mxu0 0
    %5128 = vmatprep.subr.bf16.mxu0 0
    %5129 = vmatpush1.bf16.xpose.msra.mxu0 0
    %5130 = vmatprep.subr.bf16.mxu0 0
    %5131 = vmatpush1.bf16.xpose.msra.mxu0 0
    %5132 = vmatprep.subr.bf16.mxu0 0
    %5133 = vmatpush1.bf16.xpose.msra.mxu0 0
    %5134 = vmatprep.subr.bf16.mxu0 0
    %5135 = vmatpush1.bf16.xpose.msra.mxu0 0
    %5136 = vmatprep.subr.bf16.mxu0 0
    %5137 = vmatpush1.bf16.xpose.msra.mxu0 0
    %5138 = vmatprep.subr.bf16.mxu0 0
    %5139 = vmatpush1.bf16.xpose.msra.mxu0 0
    %5140 = vmatprep.subr.bf16.mxu0 0
    %5141 = vmatpush1.bf16.xpose.msra.mxu0 0
    %5142 = vmatprep.subr.bf16.mxu0 0
    %5143 = vmatpush1.bf16.xpose.msra.mxu0 0
    %5144 = vmatprep.subr.bf16.mxu0 0
    %5145 = vmatpush1.bf16.xpose.msra.mxu0 0
    %5146 = vmatprep.subr.bf16.mxu0 0
    %5147 = vmatpush1.bf16.xpose.msra.mxu0 0
    %5148 = vmatprep.subr.bf16.mxu0 0
    %5149 = vmatpush1.bf16.xpose.msra.mxu0 0
    %5150 = vmatprep.subr.bf16.mxu0 0
    %5151 = vmatpush1.bf16.xpose.msra.mxu0 0
    %5152 = vmatprep.subr.bf16.mxu0 0
    %5153 = vmatpush1.bf16.xpose.msra.mxu0 0
    %5154 = vmatprep.subr.bf16.mxu0 0
    %5155 = vmatpush1.bf16.xpose.msra.mxu0 0
    %5156 = vmatprep.mubr.bf16.mxu0 0
    %5157 = vmatmul.mubr.bf16.gmra.mrb[0].mxu0 %v5018
    %v5158 = vpop.f32.mrb[0].mxu0
    %v5159 = vadd.f32 0.0, %v5158
    %v5160 = vpop.f32.mrb[0].mxu0
    %v5161 = vpop.f32.mrb[0].mxu0
    %v5162 = vadd.f32 0.0, %v5161
    %v5163 = vpop.f32.mrb[0].mxu0
    %5164 = vdwg.mxu0
    %v5165 = vmul.f32 %v4991, %v4991
    %v5166 = vmul.f32 %v4992, %v4992
    %v5167 = vmul.f32 %v4993, %v4993
    %v5168 = vmul.f32 %v4994, %v4994
    %v5170 = vsel %vm75, %v5165, 0
    %v5173 = vsel %vm75, %v5166, 0
    %5175 = vmatprep.subr.mxu0 0.0
    %5176 = vmatpush1.xpose.msra.mxu0 %v5170
    %5177 = vmatprep.subr.mxu0 0.0
    %5178 = vmatpush1.xpose.msra.mxu0 %v5173
    %5179 = vmatprep.subr.mxu0 0.0
    %5180 = vmatpush1.xpose.msra.mxu0 0.0
    %5181 = vmatprep.subr.mxu0 0.0
    %5182 = vmatpush1.xpose.msra.mxu0 0.0
    %5183 = vmatprep.subr.mxu0 0.0
    %5184 = vmatpush1.xpose.msra.mxu0 0.0
    %5185 = vmatprep.subr.mxu0 0.0
    %5186 = vmatpush1.xpose.msra.mxu0 0.0
    %5187 = vmatprep.subr.mxu0 0.0
    %5188 = vmatpush1.xpose.msra.mxu0 0.0
    %5189 = vmatprep.subr.mxu0 0.0
    %5190 = vmatpush1.xpose.msra.mxu0 0.0
    %5191 = vmatprep.subr.mxu0 0.0
    %5192 = vmatpush1.xpose.msra.mxu0 0.0
    %5193 = vmatprep.subr.mxu0 0.0
    %5194 = vmatpush1.xpose.msra.mxu0 0.0
    %5195 = vmatprep.subr.mxu0 0.0
    %5196 = vmatpush1.xpose.msra.mxu0 0.0
    %5197 = vmatprep.subr.mxu0 0.0
    %5198 = vmatpush1.xpose.msra.mxu0 0.0
    %5199 = vmatprep.subr.mxu0 0.0
    %5200 = vmatpush1.xpose.msra.mxu0 0.0
    %5201 = vmatprep.subr.mxu0 0.0
    %5202 = vmatpush1.xpose.msra.mxu0 0.0
    %5203 = vmatprep.subr.mxu0 0.0
    %5204 = vmatpush1.xpose.msra.mxu0 0.0
    %5205 = vmatprep.subr.mxu0 0.0
    %5206 = vmatpush1.xpose.msra.mxu0 0.0
    %5207 = vmatprep.subr.mxu0 0.0
    %5208 = vmatpush1.xpose.msra.mxu0 0.0
    %5209 = vmatprep.subr.mxu0 0.0
    %5210 = vmatpush1.xpose.msra.mxu0 0.0
    %5211 = vmatprep.subr.mxu0 0.0
    %5212 = vmatpush1.xpose.msra.mxu0 0.0
    %5213 = vmatprep.subr.mxu0 0.0
    %5214 = vmatpush1.xpose.msra.mxu0 0.0
    %5215 = vmatprep.subr.mxu0 0.0
    %5216 = vmatpush1.xpose.msra.mxu0 0.0
    %5217 = vmatprep.subr.mxu0 0.0
    %5218 = vmatpush1.xpose.msra.mxu0 0.0
    %5219 = vmatprep.subr.mxu0 0.0
    %5220 = vmatpush1.xpose.msra.mxu0 0.0
    %5221 = vmatprep.subr.mxu0 0.0
    %5222 = vmatpush1.xpose.msra.mxu0 0.0
    %5223 = vmatprep.subr.mxu0 0.0
    %5224 = vmatpush1.xpose.msra.mxu0 0.0
    %5225 = vmatprep.subr.mxu0 0.0
    %5226 = vmatpush1.xpose.msra.mxu0 0.0
    %5227 = vmatprep.subr.mxu0 0.0
    %5228 = vmatpush1.xpose.msra.mxu0 0.0
    %5229 = vmatprep.subr.mxu0 0.0
    %5230 = vmatpush1.xpose.msra.mxu0 0.0
    %5231 = vmatprep.subr.mxu0 0.0
    %5232 = vmatpush1.xpose.msra.mxu0 0.0
    %5233 = vmatprep.subr.mxu0 0.0
    %5234 = vmatpush1.xpose.msra.mxu0 0.0
    %5235 = vmatprep.subr.mxu0 0.0
    %5236 = vmatpush1.xpose.msra.mxu0 0.0
    %5237 = vmatprep.subr.mxu0 0.0
    %5238 = vmatpush1.xpose.msra.mxu0 0.0
    %5239 = vmatprep.mubr.f32.mxu0 0.0
    %5240 = vmatmul.mubr.f32.gmra.mrb[0].mxu0 %v623
    %v5241 = vpop.f32.mrb[0].mxu0
    %v5242 = vadd.f32 0.0, %v5241
    %v5243 = vpop.f32.mrb[0].mxu0
    %5244 = vmatprep.mubr.f32.mxu0 0.0
    %5245 = vmatmul.mubr.f32.gmra.mrb[0].mxu0 %v623
    %v5246 = vpop.f32.mrb[0].mxu0
    %v5247 = vadd.f32 0.0, %v5246
    %v5248 = vpop.f32.mrb[0].mxu0
    %5249 = vdwg.mxu0
    %v5251 = vsel %vm75, %v5167, 0
    %v5254 = vsel %vm75, %v5168, 0
    %5256 = vmatprep.subr.mxu0 0.0
    %5257 = vmatpush1.xpose.msra.mxu0 %v5251
    %5258 = vmatprep.subr.mxu0 0.0
    %5259 = vmatpush1.xpose.msra.mxu0 %v5254
    %5260 = vmatprep.subr.mxu0 0.0
    %5261 = vmatpush1.xpose.msra.mxu0 0.0
    %5262 = vmatprep.subr.mxu0 0.0
    %5263 = vmatpush1.xpose.msra.mxu0 0.0
    %5264 = vmatprep.subr.mxu0 0.0
    %5265 = vmatpush1.xpose.msra.mxu0 0.0
    %5266 = vmatprep.subr.mxu0 0.0
    %5267 = vmatpush1.xpose.msra.mxu0 0.0
    %5268 = vmatprep.subr.mxu0 0.0
    %5269 = vmatpush1.xpose.msra.mxu0 0.0
    %5270 = vmatprep.subr.mxu0 0.0
    %5271 = vmatpush1.xpose.msra.mxu0 0.0
    %5272 = vmatprep.subr.mxu0 0.0
    %5273 = vmatpush1.xpose.msra.mxu0 0.0
    %5274 = vmatprep.subr.mxu0 0.0
    %5275 = vmatpush1.xpose.msra.mxu0 0.0
    %5276 = vmatprep.subr.mxu0 0.0
    %5277 = vmatpush1.xpose.msra.mxu0 0.0
    %5278 = vmatprep.subr.mxu0 0.0
    %5279 = vmatpush1.xpose.msra.mxu0 0.0
    %5280 = vmatprep.subr.mxu0 0.0
    %5281 = vmatpush1.xpose.msra.mxu0 0.0
    %5282 = vmatprep.subr.mxu0 0.0
    %5283 = vmatpush1.xpose.msra.mxu0 0.0
    %5284 = vmatprep.subr.mxu0 0.0
    %5285 = vmatpush1.xpose.msra.mxu0 0.0
    %5286 = vmatprep.subr.mxu0 0.0
    %5287 = vmatpush1.xpose.msra.mxu0 0.0
    %5288 = vmatprep.subr.mxu0 0.0
    %5289 = vmatpush1.xpose.msra.mxu0 0.0
    %5290 = vmatprep.subr.mxu0 0.0
    %5291 = vmatpush1.xpose.msra.mxu0 0.0
    %5292 = vmatprep.subr.mxu0 0.0
    %5293 = vmatpush1.xpose.msra.mxu0 0.0
    %5294 = vmatprep.subr.mxu0 0.0
    %5295 = vmatpush1.xpose.msra.mxu0 0.0
    %5296 = vmatprep.subr.mxu0 0.0
    %5297 = vmatpush1.xpose.msra.mxu0 0.0
    %5298 = vmatprep.subr.mxu0 0.0
    %5299 = vmatpush1.xpose.msra.mxu0 0.0
    %5300 = vmatprep.subr.mxu0 0.0
    %5301 = vmatpush1.xpose.msra.mxu0 0.0
    %5302 = vmatprep.subr.mxu0 0.0
    %5303 = vmatpush1.xpose.msra.mxu0 0.0
    %5304 = vmatprep.subr.mxu0 0.0
    %5305 = vmatpush1.xpose.msra.mxu0 0.0
    %5306 = vmatprep.subr.mxu0 0.0
    %5307 = vmatpush1.xpose.msra.mxu0 0.0
    %5308 = vmatprep.subr.mxu0 0.0
    %5309 = vmatpush1.xpose.msra.mxu0 0.0
    %5310 = vmatprep.subr.mxu0 0.0
    %5311 = vmatpush1.xpose.msra.mxu0 0.0
    %5312 = vmatprep.subr.mxu0 0.0
    %5313 = vmatpush1.xpose.msra.mxu0 0.0
    %5314 = vmatprep.subr.mxu0 0.0
    %5315 = vmatpush1.xpose.msra.mxu0 0.0
    %5316 = vmatprep.subr.mxu0 0.0
    %5317 = vmatpush1.xpose.msra.mxu0 0.0
    %5318 = vmatprep.subr.mxu0 0.0
    %5319 = vmatpush1.xpose.msra.mxu0 0.0
    %5320 = vmatprep.mubr.f32.mxu0 0.0
    %5321 = vmatmul.mubr.f32.gmra.mrb[0].mxu0 %v623
    %v5322 = vpop.f32.mrb[0].mxu0
    %v5323 = vadd.f32 0.0, %v5322
    %v5324 = vpop.f32.mrb[0].mxu0
    %5325 = vmatprep.mubr.f32.mxu0 0.0
    %5326 = vmatmul.mubr.f32.gmra.mrb[0].mxu0 %v623
    %v5327 = vpop.f32.mrb[0].mxu0
    %v5328 = vadd.f32 0.0, %v5327
    %v5329 = vpop.f32.mrb[0].mxu0
    %5330 = vdwg.mxu0
    %v5331 = vmul.f32 %v5118, 2.0
    %v5332 = vmul.f32 %v5121, 2.0
    %v5333 = vmul.f32 %v5159, 2.0
    %v5334 = vmul.f32 %v5162, 2.0
    %v5335 = vsub.f32 %v5331, %v5242
    %v5336 = vsub.f32 %v5332, %v5247
    %v5337 = vsub.f32 %v5333, %v5323
    %v5338 = vsub.f32 %v5334, %v5328
    %v5339 = vsel %vm136, %v5335, -inf
    %5340 = vmax.xlane.f32.xlu0 %v5339
    %v5341 = vpop.xlane.xlu0 %5340
    %v5342 = vsel %vm136, %v5336, -inf
    %5343 = vmax.xlane.f32.xlu0 %v5342
    %v5344 = vpop.xlane.xlu0 %5343
    %v5345 = vsel %vm136, %v5337, -inf
    %5346 = vmax.xlane.f32.xlu0 %v5345
    %v5347 = vpop.xlane.xlu0 %5346
    %v5348 = vsel %vm136, %v5338, -inf
    %5349 = vmax.xlane.f32.xlu0 %v5348
    %v5350 = vpop.xlane.xlu0 %5349
    %vm5351 = vcmp.eq.f32.partialorder %v5335, %v5341
    %vm5352 = vcmp.eq.f32.partialorder %v5336, %v5344
    %vm5353 = vcmp.eq.f32.partialorder %v5337, %v5347
    %vm5354 = vcmp.eq.f32.partialorder %v5338, %v5350
    %v5355 = vsel %vm5351, %v448, 16
    %v5356 = vsel %vm5352, %v448, 16
    %v5357 = vsel %vm5353, %v448, 16
    %v5358 = vsel %vm5354, %v448, 16
    %v5359 = vsel %vm136, %v5355, 2147483647
    %v5360 = vand.u32 %v5359, 65535
    %v5361 = vshra.s32 %v5359, 16
    %v5362 = vcvt.s32.f32 %v5360
    %v5363 = vcvt.s32.f32 %v5361
    %5364 = vmin.xlane.f32.xlu0 %v5363
    %v5365 = vpop.xlane.xlu0 %5364
    %vm5366 = vcmp.eq.f32.partialorder %v5363, %v5365
    %v5367 = vsel %vm5366, %v5362, inf
    %5368 = vmin.xlane.f32.xlu0 %v5367
    %v5369 = vpop.xlane.xlu0 %5368
    %v5370 = vcvt.f32.s32 %v5369
    %v5371 = vcvt.f32.s32 %v5365
    %v5372 = vshll.u32 %v5371, 16
    %v5373 = vadd.s32 %v5372, %v5370
    %v5374 = vsel %vm136, %v5356, 2147483647
    %v5375 = vand.u32 %v5374, 65535
    %v5376 = vshra.s32 %v5374, 16
    %v5377 = vcvt.s32.f32 %v5375
    %v5378 = vcvt.s32.f32 %v5376
    %5379 = vmin.xlane.f32.xlu0 %v5378
    %v5380 = vpop.xlane.xlu0 %5379
    %vm5381 = vcmp.eq.f32.partialorder %v5378, %v5380
    %v5382 = vsel %vm5381, %v5377, inf
    %5383 = vmin.xlane.f32.xlu0 %v5382
    %v5384 = vpop.xlane.xlu0 %5383
    %v5385 = vcvt.f32.s32 %v5384
    %v5386 = vcvt.f32.s32 %v5380
    %v5387 = vshll.u32 %v5386, 16
    %v5388 = vadd.s32 %v5387, %v5385
    %v5389 = vsel %vm136, %v5357, 2147483647
    %v5390 = vand.u32 %v5389, 65535
    %v5391 = vshra.s32 %v5389, 16
    %v5392 = vcvt.s32.f32 %v5390
    %v5393 = vcvt.s32.f32 %v5391
    %5394 = vmin.xlane.f32.xlu0 %v5393
    %v5395 = vpop.xlane.xlu0 %5394
    %vm5396 = vcmp.eq.f32.partialorder %v5393, %v5395
    %v5397 = vsel %vm5396, %v5392, inf
    %5398 = vmin.xlane.f32.xlu0 %v5397
    %v5399 = vpop.xlane.xlu0 %5398
    %v5400 = vcvt.f32.s32 %v5399
    %v5401 = vcvt.f32.s32 %v5395
    %v5402 = vshll.u32 %v5401, 16
    %v5403 = vadd.s32 %v5402, %v5400
    %v5404 = vsel %vm136, %v5358, 2147483647
    %v5405 = vand.u32 %v5404, 65535
    %v5406 = vshra.s32 %v5404, 16
    %v5407 = vcvt.s32.f32 %v5405
    %v5408 = vcvt.s32.f32 %v5406
    %5409 = vmin.xlane.f32.xlu0 %v5408
    %v5410 = vpop.xlane.xlu0 %5409
    %vm5411 = vcmp.eq.f32.partialorder %v5408, %v5410
    %v5412 = vsel %vm5411, %v5407, inf
    %5413 = vmin.xlane.f32.xlu0 %v5412
    %v5414 = vpop.xlane.xlu0 %5413
    %v5415 = vcvt.f32.s32 %v5414
    %v5416 = vcvt.f32.s32 %v5410
    %v5417 = vshll.u32 %v5416, 16
    %v5418 = vadd.s32 %v5417, %v5415
    %vm5419 = vcmp.eq.s32.totalorder %v448, %v5373
    %vm5420 = vcmp.eq.s32.totalorder %v448, %v5388
    %vm5421 = vcmp.eq.s32.totalorder %v448, %v5403
    %vm5422 = vcmp.eq.s32.totalorder %v448, %v5418
    %v5423 = vsel %vm5419, 1, 0
    %v5424 = vsel %vm5420, 1, 0
    %v5425 = vsel %vm5421, 1, 0
    %v5426 = vsel %vm5422, 1, 0
    %v5427 = vcvt.s32.f32 %v5423
    %v5428 = vcvt.s32.f32 %v5424
    %v5429 = vcvt.s32.f32 %v5425
    %v5430 = vcvt.s32.f32 %v5426
    %v5431 = vpack.c.bf16 %v5428, %v5427
    %v5432 = vpack.c.bf16 %v5430, %v5429
    %v5434 = vsel %vm136, %v5431, 0
    %5436 = vmatprep.subr.bf16.mxu0 0
    %5437 = vmatpush1.bf16.msra.mxu0 %v5069
    %5438 = vmatprep.subr.bf16.mxu0 0
    %5439 = vmatpush1.bf16.msra.mxu0 0
    %5440 = vmatprep.subr.bf16.mxu0 0
    %5441 = vmatpush1.bf16.msra.mxu0 0
    %5442 = vmatprep.subr.bf16.mxu0 0
    %5443 = vmatpush1.bf16.msra.mxu0 0
    %5444 = vmatprep.subr.bf16.mxu0 0
    %5445 = vmatpush1.bf16.msra.mxu0 0
    %5446 = vmatprep.subr.bf16.mxu0 0
    %5447 = vmatpush1.bf16.msra.mxu0 0
    %5448 = vmatprep.subr.bf16.mxu0 0
    %5449 = vmatpush1.bf16.msra.mxu0 0
    %5450 = vmatprep.subr.bf16.mxu0 0
    %5451 = vmatpush1.bf16.msra.mxu0 0
    %5452 = vmatprep.subr.bf16.mxu0 0
    %5453 = vmatpush1.bf16.msra.mxu0 0
    %5454 = vmatprep.subr.bf16.mxu0 0
    %5455 = vmatpush1.bf16.msra.mxu0 0
    %5456 = vmatprep.subr.bf16.mxu0 0
    %5457 = vmatpush1.bf16.msra.mxu0 0
    %5458 = vmatprep.subr.bf16.mxu0 0
    %5459 = vmatpush1.bf16.msra.mxu0 0
    %5460 = vmatprep.subr.bf16.mxu0 0
    %5461 = vmatpush1.bf16.msra.mxu0 0
    %5462 = vmatprep.subr.bf16.mxu0 0
    %5463 = vmatpush1.bf16.msra.mxu0 0
    %5464 = vmatprep.subr.bf16.mxu0 0
    %5465 = vmatpush1.bf16.msra.mxu0 0
    %5466 = vmatprep.subr.bf16.mxu0 0
    %5467 = vmatpush1.bf16.msra.mxu0 0
    %5468 = vmatprep.mubr.bf16.mxu0 0
    %5469 = vmatmul.mubr.bf16.gmra.mrb[0].mxu0 %v5434
    %v5470 = vpop.f32.mrb[0].mxu0
    %v5471 = vadd.f32 0.0, %v5470
    %v5472 = vpop.f32.mrb[0].mxu0
    %v5473 = vpop.f32.mrb[0].mxu0
    %v5474 = vadd.f32 0.0, %v5473
    %v5475 = vpop.f32.mrb[0].mxu0
    %5476 = vdwg.mxu0
    %v5478 = vsel %vm136, %v5432, 0
    %5480 = vmatprep.subr.bf16.mxu0 0
    %5481 = vmatpush1.bf16.msra.mxu0 %v5070
    %5482 = vmatprep.subr.bf16.mxu0 0
    %5483 = vmatpush1.bf16.msra.mxu0 0
    %5484 = vmatprep.subr.bf16.mxu0 0
    %5485 = vmatpush1.bf16.msra.mxu0 0
    %5486 = vmatprep.subr.bf16.mxu0 0
    %5487 = vmatpush1.bf16.msra.mxu0 0
    %5488 = vmatprep.subr.bf16.mxu0 0
    %5489 = vmatpush1.bf16.msra.mxu0 0
    %5490 = vmatprep.subr.bf16.mxu0 0
    %5491 = vmatpush1.bf16.msra.mxu0 0
    %5492 = vmatprep.subr.bf16.mxu0 0
    %5493 = vmatpush1.bf16.msra.mxu0 0
    %5494 = vmatprep.subr.bf16.mxu0 0
    %5495 = vmatpush1.bf16.msra.mxu0 0
    %5496 = vmatprep.subr.bf16.mxu0 0
    %5497 = vmatpush1.bf16.msra.mxu0 0
    %5498 = vmatprep.subr.bf16.mxu0 0
    %5499 = vmatpush1.bf16.msra.mxu0 0
    %5500 = vmatprep.subr.bf16.mxu0 0
    %5501 = vmatpush1.bf16.msra.mxu0 0
    %5502 = vmatprep.subr.bf16.mxu0 0
    %5503 = vmatpush1.bf16.msra.mxu0 0
    %5504 = vmatprep.subr.bf16.mxu0 0
    %5505 = vmatpush1.bf16.msra.mxu0 0
    %5506 = vmatprep.subr.bf16.mxu0 0
    %5507 = vmatpush1.bf16.msra.mxu0 0
    %5508 = vmatprep.subr.bf16.mxu0 0
    %5509 = vmatpush1.bf16.msra.mxu0 0
    %5510 = vmatprep.subr.bf16.mxu0 0
    %5511 = vmatpush1.bf16.msra.mxu0 0
    %5512 = vmatprep.mubr.bf16.mxu0 0
    %5513 = vmatmul.mubr.bf16.gmra.mrb[0].mxu0 %v5478
    %v5514 = vpop.f32.mrb[0].mxu0
    %v5515 = vadd.f32 0.0, %v5514
    %v5516 = vpop.f32.mrb[0].mxu0
    %v5517 = vpop.f32.mrb[0].mxu0
    %v5518 = vadd.f32 0.0, %v5517
    %v5519 = vpop.f32.mrb[0].mxu0
    %5520 = vdwg.mxu0
    %v5521 = vmax.f32 %v5471, -1e+30
    %v5522 = vmax.f32 %v5474, -1e+30
    %v5523 = vmax.f32 %v5515, -1e+30
    %v5524 = vmax.f32 %v5518, -1e+30
    %v5525 = vsel %vm5419, -1e+30, %v5335
    %v5526 = vsel %vm5420, -1e+30, %v5336
    %v5527 = vsel %vm5421, -1e+30, %v5337
    %v5528 = vsel %vm5422, -1e+30, %v5338
    %v5529 = vsel %vm136, %v5525, -inf
    %5530 = vmax.xlane.f32.xlu0 %v5529
    %v5531 = vpop.xlane.xlu0 %5530
    %v5532 = vsel %vm136, %v5526, -inf
    %5533 = vmax.xlane.f32.xlu0 %v5532
    %v5534 = vpop.xlane.xlu0 %5533
    %v5535 = vsel %vm136, %v5527, -inf
    %5536 = vmax.xlane.f32.xlu0 %v5535
    %v5537 = vpop.xlane.xlu0 %5536
    %v5538 = vsel %vm136, %v5528, -inf
    %5539 = vmax.xlane.f32.xlu0 %v5538
    %v5540 = vpop.xlane.xlu0 %5539
    %vm5541 = vcmp.eq.f32.partialorder %v5525, %v5531
    %vm5542 = vcmp.eq.f32.partialorder %v5526, %v5534
    %vm5543 = vcmp.eq.f32.partialorder %v5527, %v5537
    %vm5544 = vcmp.eq.f32.partialorder %v5528, %v5540
    %v5545 = vsel %vm5541, %v448, 16
    %v5546 = vsel %vm5542, %v448, 16
    %v5547 = vsel %vm5543, %v448, 16
    %v5548 = vsel %vm5544, %v448, 16
    %v5549 = vsel %vm136, %v5545, 2147483647
    %v5550 = vand.u32 %v5549, 65535
    %v5551 = vshra.s32 %v5549, 16
    %v5552 = vcvt.s32.f32 %v5550
    %v5553 = vcvt.s32.f32 %v5551
    %5554 = vmin.xlane.f32.xlu0 %v5553
    %v5555 = vpop.xlane.xlu0 %5554
    %vm5556 = vcmp.eq.f32.partialorder %v5553, %v5555
    %v5557 = vsel %vm5556, %v5552, inf
    %5558 = vmin.xlane.f32.xlu0 %v5557
    %v5559 = vpop.xlane.xlu0 %5558
    %v5560 = vcvt.f32.s32 %v5559
    %v5561 = vcvt.f32.s32 %v5555
    %v5562 = vshll.u32 %v5561, 16
    %v5563 = vadd.s32 %v5562, %v5560
    %v5564 = vsel %vm136, %v5546, 2147483647
    %v5565 = vand.u32 %v5564, 65535
    %v5566 = vshra.s32 %v5564, 16
    %v5567 = vcvt.s32.f32 %v5565
    %v5568 = vcvt.s32.f32 %v5566
    %5569 = vmin.xlane.f32.xlu0 %v5568
    %v5570 = vpop.xlane.xlu0 %5569
    %vm5571 = vcmp.eq.f32.partialorder %v5568, %v5570
    %v5572 = vsel %vm5571, %v5567, inf
    %5573 = vmin.xlane.f32.xlu0 %v5572
    %v5574 = vpop.xlane.xlu0 %5573
    %v5575 = vcvt.f32.s32 %v5574
    %v5576 = vcvt.f32.s32 %v5570
    %v5577 = vshll.u32 %v5576, 16
    %v5578 = vadd.s32 %v5577, %v5575
    %v5579 = vsel %vm136, %v5547, 2147483647
    %v5580 = vand.u32 %v5579, 65535
    %v5581 = vshra.s32 %v5579, 16
    %v5582 = vcvt.s32.f32 %v5580
    %v5583 = vcvt.s32.f32 %v5581
    %5584 = vmin.xlane.f32.xlu0 %v5583
    %v5585 = vpop.xlane.xlu0 %5584
    %vm5586 = vcmp.eq.f32.partialorder %v5583, %v5585
    %v5587 = vsel %vm5586, %v5582, inf
    %5588 = vmin.xlane.f32.xlu0 %v5587
    %v5589 = vpop.xlane.xlu0 %5588
    %v5590 = vcvt.f32.s32 %v5589
    %v5591 = vcvt.f32.s32 %v5585
    %v5592 = vshll.u32 %v5591, 16
    %v5593 = vadd.s32 %v5592, %v5590
    %v5594 = vsel %vm136, %v5548, 2147483647
    %v5595 = vand.u32 %v5594, 65535
    %v5596 = vshra.s32 %v5594, 16
    %v5597 = vcvt.s32.f32 %v5595
    %v5598 = vcvt.s32.f32 %v5596
    %5599 = vmin.xlane.f32.xlu0 %v5598
    %v5600 = vpop.xlane.xlu0 %5599
    %vm5601 = vcmp.eq.f32.partialorder %v5598, %v5600
    %v5602 = vsel %vm5601, %v5597, inf
    %5603 = vmin.xlane.f32.xlu0 %v5602
    %v5604 = vpop.xlane.xlu0 %5603
    %v5605 = vcvt.f32.s32 %v5604
    %v5606 = vcvt.f32.s32 %v5600
    %v5607 = vshll.u32 %v5606, 16
    %v5608 = vadd.s32 %v5607, %v5605
    %vm5609 = vcmp.eq.s32.totalorder %v448, %v5563
    %vm5610 = vcmp.eq.s32.totalorder %v448, %v5578
    %vm5611 = vcmp.eq.s32.totalorder %v448, %v5593
    %vm5612 = vcmp.eq.s32.totalorder %v448, %v5608
    %v5613 = vsel %vm5609, 1, 0
    %v5614 = vsel %vm5610, 1, 0
    %v5615 = vsel %vm5611, 1, 0
    %v5616 = vsel %vm5612, 1, 0
    %v5617 = vcvt.s32.f32 %v5613
    %v5618 = vcvt.s32.f32 %v5614
    %v5619 = vcvt.s32.f32 %v5615
    %v5620 = vcvt.s32.f32 %v5616
    %v5621 = vpack.c.bf16 %v5618, %v5617
    %v5622 = vpack.c.bf16 %v5620, %v5619
    %v5624 = vsel %vm136, %v5621, 0
    %5626 = vmatprep.subr.bf16.mxu0 0
    %5627 = vmatpush1.bf16.msra.mxu0 %v5069
    %5628 = vmatprep.subr.bf16.mxu0 0
    %5629 = vmatpush1.bf16.msra.mxu0 0
    %5630 = vmatprep.subr.bf16.mxu0 0
    %5631 = vmatpush1.bf16.msra.mxu0 0
    %5632 = vmatprep.subr.bf16.mxu0 0
    %5633 = vmatpush1.bf16.msra.mxu0 0
    %5634 = vmatprep.subr.bf16.mxu0 0
    %5635 = vmatpush1.bf16.msra.mxu0 0
    %5636 = vmatprep.subr.bf16.mxu0 0
    %5637 = vmatpush1.bf16.msra.mxu0 0
    %5638 = vmatprep.subr.bf16.mxu0 0
    %5639 = vmatpush1.bf16.msra.mxu0 0
    %5640 = vmatprep.subr.bf16.mxu0 0
    %5641 = vmatpush1.bf16.msra.mxu0 0
    %5642 = vmatprep.subr.bf16.mxu0 0
    %5643 = vmatpush1.bf16.msra.mxu0 0
    %5644 = vmatprep.subr.bf16.mxu0 0
    %5645 = vmatpush1.bf16.msra.mxu0 0
    %5646 = vmatprep.subr.bf16.mxu0 0
    %5647 = vmatpush1.bf16.msra.mxu0 0
    %5648 = vmatprep.subr.bf16.mxu0 0
    %5649 = vmatpush1.bf16.msra.mxu0 0
    %5650 = vmatprep.subr.bf16.mxu0 0
    %5651 = vmatpush1.bf16.msra.mxu0 0
    %5652 = vmatprep.subr.bf16.mxu0 0
    %5653 = vmatpush1.bf16.msra.mxu0 0
    %5654 = vmatprep.subr.bf16.mxu0 0
    %5655 = vmatpush1.bf16.msra.mxu0 0
    %5656 = vmatprep.subr.bf16.mxu0 0
    %5657 = vmatpush1.bf16.msra.mxu0 0
    %5658 = vmatprep.mubr.bf16.mxu0 0
    %5659 = vmatmul.mubr.bf16.gmra.mrb[0].mxu0 %v5624
    %v5660 = vpop.f32.mrb[0].mxu0
    %v5661 = vadd.f32 0.0, %v5660
    %v5662 = vpop.f32.mrb[0].mxu0
    %v5663 = vpop.f32.mrb[0].mxu0
    %v5664 = vadd.f32 0.0, %v5663
    %v5665 = vpop.f32.mrb[0].mxu0
    %5666 = vdwg.mxu0
    %v5668 = vsel %vm136, %v5622, 0
    %5670 = vmatprep.subr.bf16.mxu0 0
    %5671 = vmatpush1.bf16.msra.mxu0 %v5070
    %5672 = vmatprep.subr.bf16.mxu0 0
    %5673 = vmatpush1.bf16.msra.mxu0 0
    %5674 = vmatprep.subr.bf16.mxu0 0
    %5675 = vmatpush1.bf16.msra.mxu0 0
    %5676 = vmatprep.subr.bf16.mxu0 0
    %5677 = vmatpush1.bf16.msra.mxu0 0
    %5678 = vmatprep.subr.bf16.mxu0 0
    %5679 = vmatpush1.bf16.msra.mxu0 0
    %5680 = vmatprep.subr.bf16.mxu0 0
    %5681 = vmatpush1.bf16.msra.mxu0 0
    %5682 = vmatprep.subr.bf16.mxu0 0
    %5683 = vmatpush1.bf16.msra.mxu0 0
    %5684 = vmatprep.subr.bf16.mxu0 0
    %5685 = vmatpush1.bf16.msra.mxu0 0
    %5686 = vmatprep.subr.bf16.mxu0 0
    %5687 = vmatpush1.bf16.msra.mxu0 0
    %5688 = vmatprep.subr.bf16.mxu0 0
    %5689 = vmatpush1.bf16.msra.mxu0 0
    %5690 = vmatprep.subr.bf16.mxu0 0
    %5691 = vmatpush1.bf16.msra.mxu0 0
    %5692 = vmatprep.subr.bf16.mxu0 0
    %5693 = vmatpush1.bf16.msra.mxu0 0
    %5694 = vmatprep.subr.bf16.mxu0 0
    %5695 = vmatpush1.bf16.msra.mxu0 0
    %5696 = vmatprep.subr.bf16.mxu0 0
    %5697 = vmatpush1.bf16.msra.mxu0 0
    %5698 = vmatprep.subr.bf16.mxu0 0
    %5699 = vmatpush1.bf16.msra.mxu0 0
    %5700 = vmatprep.subr.bf16.mxu0 0
    %5701 = vmatpush1.bf16.msra.mxu0 0
    %5702 = vmatprep.mubr.bf16.mxu0 0
    %5703 = vmatmul.mubr.bf16.gmra.mrb[0].mxu0 %v5668
    %v5704 = vpop.f32.mrb[0].mxu0
    %v5705 = vadd.f32 0.0, %v5704
    %v5706 = vpop.f32.mrb[0].mxu0
    %v5707 = vpop.f32.mrb[0].mxu0
    %v5708 = vadd.f32 0.0, %v5707
    %v5709 = vpop.f32.mrb[0].mxu0
    %5710 = vdwg.mxu0
    %v5711 = vmax.f32 %v5521, %v5661
    %v5712 = vmax.f32 %v5522, %v5664
    %v5713 = vmax.f32 %v5523, %v5705
    %v5714 = vmax.f32 %v5524, %v5708
    %v5715 = vsel %vm5609, -1e+30, %v5525
    %v5716 = vsel %vm5610, -1e+30, %v5526
    %v5717 = vsel %vm5611, -1e+30, %v5527
    %v5718 = vsel %vm5612, -1e+30, %v5528
    %v5719 = vsel %vm136, %v5715, -inf
    %5720 = vmax.xlane.f32.xlu0 %v5719
    %v5721 = vpop.xlane.xlu0 %5720
    %v5722 = vsel %vm136, %v5716, -inf
    %5723 = vmax.xlane.f32.xlu0 %v5722
    %v5724 = vpop.xlane.xlu0 %5723
    %v5725 = vsel %vm136, %v5717, -inf
    %5726 = vmax.xlane.f32.xlu0 %v5725
    %v5727 = vpop.xlane.xlu0 %5726
    %v5728 = vsel %vm136, %v5718, -inf
    %5729 = vmax.xlane.f32.xlu0 %v5728
    %v5730 = vpop.xlane.xlu0 %5729
    %vm5731 = vcmp.eq.f32.partialorder %v5715, %v5721
    %vm5732 = vcmp.eq.f32.partialorder %v5716, %v5724
    %vm5733 = vcmp.eq.f32.partialorder %v5717, %v5727
    %vm5734 = vcmp.eq.f32.partialorder %v5718, %v5730
    %v5735 = vsel %vm5731, %v448, 16
    %v5736 = vsel %vm5732, %v448, 16
    %v5737 = vsel %vm5733, %v448, 16
    %v5738 = vsel %vm5734, %v448, 16
    %v5739 = vsel %vm136, %v5735, 2147483647
    %v5740 = vand.u32 %v5739, 65535
    %v5741 = vshra.s32 %v5739, 16
    %v5742 = vcvt.s32.f32 %v5740
    %v5743 = vcvt.s32.f32 %v5741
    %5744 = vmin.xlane.f32.xlu0 %v5743
    %v5745 = vpop.xlane.xlu0 %5744
    %vm5746 = vcmp.eq.f32.partialorder %v5743, %v5745
    %v5747 = vsel %vm5746, %v5742, inf
    %5748 = vmin.xlane.f32.xlu0 %v5747
    %v5749 = vpop.xlane.xlu0 %5748
    %v5750 = vcvt.f32.s32 %v5749
    %v5751 = vcvt.f32.s32 %v5745
    %v5752 = vshll.u32 %v5751, 16
    %v5753 = vadd.s32 %v5752, %v5750
    %v5754 = vsel %vm136, %v5736, 2147483647
    %v5755 = vand.u32 %v5754, 65535
    %v5756 = vshra.s32 %v5754, 16
    %v5757 = vcvt.s32.f32 %v5755
    %v5758 = vcvt.s32.f32 %v5756
    %5759 = vmin.xlane.f32.xlu0 %v5758
    %v5760 = vpop.xlane.xlu0 %5759
    %vm5761 = vcmp.eq.f32.partialorder %v5758, %v5760
    %v5762 = vsel %vm5761, %v5757, inf
    %5763 = vmin.xlane.f32.xlu0 %v5762
    %v5764 = vpop.xlane.xlu0 %5763
    %v5765 = vcvt.f32.s32 %v5764
    %v5766 = vcvt.f32.s32 %v5760
    %v5767 = vshll.u32 %v5766, 16
    %v5768 = vadd.s32 %v5767, %v5765
    %v5769 = vsel %vm136, %v5737, 2147483647
    %v5770 = vand.u32 %v5769, 65535
    %v5771 = vshra.s32 %v5769, 16
    %v5772 = vcvt.s32.f32 %v5770
    %v5773 = vcvt.s32.f32 %v5771
    %5774 = vmin.xlane.f32.xlu0 %v5773
    %v5775 = vpop.xlane.xlu0 %5774
    %vm5776 = vcmp.eq.f32.partialorder %v5773, %v5775
    %v5777 = vsel %vm5776, %v5772, inf
    %5778 = vmin.xlane.f32.xlu0 %v5777
    %v5779 = vpop.xlane.xlu0 %5778
    %v5780 = vcvt.f32.s32 %v5779
    %v5781 = vcvt.f32.s32 %v5775
    %v5782 = vshll.u32 %v5781, 16
    %v5783 = vadd.s32 %v5782, %v5780
    %v5784 = vsel %vm136, %v5738, 2147483647
    %v5785 = vand.u32 %v5784, 65535
    %v5786 = vshra.s32 %v5784, 16
    %v5787 = vcvt.s32.f32 %v5785
    %v5788 = vcvt.s32.f32 %v5786
    %5789 = vmin.xlane.f32.xlu0 %v5788
    %v5790 = vpop.xlane.xlu0 %5789
    %vm5791 = vcmp.eq.f32.partialorder %v5788, %v5790
    %v5792 = vsel %vm5791, %v5787, inf
    %5793 = vmin.xlane.f32.xlu0 %v5792
    %v5794 = vpop.xlane.xlu0 %5793
    %v5795 = vcvt.f32.s32 %v5794
    %v5796 = vcvt.f32.s32 %v5790
    %v5797 = vshll.u32 %v5796, 16
    %v5798 = vadd.s32 %v5797, %v5795
    %vm5799 = vcmp.eq.s32.totalorder %v448, %v5753
    %vm5800 = vcmp.eq.s32.totalorder %v448, %v5768
    %vm5801 = vcmp.eq.s32.totalorder %v448, %v5783
    %vm5802 = vcmp.eq.s32.totalorder %v448, %v5798
    %v5803 = vsel %vm5799, 1, 0
    %v5804 = vsel %vm5800, 1, 0
    %v5805 = vsel %vm5801, 1, 0
    %v5806 = vsel %vm5802, 1, 0
    %v5807 = vcvt.s32.f32 %v5803
    %v5808 = vcvt.s32.f32 %v5804
    %v5809 = vcvt.s32.f32 %v5805
    %v5810 = vcvt.s32.f32 %v5806
    %v5811 = vpack.c.bf16 %v5808, %v5807
    %v5812 = vpack.c.bf16 %v5810, %v5809
    %v5814 = vsel %vm136, %v5811, 0
    %5816 = vmatprep.subr.bf16.mxu0 0
    %5817 = vmatpush1.bf16.msra.mxu0 %v5069
    %5818 = vmatprep.subr.bf16.mxu0 0
    %5819 = vmatpush1.bf16.msra.mxu0 0
    %5820 = vmatprep.subr.bf16.mxu0 0
    %5821 = vmatpush1.bf16.msra.mxu0 0
    %5822 = vmatprep.subr.bf16.mxu0 0
    %5823 = vmatpush1.bf16.msra.mxu0 0
    %5824 = vmatprep.subr.bf16.mxu0 0
    %5825 = vmatpush1.bf16.msra.mxu0 0
    %5826 = vmatprep.subr.bf16.mxu0 0
    %5827 = vmatpush1.bf16.msra.mxu0 0
    %5828 = vmatprep.subr.bf16.mxu0 0
    %5829 = vmatpush1.bf16.msra.mxu0 0
    %5830 = vmatprep.subr.bf16.mxu0 0
    %5831 = vmatpush1.bf16.msra.mxu0 0
    %5832 = vmatprep.subr.bf16.mxu0 0
    %5833 = vmatpush1.bf16.msra.mxu0 0
    %5834 = vmatprep.subr.bf16.mxu0 0
    %5835 = vmatpush1.bf16.msra.mxu0 0
    %5836 = vmatprep.subr.bf16.mxu0 0
    %5837 = vmatpush1.bf16.msra.mxu0 0
    %5838 = vmatprep.subr.bf16.mxu0 0
    %5839 = vmatpush1.bf16.msra.mxu0 0
    %5840 = vmatprep.subr.bf16.mxu0 0
    %5841 = vmatpush1.bf16.msra.mxu0 0
    %5842 = vmatprep.subr.bf16.mxu0 0
    %5843 = vmatpush1.bf16.msra.mxu0 0
    %5844 = vmatprep.subr.bf16.mxu0 0
    %5845 = vmatpush1.bf16.msra.mxu0 0
    %5846 = vmatprep.subr.bf16.mxu0 0
    %5847 = vmatpush1.bf16.msra.mxu0 0
    %5848 = vmatprep.mubr.bf16.mxu0 0
    %5849 = vmatmul.mubr.bf16.gmra.mrb[0].mxu0 %v5814
    %v5850 = vpop.f32.mrb[0].mxu0
    %v5851 = vadd.f32 0.0, %v5850
    %v5852 = vpop.f32.mrb[0].mxu0
    %v5853 = vpop.f32.mrb[0].mxu0
    %v5854 = vadd.f32 0.0, %v5853
    %v5855 = vpop.f32.mrb[0].mxu0
    %5856 = vdwg.mxu0
    %v5858 = vsel %vm136, %v5812, 0
    %5860 = vmatprep.subr.bf16.mxu0 0
    %5861 = vmatpush1.bf16.msra.mxu0 %v5070
    %5862 = vmatprep.subr.bf16.mxu0 0
    %5863 = vmatpush1.bf16.msra.mxu0 0
    %5864 = vmatprep.subr.bf16.mxu0 0
    %5865 = vmatpush1.bf16.msra.mxu0 0
    %5866 = vmatprep.subr.bf16.mxu0 0
    %5867 = vmatpush1.bf16.msra.mxu0 0
    %5868 = vmatprep.subr.bf16.mxu0 0
    %5869 = vmatpush1.bf16.msra.mxu0 0
    %5870 = vmatprep.subr.bf16.mxu0 0
    %5871 = vmatpush1.bf16.msra.mxu0 0
    %5872 = vmatprep.subr.bf16.mxu0 0
    %5873 = vmatpush1.bf16.msra.mxu0 0
    %5874 = vmatprep.subr.bf16.mxu0 0
    %5875 = vmatpush1.bf16.msra.mxu0 0
    %5876 = vmatprep.subr.bf16.mxu0 0
    %5877 = vmatpush1.bf16.msra.mxu0 0
    %5878 = vmatprep.subr.bf16.mxu0 0
    %5879 = vmatpush1.bf16.msra.mxu0 0
    %5880 = vmatprep.subr.bf16.mxu0 0
    %5881 = vmatpush1.bf16.msra.mxu0 0
    %5882 = vmatprep.subr.bf16.mxu0 0
    %5883 = vmatpush1.bf16.msra.mxu0 0
    %5884 = vmatprep.subr.bf16.mxu0 0
    %5885 = vmatpush1.bf16.msra.mxu0 0
    %5886 = vmatprep.subr.bf16.mxu0 0
    %5887 = vmatpush1.bf16.msra.mxu0 0
    %5888 = vmatprep.subr.bf16.mxu0 0
    %5889 = vmatpush1.bf16.msra.mxu0 0
    %5890 = vmatprep.subr.bf16.mxu0 0
    %5891 = vmatpush1.bf16.msra.mxu0 0
    %5892 = vmatprep.mubr.bf16.mxu0 0
    %5893 = vmatmul.mubr.bf16.gmra.mrb[0].mxu0 %v5858
    %v5894 = vpop.f32.mrb[0].mxu0
    %v5895 = vadd.f32 0.0, %v5894
    %v5896 = vpop.f32.mrb[0].mxu0
    %v5897 = vpop.f32.mrb[0].mxu0
    %v5898 = vadd.f32 0.0, %v5897
    %v5899 = vpop.f32.mrb[0].mxu0
    %5900 = vdwg.mxu0
    %v5901 = vmax.f32 %v5711, %v5851
    %v5902 = vmax.f32 %v5712, %v5854
    %v5903 = vmax.f32 %v5713, %v5895
    %v5904 = vmax.f32 %v5714, %v5898
    %v5905 = vsel %vm5799, -1e+30, %v5715
    %v5906 = vsel %vm5800, -1e+30, %v5716
    %v5907 = vsel %vm5801, -1e+30, %v5717
    %v5908 = vsel %vm5802, -1e+30, %v5718
    %v5909 = vsel %vm136, %v5905, -inf
    %5910 = vmax.xlane.f32.xlu0 %v5909
    %v5911 = vpop.xlane.xlu0 %5910
    %v5912 = vsel %vm136, %v5906, -inf
    %5913 = vmax.xlane.f32.xlu0 %v5912
    %v5914 = vpop.xlane.xlu0 %5913
    %v5915 = vsel %vm136, %v5907, -inf
    %5916 = vmax.xlane.f32.xlu0 %v5915
    %v5917 = vpop.xlane.xlu0 %5916
    %v5918 = vsel %vm136, %v5908, -inf
    %5919 = vmax.xlane.f32.xlu0 %v5918
    %v5920 = vpop.xlane.xlu0 %5919
    %vm5921 = vcmp.eq.f32.partialorder %v5905, %v5911
    %vm5922 = vcmp.eq.f32.partialorder %v5906, %v5914
    %vm5923 = vcmp.eq.f32.partialorder %v5907, %v5917
    %vm5924 = vcmp.eq.f32.partialorder %v5908, %v5920
    %v5925 = vsel %vm5921, %v448, 16
    %v5926 = vsel %vm5922, %v448, 16
    %v5927 = vsel %vm5923, %v448, 16
    %v5928 = vsel %vm5924, %v448, 16
    %v5929 = vsel %vm136, %v5925, 2147483647
    %v5930 = vand.u32 %v5929, 65535
    %v5931 = vshra.s32 %v5929, 16
    %v5932 = vcvt.s32.f32 %v5930
    %v5933 = vcvt.s32.f32 %v5931
    %5934 = vmin.xlane.f32.xlu0 %v5933
    %v5935 = vpop.xlane.xlu0 %5934
    %vm5936 = vcmp.eq.f32.partialorder %v5933, %v5935
    %v5937 = vsel %vm5936, %v5932, inf
    %5938 = vmin.xlane.f32.xlu0 %v5937
    %v5939 = vpop.xlane.xlu0 %5938
    %v5940 = vcvt.f32.s32 %v5939
    %v5941 = vcvt.f32.s32 %v5935
    %v5942 = vshll.u32 %v5941, 16
    %v5943 = vadd.s32 %v5942, %v5940
    %v5944 = vsel %vm136, %v5926, 2147483647
    %v5945 = vand.u32 %v5944, 65535
    %v5946 = vshra.s32 %v5944, 16
    %v5947 = vcvt.s32.f32 %v5945
    %v5948 = vcvt.s32.f32 %v5946
    %5949 = vmin.xlane.f32.xlu0 %v5948
    %v5950 = vpop.xlane.xlu0 %5949
    %vm5951 = vcmp.eq.f32.partialorder %v5948, %v5950
    %v5952 = vsel %vm5951, %v5947, inf
    %5953 = vmin.xlane.f32.xlu0 %v5952
    %v5954 = vpop.xlane.xlu0 %5953
    %v5955 = vcvt.f32.s32 %v5954
    %v5956 = vcvt.f32.s32 %v5950
    %v5957 = vshll.u32 %v5956, 16
    %v5958 = vadd.s32 %v5957, %v5955
    %v5959 = vsel %vm136, %v5927, 2147483647
    %v5960 = vand.u32 %v5959, 65535
    %v5961 = vshra.s32 %v5959, 16
    %v5962 = vcvt.s32.f32 %v5960
    %v5963 = vcvt.s32.f32 %v5961
    %5964 = vmin.xlane.f32.xlu0 %v5963
    %v5965 = vpop.xlane.xlu0 %5964
    %vm5966 = vcmp.eq.f32.partialorder %v5963, %v5965
    %v5967 = vsel %vm5966, %v5962, inf
    %5968 = vmin.xlane.f32.xlu0 %v5967
    %v5969 = vpop.xlane.xlu0 %5968
    %v5970 = vcvt.f32.s32 %v5969
    %v5971 = vcvt.f32.s32 %v5965
    %v5972 = vshll.u32 %v5971, 16
    %v5973 = vadd.s32 %v5972, %v5970
    %v5974 = vsel %vm136, %v5928, 2147483647
    %v5975 = vand.u32 %v5974, 65535
    %v5976 = vshra.s32 %v5974, 16
    %v5977 = vcvt.s32.f32 %v5975
    %v5978 = vcvt.s32.f32 %v5976
    %5979 = vmin.xlane.f32.xlu0 %v5978
    %v5980 = vpop.xlane.xlu0 %5979
    %vm5981 = vcmp.eq.f32.partialorder %v5978, %v5980
    %v5982 = vsel %vm5981, %v5977, inf
    %5983 = vmin.xlane.f32.xlu0 %v5982
    %v5984 = vpop.xlane.xlu0 %5983
    %v5985 = vcvt.f32.s32 %v5984
    %v5986 = vcvt.f32.s32 %v5980
    %v5987 = vshll.u32 %v5986, 16
    %v5988 = vadd.s32 %v5987, %v5985
    %vm5989 = vcmp.eq.s32.totalorder %v448, %v5943
    %vm5990 = vcmp.eq.s32.totalorder %v448, %v5958
    %vm5991 = vcmp.eq.s32.totalorder %v448, %v5973
    %vm5992 = vcmp.eq.s32.totalorder %v448, %v5988
    %v5993 = vsel %vm5989, 1, 0
    %v5994 = vsel %vm5990, 1, 0
    %v5995 = vsel %vm5991, 1, 0
    %v5996 = vsel %vm5992, 1, 0
    %v5997 = vcvt.s32.f32 %v5993
    %v5998 = vcvt.s32.f32 %v5994
    %v5999 = vcvt.s32.f32 %v5995
    %v6000 = vcvt.s32.f32 %v5996
    %v6001 = vpack.c.bf16 %v5998, %v5997
    %v6002 = vpack.c.bf16 %v6000, %v5999
    %v6004 = vsel %vm136, %v6001, 0
    %6006 = vmatprep.subr.bf16.mxu0 0
    %6007 = vmatpush1.bf16.msra.mxu0 %v5069
    %6008 = vmatprep.subr.bf16.mxu0 0
    %6009 = vmatpush1.bf16.msra.mxu0 0
    %6010 = vmatprep.subr.bf16.mxu0 0
    %6011 = vmatpush1.bf16.msra.mxu0 0
    %6012 = vmatprep.subr.bf16.mxu0 0
    %6013 = vmatpush1.bf16.msra.mxu0 0
    %6014 = vmatprep.subr.bf16.mxu0 0
    %6015 = vmatpush1.bf16.msra.mxu0 0
    %6016 = vmatprep.subr.bf16.mxu0 0
    %6017 = vmatpush1.bf16.msra.mxu0 0
    %6018 = vmatprep.subr.bf16.mxu0 0
    %6019 = vmatpush1.bf16.msra.mxu0 0
    %6020 = vmatprep.subr.bf16.mxu0 0
    %6021 = vmatpush1.bf16.msra.mxu0 0
    %6022 = vmatprep.subr.bf16.mxu0 0
    %6023 = vmatpush1.bf16.msra.mxu0 0
    %6024 = vmatprep.subr.bf16.mxu0 0
    %6025 = vmatpush1.bf16.msra.mxu0 0
    %6026 = vmatprep.subr.bf16.mxu0 0
    %6027 = vmatpush1.bf16.msra.mxu0 0
    %6028 = vmatprep.subr.bf16.mxu0 0
    %6029 = vmatpush1.bf16.msra.mxu0 0
    %6030 = vmatprep.subr.bf16.mxu0 0
    %6031 = vmatpush1.bf16.msra.mxu0 0
    %6032 = vmatprep.subr.bf16.mxu0 0
    %6033 = vmatpush1.bf16.msra.mxu0 0
    %6034 = vmatprep.subr.bf16.mxu0 0
    %6035 = vmatpush1.bf16.msra.mxu0 0
    %6036 = vmatprep.subr.bf16.mxu0 0
    %6037 = vmatpush1.bf16.msra.mxu0 0
    %6038 = vmatprep.mubr.bf16.mxu0 0
    %6039 = vmatmul.mubr.bf16.gmra.mrb[0].mxu0 %v6004
    %v6040 = vpop.f32.mrb[0].mxu0
    %v6041 = vadd.f32 0.0, %v6040
    %v6042 = vpop.f32.mrb[0].mxu0
    %v6043 = vpop.f32.mrb[0].mxu0
    %v6044 = vadd.f32 0.0, %v6043
    %v6045 = vpop.f32.mrb[0].mxu0
    %6046 = vdwg.mxu0
    %v6048 = vsel %vm136, %v6002, 0
    %6050 = vmatprep.subr.bf16.mxu0 0
    %6051 = vmatpush1.bf16.msra.mxu0 %v5070
    %6052 = vmatprep.subr.bf16.mxu0 0
    %6053 = vmatpush1.bf16.msra.mxu0 0
    %6054 = vmatprep.subr.bf16.mxu0 0
    %6055 = vmatpush1.bf16.msra.mxu0 0
    %6056 = vmatprep.subr.bf16.mxu0 0
    %6057 = vmatpush1.bf16.msra.mxu0 0
    %6058 = vmatprep.subr.bf16.mxu0 0
    %6059 = vmatpush1.bf16.msra.mxu0 0
    %6060 = vmatprep.subr.bf16.mxu0 0
    %6061 = vmatpush1.bf16.msra.mxu0 0
    %6062 = vmatprep.subr.bf16.mxu0 0
    %6063 = vmatpush1.bf16.msra.mxu0 0
    %6064 = vmatprep.subr.bf16.mxu0 0
    %6065 = vmatpush1.bf16.msra.mxu0 0
    %6066 = vmatprep.subr.bf16.mxu0 0
    %6067 = vmatpush1.bf16.msra.mxu0 0
    %6068 = vmatprep.subr.bf16.mxu0 0
    %6069 = vmatpush1.bf16.msra.mxu0 0
    %6070 = vmatprep.subr.bf16.mxu0 0
    %6071 = vmatpush1.bf16.msra.mxu0 0
    %6072 = vmatprep.subr.bf16.mxu0 0
    %6073 = vmatpush1.bf16.msra.mxu0 0
    %6074 = vmatprep.subr.bf16.mxu0 0
    %6075 = vmatpush1.bf16.msra.mxu0 0
    %6076 = vmatprep.subr.bf16.mxu0 0
    %6077 = vmatpush1.bf16.msra.mxu0 0
    %6078 = vmatprep.subr.bf16.mxu0 0
    %6079 = vmatpush1.bf16.msra.mxu0 0
    %6080 = vmatprep.subr.bf16.mxu0 0
    %6081 = vmatpush1.bf16.msra.mxu0 0
    %6082 = vmatprep.mubr.bf16.mxu0 0
    %6083 = vmatmul.mubr.bf16.gmra.mrb[0].mxu0 %v6048
    %v6084 = vpop.f32.mrb[0].mxu0
    %v6085 = vadd.f32 0.0, %v6084
    %v6086 = vpop.f32.mrb[0].mxu0
    %v6087 = vpop.f32.mrb[0].mxu0
    %v6088 = vadd.f32 0.0, %v6087
    %v6089 = vpop.f32.mrb[0].mxu0
    %6090 = vdwg.mxu0
    %v6091 = vmax.f32 %v5901, %v6041
    %v6092 = vmax.f32 %v5902, %v6044
    %v6093 = vmax.f32 %v5903, %v6085
    %v6094 = vmax.f32 %v5904, %v6088
    %v6095 = vsel %vm5989, -1e+30, %v5905
    %v6096 = vsel %vm5990, -1e+30, %v5906
    %v6097 = vsel %vm5991, -1e+30, %v5907
    %v6098 = vsel %vm5992, -1e+30, %v5908
    %v6099 = vsel %vm136, %v6095, -inf
    %6100 = vmax.xlane.f32.xlu0 %v6099
    %v6101 = vpop.xlane.xlu0 %6100
    %v6102 = vsel %vm136, %v6096, -inf
    %6103 = vmax.xlane.f32.xlu0 %v6102
    %v6104 = vpop.xlane.xlu0 %6103
    %v6105 = vsel %vm136, %v6097, -inf
    %6106 = vmax.xlane.f32.xlu0 %v6105
    %v6107 = vpop.xlane.xlu0 %6106
    %v6108 = vsel %vm136, %v6098, -inf
    %6109 = vmax.xlane.f32.xlu0 %v6108
    %v6110 = vpop.xlane.xlu0 %6109
    %vm6111 = vcmp.eq.f32.partialorder %v6095, %v6101
    %vm6112 = vcmp.eq.f32.partialorder %v6096, %v6104
    %vm6113 = vcmp.eq.f32.partialorder %v6097, %v6107
    %vm6114 = vcmp.eq.f32.partialorder %v6098, %v6110
    %v6115 = vsel %vm6111, %v448, 16
    %v6116 = vsel %vm6112, %v448, 16
    %v6117 = vsel %vm6113, %v448, 16
    %v6118 = vsel %vm6114, %v448, 16
    %v6119 = vsel %vm136, %v6115, 2147483647
    %v6120 = vand.u32 %v6119, 65535
    %v6121 = vshra.s32 %v6119, 16
    %v6122 = vcvt.s32.f32 %v6120
    %v6123 = vcvt.s32.f32 %v6121
    %6124 = vmin.xlane.f32.xlu0 %v6123
    %v6125 = vpop.xlane.xlu0 %6124
    %vm6126 = vcmp.eq.f32.partialorder %v6123, %v6125
    %v6127 = vsel %vm6126, %v6122, inf
    %6128 = vmin.xlane.f32.xlu0 %v6127
    %v6129 = vpop.xlane.xlu0 %6128
    %v6130 = vcvt.f32.s32 %v6129
    %v6131 = vcvt.f32.s32 %v6125
    %v6132 = vshll.u32 %v6131, 16
    %v6133 = vadd.s32 %v6132, %v6130
    %v6134 = vsel %vm136, %v6116, 2147483647
    %v6135 = vand.u32 %v6134, 65535
    %v6136 = vshra.s32 %v6134, 16
    %v6137 = vcvt.s32.f32 %v6135
    %v6138 = vcvt.s32.f32 %v6136
    %6139 = vmin.xlane.f32.xlu0 %v6138
    %v6140 = vpop.xlane.xlu0 %6139
    %vm6141 = vcmp.eq.f32.partialorder %v6138, %v6140
    %v6142 = vsel %vm6141, %v6137, inf
    %6143 = vmin.xlane.f32.xlu0 %v6142
    %v6144 = vpop.xlane.xlu0 %6143
    %v6145 = vcvt.f32.s32 %v6144
    %v6146 = vcvt.f32.s32 %v6140
    %v6147 = vshll.u32 %v6146, 16
    %v6148 = vadd.s32 %v6147, %v6145
    %v6149 = vsel %vm136, %v6117, 2147483647
    %v6150 = vand.u32 %v6149, 65535
    %v6151 = vshra.s32 %v6149, 16
    %v6152 = vcvt.s32.f32 %v6150
    %v6153 = vcvt.s32.f32 %v6151
    %6154 = vmin.xlane.f32.xlu0 %v6153
    %v6155 = vpop.xlane.xlu0 %6154
    %vm6156 = vcmp.eq.f32.partialorder %v6153, %v6155
    %v6157 = vsel %vm6156, %v6152, inf
    %6158 = vmin.xlane.f32.xlu0 %v6157
    %v6159 = vpop.xlane.xlu0 %6158
    %v6160 = vcvt.f32.s32 %v6159
    %v6161 = vcvt.f32.s32 %v6155
    %v6162 = vshll.u32 %v6161, 16
    %v6163 = vadd.s32 %v6162, %v6160
    %v6164 = vsel %vm136, %v6118, 2147483647
    %v6165 = vand.u32 %v6164, 65535
    %v6166 = vshra.s32 %v6164, 16
    %v6167 = vcvt.s32.f32 %v6165
    %v6168 = vcvt.s32.f32 %v6166
    %6169 = vmin.xlane.f32.xlu0 %v6168
    %v6170 = vpop.xlane.xlu0 %6169
    %vm6171 = vcmp.eq.f32.partialorder %v6168, %v6170
    %v6172 = vsel %vm6171, %v6167, inf
    %6173 = vmin.xlane.f32.xlu0 %v6172
    %v6174 = vpop.xlane.xlu0 %6173
    %v6175 = vcvt.f32.s32 %v6174
    %v6176 = vcvt.f32.s32 %v6170
    %v6177 = vshll.u32 %v6176, 16
    %v6178 = vadd.s32 %v6177, %v6175
    %vm6179 = vcmp.eq.s32.totalorder %v448, %v6133
    %vm6180 = vcmp.eq.s32.totalorder %v448, %v6148
    %vm6181 = vcmp.eq.s32.totalorder %v448, %v6163
    %vm6182 = vcmp.eq.s32.totalorder %v448, %v6178
    %v6183 = vsel %vm6179, 1, 0
    %v6184 = vsel %vm6180, 1, 0
    %v6185 = vsel %vm6181, 1, 0
    %v6186 = vsel %vm6182, 1, 0
    %v6187 = vcvt.s32.f32 %v6183
    %v6188 = vcvt.s32.f32 %v6184
    %v6189 = vcvt.s32.f32 %v6185
    %v6190 = vcvt.s32.f32 %v6186
    %v6191 = vpack.c.bf16 %v6188, %v6187
    %v6192 = vpack.c.bf16 %v6190, %v6189
    %v6194 = vsel %vm136, %v6191, 0
    %6196 = vmatprep.subr.bf16.mxu0 0
    %6197 = vmatpush1.bf16.msra.mxu0 %v5069
    %6198 = vmatprep.subr.bf16.mxu0 0
    %6199 = vmatpush1.bf16.msra.mxu0 0
    %6200 = vmatprep.subr.bf16.mxu0 0
    %6201 = vmatpush1.bf16.msra.mxu0 0
    %6202 = vmatprep.subr.bf16.mxu0 0
    %6203 = vmatpush1.bf16.msra.mxu0 0
    %6204 = vmatprep.subr.bf16.mxu0 0
    %6205 = vmatpush1.bf16.msra.mxu0 0
    %6206 = vmatprep.subr.bf16.mxu0 0
    %6207 = vmatpush1.bf16.msra.mxu0 0
    %6208 = vmatprep.subr.bf16.mxu0 0
    %6209 = vmatpush1.bf16.msra.mxu0 0
    %6210 = vmatprep.subr.bf16.mxu0 0
    %6211 = vmatpush1.bf16.msra.mxu0 0
    %6212 = vmatprep.subr.bf16.mxu0 0
    %6213 = vmatpush1.bf16.msra.mxu0 0
    %6214 = vmatprep.subr.bf16.mxu0 0
    %6215 = vmatpush1.bf16.msra.mxu0 0
    %6216 = vmatprep.subr.bf16.mxu0 0
    %6217 = vmatpush1.bf16.msra.mxu0 0
    %6218 = vmatprep.subr.bf16.mxu0 0
    %6219 = vmatpush1.bf16.msra.mxu0 0
    %6220 = vmatprep.subr.bf16.mxu0 0
    %6221 = vmatpush1.bf16.msra.mxu0 0
    %6222 = vmatprep.subr.bf16.mxu0 0
    %6223 = vmatpush1.bf16.msra.mxu0 0
    %6224 = vmatprep.subr.bf16.mxu0 0
    %6225 = vmatpush1.bf16.msra.mxu0 0
    %6226 = vmatprep.subr.bf16.mxu0 0
    %6227 = vmatpush1.bf16.msra.mxu0 0
    %6228 = vmatprep.mubr.bf16.mxu0 0
    %6229 = vmatmul.mubr.bf16.gmra.mrb[0].mxu0 %v6194
    %v6230 = vpop.f32.mrb[0].mxu0
    %v6231 = vadd.f32 0.0, %v6230
    %v6232 = vpop.f32.mrb[0].mxu0
    %v6233 = vpop.f32.mrb[0].mxu0
    %v6234 = vadd.f32 0.0, %v6233
    %v6235 = vpop.f32.mrb[0].mxu0
    %6236 = vdwg.mxu0
    %v6238 = vsel %vm136, %v6192, 0
    %6240 = vmatprep.subr.bf16.mxu0 0
    %6241 = vmatpush1.bf16.msra.mxu0 %v5070
    %6242 = vmatprep.subr.bf16.mxu0 0
    %6243 = vmatpush1.bf16.msra.mxu0 0
    %6244 = vmatprep.subr.bf16.mxu0 0
    %6245 = vmatpush1.bf16.msra.mxu0 0
    %6246 = vmatprep.subr.bf16.mxu0 0
    %6247 = vmatpush1.bf16.msra.mxu0 0
    %6248 = vmatprep.subr.bf16.mxu0 0
    %6249 = vmatpush1.bf16.msra.mxu0 0
    %6250 = vmatprep.subr.bf16.mxu0 0
    %6251 = vmatpush1.bf16.msra.mxu0 0
    %6252 = vmatprep.subr.bf16.mxu0 0
    %6253 = vmatpush1.bf16.msra.mxu0 0
    %6254 = vmatprep.subr.bf16.mxu0 0
    %6255 = vmatpush1.bf16.msra.mxu0 0
    %6256 = vmatprep.subr.bf16.mxu0 0
    %6257 = vmatpush1.bf16.msra.mxu0 0
    %6258 = vmatprep.subr.bf16.mxu0 0
    %6259 = vmatpush1.bf16.msra.mxu0 0
    %6260 = vmatprep.subr.bf16.mxu0 0
    %6261 = vmatpush1.bf16.msra.mxu0 0
    %6262 = vmatprep.subr.bf16.mxu0 0
    %6263 = vmatpush1.bf16.msra.mxu0 0
    %6264 = vmatprep.subr.bf16.mxu0 0
    %6265 = vmatpush1.bf16.msra.mxu0 0
    %6266 = vmatprep.subr.bf16.mxu0 0
    %6267 = vmatpush1.bf16.msra.mxu0 0
    %6268 = vmatprep.subr.bf16.mxu0 0
    %6269 = vmatpush1.bf16.msra.mxu0 0
    %6270 = vmatprep.subr.bf16.mxu0 0
    %6271 = vmatpush1.bf16.msra.mxu0 0
    %6272 = vmatprep.mubr.bf16.mxu0 0
    %6273 = vmatmul.mubr.bf16.gmra.mrb[0].mxu0 %v6238
    %v6274 = vpop.f32.mrb[0].mxu0
    %v6275 = vadd.f32 0.0, %v6274
    %v6276 = vpop.f32.mrb[0].mxu0
    %v6277 = vpop.f32.mrb[0].mxu0
    %v6278 = vadd.f32 0.0, %v6277
    %v6279 = vpop.f32.mrb[0].mxu0
    %6280 = vdwg.mxu0
    %v6281 = vmax.f32 %v6091, %v6231
    %v6282 = vmax.f32 %v6092, %v6234
    %v6283 = vmax.f32 %v6093, %v6275
    %v6284 = vmax.f32 %v6094, %v6278
    %v6285 = vsel %vm6179, -1e+30, %v6095
    %v6286 = vsel %vm6180, -1e+30, %v6096
    %v6287 = vsel %vm6181, -1e+30, %v6097
    %v6288 = vsel %vm6182, -1e+30, %v6098
    %v6289 = vsel %vm136, %v6285, -inf
    %6290 = vmax.xlane.f32.xlu0 %v6289
    %v6291 = vpop.xlane.xlu0 %6290
    %v6292 = vsel %vm136, %v6286, -inf
    %6293 = vmax.xlane.f32.xlu0 %v6292
    %v6294 = vpop.xlane.xlu0 %6293
    %v6295 = vsel %vm136, %v6287, -inf
    %6296 = vmax.xlane.f32.xlu0 %v6295
    %v6297 = vpop.xlane.xlu0 %6296
    %v6298 = vsel %vm136, %v6288, -inf
    %6299 = vmax.xlane.f32.xlu0 %v6298
    %v6300 = vpop.xlane.xlu0 %6299
    %vm6301 = vcmp.eq.f32.partialorder %v6285, %v6291
    %vm6302 = vcmp.eq.f32.partialorder %v6286, %v6294
    %vm6303 = vcmp.eq.f32.partialorder %v6287, %v6297
    %vm6304 = vcmp.eq.f32.partialorder %v6288, %v6300
    %v6305 = vsel %vm6301, %v448, 16
    %v6306 = vsel %vm6302, %v448, 16
    %v6307 = vsel %vm6303, %v448, 16
    %v6308 = vsel %vm6304, %v448, 16
    %v6309 = vsel %vm136, %v6305, 2147483647
    %v6310 = vand.u32 %v6309, 65535
    %v6311 = vshra.s32 %v6309, 16
    %v6312 = vcvt.s32.f32 %v6310
    %v6313 = vcvt.s32.f32 %v6311
    %6314 = vmin.xlane.f32.xlu0 %v6313
    %v6315 = vpop.xlane.xlu0 %6314
    %vm6316 = vcmp.eq.f32.partialorder %v6313, %v6315
    %v6317 = vsel %vm6316, %v6312, inf
    %6318 = vmin.xlane.f32.xlu0 %v6317
    %v6319 = vpop.xlane.xlu0 %6318
    %v6320 = vcvt.f32.s32 %v6319
    %v6321 = vcvt.f32.s32 %v6315
    %v6322 = vshll.u32 %v6321, 16
    %v6323 = vadd.s32 %v6322, %v6320
    %v6324 = vsel %vm136, %v6306, 2147483647
    %v6325 = vand.u32 %v6324, 65535
    %v6326 = vshra.s32 %v6324, 16
    %v6327 = vcvt.s32.f32 %v6325
    %v6328 = vcvt.s32.f32 %v6326
    %6329 = vmin.xlane.f32.xlu0 %v6328
    %v6330 = vpop.xlane.xlu0 %6329
    %vm6331 = vcmp.eq.f32.partialorder %v6328, %v6330
    %v6332 = vsel %vm6331, %v6327, inf
    %6333 = vmin.xlane.f32.xlu0 %v6332
    %v6334 = vpop.xlane.xlu0 %6333
    %v6335 = vcvt.f32.s32 %v6334
    %v6336 = vcvt.f32.s32 %v6330
    %v6337 = vshll.u32 %v6336, 16
    %v6338 = vadd.s32 %v6337, %v6335
    %v6339 = vsel %vm136, %v6307, 2147483647
    %v6340 = vand.u32 %v6339, 65535
    %v6341 = vshra.s32 %v6339, 16
    %v6342 = vcvt.s32.f32 %v6340
    %v6343 = vcvt.s32.f32 %v6341
    %6344 = vmin.xlane.f32.xlu0 %v6343
    %v6345 = vpop.xlane.xlu0 %6344
    %vm6346 = vcmp.eq.f32.partialorder %v6343, %v6345
    %v6347 = vsel %vm6346, %v6342, inf
    %6348 = vmin.xlane.f32.xlu0 %v6347
    %v6349 = vpop.xlane.xlu0 %6348
    %v6350 = vcvt.f32.s32 %v6349
    %v6351 = vcvt.f32.s32 %v6345
    %v6352 = vshll.u32 %v6351, 16
    %v6353 = vadd.s32 %v6352, %v6350
    %v6354 = vsel %vm136, %v6308, 2147483647
    %v6355 = vand.u32 %v6354, 65535
    %v6356 = vshra.s32 %v6354, 16
    %v6357 = vcvt.s32.f32 %v6355
    %v6358 = vcvt.s32.f32 %v6356
    %6359 = vmin.xlane.f32.xlu0 %v6358
    %v6360 = vpop.xlane.xlu0 %6359
    %vm6361 = vcmp.eq.f32.partialorder %v6358, %v6360
    %v6362 = vsel %vm6361, %v6357, inf
    %6363 = vmin.xlane.f32.xlu0 %v6362
    %v6364 = vpop.xlane.xlu0 %6363
    %v6365 = vcvt.f32.s32 %v6364
    %v6366 = vcvt.f32.s32 %v6360
    %v6367 = vshll.u32 %v6366, 16
    %v6368 = vadd.s32 %v6367, %v6365
    %vm6369 = vcmp.eq.s32.totalorder %v448, %v6323
    %vm6370 = vcmp.eq.s32.totalorder %v448, %v6338
    %vm6371 = vcmp.eq.s32.totalorder %v448, %v6353
    %vm6372 = vcmp.eq.s32.totalorder %v448, %v6368
    %v6373 = vsel %vm6369, 1, 0
    %v6374 = vsel %vm6370, 1, 0
    %v6375 = vsel %vm6371, 1, 0
    %v6376 = vsel %vm6372, 1, 0
    %v6377 = vcvt.s32.f32 %v6373
    %v6378 = vcvt.s32.f32 %v6374
    %v6379 = vcvt.s32.f32 %v6375
    %v6380 = vcvt.s32.f32 %v6376
    %v6381 = vpack.c.bf16 %v6378, %v6377
    %v6382 = vpack.c.bf16 %v6380, %v6379
    %v6384 = vsel %vm136, %v6381, 0
    %6386 = vmatprep.subr.bf16.mxu0 0
    %6387 = vmatpush1.bf16.msra.mxu0 %v5069
    %6388 = vmatprep.subr.bf16.mxu0 0
    %6389 = vmatpush1.bf16.msra.mxu0 0
    %6390 = vmatprep.subr.bf16.mxu0 0
    %6391 = vmatpush1.bf16.msra.mxu0 0
    %6392 = vmatprep.subr.bf16.mxu0 0
    %6393 = vmatpush1.bf16.msra.mxu0 0
    %6394 = vmatprep.subr.bf16.mxu0 0
    %6395 = vmatpush1.bf16.msra.mxu0 0
    %6396 = vmatprep.subr.bf16.mxu0 0
    %6397 = vmatpush1.bf16.msra.mxu0 0
    %6398 = vmatprep.subr.bf16.mxu0 0
    %6399 = vmatpush1.bf16.msra.mxu0 0
    %6400 = vmatprep.subr.bf16.mxu0 0
    %6401 = vmatpush1.bf16.msra.mxu0 0
    %6402 = vmatprep.subr.bf16.mxu0 0
    %6403 = vmatpush1.bf16.msra.mxu0 0
    %6404 = vmatprep.subr.bf16.mxu0 0
    %6405 = vmatpush1.bf16.msra.mxu0 0
    %6406 = vmatprep.subr.bf16.mxu0 0
    %6407 = vmatpush1.bf16.msra.mxu0 0
    %6408 = vmatprep.subr.bf16.mxu0 0
    %6409 = vmatpush1.bf16.msra.mxu0 0
    %6410 = vmatprep.subr.bf16.mxu0 0
    %6411 = vmatpush1.bf16.msra.mxu0 0
    %6412 = vmatprep.subr.bf16.mxu0 0
    %6413 = vmatpush1.bf16.msra.mxu0 0
    %6414 = vmatprep.subr.bf16.mxu0 0
    %6415 = vmatpush1.bf16.msra.mxu0 0
    %6416 = vmatprep.subr.bf16.mxu0 0
    %6417 = vmatpush1.bf16.msra.mxu0 0
    %6418 = vmatprep.mubr.bf16.mxu0 0
    %6419 = vmatmul.mubr.bf16.gmra.mrb[0].mxu0 %v6384
    %v6420 = vpop.f32.mrb[0].mxu0
    %v6421 = vadd.f32 0.0, %v6420
    %v6422 = vpop.f32.mrb[0].mxu0
    %v6423 = vpop.f32.mrb[0].mxu0
    %v6424 = vadd.f32 0.0, %v6423
    %v6425 = vpop.f32.mrb[0].mxu0
    %6426 = vdwg.mxu0
    %v6428 = vsel %vm136, %v6382, 0
    %6430 = vmatprep.subr.bf16.mxu0 0
    %6431 = vmatpush1.bf16.msra.mxu0 %v5070
    %6432 = vmatprep.subr.bf16.mxu0 0
    %6433 = vmatpush1.bf16.msra.mxu0 0
    %6434 = vmatprep.subr.bf16.mxu0 0
    %6435 = vmatpush1.bf16.msra.mxu0 0
    %6436 = vmatprep.subr.bf16.mxu0 0
    %6437 = vmatpush1.bf16.msra.mxu0 0
    %6438 = vmatprep.subr.bf16.mxu0 0
    %6439 = vmatpush1.bf16.msra.mxu0 0
    %6440 = vmatprep.subr.bf16.mxu0 0
    %6441 = vmatpush1.bf16.msra.mxu0 0
    %6442 = vmatprep.subr.bf16.mxu0 0
    %6443 = vmatpush1.bf16.msra.mxu0 0
    %6444 = vmatprep.subr.bf16.mxu0 0
    %6445 = vmatpush1.bf16.msra.mxu0 0
    %6446 = vmatprep.subr.bf16.mxu0 0
    %6447 = vmatpush1.bf16.msra.mxu0 0
    %6448 = vmatprep.subr.bf16.mxu0 0
    %6449 = vmatpush1.bf16.msra.mxu0 0
    %6450 = vmatprep.subr.bf16.mxu0 0
    %6451 = vmatpush1.bf16.msra.mxu0 0
    %6452 = vmatprep.subr.bf16.mxu0 0
    %6453 = vmatpush1.bf16.msra.mxu0 0
    %6454 = vmatprep.subr.bf16.mxu0 0
    %6455 = vmatpush1.bf16.msra.mxu0 0
    %6456 = vmatprep.subr.bf16.mxu0 0
    %6457 = vmatpush1.bf16.msra.mxu0 0
    %6458 = vmatprep.subr.bf16.mxu0 0
    %6459 = vmatpush1.bf16.msra.mxu0 0
    %6460 = vmatprep.subr.bf16.mxu0 0
    %6461 = vmatpush1.bf16.msra.mxu0 0
    %6462 = vmatprep.mubr.bf16.mxu0 0
    %6463 = vmatmul.mubr.bf16.gmra.mrb[0].mxu0 %v6428
    %v6464 = vpop.f32.mrb[0].mxu0
    %v6465 = vadd.f32 0.0, %v6464
    %v6466 = vpop.f32.mrb[0].mxu0
    %v6467 = vpop.f32.mrb[0].mxu0
    %v6468 = vadd.f32 0.0, %v6467
    %v6469 = vpop.f32.mrb[0].mxu0
    %6470 = vdwg.mxu0
    %v6471 = vmax.f32 %v6281, %v6421
    %v6472 = vmax.f32 %v6282, %v6424
    %v6473 = vmax.f32 %v6283, %v6465
    %v6474 = vmax.f32 %v6284, %v6468
    %v6475 = vsel %vm6369, -1e+30, %v6285
    %v6476 = vsel %vm6370, -1e+30, %v6286
    %v6477 = vsel %vm6371, -1e+30, %v6287
    %v6478 = vsel %vm6372, -1e+30, %v6288
    %v6479 = vsel %vm136, %v6475, -inf
    %6480 = vmax.xlane.f32.xlu0 %v6479
    %v6481 = vpop.xlane.xlu0 %6480
    %v6482 = vsel %vm136, %v6476, -inf
    %6483 = vmax.xlane.f32.xlu0 %v6482
    %v6484 = vpop.xlane.xlu0 %6483
    %v6485 = vsel %vm136, %v6477, -inf
    %6486 = vmax.xlane.f32.xlu0 %v6485
    %v6487 = vpop.xlane.xlu0 %6486
    %v6488 = vsel %vm136, %v6478, -inf
    %6489 = vmax.xlane.f32.xlu0 %v6488
    %v6490 = vpop.xlane.xlu0 %6489
    %vm6491 = vcmp.eq.f32.partialorder %v6475, %v6481
    %vm6492 = vcmp.eq.f32.partialorder %v6476, %v6484
    %vm6493 = vcmp.eq.f32.partialorder %v6477, %v6487
    %vm6494 = vcmp.eq.f32.partialorder %v6478, %v6490
    %v6495 = vsel %vm6491, %v448, 16
    %v6496 = vsel %vm6492, %v448, 16
    %v6497 = vsel %vm6493, %v448, 16
    %v6498 = vsel %vm6494, %v448, 16
    %v6499 = vsel %vm136, %v6495, 2147483647
    %v6500 = vand.u32 %v6499, 65535
    %v6501 = vshra.s32 %v6499, 16
    %v6502 = vcvt.s32.f32 %v6500
    %v6503 = vcvt.s32.f32 %v6501
    %6504 = vmin.xlane.f32.xlu0 %v6503
    %v6505 = vpop.xlane.xlu0 %6504
    %vm6506 = vcmp.eq.f32.partialorder %v6503, %v6505
    %v6507 = vsel %vm6506, %v6502, inf
    %6508 = vmin.xlane.f32.xlu0 %v6507
    %v6509 = vpop.xlane.xlu0 %6508
    %v6510 = vcvt.f32.s32 %v6509
    %v6511 = vcvt.f32.s32 %v6505
    %v6512 = vshll.u32 %v6511, 16
    %v6513 = vadd.s32 %v6512, %v6510
    %v6514 = vsel %vm136, %v6496, 2147483647
    %v6515 = vand.u32 %v6514, 65535
    %v6516 = vshra.s32 %v6514, 16
    %v6517 = vcvt.s32.f32 %v6515
    %v6518 = vcvt.s32.f32 %v6516
    %6519 = vmin.xlane.f32.xlu0 %v6518
    %v6520 = vpop.xlane.xlu0 %6519
    %vm6521 = vcmp.eq.f32.partialorder %v6518, %v6520
    %v6522 = vsel %vm6521, %v6517, inf
    %6523 = vmin.xlane.f32.xlu0 %v6522
    %v6524 = vpop.xlane.xlu0 %6523
    %v6525 = vcvt.f32.s32 %v6524
    %v6526 = vcvt.f32.s32 %v6520
    %v6527 = vshll.u32 %v6526, 16
    %v6528 = vadd.s32 %v6527, %v6525
    %v6529 = vsel %vm136, %v6497, 2147483647
    %v6530 = vand.u32 %v6529, 65535
    %v6531 = vshra.s32 %v6529, 16
    %v6532 = vcvt.s32.f32 %v6530
    %v6533 = vcvt.s32.f32 %v6531
    %6534 = vmin.xlane.f32.xlu0 %v6533
    %v6535 = vpop.xlane.xlu0 %6534
    %vm6536 = vcmp.eq.f32.partialorder %v6533, %v6535
    %v6537 = vsel %vm6536, %v6532, inf
    %6538 = vmin.xlane.f32.xlu0 %v6537
    %v6539 = vpop.xlane.xlu0 %6538
    %v6540 = vcvt.f32.s32 %v6539
    %v6541 = vcvt.f32.s32 %v6535
    %v6542 = vshll.u32 %v6541, 16
    %v6543 = vadd.s32 %v6542, %v6540
    %v6544 = vsel %vm136, %v6498, 2147483647
    %v6545 = vand.u32 %v6544, 65535
    %v6546 = vshra.s32 %v6544, 16
    %v6547 = vcvt.s32.f32 %v6545
    %v6548 = vcvt.s32.f32 %v6546
    %6549 = vmin.xlane.f32.xlu0 %v6548
    %v6550 = vpop.xlane.xlu0 %6549
    %vm6551 = vcmp.eq.f32.partialorder %v6548, %v6550
    %v6552 = vsel %vm6551, %v6547, inf
    %6553 = vmin.xlane.f32.xlu0 %v6552
    %v6554 = vpop.xlane.xlu0 %6553
    %v6555 = vcvt.f32.s32 %v6554
    %v6556 = vcvt.f32.s32 %v6550
    %v6557 = vshll.u32 %v6556, 16
    %v6558 = vadd.s32 %v6557, %v6555
    %vm6559 = vcmp.eq.s32.totalorder %v448, %v6513
    %vm6560 = vcmp.eq.s32.totalorder %v448, %v6528
    %vm6561 = vcmp.eq.s32.totalorder %v448, %v6543
    %vm6562 = vcmp.eq.s32.totalorder %v448, %v6558
    %v6563 = vsel %vm6559, 1, 0
    %v6564 = vsel %vm6560, 1, 0
    %v6565 = vsel %vm6561, 1, 0
    %v6566 = vsel %vm6562, 1, 0
    %v6567 = vcvt.s32.f32 %v6563
    %v6568 = vcvt.s32.f32 %v6564
    %v6569 = vcvt.s32.f32 %v6565
    %v6570 = vcvt.s32.f32 %v6566
    %v6571 = vpack.c.bf16 %v6568, %v6567
    %v6572 = vpack.c.bf16 %v6570, %v6569
    %v6574 = vsel %vm136, %v6571, 0
    %6576 = vmatprep.subr.bf16.mxu0 0
    %6577 = vmatpush1.bf16.msra.mxu0 %v5069
    %6578 = vmatprep.subr.bf16.mxu0 0
    %6579 = vmatpush1.bf16.msra.mxu0 0
    %6580 = vmatprep.subr.bf16.mxu0 0
    %6581 = vmatpush1.bf16.msra.mxu0 0
    %6582 = vmatprep.subr.bf16.mxu0 0
    %6583 = vmatpush1.bf16.msra.mxu0 0
    %6584 = vmatprep.subr.bf16.mxu0 0
    %6585 = vmatpush1.bf16.msra.mxu0 0
    %6586 = vmatprep.subr.bf16.mxu0 0
    %6587 = vmatpush1.bf16.msra.mxu0 0
    %6588 = vmatprep.subr.bf16.mxu0 0
    %6589 = vmatpush1.bf16.msra.mxu0 0
    %6590 = vmatprep.subr.bf16.mxu0 0
    %6591 = vmatpush1.bf16.msra.mxu0 0
    %6592 = vmatprep.subr.bf16.mxu0 0
    %6593 = vmatpush1.bf16.msra.mxu0 0
    %6594 = vmatprep.subr.bf16.mxu0 0
    %6595 = vmatpush1.bf16.msra.mxu0 0
    %6596 = vmatprep.subr.bf16.mxu0 0
    %6597 = vmatpush1.bf16.msra.mxu0 0
    %6598 = vmatprep.subr.bf16.mxu0 0
    %6599 = vmatpush1.bf16.msra.mxu0 0
    %6600 = vmatprep.subr.bf16.mxu0 0
    %6601 = vmatpush1.bf16.msra.mxu0 0
    %6602 = vmatprep.subr.bf16.mxu0 0
    %6603 = vmatpush1.bf16.msra.mxu0 0
    %6604 = vmatprep.subr.bf16.mxu0 0
    %6605 = vmatpush1.bf16.msra.mxu0 0
    %6606 = vmatprep.subr.bf16.mxu0 0
    %6607 = vmatpush1.bf16.msra.mxu0 0
    %6608 = vmatprep.mubr.bf16.mxu0 0
    %6609 = vmatmul.mubr.bf16.gmra.mrb[0].mxu0 %v6574
    %v6610 = vpop.f32.mrb[0].mxu0
    %v6611 = vadd.f32 0.0, %v6610
    %v6612 = vpop.f32.mrb[0].mxu0
    %v6613 = vpop.f32.mrb[0].mxu0
    %v6614 = vadd.f32 0.0, %v6613
    %v6615 = vpop.f32.mrb[0].mxu0
    %6616 = vdwg.mxu0
    %v6618 = vsel %vm136, %v6572, 0
    %6620 = vmatprep.subr.bf16.mxu0 0
    %6621 = vmatpush1.bf16.msra.mxu0 %v5070
    %6622 = vmatprep.subr.bf16.mxu0 0
    %6623 = vmatpush1.bf16.msra.mxu0 0
    %6624 = vmatprep.subr.bf16.mxu0 0
    %6625 = vmatpush1.bf16.msra.mxu0 0
    %6626 = vmatprep.subr.bf16.mxu0 0
    %6627 = vmatpush1.bf16.msra.mxu0 0
    %6628 = vmatprep.subr.bf16.mxu0 0
    %6629 = vmatpush1.bf16.msra.mxu0 0
    %6630 = vmatprep.subr.bf16.mxu0 0
    %6631 = vmatpush1.bf16.msra.mxu0 0
    %6632 = vmatprep.subr.bf16.mxu0 0
    %6633 = vmatpush1.bf16.msra.mxu0 0
    %6634 = vmatprep.subr.bf16.mxu0 0
    %6635 = vmatpush1.bf16.msra.mxu0 0
    %6636 = vmatprep.subr.bf16.mxu0 0
    %6637 = vmatpush1.bf16.msra.mxu0 0
    %6638 = vmatprep.subr.bf16.mxu0 0
    %6639 = vmatpush1.bf16.msra.mxu0 0
    %6640 = vmatprep.subr.bf16.mxu0 0
    %6641 = vmatpush1.bf16.msra.mxu0 0
    %6642 = vmatprep.subr.bf16.mxu0 0
    %6643 = vmatpush1.bf16.msra.mxu0 0
    %6644 = vmatprep.subr.bf16.mxu0 0
    %6645 = vmatpush1.bf16.msra.mxu0 0
    %6646 = vmatprep.subr.bf16.mxu0 0
    %6647 = vmatpush1.bf16.msra.mxu0 0
    %6648 = vmatprep.subr.bf16.mxu0 0
    %6649 = vmatpush1.bf16.msra.mxu0 0
    %6650 = vmatprep.subr.bf16.mxu0 0
    %6651 = vmatpush1.bf16.msra.mxu0 0
    %6652 = vmatprep.mubr.bf16.mxu0 0
    %6653 = vmatmul.mubr.bf16.gmra.mrb[0].mxu0 %v6618
    %v6654 = vpop.f32.mrb[0].mxu0
    %v6655 = vadd.f32 0.0, %v6654
    %v6656 = vpop.f32.mrb[0].mxu0
    %v6657 = vpop.f32.mrb[0].mxu0
    %v6658 = vadd.f32 0.0, %v6657
    %v6659 = vpop.f32.mrb[0].mxu0
    %6660 = vdwg.mxu0
    %v6661 = vmax.f32 %v6471, %v6611
    %v6662 = vmax.f32 %v6472, %v6614
    %v6663 = vmax.f32 %v6473, %v6655
    %v6664 = vmax.f32 %v6474, %v6658
    %v6665 = vsel %vm6559, -1e+30, %v6475
    %v6666 = vsel %vm6560, -1e+30, %v6476
    %v6667 = vsel %vm6561, -1e+30, %v6477
    %v6668 = vsel %vm6562, -1e+30, %v6478
    %v6669 = vsel %vm136, %v6665, -inf
    %6670 = vmax.xlane.f32.xlu0 %v6669
    %v6671 = vpop.xlane.xlu0 %6670
    %v6672 = vsel %vm136, %v6666, -inf
    %6673 = vmax.xlane.f32.xlu0 %v6672
    %v6674 = vpop.xlane.xlu0 %6673
    %v6675 = vsel %vm136, %v6667, -inf
    %6676 = vmax.xlane.f32.xlu0 %v6675
    %v6677 = vpop.xlane.xlu0 %6676
    %v6678 = vsel %vm136, %v6668, -inf
    %6679 = vmax.xlane.f32.xlu0 %v6678
    %v6680 = vpop.xlane.xlu0 %6679
    %vm6681 = vcmp.eq.f32.partialorder %v6665, %v6671
    %vm6682 = vcmp.eq.f32.partialorder %v6666, %v6674
    %vm6683 = vcmp.eq.f32.partialorder %v6667, %v6677
    %vm6684 = vcmp.eq.f32.partialorder %v6668, %v6680
    %v6685 = vsel %vm6681, %v448, 16
    %v6686 = vsel %vm6682, %v448, 16
    %v6687 = vsel %vm6683, %v448, 16
    %v6688 = vsel %vm6684, %v448, 16
    %v6689 = vsel %vm136, %v6685, 2147483647
    %v6690 = vand.u32 %v6689, 65535
    %v6691 = vshra.s32 %v6689, 16
    %v6692 = vcvt.s32.f32 %v6690
    %v6693 = vcvt.s32.f32 %v6691
    %6694 = vmin.xlane.f32.xlu0 %v6693
    %v6695 = vpop.xlane.xlu0 %6694
    %vm6696 = vcmp.eq.f32.partialorder %v6693, %v6695
    %v6697 = vsel %vm6696, %v6692, inf
    %6698 = vmin.xlane.f32.xlu0 %v6697
    %v6699 = vpop.xlane.xlu0 %6698
    %v6700 = vcvt.f32.s32 %v6699
    %v6701 = vcvt.f32.s32 %v6695
    %v6702 = vshll.u32 %v6701, 16
    %v6703 = vadd.s32 %v6702, %v6700
    %v6704 = vsel %vm136, %v6686, 2147483647
    %v6705 = vand.u32 %v6704, 65535
    %v6706 = vshra.s32 %v6704, 16
    %v6707 = vcvt.s32.f32 %v6705
    %v6708 = vcvt.s32.f32 %v6706
    %6709 = vmin.xlane.f32.xlu0 %v6708
    %v6710 = vpop.xlane.xlu0 %6709
    %vm6711 = vcmp.eq.f32.partialorder %v6708, %v6710
    %v6712 = vsel %vm6711, %v6707, inf
    %6713 = vmin.xlane.f32.xlu0 %v6712
    %v6714 = vpop.xlane.xlu0 %6713
    %v6715 = vcvt.f32.s32 %v6714
    %v6716 = vcvt.f32.s32 %v6710
    %v6717 = vshll.u32 %v6716, 16
    %v6718 = vadd.s32 %v6717, %v6715
    %v6719 = vsel %vm136, %v6687, 2147483647
    %v6720 = vand.u32 %v6719, 65535
    %v6721 = vshra.s32 %v6719, 16
    %v6722 = vcvt.s32.f32 %v6720
    %v6723 = vcvt.s32.f32 %v6721
    %6724 = vmin.xlane.f32.xlu0 %v6723
    %v6725 = vpop.xlane.xlu0 %6724
    %vm6726 = vcmp.eq.f32.partialorder %v6723, %v6725
    %v6727 = vsel %vm6726, %v6722, inf
    %6728 = vmin.xlane.f32.xlu0 %v6727
    %v6729 = vpop.xlane.xlu0 %6728
    %v6730 = vcvt.f32.s32 %v6729
    %v6731 = vcvt.f32.s32 %v6725
    %v6732 = vshll.u32 %v6731, 16
    %v6733 = vadd.s32 %v6732, %v6730
    %v6734 = vsel %vm136, %v6688, 2147483647
    %v6735 = vand.u32 %v6734, 65535
    %v6736 = vshra.s32 %v6734, 16
    %v6737 = vcvt.s32.f32 %v6735
    %v6738 = vcvt.s32.f32 %v6736
    %6739 = vmin.xlane.f32.xlu0 %v6738
    %v6740 = vpop.xlane.xlu0 %6739
    %vm6741 = vcmp.eq.f32.partialorder %v6738, %v6740
    %v6742 = vsel %vm6741, %v6737, inf
    %6743 = vmin.xlane.f32.xlu0 %v6742
    %v6744 = vpop.xlane.xlu0 %6743
    %v6745 = vcvt.f32.s32 %v6744
    %v6746 = vcvt.f32.s32 %v6740
    %v6747 = vshll.u32 %v6746, 16
    %v6748 = vadd.s32 %v6747, %v6745
    %vm6749 = vcmp.eq.s32.totalorder %v448, %v6703
    %vm6750 = vcmp.eq.s32.totalorder %v448, %v6718
    %vm6751 = vcmp.eq.s32.totalorder %v448, %v6733
    %vm6752 = vcmp.eq.s32.totalorder %v448, %v6748
    %v6753 = vsel %vm6749, 1, 0
    %v6754 = vsel %vm6750, 1, 0
    %v6755 = vsel %vm6751, 1, 0
    %v6756 = vsel %vm6752, 1, 0
    %v6757 = vcvt.s32.f32 %v6753
    %v6758 = vcvt.s32.f32 %v6754
    %v6759 = vcvt.s32.f32 %v6755
    %v6760 = vcvt.s32.f32 %v6756
    %v6761 = vpack.c.bf16 %v6758, %v6757
    %v6762 = vpack.c.bf16 %v6760, %v6759
    %v6764 = vsel %vm136, %v6761, 0
    %6766 = vmatprep.subr.bf16.mxu0 0
    %6767 = vmatpush1.bf16.msra.mxu0 %v5069
    %6768 = vmatprep.subr.bf16.mxu0 0
    %6769 = vmatpush1.bf16.msra.mxu0 0
    %6770 = vmatprep.subr.bf16.mxu0 0
    %6771 = vmatpush1.bf16.msra.mxu0 0
    %6772 = vmatprep.subr.bf16.mxu0 0
    %6773 = vmatpush1.bf16.msra.mxu0 0
    %6774 = vmatprep.subr.bf16.mxu0 0
    %6775 = vmatpush1.bf16.msra.mxu0 0
    %6776 = vmatprep.subr.bf16.mxu0 0
    %6777 = vmatpush1.bf16.msra.mxu0 0
    %6778 = vmatprep.subr.bf16.mxu0 0
    %6779 = vmatpush1.bf16.msra.mxu0 0
    %6780 = vmatprep.subr.bf16.mxu0 0
    %6781 = vmatpush1.bf16.msra.mxu0 0
    %6782 = vmatprep.subr.bf16.mxu0 0
    %6783 = vmatpush1.bf16.msra.mxu0 0
    %6784 = vmatprep.subr.bf16.mxu0 0
    %6785 = vmatpush1.bf16.msra.mxu0 0
    %6786 = vmatprep.subr.bf16.mxu0 0
    %6787 = vmatpush1.bf16.msra.mxu0 0
    %6788 = vmatprep.subr.bf16.mxu0 0
    %6789 = vmatpush1.bf16.msra.mxu0 0
    %6790 = vmatprep.subr.bf16.mxu0 0
    %6791 = vmatpush1.bf16.msra.mxu0 0
    %6792 = vmatprep.subr.bf16.mxu0 0
    %6793 = vmatpush1.bf16.msra.mxu0 0
    %6794 = vmatprep.subr.bf16.mxu0 0
    %6795 = vmatpush1.bf16.msra.mxu0 0
    %6796 = vmatprep.subr.bf16.mxu0 0
    %6797 = vmatpush1.bf16.msra.mxu0 0
    %6798 = vmatprep.mubr.bf16.mxu0 0
    %6799 = vmatmul.mubr.bf16.gmra.mrb[0].mxu0 %v6764
    %v6800 = vpop.f32.mrb[0].mxu0
    %v6801 = vadd.f32 0.0, %v6800
    %v6802 = vpop.f32.mrb[0].mxu0
    %v6803 = vpop.f32.mrb[0].mxu0
    %v6804 = vadd.f32 0.0, %v6803
    %v6805 = vpop.f32.mrb[0].mxu0
    %6806 = vdwg.mxu0
    %v6808 = vsel %vm136, %v6762, 0
    %6810 = vmatprep.subr.bf16.mxu0 0
    %6811 = vmatpush1.bf16.msra.mxu0 %v5070
    %6812 = vmatprep.subr.bf16.mxu0 0
    %6813 = vmatpush1.bf16.msra.mxu0 0
    %6814 = vmatprep.subr.bf16.mxu0 0
    %6815 = vmatpush1.bf16.msra.mxu0 0
    %6816 = vmatprep.subr.bf16.mxu0 0
    %6817 = vmatpush1.bf16.msra.mxu0 0
    %6818 = vmatprep.subr.bf16.mxu0 0
    %6819 = vmatpush1.bf16.msra.mxu0 0
    %6820 = vmatprep.subr.bf16.mxu0 0
    %6821 = vmatpush1.bf16.msra.mxu0 0
    %6822 = vmatprep.subr.bf16.mxu0 0
    %6823 = vmatpush1.bf16.msra.mxu0 0
    %6824 = vmatprep.subr.bf16.mxu0 0
    %6825 = vmatpush1.bf16.msra.mxu0 0
    %6826 = vmatprep.subr.bf16.mxu0 0
    %6827 = vmatpush1.bf16.msra.mxu0 0
    %6828 = vmatprep.subr.bf16.mxu0 0
    %6829 = vmatpush1.bf16.msra.mxu0 0
    %6830 = vmatprep.subr.bf16.mxu0 0
    %6831 = vmatpush1.bf16.msra.mxu0 0
    %6832 = vmatprep.subr.bf16.mxu0 0
    %6833 = vmatpush1.bf16.msra.mxu0 0
    %6834 = vmatprep.subr.bf16.mxu0 0
    %6835 = vmatpush1.bf16.msra.mxu0 0
    %6836 = vmatprep.subr.bf16.mxu0 0
    %6837 = vmatpush1.bf16.msra.mxu0 0
    %6838 = vmatprep.subr.bf16.mxu0 0
    %6839 = vmatpush1.bf16.msra.mxu0 0
    %6840 = vmatprep.subr.bf16.mxu0 0
    %6841 = vmatpush1.bf16.msra.mxu0 0
    %6842 = vmatprep.mubr.bf16.mxu0 0
    %6843 = vmatmul.mubr.bf16.gmra.mrb[0].mxu0 %v6808
    %v6844 = vpop.f32.mrb[0].mxu0
    %v6845 = vadd.f32 0.0, %v6844
    %v6846 = vpop.f32.mrb[0].mxu0
    %v6847 = vpop.f32.mrb[0].mxu0
    %v6848 = vadd.f32 0.0, %v6847
    %v6849 = vpop.f32.mrb[0].mxu0
    %6850 = vdwg.mxu0
    %v6851 = vmax.f32 %v6661, %v6801
    %v6852 = vmax.f32 %v6662, %v6804
    %v6853 = vmax.f32 %v6663, %v6845
    %v6854 = vmax.f32 %v6664, %v6848
    %v6855 = vsel %vm6749, -1e+30, %v6665
    %v6856 = vsel %vm6750, -1e+30, %v6666
    %v6857 = vsel %vm6751, -1e+30, %v6667
    %v6858 = vsel %vm6752, -1e+30, %v6668
    %v6859 = vsel %vm136, %v6855, -inf
    %6860 = vmax.xlane.f32.xlu0 %v6859
    %v6861 = vpop.xlane.xlu0 %6860
    %v6862 = vsel %vm136, %v6856, -inf
    %6863 = vmax.xlane.f32.xlu0 %v6862
    %v6864 = vpop.xlane.xlu0 %6863
    %v6865 = vsel %vm136, %v6857, -inf
    %6866 = vmax.xlane.f32.xlu0 %v6865
    %v6867 = vpop.xlane.xlu0 %6866
    %v6868 = vsel %vm136, %v6858, -inf
    %6869 = vmax.xlane.f32.xlu0 %v6868
    %v6870 = vpop.xlane.xlu0 %6869
    %vm6871 = vcmp.eq.f32.partialorder %v6855, %v6861
    %vm6872 = vcmp.eq.f32.partialorder %v6856, %v6864
    %vm6873 = vcmp.eq.f32.partialorder %v6857, %v6867
    %vm6874 = vcmp.eq.f32.partialorder %v6858, %v6870
    %v6875 = vsel %vm6871, %v448, 16
    %v6876 = vsel %vm6872, %v448, 16
    %v6877 = vsel %vm6873, %v448, 16
    %v6878 = vsel %vm6874, %v448, 16
    %v6879 = vsel %vm136, %v6875, 2147483647
    %v6880 = vand.u32 %v6879, 65535
    %v6881 = vshra.s32 %v6879, 16
    %v6882 = vcvt.s32.f32 %v6880
    %v6883 = vcvt.s32.f32 %v6881
    %6884 = vmin.xlane.f32.xlu0 %v6883
    %v6885 = vpop.xlane.xlu0 %6884
    %vm6886 = vcmp.eq.f32.partialorder %v6883, %v6885
    %v6887 = vsel %vm6886, %v6882, inf
    %6888 = vmin.xlane.f32.xlu0 %v6887
    %v6889 = vpop.xlane.xlu0 %6888
    %v6890 = vcvt.f32.s32 %v6889
    %v6891 = vcvt.f32.s32 %v6885
    %v6892 = vshll.u32 %v6891, 16
    %v6893 = vadd.s32 %v6892, %v6890
    %v6894 = vsel %vm136, %v6876, 2147483647
    %v6895 = vand.u32 %v6894, 65535
    %v6896 = vshra.s32 %v6894, 16
    %v6897 = vcvt.s32.f32 %v6895
    %v6898 = vcvt.s32.f32 %v6896
    %6899 = vmin.xlane.f32.xlu0 %v6898
    %v6900 = vpop.xlane.xlu0 %6899
    %vm6901 = vcmp.eq.f32.partialorder %v6898, %v6900
    %v6902 = vsel %vm6901, %v6897, inf
    %6903 = vmin.xlane.f32.xlu0 %v6902
    %v6904 = vpop.xlane.xlu0 %6903
    %v6905 = vcvt.f32.s32 %v6904
    %v6906 = vcvt.f32.s32 %v6900
    %v6907 = vshll.u32 %v6906, 16
    %v6908 = vadd.s32 %v6907, %v6905
    %v6909 = vsel %vm136, %v6877, 2147483647
    %v6910 = vand.u32 %v6909, 65535
    %v6911 = vshra.s32 %v6909, 16
    %v6912 = vcvt.s32.f32 %v6910
    %v6913 = vcvt.s32.f32 %v6911
    %6914 = vmin.xlane.f32.xlu0 %v6913
    %v6915 = vpop.xlane.xlu0 %6914
    %vm6916 = vcmp.eq.f32.partialorder %v6913, %v6915
    %v6917 = vsel %vm6916, %v6912, inf
    %6918 = vmin.xlane.f32.xlu0 %v6917
    %v6919 = vpop.xlane.xlu0 %6918
    %v6920 = vcvt.f32.s32 %v6919
    %v6921 = vcvt.f32.s32 %v6915
    %v6922 = vshll.u32 %v6921, 16
    %v6923 = vadd.s32 %v6922, %v6920
    %v6924 = vsel %vm136, %v6878, 2147483647
    %v6925 = vand.u32 %v6924, 65535
    %v6926 = vshra.s32 %v6924, 16
    %v6927 = vcvt.s32.f32 %v6925
    %v6928 = vcvt.s32.f32 %v6926
    %6929 = vmin.xlane.f32.xlu0 %v6928
    %v6930 = vpop.xlane.xlu0 %6929
    %vm6931 = vcmp.eq.f32.partialorder %v6928, %v6930
    %v6932 = vsel %vm6931, %v6927, inf
    %6933 = vmin.xlane.f32.xlu0 %v6932
    %v6934 = vpop.xlane.xlu0 %6933
    %v6935 = vcvt.f32.s32 %v6934
    %v6936 = vcvt.f32.s32 %v6930
    %v6937 = vshll.u32 %v6936, 16
    %v6938 = vadd.s32 %v6937, %v6935
    %vm6939 = vcmp.eq.s32.totalorder %v448, %v6893
    %vm6940 = vcmp.eq.s32.totalorder %v448, %v6908
    %vm6941 = vcmp.eq.s32.totalorder %v448, %v6923
    %vm6942 = vcmp.eq.s32.totalorder %v448, %v6938
    %v6943 = vsel %vm6939, 1, 0
    %v6944 = vsel %vm6940, 1, 0
    %v6945 = vsel %vm6941, 1, 0
    %v6946 = vsel %vm6942, 1, 0
    %v6947 = vcvt.s32.f32 %v6943
    %v6948 = vcvt.s32.f32 %v6944
    %v6949 = vcvt.s32.f32 %v6945
    %v6950 = vcvt.s32.f32 %v6946
    %v6951 = vpack.c.bf16 %v6948, %v6947
    %v6952 = vpack.c.bf16 %v6950, %v6949
    %v6954 = vsel %vm136, %v6951, 0
    %6956 = vmatprep.subr.bf16.mxu0 0
    %6957 = vmatpush1.bf16.msra.mxu0 %v5069
    %6958 = vmatprep.subr.bf16.mxu0 0
    %6959 = vmatpush1.bf16.msra.mxu0 0
    %6960 = vmatprep.subr.bf16.mxu0 0
    %6961 = vmatpush1.bf16.msra.mxu0 0
    %6962 = vmatprep.subr.bf16.mxu0 0
    %6963 = vmatpush1.bf16.msra.mxu0 0
    %6964 = vmatprep.subr.bf16.mxu0 0
    %6965 = vmatpush1.bf16.msra.mxu0 0
    %6966 = vmatprep.subr.bf16.mxu0 0
    %6967 = vmatpush1.bf16.msra.mxu0 0
    %6968 = vmatprep.subr.bf16.mxu0 0
    %6969 = vmatpush1.bf16.msra.mxu0 0
    %6970 = vmatprep.subr.bf16.mxu0 0
    %6971 = vmatpush1.bf16.msra.mxu0 0
    %6972 = vmatprep.subr.bf16.mxu0 0
    %6973 = vmatpush1.bf16.msra.mxu0 0
    %6974 = vmatprep.subr.bf16.mxu0 0
    %6975 = vmatpush1.bf16.msra.mxu0 0
    %6976 = vmatprep.subr.bf16.mxu0 0
    %6977 = vmatpush1.bf16.msra.mxu0 0
    %6978 = vmatprep.subr.bf16.mxu0 0
    %6979 = vmatpush1.bf16.msra.mxu0 0
    %6980 = vmatprep.subr.bf16.mxu0 0
    %6981 = vmatpush1.bf16.msra.mxu0 0
    %6982 = vmatprep.subr.bf16.mxu0 0
    %6983 = vmatpush1.bf16.msra.mxu0 0
    %6984 = vmatprep.subr.bf16.mxu0 0
    %6985 = vmatpush1.bf16.msra.mxu0 0
    %6986 = vmatprep.subr.bf16.mxu0 0
    %6987 = vmatpush1.bf16.msra.mxu0 0
    %6988 = vmatprep.mubr.bf16.mxu0 0
    %6989 = vmatmul.mubr.bf16.gmra.mrb[0].mxu0 %v6954
    %v6990 = vpop.f32.mrb[0].mxu0
    %v6991 = vadd.f32 0.0, %v6990
    %v6992 = vpop.f32.mrb[0].mxu0
    %v6993 = vpop.f32.mrb[0].mxu0
    %v6994 = vadd.f32 0.0, %v6993
    %v6995 = vpop.f32.mrb[0].mxu0
    %6996 = vdwg.mxu0
    %v6998 = vsel %vm136, %v6952, 0
    %7000 = vmatprep.subr.bf16.mxu0 0
    %7001 = vmatpush1.bf16.msra.mxu0 %v5070
    %7002 = vmatprep.subr.bf16.mxu0 0
    %7003 = vmatpush1.bf16.msra.mxu0 0
    %7004 = vmatprep.subr.bf16.mxu0 0
    %7005 = vmatpush1.bf16.msra.mxu0 0
    %7006 = vmatprep.subr.bf16.mxu0 0
    %7007 = vmatpush1.bf16.msra.mxu0 0
    %7008 = vmatprep.subr.bf16.mxu0 0
    %7009 = vmatpush1.bf16.msra.mxu0 0
    %7010 = vmatprep.subr.bf16.mxu0 0
    %7011 = vmatpush1.bf16.msra.mxu0 0
    %7012 = vmatprep.subr.bf16.mxu0 0
    %7013 = vmatpush1.bf16.msra.mxu0 0
    %7014 = vmatprep.subr.bf16.mxu0 0
    %7015 = vmatpush1.bf16.msra.mxu0 0
    %7016 = vmatprep.subr.bf16.mxu0 0
    %7017 = vmatpush1.bf16.msra.mxu0 0
    %7018 = vmatprep.subr.bf16.mxu0 0
    %7019 = vmatpush1.bf16.msra.mxu0 0
    %7020 = vmatprep.subr.bf16.mxu0 0
    %7021 = vmatpush1.bf16.msra.mxu0 0
    %7022 = vmatprep.subr.bf16.mxu0 0
    %7023 = vmatpush1.bf16.msra.mxu0 0
    %7024 = vmatprep.subr.bf16.mxu0 0
    %7025 = vmatpush1.bf16.msra.mxu0 0
    %7026 = vmatprep.subr.bf16.mxu0 0
    %7027 = vmatpush1.bf16.msra.mxu0 0
    %7028 = vmatprep.subr.bf16.mxu0 0
    %7029 = vmatpush1.bf16.msra.mxu0 0
    %7030 = vmatprep.subr.bf16.mxu0 0
    %7031 = vmatpush1.bf16.msra.mxu0 0
    %7032 = vmatprep.mubr.bf16.mxu0 0
    %7033 = vmatmul.mubr.bf16.gmra.mrb[0].mxu0 %v6998
    %v7034 = vpop.f32.mrb[0].mxu0
    %v7035 = vadd.f32 0.0, %v7034
    %v7036 = vpop.f32.mrb[0].mxu0
    %v7037 = vpop.f32.mrb[0].mxu0
    %v7038 = vadd.f32 0.0, %v7037
    %v7039 = vpop.f32.mrb[0].mxu0
    %7040 = vdwg.mxu0
    %v7041 = vmax.f32 %v6851, %v6991
    %v7042 = vmax.f32 %v6852, %v6994
    %v7043 = vmax.f32 %v6853, %v7035
    %v7044 = vmax.f32 %v6854, %v7038
    %v7045 = vsel %vm6939, -1e+30, %v6855
    %v7046 = vsel %vm6940, -1e+30, %v6856
    %v7047 = vsel %vm6941, -1e+30, %v6857
    %v7048 = vsel %vm6942, -1e+30, %v6858
    %v7049 = vsel %vm136, %v7045, -inf
    %7050 = vmax.xlane.f32.xlu0 %v7049
    %v7051 = vpop.xlane.xlu0 %7050
    %v7052 = vsel %vm136, %v7046, -inf
    %7053 = vmax.xlane.f32.xlu0 %v7052
    %v7054 = vpop.xlane.xlu0 %7053
    %v7055 = vsel %vm136, %v7047, -inf
    %7056 = vmax.xlane.f32.xlu0 %v7055
    %v7057 = vpop.xlane.xlu0 %7056
    %v7058 = vsel %vm136, %v7048, -inf
    %7059 = vmax.xlane.f32.xlu0 %v7058
    %v7060 = vpop.xlane.xlu0 %7059
    %vm7061 = vcmp.eq.f32.partialorder %v7045, %v7051
    %vm7062 = vcmp.eq.f32.partialorder %v7046, %v7054
    %vm7063 = vcmp.eq.f32.partialorder %v7047, %v7057
    %vm7064 = vcmp.eq.f32.partialorder %v7048, %v7060
    %v7065 = vsel %vm7061, %v448, 16
    %v7066 = vsel %vm7062, %v448, 16
    %v7067 = vsel %vm7063, %v448, 16
    %v7068 = vsel %vm7064, %v448, 16
    %v7069 = vsel %vm136, %v7065, 2147483647
    %v7070 = vand.u32 %v7069, 65535
    %v7071 = vshra.s32 %v7069, 16
    %v7072 = vcvt.s32.f32 %v7070
    %v7073 = vcvt.s32.f32 %v7071
    %7074 = vmin.xlane.f32.xlu0 %v7073
    %v7075 = vpop.xlane.xlu0 %7074
    %vm7076 = vcmp.eq.f32.partialorder %v7073, %v7075
    %v7077 = vsel %vm7076, %v7072, inf
    %7078 = vmin.xlane.f32.xlu0 %v7077
    %v7079 = vpop.xlane.xlu0 %7078
    %v7080 = vcvt.f32.s32 %v7079
    %v7081 = vcvt.f32.s32 %v7075
    %v7082 = vshll.u32 %v7081, 16
    %v7083 = vadd.s32 %v7082, %v7080
    %v7084 = vsel %vm136, %v7066, 2147483647
    %v7085 = vand.u32 %v7084, 65535
    %v7086 = vshra.s32 %v7084, 16
    %v7087 = vcvt.s32.f32 %v7085
    %v7088 = vcvt.s32.f32 %v7086
    %7089 = vmin.xlane.f32.xlu0 %v7088
    %v7090 = vpop.xlane.xlu0 %7089
    %vm7091 = vcmp.eq.f32.partialorder %v7088, %v7090
    %v7092 = vsel %vm7091, %v7087, inf
    %7093 = vmin.xlane.f32.xlu0 %v7092
    %v7094 = vpop.xlane.xlu0 %7093
    %v7095 = vcvt.f32.s32 %v7094
    %v7096 = vcvt.f32.s32 %v7090
    %v7097 = vshll.u32 %v7096, 16
    %v7098 = vadd.s32 %v7097, %v7095
    %v7099 = vsel %vm136, %v7067, 2147483647
    %v7100 = vand.u32 %v7099, 65535
    %v7101 = vshra.s32 %v7099, 16
    %v7102 = vcvt.s32.f32 %v7100
    %v7103 = vcvt.s32.f32 %v7101
    %7104 = vmin.xlane.f32.xlu0 %v7103
    %v7105 = vpop.xlane.xlu0 %7104
    %vm7106 = vcmp.eq.f32.partialorder %v7103, %v7105
    %v7107 = vsel %vm7106, %v7102, inf
    %7108 = vmin.xlane.f32.xlu0 %v7107
    %v7109 = vpop.xlane.xlu0 %7108
    %v7110 = vcvt.f32.s32 %v7109
    %v7111 = vcvt.f32.s32 %v7105
    %v7112 = vshll.u32 %v7111, 16
    %v7113 = vadd.s32 %v7112, %v7110
    %v7114 = vsel %vm136, %v7068, 2147483647
    %v7115 = vand.u32 %v7114, 65535
    %v7116 = vshra.s32 %v7114, 16
    %v7117 = vcvt.s32.f32 %v7115
    %v7118 = vcvt.s32.f32 %v7116
    %7119 = vmin.xlane.f32.xlu0 %v7118
    %v7120 = vpop.xlane.xlu0 %7119
    %vm7121 = vcmp.eq.f32.partialorder %v7118, %v7120
    %v7122 = vsel %vm7121, %v7117, inf
    %7123 = vmin.xlane.f32.xlu0 %v7122
    %v7124 = vpop.xlane.xlu0 %7123
    %v7125 = vcvt.f32.s32 %v7124
    %v7126 = vcvt.f32.s32 %v7120
    %v7127 = vshll.u32 %v7126, 16
    %v7128 = vadd.s32 %v7127, %v7125
    %vm7129 = vcmp.eq.s32.totalorder %v448, %v7083
    %vm7130 = vcmp.eq.s32.totalorder %v448, %v7098
    %vm7131 = vcmp.eq.s32.totalorder %v448, %v7113
    %vm7132 = vcmp.eq.s32.totalorder %v448, %v7128
    %v7133 = vsel %vm7129, 1, 0
    %v7134 = vsel %vm7130, 1, 0
    %v7135 = vsel %vm7131, 1, 0
    %v7136 = vsel %vm7132, 1, 0
    %v7137 = vcvt.s32.f32 %v7133
    %v7138 = vcvt.s32.f32 %v7134
    %v7139 = vcvt.s32.f32 %v7135
    %v7140 = vcvt.s32.f32 %v7136
    %v7141 = vpack.c.bf16 %v7138, %v7137
    %v7142 = vpack.c.bf16 %v7140, %v7139
    %v7144 = vsel %vm136, %v7141, 0
    %7146 = vmatprep.subr.bf16.mxu0 0
    %7147 = vmatpush1.bf16.msra.mxu0 %v5069
    %7148 = vmatprep.subr.bf16.mxu0 0
    %7149 = vmatpush1.bf16.msra.mxu0 0
    %7150 = vmatprep.subr.bf16.mxu0 0
    %7151 = vmatpush1.bf16.msra.mxu0 0
    %7152 = vmatprep.subr.bf16.mxu0 0
    %7153 = vmatpush1.bf16.msra.mxu0 0
    %7154 = vmatprep.subr.bf16.mxu0 0
    %7155 = vmatpush1.bf16.msra.mxu0 0
    %7156 = vmatprep.subr.bf16.mxu0 0
    %7157 = vmatpush1.bf16.msra.mxu0 0
    %7158 = vmatprep.subr.bf16.mxu0 0
    %7159 = vmatpush1.bf16.msra.mxu0 0
    %7160 = vmatprep.subr.bf16.mxu0 0
    %7161 = vmatpush1.bf16.msra.mxu0 0
    %7162 = vmatprep.subr.bf16.mxu0 0
    %7163 = vmatpush1.bf16.msra.mxu0 0
    %7164 = vmatprep.subr.bf16.mxu0 0
    %7165 = vmatpush1.bf16.msra.mxu0 0
    %7166 = vmatprep.subr.bf16.mxu0 0
    %7167 = vmatpush1.bf16.msra.mxu0 0
    %7168 = vmatprep.subr.bf16.mxu0 0
    %7169 = vmatpush1.bf16.msra.mxu0 0
    %7170 = vmatprep.subr.bf16.mxu0 0
    %7171 = vmatpush1.bf16.msra.mxu0 0
    %7172 = vmatprep.subr.bf16.mxu0 0
    %7173 = vmatpush1.bf16.msra.mxu0 0
    %7174 = vmatprep.subr.bf16.mxu0 0
    %7175 = vmatpush1.bf16.msra.mxu0 0
    %7176 = vmatprep.subr.bf16.mxu0 0
    %7177 = vmatpush1.bf16.msra.mxu0 0
    %7178 = vmatprep.mubr.bf16.mxu0 0
    %7179 = vmatmul.mubr.bf16.gmra.mrb[0].mxu0 %v7144
    %v7180 = vpop.f32.mrb[0].mxu0
    %v7181 = vadd.f32 0.0, %v7180
    %v7182 = vpop.f32.mrb[0].mxu0
    %v7183 = vpop.f32.mrb[0].mxu0
    %v7184 = vadd.f32 0.0, %v7183
    %v7185 = vpop.f32.mrb[0].mxu0
    %7186 = vdwg.mxu0
    %v7188 = vsel %vm136, %v7142, 0
    %7190 = vmatprep.subr.bf16.mxu0 0
    %7191 = vmatpush1.bf16.msra.mxu0 %v5070
    %7192 = vmatprep.subr.bf16.mxu0 0
    %7193 = vmatpush1.bf16.msra.mxu0 0
    %7194 = vmatprep.subr.bf16.mxu0 0
    %7195 = vmatpush1.bf16.msra.mxu0 0
    %7196 = vmatprep.subr.bf16.mxu0 0
    %7197 = vmatpush1.bf16.msra.mxu0 0
    %7198 = vmatprep.subr.bf16.mxu0 0
    %7199 = vmatpush1.bf16.msra.mxu0 0
    %7200 = vmatprep.subr.bf16.mxu0 0
    %7201 = vmatpush1.bf16.msra.mxu0 0
    %7202 = vmatprep.subr.bf16.mxu0 0
    %7203 = vmatpush1.bf16.msra.mxu0 0
    %7204 = vmatprep.subr.bf16.mxu0 0
    %7205 = vmatpush1.bf16.msra.mxu0 0
    %7206 = vmatprep.subr.bf16.mxu0 0
    %7207 = vmatpush1.bf16.msra.mxu0 0
    %7208 = vmatprep.subr.bf16.mxu0 0
    %7209 = vmatpush1.bf16.msra.mxu0 0
    %7210 = vmatprep.subr.bf16.mxu0 0
    %7211 = vmatpush1.bf16.msra.mxu0 0
    %7212 = vmatprep.subr.bf16.mxu0 0
    %7213 = vmatpush1.bf16.msra.mxu0 0
    %7214 = vmatprep.subr.bf16.mxu0 0
    %7215 = vmatpush1.bf16.msra.mxu0 0
    %7216 = vmatprep.subr.bf16.mxu0 0
    %7217 = vmatpush1.bf16.msra.mxu0 0
    %7218 = vmatprep.subr.bf16.mxu0 0
    %7219 = vmatpush1.bf16.msra.mxu0 0
    %7220 = vmatprep.subr.bf16.mxu0 0
    %7221 = vmatpush1.bf16.msra.mxu0 0
    %7222 = vmatprep.mubr.bf16.mxu0 0
    %7223 = vmatmul.mubr.bf16.gmra.mrb[0].mxu0 %v7188
    %v7224 = vpop.f32.mrb[0].mxu0
    %v7225 = vadd.f32 0.0, %v7224
    %v7226 = vpop.f32.mrb[0].mxu0
    %v7227 = vpop.f32.mrb[0].mxu0
    %v7228 = vadd.f32 0.0, %v7227
    %v7229 = vpop.f32.mrb[0].mxu0
    %7230 = vdwg.mxu0
    %v7231 = vmax.f32 %v7041, %v7181
    %v7232 = vmax.f32 %v7042, %v7184
    %v7233 = vmax.f32 %v7043, %v7225
    %v7234 = vmax.f32 %v7044, %v7228
    %7239 = vrot.lane.b32.xlu0 %v5079, 96
    %v7240 = vpop.permute.xlu0 %7239
    %7241 = vrot.lane.b32.xlu0 %v5080, 96
    %v7242 = vpop.permute.xlu0 %7241
    %7243 = vrot.lane.b32.xlu0 %v5081, 96
    %v7244 = vpop.permute.xlu0 %7243
    %7245 = vrot.lane.b32.xlu0 %v5082, 96
    %v7246 = vpop.permute.xlu0 %7245
    %v7251 = vadd.f32 %v7231, %v7240
    %v7252 = vadd.f32 %v7232, %v7242
    %v7253 = vadd.f32 %v7233, %v7244
    %v7254 = vadd.f32 %v7234, %v7246
    %vm7255 = vcmp.gt.f32.partialorder %v7251, 0.0
    %vm7256 = vcmp.gt.f32.partialorder %v7252, 0.0
    %vm7257 = vcmp.gt.f32.partialorder %v7253, 0.0
    %vm7258 = vcmp.gt.f32.partialorder %v7254, 0.0
    %v7259 = vmul.f32 %v7251, 0.2
    %v7260 = vmul.f32 %v7252, 0.2
    %v7261 = vmul.f32 %v7253, 0.2
    %v7262 = vmul.f32 %v7254, 0.2
    %v7263 = vsel %vm7255, %v7251, %v7259
    %v7264 = vsel %vm7256, %v7252, %v7260
    %v7265 = vsel %vm7257, %v7253, %v7261
    %v7266 = vsel %vm7258, %v7254, %v7262
    %7267 = vst.msk [vmem:[#allocation2] sm:$0xff] %vm75, %v7263
    %7268 = vst.msk [vmem:[#allocation2 + $0x8] sm:$0xff] %vm75, %v7264
    %7269 = vst.msk [vmem:[#allocation2 + $0x10] sm:$0xff] %vm75, %v7265
    %7270 = vst.msk [vmem:[#allocation2 + $0x18] sm:$0xff] %vm75, %v7266
    // Predicated region
    $region26: #{graph_attention_network.1} parent=1 // pred_check
      _
    $region27: #{graph_attention_network.1} parent=1 // pred_check_branch
      %7272 = sbr.rel (0) target = $region29
    $region28: #{graph_attention_network.1} parent=1 // pred_region
      %s7274 = ssub.s32 512, 512
      %7275 = vsyncadd [#allocation3], %s7274
      %s7276 = sshll.u32 [#allocation2], 4
      %s7277 = int_to_ptr.vmem [resolvable:$true] %s7276
      %7282 = dma.vmem_to_hbm [thread:$0]  %s7277, 512, %s6, [#allocation3], 128, 128, 8
    $region29: #{graph_attention_network.1} parent=1 // pred_fallthru
      _
    // Predicated region
    $region30: #{graph_attention_network.1} parent=1 // pred_check
      _
    $region31: #{graph_attention_network.1} parent=1 // pred_check_branch
      %7284 = sbr.rel (0) target = $region33
    $region32: #{graph_attention_network.1} parent=1 // pred_region
      %7285 = dma.done [#allocation3], 512
    $region33: #{graph_attention_network.1} parent=1 // pred_fallthru
      _
    %7286 = vsyncpa [#allocation3], 1

</llo_original>
